<compile_context>
chip_gen: v5e
topology: v5e:2x2
jax: 0.10.0
libtpu: 0.0.40
codegen_flags: <defaults>
</compile_context>

<pallas_src>
import jax
import jax.numpy as jnp
from jax import lax
from jax.experimental import pallas as pl
from jax.experimental.pallas import tpu as pltpu

EPS = 1e-5        # nn.BatchNorm2d default eps
SLOPE = 0.01      # nn.LeakyReLU default negative_slope
VMEM_LIMIT = 48 * 1024 * 1024


def _lrelu(x):
    return jnp.where(x >= 0, x, SLOPE * x)


def _sigmoid(x):
    return 1.0 / (1.0 + jnp.exp(-x))


# ---------------------------------------------------------------------------
# pass 1: 1x1 conv (channel matmul) + BN1 partial statistics
# ---------------------------------------------------------------------------
def conv1_kernel(x_ref, w1_ref, y_ref, st_ref):
    y = jnp.dot(x_ref[0].astype(jnp.bfloat16), w1_ref[...],
                preferred_element_type=jnp.float32)            # (T, P) f32
    y_ref[0] = y
    st_ref[0, 0, 0:1, :] = jnp.sum(y, axis=0, keepdims=True)
    st_ref[0, 0, 1:2, :] = jnp.sum(y * y, axis=0, keepdims=True)


# ---------------------------------------------------------------------------
# pass 2: BN1 + LeakyReLU epilogue, 3x3 conv as a single im2col matmul,
#         BN2 partial statistics.  One image per grid step.
# ---------------------------------------------------------------------------
def conv2_kernel(y1_ref, a1_ref, b1_ref, w2_ref, y_ref, st_ref, col_ref):
    _, H, W, P = y1_ref.shape
    h = _lrelu(y1_ref[0] * a1_ref[0] + b1_ref[0])              # (H, W, P) f32

    # Zero halo for padding=1 (tiny (H+2)x(W+2) tile; concatenate keeps the
    # lowering simple and robust -- the fused im2col matmul below is the win).
    zr = jnp.zeros((1, W, P), jnp.float32)
    hp = jnp.concatenate([zr, h, zr], axis=0)                  # (H+2, W, P)
    zc = jnp.zeros((H + 2, 1, P), jnp.float32)
    hp = jnp.concatenate([zc, hp, zc], axis=1)                 # (H+2, W+2, P)

    # im2col: pack the 9 shifted windows along the lane axis (bf16, 128-aligned
    # stores into a VMEM scratch) and do ONE MXU matmul with K = 9*P.
    for k in range(9):
        dy, dx = divmod(k, 3)
        col_ref[:, k * P:(k + 1) * P] = (
            hp[dy:dy + H, dx:dx + W, :].reshape(H * W, P).astype(jnp.bfloat16))
    y = jnp.dot(col_ref[...], w2_ref[...],
                preferred_element_type=jnp.float32)            # (H*W, P) f32
    y_ref[0] = y
    st_ref[0, 0:1, :] = jnp.sum(y, axis=0, keepdims=True)
    st_ref[0, 1:2, :] = jnp.sum(y * y, axis=0, keepdims=True)


# ---------------------------------------------------------------------------
# pass 3: BN2 + LeakyReLU epilogue, 1x1 conv back to Cin, BN3/SE partial sums
# ---------------------------------------------------------------------------
def conv3_kernel(y2_ref, a2_ref, b2_ref, w3_ref, y_ref, st_ref):
    h = _lrelu(y2_ref[0] * a2_ref[0] + b2_ref[0])              # (T, P) f32
    y = jnp.dot(h.astype(jnp.bfloat16), w3_ref[...],
                preferred_element_type=jnp.float32)            # (T, Cin) f32
    y_ref[0] = y
    st_ref[0, 0, 0:1, :] = jnp.sum(y, axis=0, keepdims=True)
    st_ref[0, 0, 1:2, :] = jnp.sum(y * y, axis=0, keepdims=True)


# ---------------------------------------------------------------------------
# pass 4: SE excitation MLP + channel scaling + residual + final LeakyReLU
# ---------------------------------------------------------------------------
def se_out_kernel(y3_ref, x_ref, a3_ref, b3_ref, pooled_ref,
                  fc1w_ref, fc1b_ref, fc2w_ref, fc2b_ref, o_ref):
    # Squeeze-excitation MLP on the per-sample pooled (post-BN3) vector.
    # The (1 x C) matmuls are tiny -> keep f32; recomputed per pixel tile
    # (negligible vs. the elementwise epilogue).
    z = jnp.dot(pooled_ref[0], fc1w_ref[...],
                preferred_element_type=jnp.float32) + fc1b_ref[...]   # (1, r)
    z = _lrelu(z)
    s = jnp.dot(z, fc2w_ref[...],
                preferred_element_type=jnp.float32) + fc2b_ref[...]   # (1, Cin)
    s = _sigmoid(s)
    y3n = y3_ref[0] * a3_ref[0] + b3_ref[0]                    # BN3, (T, Cin)
    o_ref[0] = _lrelu(s * y3n + x_ref[0])


# ---------------------------------------------------------------------------
# wrapper
# ---------------------------------------------------------------------------
def _pick_tile(hw):
    """Largest divisor of hw that is a multiple of 8 and <= 1024."""
    for t in range(min(hw, 1024), 7, -1):
        if hw % t == 0 and t % 8 == 0:
            return t
    return hw


def _fold_bn(stats, count, gamma, beta):
    """Fold partial (sum, sum-of-squares) stats + gamma/beta into a per-channel
    scale & shift (training-mode BatchNorm, biased variance, f32 accumulate)."""
    tot = jnp.sum(stats.reshape(-1, 2, stats.shape[-1]), axis=0)   # (2, C)
    mean = tot[0] / count
    var = tot[1] / count - mean * mean
    scale = gamma * lax.rsqrt(var + EPS)
    shift = beta - mean * scale
    return scale[None, :], shift[None, :]                          # (1, C)


def se_bottleneck_pallas(x, params):
    """SEBottleneck forward (stride=1, downsample=None).  x is NHWC f32."""
    N, H, W, Cin = x.shape
    P = params["w1"].shape[1]
    r = params["w_fc1"].shape[1]
    assert Cin % 128 == 0 and P % 128 == 0, "pad channels to multiples of 128"
    assert params["w_fc1"].shape[0] == Cin   # the module needs inplanes == planes
    HW = H * W
    T = _pick_tile(HW)
    nT = HW // T

    x2 = x.reshape(N, HW, Cin).astype(jnp.float32)

    def cparams(sem):
        return pltpu.CompilerParams(dimension_semantics=sem,
                                    vmem_limit_bytes=VMEM_LIMIT)

    # ---- pass 1: conv1 + BN1 partial stats --------------------------------
    y1, st1 = pl.pallas_call(
        conv1_kernel,
        grid=(N, nT),
        in_specs=[pl.BlockSpec((1, T, Cin), lambda n, t: (n, t, 0)),
                  pl.BlockSpec((Cin, P), lambda n, t: (0, 0))],
        out_specs=(pl.BlockSpec((1, T, P), lambda n, t: (n, t, 0)),
                   pl.BlockSpec((1, 1, 2, P), lambda n, t: (n, t, 0, 0))),
        out_shape=(jax.ShapeDtypeStruct((N, HW, P), jnp.float32),
                   jax.ShapeDtypeStruct((N, nT, 2, P), jnp.float32)),
        compiler_params=cparams(("parallel", "parallel")),
    )(x2, params["w1"])
    a1, b1 = _fold_bn(st1, N * HW, params["g1"], params["b1"])

    # ---- pass 2: 3x3 conv (fused im2col matmul) + BN2 partial stats -------
    y2, st2 = pl.pallas_call(
        conv2_kernel,
        grid=(N,),
        in_specs=[pl.BlockSpec((1, H, W, P), lambda n: (n, 0, 0, 0)),
                  pl.BlockSpec((1, P), lambda n: (0, 0)),
                  pl.BlockSpec((1, P), lambda n: (0, 0)),
                  pl.BlockSpec((9 * P, P), lambda n: (0, 0))],
        out_specs=(pl.BlockSpec((1, HW, P), lambda n: (n, 0, 0)),
                   pl.BlockSpec((1, 2, P), lambda n: (n, 0, 0))),
        out_shape=(jax.ShapeDtypeStruct((N, HW, P), jnp.float32),
                   jax.ShapeDtypeStruct((N, 2, P), jnp.float32)),
        scratch_shapes=[pltpu.VMEM((HW, 9 * P), jnp.bfloat16)],
        compiler_params=cparams(("parallel",)),
    )(y1.reshape(N, H, W, P), a1, b1, params["w2"])
    a2, b2 = _fold_bn(st2, N * HW, params["g2"], params["b2"])

    # ---- pass 3: conv3 + BN3 / SE-pool partial stats -----------------------
    y3, st3 = pl.pallas_call(
        conv3_kernel,
        grid=(N, nT),
        in_specs=[pl.BlockSpec((1, T, P), lambda n, t: (n, t, 0)),
                  pl.BlockSpec((1, P), lambda n, t: (0, 0)),
                  pl.BlockSpec((1, P), lambda n, t: (0, 0)),
                  pl.BlockSpec((P, Cin), lambda n, t: (0, 0))],
        out_specs=(pl.BlockSpec((1, T, Cin), lambda n, t: (n, t, 0)),
                   pl.BlockSpec((1, 1, 2, Cin), lambda n, t: (n, t, 0, 0))),
        out_shape=(jax.ShapeDtypeStruct((N, HW, Cin), jnp.float32),
                   jax.ShapeDtypeStruct((N, nT, 2, Cin), jnp.float32)),
        compiler_params=cparams(("parallel", "parallel")),
    )(y2, a2, b2, params["w3"])
    a3, b3 = _fold_bn(st3, N * HW, params["g3"], params["b3"])

    # SE "squeeze": per-sample spatial mean of the BN3 output, derived from
    # the per-tile raw sums (no extra pass over y3).
    pooled_raw = jnp.sum(st3[:, :, 0, :], axis=1) / float(HW)      # (N, Cin)
    pooled_bn3 = (pooled_raw * a3 + b3)[:, None, :]                # (N, 1, Cin)

    # ---- pass 4: SE excitation + scale + residual + LeakyReLU --------------
    out = pl.pallas_call(
        se_out_kernel,
        grid=(N, nT),
        in_specs=[pl.BlockSpec((1, T, Cin), lambda n, t: (n, t, 0)),   # y3_raw
                  pl.BlockSpec((1, T, Cin), lambda n, t: (n, t, 0)),   # residual
                  pl.BlockSpec((1, Cin), lambda n, t: (0, 0)),          # bn3 scale
                  pl.BlockSpec((1, Cin), lambda n, t: (0, 0)),          # bn3 shift
                  pl.BlockSpec((1, 1, Cin), lambda n, t: (n, 0, 0)),    # pooled
                  pl.BlockSpec((Cin, r), lambda n, t: (0, 0)),          # fc1 W
                  pl.BlockSpec((1, r), lambda n, t: (0, 0)),            # fc1 b
                  pl.BlockSpec((r, Cin), lambda n, t: (0, 0)),          # fc2 W
                  pl.BlockSpec((1, Cin), lambda n, t: (0, 0))],         # fc2 b
        out_specs=pl.BlockSpec((1, T, Cin), lambda n, t: (n, t, 0)),
        out_shape=jax.ShapeDtypeStruct((N, HW, Cin), jnp.float32),
        compiler_params=cparams(("parallel", "parallel")),
    )(y3, x2, a3, b3, pooled_bn3,
      params["w_fc1"], params["b_fc1"], params["w_fc2"], params["b_fc2"])
    return out.reshape(N, H, W, Cin)


# ---------------------------------------------------------------------------
# pure-JAX reference + parameters
# ---------------------------------------------------------------------------
def se_bottleneck_ref(x, params):
    """Pure-JAX reference.  Matmul operands are cast to bf16 (f32 accumulate)
    to match the kernel's MXU numerics; all other math is f32."""
    N, H, W, C = x.shape
    P = params["w1"].shape[1]
    bf16, f32 = jnp.bfloat16, jnp.float32

    def bn(y, g, b):                       # training-mode BN, biased variance
        m = jnp.mean(y, axis=(0, 1, 2))
        v = jnp.mean(y * y, axis=(0, 1, 2)) - m * m
        return (y - m) * lax.rsqrt(v + EPS) * g + b

    def mm(a, w):
        return jnp.dot(a.astype(bf16), w.astype(bf16), preferred_element_type=f32)

    x = x.astype(f32)
    y = mm(x.reshape(N * H * W, C), params["w1"]).reshape(N, H, W, P)
    y = _lrelu(bn(y, params["g1"], params["b1"]))
    w_hwio = params["w2"].reshape(3, 3, P, P)
    y = lax.conv_general_dilated(y.astype(bf16), w_hwio, (1, 1), "SAME",
                                 dimension_numbers=("NHWC", "HWIO", "NHWC"),
                                 preferred_element_type=f32)
    y = _lrelu(bn(y, params["g2"], params["b2"]))
    y = mm(y.reshape(N * H * W, P), params["w3"]).reshape(N, H, W, C)
    y = bn(y, params["g3"], params["b3"])
    se = jnp.mean(y, axis=(1, 2))                                   # (N, C)
    se = _lrelu(se @ params["w_fc1"] + params["b_fc1"])
    se = _sigmoid(se @ params["w_fc2"] + params["b_fc2"])
    return _lrelu(se[:, None, None, :] * y + x)


def make_params(key, inplanes, planes):
    """The PyTorch module's own forward requires inplanes == planes (fc1 is
    declared with in_features=planes but consumes the pooled conv3/bn3 output
    which has inplanes channels)."""
    assert inplanes == planes
    r = int(round(planes / 16.0))
    ks = jax.random.split(key, 13)
    f32, bf16 = jnp.float32, jnp.bfloat16
    n = jax.random.normal
    return {
        # conv1: torch (P, Cin, 1, 1) -> (Cin, P), bf16 for the MXU
        "w1": (0.1 * n(ks[0], (inplanes, planes), f32)).astype(bf16),
        # conv2: torch (P, P, 3, 3) -> im2col layout (9*P_in, P_out), bf16
        "w2": (0.1 * n(ks[1], (9, planes, planes), f32)
               ).astype(bf16).reshape(9 * planes, planes),
        # conv3: torch (Cin, P, 1, 1) -> (P, Cin), bf16
        "w3": (0.1 * n(ks[2], (planes, inplanes), f32)).astype(bf16),
        "g1": 1.0 + 0.1 * n(ks[3], (planes,), f32),
        "b1": 0.1 * n(ks[4], (planes,), f32),
        "g2": 1.0 + 0.1 * n(ks[5], (planes,), f32),
        "b2": 0.1 * n(ks[6], (planes,), f32),
        "g3": 1.0 + 0.1 * n(ks[7], (inplanes,), f32),
        "b3": 0.1 * n(ks[8], (inplanes,), f32),
        # SE: fc1 = Linear(planes, r), fc2 = Linear(r, planes); stored as x @ W + b
        "w_fc1": 0.1 * n(ks[9], (planes, r), f32),
        "b_fc1": 0.1 * n(ks[10], (1, r), f32),
        "w_fc2": 0.1 * n(ks[11], (r, planes), f32),
        "b_fc2": 0.1 * n(ks[12], (1, planes), f32),
    }


if __name__ == "__main__":
    key = jax.random.PRNGKey(0)
    k_x, k_p = jax.random.split(key)

    # Channels are lane-dense (multiple of 128) per the performance feedback;
    # data is channels-last NHWC (equivalent to a (2, 128, 16, 16) NCHW input).
    N, C, H, W = 2, 128, 16, 16
    x = jax.random.normal(k_x, (N, H, W, C), jnp.float32)
    params = make_params(k_p, C, C)

    fwd = jax.jit(se_bottleneck_pallas)
    out = jax.block_until_ready(fwd(x, params))
    ref = se_bottleneck_ref(x, params)

    assert out.shape == (N, H, W, C)
    assert bool(jnp.allclose(out, ref, atol=1e-2, rtol=1e-2)), (
        "mismatch vs reference: max abs err = "
        f"{float(jnp.max(jnp.abs(out - ref)))}")
    print("KERNEL_OK")
</pallas_src>

<mosaic_0001>
module attributes {stable_mosaic.version = 11 : i64} {
  func.func @conv1_kernel(%arg0: i32, %arg1: i32, %arg2: memref<1x256x128xf32, #tpu.memory_space<vmem>>, %arg3: memref<128x128xbf16, #tpu.memory_space<vmem>>, %arg4: memref<1x256x128xf32, #tpu.memory_space<vmem>>, %arg5: memref<1x1x2x128xf32, #tpu.memory_space<vmem>>) attributes {dimension_semantics = [#tpu.dimension_semantics<parallel>, #tpu.dimension_semantics<parallel>], iteration_bounds = array<i64: 2, 1>, scalar_prefetch = 0 : i64, scratch_operands = 0 : i64, tpu.core_type = #tpu.core_type<tc>, window_params = [{transform_indices = @transform_0, window_bounds = array<i64: 1, 256, 128>}, {pipeline_mode = #tpu.pipeline_mode<synchronous>, transform_indices = @transform_1, window_bounds = array<i64: 128, 128>}, {transform_indices = @transform_2, window_bounds = array<i64: 1, 256, 128>}, {transform_indices = @transform_3, window_bounds = array<i64: 1, 1, 2, 128>}]} {
    %c0 = arith.constant 0 : index
    %c0_0 = arith.constant 0 : index
    %c0_1 = arith.constant 0 : index
    %0 = vector.load %arg2[%c0, %c0_0, %c0_1] : memref<1x256x128xf32, #tpu.memory_space<vmem>>, vector<1x256x128xf32>
    %1 = vector.shape_cast %0 : vector<1x256x128xf32> to vector<256x128xf32>
    %2 = arith.truncf %1 : vector<256x128xf32> to vector<256x128xbf16>
    %c0_2 = arith.constant 0 : index
    %c0_3 = arith.constant 0 : index
    %3 = vector.load %arg3[%c0_2, %c0_3] : memref<128x128xbf16, #tpu.memory_space<vmem>>, vector<128x128xbf16>
    %cst = arith.constant dense<0.000000e+00> : vector<256x128xf32>
    %4 = tpu.matmul %2, %3, %cst {dimension_numbers = #tpu.dot_dimension_numbers<[1], [0], [0], [1], [0, 0, 1, 1], [], []>} : vector<256x128xbf16>, vector<128x128xbf16>, vector<256x128xf32> -> vector<256x128xf32>
    %c0_4 = arith.constant 0 : index
    %c0_5 = arith.constant 0 : index
    %c0_6 = arith.constant 0 : index
    %5 = vector.load %arg4[%c0_4, %c0_5, %c0_6] : memref<1x256x128xf32, #tpu.memory_space<vmem>>, vector<1x256x128xf32>
    %6 = vector.shape_cast %5 : vector<1x256x128xf32> to vector<256x128xf32>
    %7 = vector.shape_cast %4 : vector<256x128xf32> to vector<1x256x128xf32>
    tpu.vector_store %arg4[%c0_4, %c0_5, %c0_6], %7 {strides = array<i32>} : memref<1x256x128xf32, #tpu.memory_space<vmem>>, vector<1x256x128xf32>,
    %cst_7 = arith.constant dense<0.000000e+00> : vector<128xf32>
    %8 = vector.multi_reduction <add>, %4, %cst_7 [0] : vector<256x128xf32> to vector<128xf32>
    %9 = vector.shape_cast %8 : vector<128xf32> to vector<1x128xf32>
    %c0_8 = arith.constant 0 : index
    %c0_9 = arith.constant 0 : index
    %c0_10 = arith.constant 0 : index
    %c0_11 = arith.constant 0 : index
    %10 = vector.load %arg5[%c0_8, %c0_9, %c0_10, %c0_11] : memref<1x1x2x128xf32, #tpu.memory_space<vmem>>, vector<1x1x1x128xf32>
    %11 = vector.shape_cast %10 : vector<1x1x1x128xf32> to vector<1x128xf32>
    %12 = vector.shape_cast %9 : vector<1x128xf32> to vector<1x1x1x128xf32>
    tpu.vector_store %arg5[%c0_8, %c0_9, %c0_10, %c0_11], %12 {strides = array<i32>} : memref<1x1x2x128xf32, #tpu.memory_space<vmem>>, vector<1x1x1x128xf32>,
    %13 = arith.mulf %4, %4 : vector<256x128xf32>
    %cst_12 = arith.constant dense<0.000000e+00> : vector<128xf32>
    %14 = vector.multi_reduction <add>, %13, %cst_12 [0] : vector<256x128xf32> to vector<128xf32>
    %15 = vector.shape_cast %14 : vector<128xf32> to vector<1x128xf32>
    %c0_13 = arith.constant 0 : index
    %c0_14 = arith.constant 0 : index
    %c1 = arith.constant 1 : index
    %c0_15 = arith.constant 0 : index
    %16 = vector.load %arg5[%c0_13, %c0_14, %c1, %c0_15] : memref<1x1x2x128xf32, #tpu.memory_space<vmem>>, vector<1x1x1x128xf32>
    %17 = vector.shape_cast %16 : vector<1x1x1x128xf32> to vector<1x128xf32>
    %18 = vector.shape_cast %15 : vector<1x128xf32> to vector<1x1x1x128xf32>
    tpu.vector_store %arg5[%c0_13, %c0_14, %c1, %c0_15], %18 {strides = array<i32>} : memref<1x1x2x128xf32, #tpu.memory_space<vmem>>, vector<1x1x1x128xf32>,
    return
  }
  func.func @transform_0(%arg0: i32, %arg1: i32) -> (i32, i32, i32) {
    %c0_i32 = arith.constant 0 : i32
    %c0_i32_0 = arith.constant 0 : i32
    return %arg0, %arg1, %c0_i32 : i32, i32, i32
  }
  func.func @transform_1(%arg0: i32, %arg1: i32) -> (i32, i32) {
    %c0_i32 = arith.constant 0 : i32
    %c0_i32_0 = arith.constant 0 : i32
    %c0_i32_1 = arith.constant 0 : i32
    return %c0_i32, %c0_i32_0 : i32, i32
  }
  func.func @transform_2(%arg0: i32, %arg1: i32) -> (i32, i32, i32) {
    %c0_i32 = arith.constant 0 : i32
    %c0_i32_0 = arith.constant 0 : i32
    return %arg0, %arg1, %c0_i32 : i32, i32, i32
  }
  func.func @transform_3(%arg0: i32, %arg1: i32) -> (i32, i32, i32, i32) {
    %c0_i32 = arith.constant 0 : i32
    %c0_i32_0 = arith.constant 0 : i32
    %c0_i32_1 = arith.constant 0 : i32
    return %arg0, %arg1, %c0_i32, %c0_i32_0 : i32, i32, i32, i32
  }
}

module attributes {stable_mosaic.version = 11 : i64} {
  func.func @conv2_kernel(%arg0: i32, %arg1: memref<1x16x16x128xf32, #tpu.memory_space<vmem>>, %arg2: memref<1x128xf32, #tpu.memory_space<vmem>>, %arg3: memref<1x128xf32, #tpu.memory_space<vmem>>, %arg4: memref<1152x128xbf16, #tpu.memory_space<vmem>>, %arg5: memref<1x256x128xf32, #tpu.memory_space<vmem>>, %arg6: memref<1x2x128xf32, #tpu.memory_space<vmem>>, %arg7: memref<256x1152xbf16, #tpu.memory_space<vmem>>) attributes {dimension_semantics = [#tpu.dimension_semantics<parallel>], iteration_bounds = array<i64: 2>, scalar_prefetch = 0 : i64, scratch_operands = 1 : i64, tpu.core_type = #tpu.core_type<tc>, window_params = [{transform_indices = @transform_0, window_bounds = array<i64: 1, 16, 16, 128>}, {pipeline_mode = #tpu.pipeline_mode<synchronous>, transform_indices = @transform_1, window_bounds = array<i64: 1, 128>}, {pipeline_mode = #tpu.pipeline_mode<synchronous>, transform_indices = @transform_2, window_bounds = array<i64: 1, 128>}, {pipeline_mode = #tpu.pipeline_mode<synchronous>, transform_indices = @transform_3, window_bounds = array<i64: 1152, 128>}, {transform_indices = @transform_4, window_bounds = array<i64: 1, 256, 128>}, {transform_indices = @transform_5, window_bounds = array<i64: 1, 2, 128>}]} {
    %c0 = arith.constant 0 : index
    %c0_0 = arith.constant 0 : index
    %c0_1 = arith.constant 0 : index
    %c0_2 = arith.constant 0 : index
    %0 = vector.load %arg1[%c0, %c0_0, %c0_1, %c0_2] : memref<1x16x16x128xf32, #tpu.memory_space<vmem>>, vector<1x16x16x128xf32>
    %1 = vector.shape_cast %0 : vector<1x16x16x128xf32> to vector<16x16x128xf32>
    %c0_3 = arith.constant 0 : index
    %c0_4 = arith.constant 0 : index
    %2 = vector.load %arg2[%c0_3, %c0_4] : memref<1x128xf32, #tpu.memory_space<vmem>>, vector<1x128xf32>
    %3 = vector.shape_cast %2 : vector<1x128xf32> to vector<128xf32>
    %4 = vector.shape_cast %3 : vector<128xf32> to vector<1x1x128xf32>
    %5 = vector.broadcast %4 : vector<1x1x128xf32> to vector<16x16x128xf32>
    %6 = arith.mulf %1, %5 : vector<16x16x128xf32>
    %c0_5 = arith.constant 0 : index
    %c0_6 = arith.constant 0 : index
    %7 = vector.load %arg3[%c0_5, %c0_6] : memref<1x128xf32, #tpu.memory_space<vmem>>, vector<1x128xf32>
    %8 = vector.shape_cast %7 : vector<1x128xf32> to vector<128xf32>
    %9 = vector.shape_cast %8 : vector<128xf32> to vector<1x1x128xf32>
    %10 = vector.broadcast %9 : vector<1x1x128xf32> to vector<16x16x128xf32>
    %11 = arith.addf %6, %10 : vector<16x16x128xf32>
    %cst = arith.constant 0.000000e+00 : f32
    %12 = vector.broadcast %cst : f32 to vector<16x16x128xf32>
    %13 = arith.cmpf oge, %11, %12 : vector<16x16x128xf32>
    %cst_7 = arith.constant 0.00999999977 : f32
    %14 = vector.broadcast %cst_7 : f32 to vector<16x16x128xf32>
    %15 = arith.mulf %14, %11 : vector<16x16x128xf32>
    %16 = arith.select %13, %11, %15 : vector<16x16x128xi1>, vector<16x16x128xf32>
    %cst_8 = arith.constant 0.000000e+00 : f32
    %17 = vector.broadcast %cst_8 : f32 to vector<1x16x128xf32>
    %18 = tpu.concatenate %17, %16, %17 in 0 : vector<1x16x128xf32>, vector<16x16x128xf32>, vector<1x16x128xf32> -> vector<18x16x128xf32>
    %cst_9 = arith.constant 0.000000e+00 : f32
    %19 = vector.broadcast %cst_9 : f32 to vector<18x1x128xf32>
    %20 = tpu.concatenate %19, %18, %19 in 1 : vector<18x1x128xf32>, vector<18x16x128xf32>, vector<18x1x128xf32> -> vector<18x18x128xf32>
    %21 = vector.extract_strided_slice %20 {offsets = [0, 0, 0], sizes = [16, 16, 128], strides = [1, 1, 1]} : vector<18x18x128xf32> to vector<16x16x128xf32>
    %22 = vector.shape_cast %21 : vector<16x16x128xf32> to vector<256x128xf32>
    %23 = arith.truncf %22 : vector<256x128xf32> to vector<256x128xbf16>
    %c0_10 = arith.constant 0 : index
    %c0_11 = arith.constant 0 : index
    %24 = vector.load %arg7[%c0_10, %c0_11] : memref<256x1152xbf16, #tpu.memory_space<vmem>>, vector<256x128xbf16>
    tpu.vector_store %arg7[%c0_10, %c0_11], %23 {strides = array<i32>} : memref<256x1152xbf16, #tpu.memory_space<vmem>>, vector<256x128xbf16>,
    %25 = vector.extract_strided_slice %20 {offsets = [0, 1, 0], sizes = [16, 16, 128], strides = [1, 1, 1]} : vector<18x18x128xf32> to vector<16x16x128xf32>
    %26 = vector.shape_cast %25 : vector<16x16x128xf32> to vector<256x128xf32>
    %27 = arith.truncf %26 : vector<256x128xf32> to vector<256x128xbf16>
    %c0_12 = arith.constant 0 : index
    %c128 = arith.constant 128 : index
    %28 = vector.load %arg7[%c0_12, %c128] : memref<256x1152xbf16, #tpu.memory_space<vmem>>, vector<256x128xbf16>
    tpu.vector_store %arg7[%c0_12, %c128], %27 {strides = array<i32>} : memref<256x1152xbf16, #tpu.memory_space<vmem>>, vector<256x128xbf16>,
    %29 = vector.extract_strided_slice %20 {offsets = [0, 2, 0], sizes = [16, 16, 128], strides = [1, 1, 1]} : vector<18x18x128xf32> to vector<16x16x128xf32>
    %30 = vector.shape_cast %29 : vector<16x16x128xf32> to vector<256x128xf32>
    %31 = arith.truncf %30 : vector<256x128xf32> to vector<256x128xbf16>
    %c0_13 = arith.constant 0 : index
    %c256 = arith.constant 256 : index
    %32 = vector.load %arg7[%c0_13, %c256] : memref<256x1152xbf16, #tpu.memory_space<vmem>>, vector<256x128xbf16>
    tpu.vector_store %arg7[%c0_13, %c256], %31 {strides = array<i32>} : memref<256x1152xbf16, #tpu.memory_space<vmem>>, vector<256x128xbf16>,
    %33 = vector.extract_strided_slice %20 {offsets = [1, 0, 0], sizes = [16, 16, 128], strides = [1, 1, 1]} : vector<18x18x128xf32> to vector<16x16x128xf32>
    %34 = vector.shape_cast %33 : vector<16x16x128xf32> to vector<256x128xf32>
    %35 = arith.truncf %34 : vector<256x128xf32> to vector<256x128xbf16>
    %c0_14 = arith.constant 0 : index
    %c384 = arith.constant 384 : index
    %36 = vector.load %arg7[%c0_14, %c384] : memref<256x1152xbf16, #tpu.memory_space<vmem>>, vector<256x128xbf16>
    tpu.vector_store %arg7[%c0_14, %c384], %35 {strides = array<i32>} : memref<256x1152xbf16, #tpu.memory_space<vmem>>, vector<256x128xbf16>,
    %37 = vector.extract_strided_slice %20 {offsets = [1, 1, 0], sizes = [16, 16, 128], strides = [1, 1, 1]} : vector<18x18x128xf32> to vector<16x16x128xf32>
    %38 = vector.shape_cast %37 : vector<16x16x128xf32> to vector<256x128xf32>
    %39 = arith.truncf %38 : vector<256x128xf32> to vector<256x128xbf16>
    %c0_15 = arith.constant 0 : index
    %c512 = arith.constant 512 : index
    %40 = vector.load %arg7[%c0_15, %c512] : memref<256x1152xbf16, #tpu.memory_space<vmem>>, vector<256x128xbf16>
    tpu.vector_store %arg7[%c0_15, %c512], %39 {strides = array<i32>} : memref<256x1152xbf16, #tpu.memory_space<vmem>>, vector<256x128xbf16>,
    %41 = vector.extract_strided_slice %20 {offsets = [1, 2, 0], sizes = [16, 16, 128], strides = [1, 1, 1]} : vector<18x18x128xf32> to vector<16x16x128xf32>
    %42 = vector.shape_cast %41 : vector<16x16x128xf32> to vector<256x128xf32>
    %43 = arith.truncf %42 : vector<256x128xf32> to vector<256x128xbf16>
    %c0_16 = arith.constant 0 : index
    %c640 = arith.constant 640 : index
    %44 = vector.load %arg7[%c0_16, %c640] : memref<256x1152xbf16, #tpu.memory_space<vmem>>, vector<256x128xbf16>
    tpu.vector_store %arg7[%c0_16, %c640], %43 {strides = array<i32>} : memref<256x1152xbf16, #tpu.memory_space<vmem>>, vector<256x128xbf16>,
    %45 = vector.extract_strided_slice %20 {offsets = [2, 0, 0], sizes = [16, 16, 128], strides = [1, 1, 1]} : vector<18x18x128xf32> to vector<16x16x128xf32>
    %46 = vector.shape_cast %45 : vector<16x16x128xf32> to vector<256x128xf32>
    %47 = arith.truncf %46 : vector<256x128xf32> to vector<256x128xbf16>
    %c0_17 = arith.constant 0 : index
    %c768 = arith.constant 768 : index
    %48 = vector.load %arg7[%c0_17, %c768] : memref<256x1152xbf16, #tpu.memory_space<vmem>>, vector<256x128xbf16>
    tpu.vector_store %arg7[%c0_17, %c768], %47 {strides = array<i32>} : memref<256x1152xbf16, #tpu.memory_space<vmem>>, vector<256x128xbf16>,
    %49 = vector.extract_strided_slice %20 {offsets = [2, 1, 0], sizes = [16, 16, 128], strides = [1, 1, 1]} : vector<18x18x128xf32> to vector<16x16x128xf32>
    %50 = vector.shape_cast %49 : vector<16x16x128xf32> to vector<256x128xf32>
    %51 = arith.truncf %50 : vector<256x128xf32> to vector<256x128xbf16>
    %c0_18 = arith.constant 0 : index
    %c896 = arith.constant 896 : index
    %52 = vector.load %arg7[%c0_18, %c896] : memref<256x1152xbf16, #tpu.memory_space<vmem>>, vector<256x128xbf16>
    tpu.vector_store %arg7[%c0_18, %c896], %51 {strides = array<i32>} : memref<256x1152xbf16, #tpu.memory_space<vmem>>, vector<256x128xbf16>,
    %53 = vector.extract_strided_slice %20 {offsets = [2, 2, 0], sizes = [16, 16, 128], strides = [1, 1, 1]} : vector<18x18x128xf32> to vector<16x16x128xf32>
    %54 = vector.shape_cast %53 : vector<16x16x128xf32> to vector<256x128xf32>
    %55 = arith.truncf %54 : vector<256x128xf32> to vector<256x128xbf16>
    %c0_19 = arith.constant 0 : index
    %c1024 = arith.constant 1024 : index
    %56 = vector.load %arg7[%c0_19, %c1024] : memref<256x1152xbf16, #tpu.memory_space<vmem>>, vector<256x128xbf16>
    tpu.vector_store %arg7[%c0_19, %c1024], %55 {strides = array<i32>} : memref<256x1152xbf16, #tpu.memory_space<vmem>>, vector<256x128xbf16>,
    %c0_20 = arith.constant 0 : index
    %c0_21 = arith.constant 0 : index
    %57 = vector.load %arg7[%c0_20, %c0_21] : memref<256x1152xbf16, #tpu.memory_space<vmem>>, vector<256x1152xbf16>
    %c0_22 = arith.constant 0 : index
    %c0_23 = arith.constant 0 : index
    %58 = vector.load %arg4[%c0_22, %c0_23] : memref<1152x128xbf16, #tpu.memory_space<vmem>>, vector<1152x128xbf16>
    %cst_24 = arith.constant dense<0.000000e+00> : vector<256x128xf32>
    %59 = tpu.matmul %57, %58, %cst_24 {dimension_numbers = #tpu.dot_dimension_numbers<[1], [0], [0], [1], [0, 0, 1, 1], [], []>} : vector<256x1152xbf16>, vector<1152x128xbf16>, vector<256x128xf32> -> vector<256x128xf32>
    %c0_25 = arith.constant 0 : index
    %c0_26 = arith.constant 0 : index
    %c0_27 = arith.constant 0 : index
    %60 = vector.load %arg5[%c0_25, %c0_26, %c0_27] : memref<1x256x128xf32, #tpu.memory_space<vmem>>, vector<1x256x128xf32>
    %61 = vector.shape_cast %60 : vector<1x256x128xf32> to vector<256x128xf32>
    %62 = vector.shape_cast %59 : vector<256x128xf32> to vector<1x256x128xf32>
    tpu.vector_store %arg5[%c0_25, %c0_26, %c0_27], %62 {strides = array<i32>} : memref<1x256x128xf32, #tpu.memory_space<vmem>>, vector<1x256x128xf32>,
    %cst_28 = arith.constant dense<0.000000e+00> : vector<128xf32>
    %63 = vector.multi_reduction <add>, %59, %cst_28 [0] : vector<256x128xf32> to vector<128xf32>
    %64 = vector.shape_cast %63 : vector<128xf32> to vector<1x128xf32>
    %c0_29 = arith.constant 0 : index
    %c0_30 = arith.constant 0 : index
    %c0_31 = arith.constant 0 : index
    %65 = vector.load %arg6[%c0_29, %c0_30, %c0_31] : memref<1x2x128xf32, #tpu.memory_space<vmem>>, vector<1x1x128xf32>
    %66 = vector.shape_cast %65 : vector<1x1x128xf32> to vector<1x128xf32>
    %67 = vector.shape_cast %64 : vector<1x128xf32> to vector<1x1x128xf32>
    tpu.vector_store %arg6[%c0_29, %c0_30, %c0_31], %67 {strides = array<i32>} : memref<1x2x128xf32, #tpu.memory_space<vmem>>, vector<1x1x128xf32>,
    %68 = arith.mulf %59, %59 : vector<256x128xf32>
    %cst_32 = arith.constant dense<0.000000e+00> : vector<128xf32>
    %69 = vector.multi_reduction <add>, %68, %cst_32 [0] : vector<256x128xf32> to vector<128xf32>
    %70 = vector.shape_cast %69 : vector<128xf32> to vector<1x128xf32>
    %c0_33 = arith.constant 0 : index
    %c1 = arith.constant 1 : index
    %c0_34 = arith.constant 0 : index
    %71 = vector.load %arg6[%c0_33, %c1, %c0_34] : memref<1x2x128xf32, #tpu.memory_space<vmem>>, vector<1x1x128xf32>
    %72 = vector.shape_cast %71 : vector<1x1x128xf32> to vector<1x128xf32>
    %73 = vector.shape_cast %70 : vector<1x128xf32> to vector<1x1x128xf32>
    tpu.vector_store %arg6[%c0_33, %c1, %c0_34], %73 {strides = array<i32>} : memref<1x2x128xf32, #tpu.memory_space<vmem>>, vector<1x1x128xf32>,
    return
  }
  func.func @transform_0(%arg0: i32) -> (i32, i32, i32, i32) {
    %c0_i32 = arith.constant 0 : i32
    %c0_i32_0 = arith.constant 0 : i32
    %c0_i32_1 = arith.constant 0 : i32
    %c0_i32_2 = arith.constant 0 : i32
    return %arg0, %c0_i32, %c0_i32_0, %c0_i32_1 : i32, i32, i32, i32
  }
  func.func @transform_1(%arg0: i32) -> (i32, i32) {
    %c0_i32 = arith.constant 0 : i32
    %c0_i32_0 = arith.constant 0 : i32
    %c0_i32_1 = arith.constant 0 : i32
    return %c0_i32, %c0_i32_0 : i32, i32
  }
  func.func @transform_2(%arg0: i32) -> (i32, i32) {
    %c0_i32 = arith.constant 0 : i32
    %c0_i32_0 = arith.constant 0 : i32
    %c0_i32_1 = arith.constant 0 : i32
    return %c0_i32, %c0_i32_0 : i32, i32
  }
  func.func @transform_3(%arg0: i32) -> (i32, i32) {
    %c0_i32 = arith.constant 0 : i32
    %c0_i32_0 = arith.constant 0 : i32
    %c0_i32_1 = arith.constant 0 : i32
    return %c0_i32, %c0_i32_0 : i32, i32
  }
  func.func @transform_4(%arg0: i32) -> (i32, i32, i32) {
    %c0_i32 = arith.constant 0 : i32
    %c0_i32_0 = arith.constant 0 : i32
    %c0_i32_1 = arith.constant 0 : i32
    return %arg0, %c0_i32, %c0_i32_0 : i32, i32, i32
  }
  func.func @transform_5(%arg0: i32) -> (i32, i32, i32) {
    %c0_i32 = arith.constant 0 : i32
    %c0_i32_0 = arith.constant 0 : i32
    %c0_i32_1 = arith.constant 0 : i32
    return %arg0, %c0_i32, %c0_i32_0 : i32, i32, i32
  }
}

module attributes {stable_mosaic.version = 11 : i64} {
  func.func @conv3_kernel(%arg0: i32, %arg1: i32, %arg2: memref<1x256x128xf32, #tpu.memory_space<vmem>>, %arg3: memref<1x128xf32, #tpu.memory_space<vmem>>, %arg4: memref<1x128xf32, #tpu.memory_space<vmem>>, %arg5: memref<128x128xbf16, #tpu.memory_space<vmem>>, %arg6: memref<1x256x128xf32, #tpu.memory_space<vmem>>, %arg7: memref<1x1x2x128xf32, #tpu.memory_space<vmem>>) attributes {dimension_semantics = [#tpu.dimension_semantics<parallel>, #tpu.dimension_semantics<parallel>], iteration_bounds = array<i64: 2, 1>, scalar_prefetch = 0 : i64, scratch_operands = 0 : i64, tpu.core_type = #tpu.core_type<tc>, window_params = [{transform_indices = @transform_0, window_bounds = array<i64: 1, 256, 128>}, {pipeline_mode = #tpu.pipeline_mode<synchronous>, transform_indices = @transform_1, window_bounds = array<i64: 1, 128>}, {pipeline_mode = #tpu.pipeline_mode<synchronous>, transform_indices = @transform_2, window_bounds = array<i64: 1, 128>}, {pipeline_mode = #tpu.pipeline_mode<synchronous>, transform_indices = @transform_3, window_bounds = array<i64: 128, 128>}, {transform_indices = @transform_4, window_bounds = array<i64: 1, 256, 128>}, {transform_indices = @transform_5, window_bounds = array<i64: 1, 1, 2, 128>}]} {
    %c0 = arith.constant 0 : index
    %c0_0 = arith.constant 0 : index
    %c0_1 = arith.constant 0 : index
    %0 = vector.load %arg2[%c0, %c0_0, %c0_1] : memref<1x256x128xf32, #tpu.memory_space<vmem>>, vector<1x256x128xf32>
    %1 = vector.shape_cast %0 : vector<1x256x128xf32> to vector<256x128xf32>
    %c0_2 = arith.constant 0 : index
    %c0_3 = arith.constant 0 : index
    %2 = vector.load %arg3[%c0_2, %c0_3] : memref<1x128xf32, #tpu.memory_space<vmem>>, vector<1x128xf32>
    %3 = vector.shape_cast %2 : vector<1x128xf32> to vector<128xf32>
    %4 = vector.shape_cast %3 : vector<128xf32> to vector<1x128xf32>
    %5 = vector.broadcast %4 : vector<1x128xf32> to vector<256x128xf32>
    %6 = arith.mulf %1, %5 : vector<256x128xf32>
    %c0_4 = arith.constant 0 : index
    %c0_5 = arith.constant 0 : index
    %7 = vector.load %arg4[%c0_4, %c0_5] : memref<1x128xf32, #tpu.memory_space<vmem>>, vector<1x128xf32>
    %8 = vector.shape_cast %7 : vector<1x128xf32> to vector<128xf32>
    %9 = vector.shape_cast %8 : vector<128xf32> to vector<1x128xf32>
    %10 = vector.broadcast %9 : vector<1x128xf32> to vector<256x128xf32>
    %11 = arith.addf %6, %10 : vector<256x128xf32>
    %cst = arith.constant 0.000000e+00 : f32
    %12 = vector.broadcast %cst : f32 to vector<256x128xf32>
    %13 = arith.cmpf oge, %11, %12 : vector<256x128xf32>
    %cst_6 = arith.constant 0.00999999977 : f32
    %14 = vector.broadcast %cst_6 : f32 to vector<256x128xf32>
    %15 = arith.mulf %14, %11 : vector<256x128xf32>
    %16 = arith.select %13, %11, %15 : vector<256x128xi1>, vector<256x128xf32>
    %17 = arith.truncf %16 : vector<256x128xf32> to vector<256x128xbf16>
    %c0_7 = arith.constant 0 : index
    %c0_8 = arith.constant 0 : index
    %18 = vector.load %arg5[%c0_7, %c0_8] : memref<128x128xbf16, #tpu.memory_space<vmem>>, vector<128x128xbf16>
    %cst_9 = arith.constant dense<0.000000e+00> : vector<256x128xf32>
    %19 = tpu.matmul %17, %18, %cst_9 {dimension_numbers = #tpu.dot_dimension_numbers<[1], [0], [0], [1], [0, 0, 1, 1], [], []>} : vector<256x128xbf16>, vector<128x128xbf16>, vector<256x128xf32> -> vector<256x128xf32>
    %c0_10 = arith.constant 0 : index
    %c0_11 = arith.constant 0 : index
    %c0_12 = arith.constant 0 : index
    %20 = vector.load %arg6[%c0_10, %c0_11, %c0_12] : memref<1x256x128xf32, #tpu.memory_space<vmem>>, vector<1x256x128xf32>
    %21 = vector.shape_cast %20 : vector<1x256x128xf32> to vector<256x128xf32>
    %22 = vector.shape_cast %19 : vector<256x128xf32> to vector<1x256x128xf32>
    tpu.vector_store %arg6[%c0_10, %c0_11, %c0_12], %22 {strides = array<i32>} : memref<1x256x128xf32, #tpu.memory_space<vmem>>, vector<1x256x128xf32>,
    %cst_13 = arith.constant dense<0.000000e+00> : vector<128xf32>
    %23 = vector.multi_reduction <add>, %19, %cst_13 [0] : vector<256x128xf32> to vector<128xf32>
    %24 = vector.shape_cast %23 : vector<128xf32> to vector<1x128xf32>
    %c0_14 = arith.constant 0 : index
    %c0_15 = arith.constant 0 : index
    %c0_16 = arith.constant 0 : index
    %c0_17 = arith.constant 0 : index
    %25 = vector.load %arg7[%c0_14, %c0_15, %c0_16, %c0_17] : memref<1x1x2x128xf32, #tpu.memory_space<vmem>>, vector<1x1x1x128xf32>
    %26 = vector.shape_cast %25 : vector<1x1x1x128xf32> to vector<1x128xf32>
    %27 = vector.shape_cast %24 : vector<1x128xf32> to vector<1x1x1x128xf32>
    tpu.vector_store %arg7[%c0_14, %c0_15, %c0_16, %c0_17], %27 {strides = array<i32>} : memref<1x1x2x128xf32, #tpu.memory_space<vmem>>, vector<1x1x1x128xf32>,
    %28 = arith.mulf %19, %19 : vector<256x128xf32>
    %cst_18 = arith.constant dense<0.000000e+00> : vector<128xf32>
    %29 = vector.multi_reduction <add>, %28, %cst_18 [0] : vector<256x128xf32> to vector<128xf32>
    %30 = vector.shape_cast %29 : vector<128xf32> to vector<1x128xf32>
    %c0_19 = arith.constant 0 : index
    %c0_20 = arith.constant 0 : index
    %c1 = arith.constant 1 : index
    %c0_21 = arith.constant 0 : index
    %31 = vector.load %arg7[%c0_19, %c0_20, %c1, %c0_21] : memref<1x1x2x128xf32, #tpu.memory_space<vmem>>, vector<1x1x1x128xf32>
    %32 = vector.shape_cast %31 : vector<1x1x1x128xf32> to vector<1x128xf32>
    %33 = vector.shape_cast %30 : vector<1x128xf32> to vector<1x1x1x128xf32>
    tpu.vector_store %arg7[%c0_19, %c0_20, %c1, %c0_21], %33 {strides = array<i32>} : memref<1x1x2x128xf32, #tpu.memory_space<vmem>>, vector<1x1x1x128xf32>,
    return
  }
  func.func @transform_0(%arg0: i32, %arg1: i32) -> (i32, i32, i32) {
    %c0_i32 = arith.constant 0 : i32
    %c0_i32_0 = arith.constant 0 : i32
    return %arg0, %arg1, %c0_i32 : i32, i32, i32
  }
  func.func @transform_1(%arg0: i32, %arg1: i32) -> (i32, i32) {
    %c0_i32 = arith.constant 0 : i32
    %c0_i32_0 = arith.constant 0 : i32
    %c0_i32_1 = arith.constant 0 : i32
    return %c0_i32, %c0_i32_0 : i32, i32
  }
  func.func @transform_2(%arg0: i32, %arg1: i32) -> (i32, i32) {
    %c0_i32 = arith.constant 0 : i32
    %c0_i32_0 = arith.constant 0 : i32
    %c0_i32_1 = arith.constant 0 : i32
    return %c0_i32, %c0_i32_0 : i32, i32
  }
  func.func @transform_3(%arg0: i32, %arg1: i32) -> (i32, i32) {
    %c0_i32 = arith.constant 0 : i32
    %c0_i32_0 = arith.constant 0 : i32
    %c0_i32_1 = arith.constant 0 : i32
    return %c0_i32, %c0_i32_0 : i32, i32
  }
  func.func @transform_4(%arg0: i32, %arg1: i32) -> (i32, i32, i32) {
    %c0_i32 = arith.constant 0 : i32
    %c0_i32_0 = arith.constant 0 : i32
    return %arg0, %arg1, %c0_i32 : i32, i32, i32
  }
  func.func @transform_5(%arg0: i32, %arg1: i32) -> (i32, i32, i32, i32) {
    %c0_i32 = arith.constant 0 : i32
    %c0_i32_0 = arith.constant 0 : i32
    %c0_i32_1 = arith.constant 0 : i32
    return %arg0, %arg1, %c0_i32, %c0_i32_0 : i32, i32, i32, i32
  }
}

module attributes {stable_mosaic.version = 11 : i64} {
  func.func @se_out_kernel(%arg0: i32, %arg1: i32, %arg2: memref<1x256x128xf32, #tpu.memory_space<vmem>>, %arg3: memref<1x256x128xf32, #tpu.memory_space<vmem>>, %arg4: memref<1x128xf32, #tpu.memory_space<vmem>>, %arg5: memref<1x128xf32, #tpu.memory_space<vmem>>, %arg6: memref<1x1x128xf32, #tpu.memory_space<vmem>>, %arg7: memref<128x8xf32, #tpu.memory_space<vmem>>, %arg8: memref<1x8xf32, #tpu.memory_space<vmem>>, %arg9: memref<8x128xf32, #tpu.memory_space<vmem>>, %arg10: memref<1x128xf32, #tpu.memory_space<vmem>>, %arg11: memref<1x256x128xf32, #tpu.memory_space<vmem>>) attributes {dimension_semantics = [#tpu.dimension_semantics<parallel>, #tpu.dimension_semantics<parallel>], iteration_bounds = array<i64: 2, 1>, scalar_prefetch = 0 : i64, scratch_operands = 0 : i64, tpu.core_type = #tpu.core_type<tc>, window_params = [{transform_indices = @transform_0, window_bounds = array<i64: 1, 256, 128>}, {transform_indices = @transform_1, window_bounds = array<i64: 1, 256, 128>}, {pipeline_mode = #tpu.pipeline_mode<synchronous>, transform_indices = @transform_2, window_bounds = array<i64: 1, 128>}, {pipeline_mode = #tpu.pipeline_mode<synchronous>, transform_indices = @transform_3, window_bounds = array<i64: 1, 128>}, {transform_indices = @transform_4, window_bounds = array<i64: 1, 1, 128>}, {pipeline_mode = #tpu.pipeline_mode<synchronous>, transform_indices = @transform_5, window_bounds = array<i64: 128, 8>}, {pipeline_mode = #tpu.pipeline_mode<synchronous>, transform_indices = @transform_6, window_bounds = array<i64: 1, 8>}, {pipeline_mode = #tpu.pipeline_mode<synchronous>, transform_indices = @transform_7, window_bounds = array<i64: 8, 128>}, {pipeline_mode = #tpu.pipeline_mode<synchronous>, transform_indices = @transform_8, window_bounds = array<i64: 1, 128>}, {transform_indices = @transform_9, window_bounds = array<i64: 1, 256, 128>}]} {
    %c0 = arith.constant 0 : index
    %c0_0 = arith.constant 0 : index
    %c0_1 = arith.constant 0 : index
    %0 = vector.load %arg6[%c0, %c0_0, %c0_1] : memref<1x1x128xf32, #tpu.memory_space<vmem>>, vector<1x1x128xf32>
    %1 = vector.shape_cast %0 : vector<1x1x128xf32> to vector<1x128xf32>
    %c0_2 = arith.constant 0 : index
    %c0_3 = arith.constant 0 : index
    %2 = vector.load %arg7[%c0_2, %c0_3] : memref<128x8xf32, #tpu.memory_space<vmem>>, vector<128x8xf32>
    %cst = arith.constant dense<0.000000e+00> : vector<1x8xf32>
    %3 = tpu.matmul %1, %2, %cst {dimension_numbers = #tpu.dot_dimension_numbers<[1], [0], [0], [1], [0, 0, 1, 1], [], []>} : vector<1x128xf32>, vector<128x8xf32>, vector<1x8xf32> -> vector<1x8xf32>
    %c0_4 = arith.constant 0 : index
    %c0_5 = arith.constant 0 : index
    %4 = vector.load %arg8[%c0_4, %c0_5] : memref<1x8xf32, #tpu.memory_space<vmem>>, vector<1x8xf32>
    %5 = arith.addf %3, %4 : vector<1x8xf32>
    %cst_6 = arith.constant 0.000000e+00 : f32
    %6 = vector.broadcast %cst_6 : f32 to vector<1x8xf32>
    %7 = arith.cmpf oge, %5, %6 : vector<1x8xf32>
    %cst_7 = arith.constant 0.00999999977 : f32
    %8 = vector.broadcast %cst_7 : f32 to vector<1x8xf32>
    %9 = arith.mulf %8, %5 : vector<1x8xf32>
    %10 = arith.select %7, %5, %9 : vector<1x8xi1>, vector<1x8xf32>
    %c0_8 = arith.constant 0 : index
    %c0_9 = arith.constant 0 : index
    %11 = vector.load %arg9[%c0_8, %c0_9] : memref<8x128xf32, #tpu.memory_space<vmem>>, vector<8x128xf32>
    %cst_10 = arith.constant dense<0.000000e+00> : vector<1x128xf32>
    %12 = tpu.matmul %10, %11, %cst_10 {dimension_numbers = #tpu.dot_dimension_numbers<[1], [0], [0], [1], [0, 0, 1, 1], [], []>} : vector<1x8xf32>, vector<8x128xf32>, vector<1x128xf32> -> vector<1x128xf32>
    %c0_11 = arith.constant 0 : index
    %c0_12 = arith.constant 0 : index
    %13 = vector.load %arg10[%c0_11, %c0_12] : memref<1x128xf32, #tpu.memory_space<vmem>>, vector<1x128xf32>
    %14 = arith.addf %12, %13 : vector<1x128xf32>
    %cst_13 = arith.constant 0.000000e+00 : f32
    %15 = vector.broadcast %cst_13 : f32 to vector<1x128xf32>
    %16 = arith.subf %15, %14 : vector<1x128xf32>
    %17 = math.exp %16 : vector<1x128xf32>
    %cst_14 = arith.constant 1.000000e+00 : f32
    %18 = vector.broadcast %cst_14 : f32 to vector<1x128xf32>
    %19 = arith.addf %18, %17 : vector<1x128xf32>
    %cst_15 = arith.constant 1.000000e+00 : f32
    %20 = vector.broadcast %cst_15 : f32 to vector<1x128xf32>
    %21 = arith.divf %20, %19 : vector<1x128xf32>
    %c0_16 = arith.constant 0 : index
    %c0_17 = arith.constant 0 : index
    %c0_18 = arith.constant 0 : index
    %22 = vector.load %arg2[%c0_16, %c0_17, %c0_18] : memref<1x256x128xf32, #tpu.memory_space<vmem>>, vector<1x256x128xf32>
    %23 = vector.shape_cast %22 : vector<1x256x128xf32> to vector<256x128xf32>
    %c0_19 = arith.constant 0 : index
    %c0_20 = arith.constant 0 : index
    %24 = vector.load %arg4[%c0_19, %c0_20] : memref<1x128xf32, #tpu.memory_space<vmem>>, vector<1x128xf32>
    %25 = vector.shape_cast %24 : vector<1x128xf32> to vector<128xf32>
    %26 = vector.shape_cast %25 : vector<128xf32> to vector<1x128xf32>
    %27 = vector.broadcast %26 : vector<1x128xf32> to vector<256x128xf32>
    %28 = arith.mulf %23, %27 : vector<256x128xf32>
    %c0_21 = arith.constant 0 : index
    %c0_22 = arith.constant 0 : index
    %29 = vector.load %arg5[%c0_21, %c0_22] : memref<1x128xf32, #tpu.memory_space<vmem>>, vector<1x128xf32>
    %30 = vector.shape_cast %29 : vector<1x128xf32> to vector<128xf32>
    %31 = vector.shape_cast %30 : vector<128xf32> to vector<1x128xf32>
    %32 = vector.broadcast %31 : vector<1x128xf32> to vector<256x128xf32>
    %33 = arith.addf %28, %32 : vector<256x128xf32>
    %34 = vector.broadcast %21 : vector<1x128xf32> to vector<256x128xf32>
    %35 = arith.mulf %34, %33 : vector<256x128xf32>
    %c0_23 = arith.constant 0 : index
    %c0_24 = arith.constant 0 : index
    %c0_25 = arith.constant 0 : index
    %36 = vector.load %arg3[%c0_23, %c0_24, %c0_25] : memref<1x256x128xf32, #tpu.memory_space<vmem>>, vector<1x256x128xf32>
    %37 = vector.shape_cast %36 : vector<1x256x128xf32> to vector<256x128xf32>
    %38 = arith.addf %35, %37 : vector<256x128xf32>
    %cst_26 = arith.constant 0.000000e+00 : f32
    %39 = vector.broadcast %cst_26 : f32 to vector<256x128xf32>
    %40 = arith.cmpf oge, %38, %39 : vector<256x128xf32>
    %cst_27 = arith.constant 0.00999999977 : f32
    %41 = vector.broadcast %cst_27 : f32 to vector<256x128xf32>
    %42 = arith.mulf %41, %38 : vector<256x128xf32>
    %43 = arith.select %40, %38, %42 : vector<256x128xi1>, vector<256x128xf32>
    %c0_28 = arith.constant 0 : index
    %c0_29 = arith.constant 0 : index
    %c0_30 = arith.constant 0 : index
    %44 = vector.load %arg11[%c0_28, %c0_29, %c0_30] : memref<1x256x128xf32, #tpu.memory_space<vmem>>, vector<1x256x128xf32>
    %45 = vector.shape_cast %44 : vector<1x256x128xf32> to vector<256x128xf32>
    %46 = vector.shape_cast %43 : vector<256x128xf32> to vector<1x256x128xf32>
    tpu.vector_store %arg11[%c0_28, %c0_29, %c0_30], %46 {strides = array<i32>} : memref<1x256x128xf32, #tpu.memory_space<vmem>>, vector<1x256x128xf32>,
    return
  }
  func.func @transform_0(%arg0: i32, %arg1: i32) -> (i32, i32, i32) {
    %c0_i32 = arith.constant 0 : i32
    %c0_i32_0 = arith.constant 0 : i32
    return %arg0, %arg1, %c0_i32 : i32, i32, i32
  }
  func.func @transform_1(%arg0: i32, %arg1: i32) -> (i32, i32, i32) {
    %c0_i32 = arith.constant 0 : i32
    %c0_i32_0 = arith.constant 0 : i32
    return %arg0, %arg1, %c0_i32 : i32, i32, i32
  }
  func.func @transform_2(%arg0: i32, %arg1: i32) -> (i32, i32) {
    %c0_i32 = arith.constant 0 : i32
    %c0_i32_0 = arith.constant 0 : i32
    %c0_i32_1 = arith.constant 0 : i32
    return %c0_i32, %c0_i32_0 : i32, i32
  }
  func.func @transform_3(%arg0: i32, %arg1: i32) -> (i32, i32) {
    %c0_i32 = arith.constant 0 : i32
    %c0_i32_0 = arith.constant 0 : i32
    %c0_i32_1 = arith.constant 0 : i32
    return %c0_i32, %c0_i32_0 : i32, i32
  }
  func.func @transform_4(%arg0: i32, %arg1: i32) -> (i32, i32, i32) {
    %c0_i32 = arith.constant 0 : i32
    %c0_i32_0 = arith.constant 0 : i32
    %c0_i32_1 = arith.constant 0 : i32
    return %arg0, %c0_i32, %c0_i32_0 : i32, i32, i32
  }
  func.func @transform_5(%arg0: i32, %arg1: i32) -> (i32, i32) {
    %c0_i32 = arith.constant 0 : i32
    %c0_i32_0 = arith.constant 0 : i32
    %c0_i32_1 = arith.constant 0 : i32
    return %c0_i32, %c0_i32_0 : i32, i32
  }
  func.func @transform_6(%arg0: i32, %arg1: i32) -> (i32, i32) {
    %c0_i32 = arith.constant 0 : i32
    %c0_i32_0 = arith.constant 0 : i32
    %c0_i32_1 = arith.constant 0 : i32
    return %c0_i32, %c0_i32_0 : i32, i32
  }
  func.func @transform_7(%arg0: i32, %arg1: i32) -> (i32, i32) {
    %c0_i32 = arith.constant 0 : i32
    %c0_i32_0 = arith.constant 0 : i32
    %c0_i32_1 = arith.constant 0 : i32
    return %c0_i32, %c0_i32_0 : i32, i32
  }
  func.func @transform_8(%arg0: i32, %arg1: i32) -> (i32, i32) {
    %c0_i32 = arith.constant 0 : i32
    %c0_i32_0 = arith.constant 0 : i32
    %c0_i32_1 = arith.constant 0 : i32
    return %c0_i32, %c0_i32_0 : i32, i32
  }
  func.func @transform_9(%arg0: i32, %arg1: i32) -> (i32, i32, i32) {
    %c0_i32 = arith.constant 0 : i32
    %c0_i32_0 = arith.constant 0 : i32
    return %arg0, %arg1, %c0_i32 : i32, i32, i32
  }
}

</mosaic_0001>

<llo_original>
// kernel: se_bottleneck_pallas.4
$region0: #{se_bottleneck_pallas.4}
  #allocation0 [shape = 'u32[]', space=smem, size = 0x4, offset = 0x4, fixed_abs, tag = 'smem constant byte address 0x4 - core index']
  #allocation1 [shape = 'u32[72,128]{1,0:T(1,128)}', space=vmem, size = 0x9000, scoped, tag = 'internal scratch']
  %s0 = inlined_call_operand.hbm [shape: f32[2,256,128], index: 0, kind: input, shape index: {}]
  %s1 = inlined_call_operand.hbm [shape: bf16[128,128], index: 1, kind: input, shape index: {}]
  %s2 = inlined_call_operand.vmem [shape: f32[2,256,128], index: 2, kind: output, shape index: {0}]
  %s3 = inlined_call_operand.vmem [shape: f32[2,1,2,128], index: 3, kind: output, shape index: {1}]
  %4 = xla_tuple %s2, %s3
  %s5 = sld [smem:[#allocation0]]
  $region57: #{se_bottleneck_pallas.4} parent=0
    _
  %s7 = ssub.s32 1, %s5
  %s8 = scalar_select 0, %s7, %s5
  $region1: #{se_bottleneck_pallas.4} parent=0
    #allocation2 [shape = 'u8[262144]{0}', space=vmem, size = 0x40000, scoped, tag = 'input window, operand 0']
    #allocation3 [shape = 's32[2]{0}', space=sflag, size = 0x8, scoped, tag = 'scoped memory for se_bottleneck_pallas.4']
    #allocation4 [shape = 'u8[32768]{0}', space=vmem, size = 0x8000, scoped, tag = 'input window, operand 1, single buffered']
    #allocation5 [shape = 's32[1]{0}', space=sflag, size = 0x4, scoped, tag = 'scoped memory for se_bottleneck_pallas.4']
    %9 = vsyncpa [#allocation3], 0
    %s10 = scalar_lea.sflag [#allocation3], 1
    %11 = vsyncpa %s10, 0
    %12 = vsyncpa [#allocation5], 0
    loop: start=0, step=1, limit=4
    $region2: #{se_bottleneck_pallas.4} parent=1 // loop_pre_header
      _
    $region3: #{se_bottleneck_pallas.4} parent=1 // loop_header
      %s14 = sphi 0, %s18
      %p15 = scmp.ge.s32.totalorder %s14, 4
      %s21 = sphi 0, %s33
      %s22 = sphi 0, %s29
      %s23 = sphi 0, %s21
      %s24 = sphi 0, %s22
      %s25 = sphi 0, %s23
      %s26 = sphi 0, %s24
      %s38 = sphi 0, %s40
      %s41 = sphi 0, %s38
      %s42 = sphi 0, %s41
      %s58 = sphi 0, %s42
      %s62 = sphi 0, %s62
      %s64 = sphi 0, %s62
      %s65 = sphi 0, %s64
      %s79 = sphi 0, %s65
      %s87 = sphi 0, %s89
      %s90 = sphi 0, %s87
      %s91 = sphi 0, %s90
      %s107 = sphi 0, %s91
      %s115 = sphi 0, %s117
      %s118 = sphi 0, %s115
      %s119 = sphi 0, %s118
      %s135 = sphi 0, %s119
    $region4: #{se_bottleneck_pallas.4} parent=1 // loop_header_branch
      %17 = sbr.rel (%p15) target = $region8
    $region5: #{se_bottleneck_pallas.4} parent=1 // loop_body
      %s19 = ssub.s32 %s14, 1
      %s20 = ssub.s32 %s14, 2
      %s27 = sadd.s32 1, %s22
      %p28 = scmp.ge.s32.totalorder %s27, 1
      %s29 = scalar_select %p28, 0, %s27
      %s30 = sadd.s32 1, %s21
      %s31 = scalar_select %p28, %s30, %s21
      %p32 = scmp.ge.s32.totalorder %s31, 2
      %s33 = scalar_select %p32, 0, %s31
      %s34 = ssub.s32 %s21, %s33
      %s35 = ssub.s32 %s22, %s29
      %s36 = sor.u32 %s34, %s35
      %p37 = scmp.eq.s32.totalorder %s36, 0
      %s39 = sadd.s32 %s38, 1
      %s40 = scalar_select %p37, %s38, %s39
      %p43 = pneg %p37
      %p44 = scmp.eq.s32.totalorder %s14, 1
      %p45 = por %p43, %p44
      %p46 = scmp.ne.s32.totalorder %s38, %s41
      %p47 = scmp.eq.s32.totalorder %s14, 0
      %p48 = por %p46, %p47
      %p49 = scmp.ne.s32.totalorder %s38, %s41
      %p50 = scmp.eq.s32.totalorder %s19, 1
      %p51 = por %p49, %p50
      %p52 = scmp.ne.s32.totalorder %s41, %s42
      %p53 = scmp.eq.s32.totalorder %s19, 0
      %p54 = por %p52, %p53
      %p55 = scmp.ne.s32.totalorder %s41, %s42
      %p56 = scmp.eq.s32.totalorder %s20, 1
      %p57 = por %p55, %p56
      %p59 = scmp.ne.s32.totalorder %s42, %s58
      %p60 = scmp.eq.s32.totalorder %s20, 0
      %p61 = por %p59, %p60
      %s63 = sadd.s32 %s62, 1
      %p66 = scmp.eq.s32.totalorder %s14, 1
      %p67 = scmp.ne.s32.totalorder %s62, %s64
      %p68 = scmp.eq.s32.totalorder %s14, 0
      %p69 = por %p67, %p68
      %p70 = scmp.ne.s32.totalorder %s62, %s64
      %p71 = scmp.eq.s32.totalorder %s19, 1
      %p72 = por %p70, %p71
      %p73 = scmp.ne.s32.totalorder %s64, %s65
      %p74 = scmp.eq.s32.totalorder %s19, 0
      %p75 = por %p73, %p74
      %p76 = scmp.ne.s32.totalorder %s64, %s65
      %p77 = scmp.eq.s32.totalorder %s20, 1
      %p78 = por %p76, %p77
      %p80 = scmp.ne.s32.totalorder %s65, %s79
      %p81 = scmp.eq.s32.totalorder %s20, 0
      %p82 = por %p80, %p81
      %s83 = ssub.s32 %s21, %s33
      %s84 = ssub.s32 %s22, %s29
      %s85 = sor.u32 %s83, %s84
      %p86 = scmp.eq.s32.totalorder %s85, 0
      %s88 = sadd.s32 %s87, 1
      %s89 = scalar_select %p86, %s87, %s88
      %p92 = pneg %p86
      %p93 = scmp.eq.s32.totalorder %s14, 1
      %p94 = por %p92, %p93
      %p95 = scmp.ne.s32.totalorder %s87, %s90
      %p96 = scmp.eq.s32.totalorder %s14, 0
      %p97 = por %p95, %p96
      %p98 = scmp.ne.s32.totalorder %s87, %s90
      %p99 = scmp.eq.s32.totalorder %s19, 1
      %p100 = por %p98, %p99
      %p101 = scmp.ne.s32.totalorder %s90, %s91
      %p102 = scmp.eq.s32.totalorder %s19, 0
      %p103 = por %p101, %p102
      %p104 = scmp.ne.s32.totalorder %s90, %s91
      %p105 = scmp.eq.s32.totalorder %s20, 1
      %p106 = por %p104, %p105
      %p108 = scmp.ne.s32.totalorder %s91, %s107
      %p109 = scmp.eq.s32.totalorder %s20, 0
      %p110 = por %p108, %p109
      %s111 = ssub.s32 %s21, %s33
      %s112 = ssub.s32 %s22, %s29
      %s113 = sor.u32 %s111, %s112
      %p114 = scmp.eq.s32.totalorder %s113, 0
      %s116 = sadd.s32 %s115, 1
      %s117 = scalar_select %p114, %s115, %s116
      %p120 = pneg %p114
      %p121 = scmp.eq.s32.totalorder %s14, 1
      %p122 = por %p120, %p121
      %p123 = scmp.ne.s32.totalorder %s115, %s118
      %p124 = scmp.eq.s32.totalorder %s14, 0
      %p125 = por %p123, %p124
      %p126 = scmp.ne.s32.totalorder %s115, %s118
      %p127 = scmp.eq.s32.totalorder %s19, 1
      %p128 = por %p126, %p127
      %p129 = scmp.ne.s32.totalorder %s118, %s119
      %p130 = scmp.eq.s32.totalorder %s19, 0
      %p131 = por %p129, %p130
      %p132 = scmp.ne.s32.totalorder %s118, %s119
      %p133 = scmp.eq.s32.totalorder %s20, 1
      %p134 = por %p132, %p133
      %p136 = scmp.ne.s32.totalorder %s119, %s135
      %p137 = scmp.eq.s32.totalorder %s20, 0
      %p138 = por %p136, %p137
      %p139 = scmp.le.s32.totalorder 1, %s14
      %p140 = scmp.lt.s32.totalorder %s14, 3
      %p141 = pnand %p139, %p140
      %p142 = pneg %p141
      // Predicated region
      $region9: #{se_bottleneck_pallas.4} parent=5 // pred_check
        _
      $region10: #{se_bottleneck_pallas.4} parent=5 // pred_check_branch
        %144 = sbr.rel (%p141) target = $region12
      $region11: #{se_bottleneck_pallas.4} parent=5 // pred_region
        %s145 = ssub.s32 %s14, 1
        // Predicated region
        $region13: #{se_bottleneck_pallas.4} parent=11 // pred_check
          %p146 = pneg %p75
        $region14: #{se_bottleneck_pallas.4} parent=11 // pred_check_branch
          %148 = sbr.rel (%p146) target = $region16
        $region15: #{se_bottleneck_pallas.4} parent=11 // pred_region
          %150 = vsyncadd [#allocation5], 0
          %s151 = sshll.u32 %s1, 4
          %s152 = int_to_ptr.hbm [resolvable:$true] %s151
          %s153 = sshll.u32 [#allocation4], 4
          %s154 = int_to_ptr.vmem [resolvable:$true] %s153
          %159 = dma.hbm_to_vmem [thread:$0]  %s152, 1024, %s154, [#allocation5], 64, 64, 4
        $region16: #{se_bottleneck_pallas.4} parent=11 // pred_fallthru
          _
      $region12: #{se_bottleneck_pallas.4} parent=5 // pred_fallthru
        _
      %p160 = scmp.lt.s32.totalorder %s14, 2
      // Predicated region
      $region17: #{se_bottleneck_pallas.4} parent=5 // pred_check
        %p161 = pneg %p160
      $region18: #{se_bottleneck_pallas.4} parent=5 // pred_check_branch
        %163 = sbr.rel (%p161) target = $region20
      $region19: #{se_bottleneck_pallas.4} parent=5 // pred_region
        // Predicated region
        $region21: #{se_bottleneck_pallas.4} parent=19 // pred_check
          %p164 = pneg %p48
        $region22: #{se_bottleneck_pallas.4} parent=19 // pred_check_branch
          %166 = sbr.rel (%p164) target = $region24
        $region23: #{se_bottleneck_pallas.4} parent=19 // pred_region
          %s167 = sand.u32 %s38, 1
          %s168 = scalar_lea.sflag [#allocation3], %s167
          %s169 = sand.u32 %s38, 1
          %s170 = smul.addr %s169, 256
          %s171 = scalar_lea.vmem [#allocation2], %s170
          %s172 = smul.u32 32, %s22
          %174 = vsyncadd %s168, 0
          %s175 = smul.addr %s21, 32
          %s176 = sadd.s32 %s172, %s175
          %s177 = smul.addr %s176, 8
          %s178 = scalar_lea.hbm %s0, %s177
          %s179 = sshll.u32 %s178, 4
          %s180 = int_to_ptr.hbm [resolvable:$true] %s179
          %s181 = sshll.u32 %s171, 4
          %s182 = int_to_ptr.vmem [resolvable:$true] %s181
          %187 = dma.hbm_to_vmem [thread:$0]  %s180, 4096, %s182, %s168, 128, 128, 8
        $region24: #{se_bottleneck_pallas.4} parent=19 // pred_fallthru
          _
      $region20: #{se_bottleneck_pallas.4} parent=5 // pred_fallthru
        _
      %p188 = scmp.le.s32.totalorder 1, %s14
      %p189 = scmp.lt.s32.totalorder %s14, 3
      %p190 = pnand %p188, %p189
      %p191 = pneg %p190
      // Predicated region
      $region25: #{se_bottleneck_pallas.4} parent=5 // pred_check
        _
      $region26: #{se_bottleneck_pallas.4} parent=5 // pred_check_branch
        %193 = sbr.rel (%p190) target = $region28
      $region27: #{se_bottleneck_pallas.4} parent=5 // pred_region
        %s194 = ssub.s32 %s14, 1
        %s195 = sand.u32 %s41, 1
        %s196 = scalar_lea.sflag [#allocation3], %s195
        %s197 = sand.u32 %s41, 1
        %s198 = smul.addr %s197, 256
        %s199 = scalar_lea.vmem [#allocation2], %s198
        // Predicated region
        $region29: #{se_bottleneck_pallas.4} parent=27 // pred_check
          %p200 = pneg %p54
        $region30: #{se_bottleneck_pallas.4} parent=27 // pred_check_branch
          %202 = sbr.rel (%p200) target = $region32
        $region31: #{se_bottleneck_pallas.4} parent=27 // pred_region
          %204 = dma.done %s196, 4096
        $region32: #{se_bottleneck_pallas.4} parent=27 // pred_fallthru
          _
        // Predicated region
        $region33: #{se_bottleneck_pallas.4} parent=27 // pred_check
          %p205 = pneg %p75
        $region34: #{se_bottleneck_pallas.4} parent=27 // pred_check_branch
          %207 = sbr.rel (%p205) target = $region36
        $region35: #{se_bottleneck_pallas.4} parent=27 // pred_region
          %209 = dma.done [#allocation5], 1024
        $region36: #{se_bottleneck_pallas.4} parent=27 // pred_fallthru
          _
        %s210 = sand.u32 %s41, 1
        %s211 = scalar_lea.sflag [#allocation3], %s210
        %s212 = sand.u32 %s41, 1
        %s213 = smul.addr %s212, 256
        %s214 = scalar_lea.vmem [#allocation2], %s213
        %p215 = pneg %p54
        %p216 = pneg %p51
        %p217 = pneg %p75
        %p218 = pneg %p72
        %p219 = pneg %p103
        %p220 = pneg %p100
        %s221 = smul.u32 32, %s24
        %p222 = scmp.lt.s32.totalorder %s23, 1
        %s223 = scalar_select %p222, %s23, 1
        %p224 = scmp.lt.s32.totalorder %s221, 31
        %s225 = scalar_select %p224, %s221, 31
        %s226 = smul.addr %s223, 32
        %s227 = sadd.s32 %s225, %s226
        %s228 = smul.addr %s227, 8
        %s229 = scalar_lea.vmem %s2, %s228
        %p230 = pneg %p131
        %p231 = pneg %p128
        %p232 = scmp.lt.s32.totalorder %s23, 1
        %s233 = scalar_select %p232, %s23, 1
        %p234 = scmp.lt.s32.totalorder %s24, 0
        %s235 = scalar_select %p234, %s24, 0
        %s236 = sadd.s32 %s235, %s233
        %s237 = smul.addr %s236, 2
        %s238 = scalar_lea.vmem %s3, %s237
        %s239 = smul.u32 32, %s24
        %s240 = smul.u32 32, %s24
        %p241 = scmp.lt.s32.totalorder %s23, 1
        %s242 = scalar_select %p241, %s23, 1
        %p243 = scmp.lt.s32.totalorder %s240, 31
        %s244 = scalar_select %p243, %s240, 31
        %s245 = smul.addr %s242, 32
        %s246 = sadd.s32 %s244, %s245
        %s247 = smul.addr %s246, 8
        %s248 = scalar_lea.vmem %s2, %s247
        %s249 = smul.u32 32, %s24
        %p250 = scmp.lt.s32.totalorder %s23, 1
        %s251 = scalar_select %p250, %s23, 1
        %p252 = scmp.lt.s32.totalorder %s24, 0
        %s253 = scalar_select %p252, %s24, 0
        %s254 = sadd.s32 %s253, %s251
        %s255 = smul.addr %s254, 2
        %s256 = scalar_lea.vmem %s3, %s255
        %v257 = vld [vmem:[%s199] sm:$0xff]
        %v258 = vld [vmem:[%s199 + $0x8] sm:$0xff]
        %v259 = vld [vmem:[%s199 + $0x10] sm:$0xff]
        %v260 = vld [vmem:[%s199 + $0x18] sm:$0xff]
        %v261 = vld [vmem:[%s199 + $0x20] sm:$0xff]
        %v262 = vld [vmem:[%s199 + $0x28] sm:$0xff]
        %v263 = vld [vmem:[%s199 + $0x30] sm:$0xff]
        %v264 = vld [vmem:[%s199 + $0x38] sm:$0xff]
        %v265 = vld [vmem:[%s199 + $0x40] sm:$0xff]
        %v266 = vld [vmem:[%s199 + $0x48] sm:$0xff]
        %v267 = vld [vmem:[%s199 + $0x50] sm:$0xff]
        %v268 = vld [vmem:[%s199 + $0x58] sm:$0xff]
        %v269 = vld [vmem:[%s199 + $0x60] sm:$0xff]
        %v270 = vld [vmem:[%s199 + $0x68] sm:$0xff]
        %v271 = vld [vmem:[%s199 + $0x70] sm:$0xff]
        %v272 = vld [vmem:[%s199 + $0x78] sm:$0xff]
        %v273 = vld [vmem:[%s199 + $0x80] sm:$0xff]
        %v274 = vld [vmem:[%s199 + $0x88] sm:$0xff]
        %v275 = vld [vmem:[%s199 + $0x90] sm:$0xff]
        %v276 = vld [vmem:[%s199 + $0x98] sm:$0xff]
        %v277 = vld [vmem:[%s199 + $0xa0] sm:$0xff]
        %v278 = vld [vmem:[%s199 + $0xa8] sm:$0xff]
        %v279 = vld [vmem:[%s199 + $0xb0] sm:$0xff]
        %v280 = vld [vmem:[%s199 + $0xb8] sm:$0xff]
        %v281 = vld [vmem:[%s199 + $0xc0] sm:$0xff]
        %v282 = vld [vmem:[%s199 + $0xc8] sm:$0xff]
        %v283 = vld [vmem:[%s199 + $0xd0] sm:$0xff]
        %v284 = vld [vmem:[%s199 + $0xd8] sm:$0xff]
        %v285 = vld [vmem:[%s199 + $0xe0] sm:$0xff]
        %v286 = vld [vmem:[%s199 + $0xe8] sm:$0xff]
        %v287 = vld [vmem:[%s199 + $0xf0] sm:$0xff]
        %v288 = vld [vmem:[%s199 + $0xf8] sm:$0xff]
        %v289 = vpack.c.bf16 %v258, %v257
        %v290 = vpack.c.bf16 %v260, %v259
        %v291 = vpack.c.bf16 %v262, %v261
        %v292 = vpack.c.bf16 %v264, %v263
        %v293 = vpack.c.bf16 %v266, %v265
        %v294 = vpack.c.bf16 %v268, %v267
        %v295 = vpack.c.bf16 %v270, %v269
        %v296 = vpack.c.bf16 %v272, %v271
        %v297 = vpack.c.bf16 %v274, %v273
        %v298 = vpack.c.bf16 %v276, %v275
        %v299 = vpack.c.bf16 %v278, %v277
        %v300 = vpack.c.bf16 %v280, %v279
        %v301 = vpack.c.bf16 %v282, %v281
        %v302 = vpack.c.bf16 %v284, %v283
        %v303 = vpack.c.bf16 %v286, %v285
        %v304 = vpack.c.bf16 %v288, %v287
        %v305 = vld [vmem:[#allocation4] sm:$0xf]
        %v306 = vld [vmem:[#allocation4 + $0x4] sm:$0xf]
        %v307 = vld [vmem:[#allocation4 + $0x8] sm:$0xf]
        %v308 = vld [vmem:[#allocation4 + $0xc] sm:$0xf]
        %v309 = vld [vmem:[#allocation4 + $0x10] sm:$0xf]
        %v310 = vld [vmem:[#allocation4 + $0x14] sm:$0xf]
        %v311 = vld [vmem:[#allocation4 + $0x18] sm:$0xf]
        %v312 = vld [vmem:[#allocation4 + $0x1c] sm:$0xf]
        %v313 = vld [vmem:[#allocation4 + $0x20] sm:$0xf]
        %v314 = vld [vmem:[#allocation4 + $0x24] sm:$0xf]
        %v315 = vld [vmem:[#allocation4 + $0x28] sm:$0xf]
        %v316 = vld [vmem:[#allocation4 + $0x2c] sm:$0xf]
        %v317 = vld [vmem:[#allocation4 + $0x30] sm:$0xf]
        %v318 = vld [vmem:[#allocation4 + $0x34] sm:$0xf]
        %v319 = vld [vmem:[#allocation4 + $0x38] sm:$0xf]
        %v320 = vld [vmem:[#allocation4 + $0x3c] sm:$0xf]
        %v337 = vunpack.c.l.b16 %v305
        %v338 = vunpack.c.l.b16 %v306
        %v339 = vunpack.c.l.b16 %v307
        %v340 = vunpack.c.l.b16 %v308
        %v341 = vunpack.c.l.b16 %v309
        %v342 = vunpack.c.l.b16 %v310
        %v343 = vunpack.c.l.b16 %v311
        %v344 = vunpack.c.l.b16 %v312
        %v345 = vunpack.c.l.b16 %v313
        %v346 = vunpack.c.l.b16 %v314
        %v347 = vunpack.c.l.b16 %v315
        %v348 = vunpack.c.l.b16 %v316
        %v349 = vunpack.c.l.b16 %v317
        %v350 = vunpack.c.l.b16 %v318
        %v351 = vunpack.c.l.b16 %v319
        %v352 = vunpack.c.l.b16 %v320
        %v353 = vpack.c.b16 %v338, %v337
        %v354 = vpack.c.b16 %v340, %v339
        %v355 = vpack.c.b16 %v342, %v341
        %v356 = vpack.c.b16 %v344, %v343
        %v357 = vpack.c.b16 %v346, %v345
        %v358 = vpack.c.b16 %v348, %v347
        %v359 = vpack.c.b16 %v350, %v349
        %v360 = vpack.c.b16 %v352, %v351
        %369 = vmatpush.bf16.msra.mxu0 %v360
        %370 = vmatpush.bf16.msra.mxu0 %v359
        %371 = vmatpush.bf16.msra.mxu0 %v358
        %372 = vmatpush.bf16.msra.mxu0 %v357
        %373 = vmatpush.bf16.msra.mxu0 %v356
        %374 = vmatpush.bf16.msra.mxu0 %v355
        %375 = vmatpush.bf16.msra.mxu0 %v354
        %376 = vmatpush.bf16.msra.mxu0 %v353
        %377 = vmatmul.bf16.gmra.mxu0 %v289
        %v378 = vpop.f32.mrf.mxu0
        %v379 = vadd.f32 0.0, %v378
        %v380 = vpop.f32.mrf.mxu0
        %v381 = vadd.f32 0.0, %v380
        %382 = vmatmul.bf16.gmra.mxu0 %v290
        %v383 = vpop.f32.mrf.mxu0
        %v384 = vadd.f32 0.0, %v383
        %v385 = vpop.f32.mrf.mxu0
        %v386 = vadd.f32 0.0, %v385
        %387 = vmatmul.bf16.gmra.mxu0 %v291
        %v388 = vpop.f32.mrf.mxu0
        %v389 = vadd.f32 0.0, %v388
        %v390 = vpop.f32.mrf.mxu0
        %v391 = vadd.f32 0.0, %v390
        %392 = vmatmul.bf16.gmra.mxu0 %v292
        %v393 = vpop.f32.mrf.mxu0
        %v394 = vadd.f32 0.0, %v393
        %v395 = vpop.f32.mrf.mxu0
        %v396 = vadd.f32 0.0, %v395
        %397 = vmatmul.bf16.gmra.mxu0 %v293
        %v398 = vpop.f32.mrf.mxu0
        %v399 = vadd.f32 0.0, %v398
        %v400 = vpop.f32.mrf.mxu0
        %v401 = vadd.f32 0.0, %v400
        %402 = vmatmul.bf16.gmra.mxu0 %v294
        %v403 = vpop.f32.mrf.mxu0
        %v404 = vadd.f32 0.0, %v403
        %v405 = vpop.f32.mrf.mxu0
        %v406 = vadd.f32 0.0, %v405
        %407 = vmatmul.bf16.gmra.mxu0 %v295
        %v408 = vpop.f32.mrf.mxu0
        %v409 = vadd.f32 0.0, %v408
        %v410 = vpop.f32.mrf.mxu0
        %v411 = vadd.f32 0.0, %v410
        %412 = vmatmul.bf16.gmra.mxu0 %v296
        %v413 = vpop.f32.mrf.mxu0
        %v414 = vadd.f32 0.0, %v413
        %v415 = vpop.f32.mrf.mxu0
        %v416 = vadd.f32 0.0, %v415
        %417 = vmatmul.bf16.gmra.mxu0 %v297
        %v418 = vpop.f32.mrf.mxu0
        %v419 = vadd.f32 0.0, %v418
        %v420 = vpop.f32.mrf.mxu0
        %v421 = vadd.f32 0.0, %v420
        %422 = vmatmul.bf16.gmra.mxu0 %v298
        %v423 = vpop.f32.mrf.mxu0
        %v424 = vadd.f32 0.0, %v423
        %v425 = vpop.f32.mrf.mxu0
        %v426 = vadd.f32 0.0, %v425
        %427 = vmatmul.bf16.gmra.mxu0 %v299
        %v428 = vpop.f32.mrf.mxu0
        %v429 = vadd.f32 0.0, %v428
        %v430 = vpop.f32.mrf.mxu0
        %v431 = vadd.f32 0.0, %v430
        %432 = vmatmul.bf16.gmra.mxu0 %v300
        %v433 = vpop.f32.mrf.mxu0
        %v434 = vadd.f32 0.0, %v433
        %v435 = vpop.f32.mrf.mxu0
        %v436 = vadd.f32 0.0, %v435
        %437 = vmatmul.bf16.gmra.mxu0 %v301
        %v438 = vpop.f32.mrf.mxu0
        %v439 = vadd.f32 0.0, %v438
        %v440 = vpop.f32.mrf.mxu0
        %v441 = vadd.f32 0.0, %v440
        %442 = vmatmul.bf16.gmra.mxu0 %v302
        %v443 = vpop.f32.mrf.mxu0
        %v444 = vadd.f32 0.0, %v443
        %v445 = vpop.f32.mrf.mxu0
        %v446 = vadd.f32 0.0, %v445
        %447 = vmatmul.bf16.gmra.mxu0 %v303
        %v448 = vpop.f32.mrf.mxu0
        %v449 = vadd.f32 0.0, %v448
        %v450 = vpop.f32.mrf.mxu0
        %v451 = vadd.f32 0.0, %v450
        %452 = vmatmul.bf16.gmra.mxu0 %v304
        %v453 = vpop.f32.mrf.mxu0
        %v454 = vadd.f32 0.0, %v453
        %v455 = vpop.f32.mrf.mxu0
        %v456 = vadd.f32 0.0, %v455
        %457 = vdwg.mxu0
        %458 = vst [vmem:[%s248] sm:$0xff] %v379
        %459 = vst [vmem:[%s248 + $0x8] sm:$0xff] %v381
        %460 = vst [vmem:[%s248 + $0x10] sm:$0xff] %v384
        %461 = vst [vmem:[%s248 + $0x18] sm:$0xff] %v386
        %462 = vst [vmem:[%s248 + $0x20] sm:$0xff] %v389
        %463 = vst [vmem:[%s248 + $0x28] sm:$0xff] %v391
        %464 = vst [vmem:[%s248 + $0x30] sm:$0xff] %v394
        %465 = vst [vmem:[%s248 + $0x38] sm:$0xff] %v396
        %466 = vst [vmem:[%s248 + $0x40] sm:$0xff] %v399
        %467 = vst [vmem:[%s248 + $0x48] sm:$0xff] %v401
        %468 = vst [vmem:[%s248 + $0x50] sm:$0xff] %v404
        %469 = vst [vmem:[%s248 + $0x58] sm:$0xff] %v406
        %470 = vst [vmem:[%s248 + $0x60] sm:$0xff] %v409
        %471 = vst [vmem:[%s248 + $0x68] sm:$0xff] %v411
        %472 = vst [vmem:[%s248 + $0x70] sm:$0xff] %v414
        %473 = vst [vmem:[%s248 + $0x78] sm:$0xff] %v416
        %474 = vst [vmem:[%s248 + $0x80] sm:$0xff] %v419
        %475 = vst [vmem:[%s248 + $0x88] sm:$0xff] %v421
        %476 = vst [vmem:[%s248 + $0x90] sm:$0xff] %v424
        %477 = vst [vmem:[%s248 + $0x98] sm:$0xff] %v426
        %478 = vst [vmem:[%s248 + $0xa0] sm:$0xff] %v429
        %479 = vst [vmem:[%s248 + $0xa8] sm:$0xff] %v431
        %480 = vst [vmem:[%s248 + $0xb0] sm:$0xff] %v434
        %481 = vst [vmem:[%s248 + $0xb8] sm:$0xff] %v436
        %482 = vst [vmem:[%s248 + $0xc0] sm:$0xff] %v439
        %483 = vst [vmem:[%s248 + $0xc8] sm:$0xff] %v441
        %484 = vst [vmem:[%s248 + $0xd0] sm:$0xff] %v444
        %485 = vst [vmem:[%s248 + $0xd8] sm:$0xff] %v446
        %486 = vst [vmem:[%s248 + $0xe0] sm:$0xff] %v449
        %487 = vst [vmem:[%s248 + $0xe8] sm:$0xff] %v451
        %488 = vst [vmem:[%s248 + $0xf0] sm:$0xff] %v454
        %489 = vst [vmem:[%s248 + $0xf8] sm:$0xff] %v456
        %v490 = vadd.f32 %v379, %v381
        %v491 = vadd.f32 %v490, %v384
        %v492 = vadd.f32 %v491, %v386
        %v493 = vadd.f32 %v492, %v389
        %v494 = vadd.f32 %v493, %v391
        %v495 = vadd.f32 %v494, %v394
        %v496 = vadd.f32 %v495, %v396
        %v497 = vadd.f32 %v496, %v399
        %v498 = vadd.f32 %v497, %v401
        %v499 = vadd.f32 %v498, %v404
        %v500 = vadd.f32 %v499, %v406
        %v501 = vadd.f32 %v500, %v409
        %v502 = vadd.f32 %v501, %v411
        %v503 = vadd.f32 %v502, %v414
        %v504 = vadd.f32 %v503, %v416
        %v505 = vadd.f32 %v504, %v419
        %v506 = vadd.f32 %v505, %v421
        %v507 = vadd.f32 %v506, %v424
        %v508 = vadd.f32 %v507, %v426
        %v509 = vadd.f32 %v508, %v429
        %v510 = vadd.f32 %v509, %v431
        %v511 = vadd.f32 %v510, %v434
        %v512 = vadd.f32 %v511, %v436
        %v513 = vadd.f32 %v512, %v439
        %v514 = vadd.f32 %v513, %v441
        %v515 = vadd.f32 %v514, %v444
        %v516 = vadd.f32 %v515, %v446
        %v517 = vadd.f32 %v516, %v449
        %v518 = vadd.f32 %v517, %v451
        %v519 = vadd.f32 %v518, %v454
        %v520 = vadd.f32 %v519, %v456
        %v521 = vrot.slane %v520, 4
        %v522 = vadd.f32 %v520, %v521
        %v523 = vrot.slane %v522, 2
        %v524 = vadd.f32 %v522, %v523
        %v525 = vrot.slane %v524, 1
        %v526 = vadd.f32 %v524, %v525
        %527 = vst [vmem:[%s256] sm:$0x1] %v526
        %v528 = vmul.f32 %v379, %v379
        %v529 = vmul.f32 %v381, %v381
        %v530 = vmul.f32 %v384, %v384
        %v531 = vmul.f32 %v386, %v386
        %v532 = vmul.f32 %v389, %v389
        %v533 = vmul.f32 %v391, %v391
        %v534 = vmul.f32 %v394, %v394
        %v535 = vmul.f32 %v396, %v396
        %v536 = vmul.f32 %v399, %v399
        %v537 = vmul.f32 %v401, %v401
        %v538 = vmul.f32 %v404, %v404
        %v539 = vmul.f32 %v406, %v406
        %v540 = vmul.f32 %v409, %v409
        %v541 = vmul.f32 %v411, %v411
        %v542 = vmul.f32 %v414, %v414
        %v543 = vmul.f32 %v416, %v416
        %v544 = vmul.f32 %v419, %v419
        %v545 = vmul.f32 %v421, %v421
        %v546 = vmul.f32 %v424, %v424
        %v547 = vmul.f32 %v426, %v426
        %v548 = vmul.f32 %v429, %v429
        %v549 = vmul.f32 %v431, %v431
        %v550 = vmul.f32 %v434, %v434
        %v551 = vmul.f32 %v436, %v436
        %v552 = vmul.f32 %v439, %v439
        %v553 = vmul.f32 %v441, %v441
        %v554 = vmul.f32 %v444, %v444
        %v555 = vmul.f32 %v446, %v446
        %v556 = vmul.f32 %v449, %v449
        %v557 = vmul.f32 %v451, %v451
        %v558 = vmul.f32 %v454, %v454
        %v559 = vmul.f32 %v456, %v456
        %v560 = vadd.f32 %v528, %v529
        %v561 = vadd.f32 %v560, %v530
        %v562 = vadd.f32 %v561, %v531
        %v563 = vadd.f32 %v562, %v532
        %v564 = vadd.f32 %v563, %v533
        %v565 = vadd.f32 %v564, %v534
        %v566 = vadd.f32 %v565, %v535
        %v567 = vadd.f32 %v566, %v536
        %v568 = vadd.f32 %v567, %v537
        %v569 = vadd.f32 %v568, %v538
        %v570 = vadd.f32 %v569, %v539
        %v571 = vadd.f32 %v570, %v540
        %v572 = vadd.f32 %v571, %v541
        %v573 = vadd.f32 %v572, %v542
        %v574 = vadd.f32 %v573, %v543
        %v575 = vadd.f32 %v574, %v544
        %v576 = vadd.f32 %v575, %v545
        %v577 = vadd.f32 %v576, %v546
        %v578 = vadd.f32 %v577, %v547
        %v579 = vadd.f32 %v578, %v548
        %v580 = vadd.f32 %v579, %v549
        %v581 = vadd.f32 %v580, %v550
        %v582 = vadd.f32 %v581, %v551
        %v583 = vadd.f32 %v582, %v552
        %v584 = vadd.f32 %v583, %v553
        %v585 = vadd.f32 %v584, %v554
        %v586 = vadd.f32 %v585, %v555
        %v587 = vadd.f32 %v586, %v556
        %v588 = vadd.f32 %v587, %v557
        %v589 = vadd.f32 %v588, %v558
        %v590 = vadd.f32 %v589, %v559
        %v591 = vrot.slane %v590, 4
        %v592 = vadd.f32 %v590, %v591
        %v593 = vrot.slane %v592, 2
        %v594 = vadd.f32 %v592, %v593
        %v595 = vrot.slane %v594, 1
        %v596 = vadd.f32 %v594, %v595
        %597 = vst [vmem:[%s256 + $0x1] sm:$0x1] %v596
        %s598 = smul.u32 32, %s24
        %p599 = scmp.lt.s32.totalorder %s23, 1
        %s600 = scalar_select %p599, %s23, 1
        %p601 = scmp.lt.s32.totalorder %s598, 31
        %s602 = scalar_select %p601, %s598, 31
        %s603 = smul.addr %s600, 32
        %s604 = sadd.s32 %s602, %s603
        %s605 = smul.addr %s604, 8
        %s606 = scalar_lea.vmem %s2, %s605
        %p607 = scmp.lt.s32.totalorder %s23, 1
        %s608 = scalar_select %p607, %s23, 1
        %p609 = scmp.lt.s32.totalorder %s24, 0
        %s610 = scalar_select %p609, %s24, 0
        %s611 = sadd.s32 %s610, %s608
        %s612 = smul.addr %s611, 2
        %s613 = scalar_lea.vmem %s3, %s612
        // Predicated region
        $region37: #{se_bottleneck_pallas.4} parent=27 // pred_check
          %p614 = pneg %p100
        $region38: #{se_bottleneck_pallas.4} parent=27 // pred_check_branch
          %616 = sbr.rel (%p614) target = $region40
        $region39: #{se_bottleneck_pallas.4} parent=27 // pred_region
          %s617 = smul.u32 32, %s24
        $region40: #{se_bottleneck_pallas.4} parent=27 // pred_fallthru
          _
        // Predicated region
        $region41: #{se_bottleneck_pallas.4} parent=27 // pred_check
          %p618 = pneg %p128
        $region42: #{se_bottleneck_pallas.4} parent=27 // pred_check_branch
          %620 = sbr.rel (%p618) target = $region44
        $region43: #{se_bottleneck_pallas.4} parent=27 // pred_region
          _
        $region44: #{se_bottleneck_pallas.4} parent=27 // pred_fallthru
          _
      $region28: #{se_bottleneck_pallas.4} parent=5 // pred_fallthru
        _
      %p621 = scmp.le.s32.totalorder 2, %s14
      // Predicated region
      $region45: #{se_bottleneck_pallas.4} parent=5 // pred_check
        %p622 = pneg %p621
      $region46: #{se_bottleneck_pallas.4} parent=5 // pred_check_branch
        %624 = sbr.rel (%p622) target = $region48
      $region47: #{se_bottleneck_pallas.4} parent=5 // pred_region
        %s625 = ssub.s32 %s14, 2
        // Predicated region
        $region49: #{se_bottleneck_pallas.4} parent=47 // pred_check
          %p626 = pneg %p106
        $region50: #{se_bottleneck_pallas.4} parent=47 // pred_check_branch
          %628 = sbr.rel (%p626) target = $region52
        $region51: #{se_bottleneck_pallas.4} parent=47 // pred_region
          %s629 = smul.u32 32, %s26
          %p630 = scmp.lt.s32.totalorder %s25, 1
          %s631 = scalar_select %p630, %s25, 1
          %p632 = scmp.lt.s32.totalorder %s629, 31
          %s633 = scalar_select %p632, %s629, 31
          %s634 = smul.addr %s631, 32
          %s635 = sadd.s32 %s633, %s634
          %s636 = smul.addr %s635, 8
          %s637 = scalar_lea.vmem %s2, %s636
        $region52: #{se_bottleneck_pallas.4} parent=47 // pred_fallthru
          _
        // Predicated region
        $region53: #{se_bottleneck_pallas.4} parent=47 // pred_check
          %p638 = pneg %p134
        $region54: #{se_bottleneck_pallas.4} parent=47 // pred_check_branch
          %640 = sbr.rel (%p638) target = $region56
        $region55: #{se_bottleneck_pallas.4} parent=47 // pred_region
          %p641 = scmp.lt.s32.totalorder %s25, 1
          %s642 = scalar_select %p641, %s25, 1
          %p643 = scmp.lt.s32.totalorder %s26, 0
          %s644 = scalar_select %p643, %s26, 0
          %s645 = sadd.s32 %s644, %s642
          %s646 = smul.addr %s645, 2
          %s647 = scalar_lea.vmem %s3, %s646
        $region56: #{se_bottleneck_pallas.4} parent=47 // pred_fallthru
          _
      $region48: #{se_bottleneck_pallas.4} parent=5 // pred_fallthru
        _
    $region6: #{se_bottleneck_pallas.4} parent=1 // loop_footer
      %s18 = sadd.s32 1, %s14
    $region7: #{se_bottleneck_pallas.4} parent=1 // loop_footer_branch
      %13 = sbr.rel target = $region3
    $region8: #{se_bottleneck_pallas.4} parent=1 // loop_exit
      _
    %648 = vsyncpa [#allocation3], 1
    %s649 = scalar_lea.sflag [#allocation3], 1
    %650 = vsyncpa %s649, 1
    %651 = vsyncpa [#allocation5], 1

// kernel: se_bottleneck_pallas.6
$region0: #{se_bottleneck_pallas.6}
  #allocation0 [shape = 'u32[]', space=smem, size = 0x4, offset = 0x4, fixed_abs, tag = 'smem constant byte address 0x4 - core index']
  #allocation1 [shape = 'u32[72,128]{1,0:T(1,128)}', space=vmem, size = 0x9000, scoped, tag = 'internal scratch']
  %s0 = inlined_call_operand.vmem [shape: f32[2,256,128], index: 0, kind: input, shape index: {}]
  %s1 = inlined_call_operand.vmem [shape: f32[1,128], index: 1, kind: input, shape index: {}]
  %s2 = inlined_call_operand.vmem [shape: f32[1,128], index: 2, kind: input, shape index: {}]
  %s3 = inlined_call_operand.hbm [shape: bf16[128,128], index: 3, kind: input, shape index: {}]
  %s4 = inlined_call_operand.vmem [shape: f32[2,256,128], index: 4, kind: output, shape index: {0}]
  %s5 = inlined_call_operand.vmem [shape: f32[2,1,2,128], index: 5, kind: output, shape index: {1}]
  %6 = xla_tuple %s4, %s5
  %s7 = sld [smem:[#allocation0]]
  $region61: #{se_bottleneck_pallas.6} parent=0
    _
  %s9 = ssub.s32 1, %s7
  %s10 = scalar_select 0, %s9, %s7
  $region1: #{se_bottleneck_pallas.6} parent=0
    #allocation2 [shape = 'u8[32768]{0}', space=vmem, size = 0x8000, scoped, tag = 'input window, operand 3, single buffered']
    #allocation3 [shape = 's32[2]{0}', space=sflag, size = 0x8, scoped, tag = 'scoped memory for se_bottleneck_pallas.6']
    %11 = vsyncpa [#allocation3], 0
    loop: start=0, step=1, limit=4
    $region2: #{se_bottleneck_pallas.6} parent=1 // loop_pre_header
      _
    $region3: #{se_bottleneck_pallas.6} parent=1 // loop_header
      %s13 = sphi 0, %s17
      %p14 = scmp.ge.s32.totalorder %s13, 4
      %s20 = sphi 0, %s32
      %s21 = sphi 0, %s28
      %s22 = sphi 0, %s20
      %s23 = sphi 0, %s21
      %s24 = sphi 0, %s22
      %s25 = sphi 0, %s23
      %s37 = sphi 0, %s39
      %s40 = sphi 0, %s37
      %s41 = sphi 0, %s40
      %s57 = sphi 0, %s41
      %s61 = sphi 0, %s61
      %s63 = sphi 0, %s61
      %s64 = sphi 0, %s63
      %s78 = sphi 0, %s64
      %s82 = sphi 0, %s82
      %s84 = sphi 0, %s82
      %s85 = sphi 0, %s84
      %s99 = sphi 0, %s85
      %s103 = sphi 0, %s103
      %s105 = sphi 0, %s103
      %s106 = sphi 0, %s105
      %s120 = sphi 0, %s106
      %s128 = sphi 0, %s130
      %s131 = sphi 0, %s128
      %s132 = sphi 0, %s131
      %s148 = sphi 0, %s132
      %s156 = sphi 0, %s158
      %s159 = sphi 0, %s156
      %s160 = sphi 0, %s159
      %s176 = sphi 0, %s160
    $region4: #{se_bottleneck_pallas.6} parent=1 // loop_header_branch
      %16 = sbr.rel (%p14) target = $region8
    $region5: #{se_bottleneck_pallas.6} parent=1 // loop_body
      %s18 = ssub.s32 %s13, 1
      %s19 = ssub.s32 %s13, 2
      %s26 = sadd.s32 1, %s21
      %p27 = scmp.ge.s32.totalorder %s26, 1
      %s28 = scalar_select %p27, 0, %s26
      %s29 = sadd.s32 1, %s20
      %s30 = scalar_select %p27, %s29, %s20
      %p31 = scmp.ge.s32.totalorder %s30, 2
      %s32 = scalar_select %p31, 0, %s30
      %s33 = ssub.s32 %s20, %s32
      %s34 = ssub.s32 %s21, %s28
      %s35 = sor.u32 %s33, %s34
      %p36 = scmp.eq.s32.totalorder %s35, 0
      %s38 = sadd.s32 %s37, 1
      %s39 = scalar_select %p36, %s37, %s38
      %p42 = pneg %p36
      %p43 = scmp.eq.s32.totalorder %s13, 1
      %p44 = por %p42, %p43
      %p45 = scmp.ne.s32.totalorder %s37, %s40
      %p46 = scmp.eq.s32.totalorder %s13, 0
      %p47 = por %p45, %p46
      %p48 = scmp.ne.s32.totalorder %s37, %s40
      %p49 = scmp.eq.s32.totalorder %s18, 1
      %p50 = por %p48, %p49
      %p51 = scmp.ne.s32.totalorder %s40, %s41
      %p52 = scmp.eq.s32.totalorder %s18, 0
      %p53 = por %p51, %p52
      %p54 = scmp.ne.s32.totalorder %s40, %s41
      %p55 = scmp.eq.s32.totalorder %s19, 1
      %p56 = por %p54, %p55
      %p58 = scmp.ne.s32.totalorder %s41, %s57
      %p59 = scmp.eq.s32.totalorder %s19, 0
      %p60 = por %p58, %p59
      %s62 = sadd.s32 %s61, 1
      %p65 = scmp.eq.s32.totalorder %s13, 1
      %p66 = scmp.ne.s32.totalorder %s61, %s63
      %p67 = scmp.eq.s32.totalorder %s13, 0
      %p68 = por %p66, %p67
      %p69 = scmp.ne.s32.totalorder %s61, %s63
      %p70 = scmp.eq.s32.totalorder %s18, 1
      %p71 = por %p69, %p70
      %p72 = scmp.ne.s32.totalorder %s63, %s64
      %p73 = scmp.eq.s32.totalorder %s18, 0
      %p74 = por %p72, %p73
      %p75 = scmp.ne.s32.totalorder %s63, %s64
      %p76 = scmp.eq.s32.totalorder %s19, 1
      %p77 = por %p75, %p76
      %p79 = scmp.ne.s32.totalorder %s64, %s78
      %p80 = scmp.eq.s32.totalorder %s19, 0
      %p81 = por %p79, %p80
      %s83 = sadd.s32 %s82, 1
      %p86 = scmp.eq.s32.totalorder %s13, 1
      %p87 = scmp.ne.s32.totalorder %s82, %s84
      %p88 = scmp.eq.s32.totalorder %s13, 0
      %p89 = por %p87, %p88
      %p90 = scmp.ne.s32.totalorder %s82, %s84
      %p91 = scmp.eq.s32.totalorder %s18, 1
      %p92 = por %p90, %p91
      %p93 = scmp.ne.s32.totalorder %s84, %s85
      %p94 = scmp.eq.s32.totalorder %s18, 0
      %p95 = por %p93, %p94
      %p96 = scmp.ne.s32.totalorder %s84, %s85
      %p97 = scmp.eq.s32.totalorder %s19, 1
      %p98 = por %p96, %p97
      %p100 = scmp.ne.s32.totalorder %s85, %s99
      %p101 = scmp.eq.s32.totalorder %s19, 0
      %p102 = por %p100, %p101
      %s104 = sadd.s32 %s103, 1
      %p107 = scmp.eq.s32.totalorder %s13, 1
      %p108 = scmp.ne.s32.totalorder %s103, %s105
      %p109 = scmp.eq.s32.totalorder %s13, 0
      %p110 = por %p108, %p109
      %p111 = scmp.ne.s32.totalorder %s103, %s105
      %p112 = scmp.eq.s32.totalorder %s18, 1
      %p113 = por %p111, %p112
      %p114 = scmp.ne.s32.totalorder %s105, %s106
      %p115 = scmp.eq.s32.totalorder %s18, 0
      %p116 = por %p114, %p115
      %p117 = scmp.ne.s32.totalorder %s105, %s106
      %p118 = scmp.eq.s32.totalorder %s19, 1
      %p119 = por %p117, %p118
      %p121 = scmp.ne.s32.totalorder %s106, %s120
      %p122 = scmp.eq.s32.totalorder %s19, 0
      %p123 = por %p121, %p122
      %s124 = ssub.s32 %s20, %s32
      %s125 = ssub.s32 %s21, %s28
      %s126 = sor.u32 %s124, %s125
      %p127 = scmp.eq.s32.totalorder %s126, 0
      %s129 = sadd.s32 %s128, 1
      %s130 = scalar_select %p127, %s128, %s129
      %p133 = pneg %p127
      %p134 = scmp.eq.s32.totalorder %s13, 1
      %p135 = por %p133, %p134
      %p136 = scmp.ne.s32.totalorder %s128, %s131
      %p137 = scmp.eq.s32.totalorder %s13, 0
      %p138 = por %p136, %p137
      %p139 = scmp.ne.s32.totalorder %s128, %s131
      %p140 = scmp.eq.s32.totalorder %s18, 1
      %p141 = por %p139, %p140
      %p142 = scmp.ne.s32.totalorder %s131, %s132
      %p143 = scmp.eq.s32.totalorder %s18, 0
      %p144 = por %p142, %p143
      %p145 = scmp.ne.s32.totalorder %s131, %s132
      %p146 = scmp.eq.s32.totalorder %s19, 1
      %p147 = por %p145, %p146
      %p149 = scmp.ne.s32.totalorder %s132, %s148
      %p150 = scmp.eq.s32.totalorder %s19, 0
      %p151 = por %p149, %p150
      %s152 = ssub.s32 %s20, %s32
      %s153 = ssub.s32 %s21, %s28
      %s154 = sor.u32 %s152, %s153
      %p155 = scmp.eq.s32.totalorder %s154, 0
      %s157 = sadd.s32 %s156, 1
      %s158 = scalar_select %p155, %s156, %s157
      %p161 = pneg %p155
      %p162 = scmp.eq.s32.totalorder %s13, 1
      %p163 = por %p161, %p162
      %p164 = scmp.ne.s32.totalorder %s156, %s159
      %p165 = scmp.eq.s32.totalorder %s13, 0
      %p166 = por %p164, %p165
      %p167 = scmp.ne.s32.totalorder %s156, %s159
      %p168 = scmp.eq.s32.totalorder %s18, 1
      %p169 = por %p167, %p168
      %p170 = scmp.ne.s32.totalorder %s159, %s160
      %p171 = scmp.eq.s32.totalorder %s18, 0
      %p172 = por %p170, %p171
      %p173 = scmp.ne.s32.totalorder %s159, %s160
      %p174 = scmp.eq.s32.totalorder %s19, 1
      %p175 = por %p173, %p174
      %p177 = scmp.ne.s32.totalorder %s160, %s176
      %p178 = scmp.eq.s32.totalorder %s19, 0
      %p179 = por %p177, %p178
      %p180 = scmp.le.s32.totalorder 1, %s13
      %p181 = scmp.lt.s32.totalorder %s13, 3
      %p182 = pnand %p180, %p181
      %p183 = pneg %p182
      // Predicated region
      $region9: #{se_bottleneck_pallas.6} parent=5 // pred_check
        _
      $region10: #{se_bottleneck_pallas.6} parent=5 // pred_check_branch
        %185 = sbr.rel (%p182) target = $region12
      $region11: #{se_bottleneck_pallas.6} parent=5 // pred_region
        %s186 = ssub.s32 %s13, 1
        // Predicated region
        $region13: #{se_bottleneck_pallas.6} parent=11 // pred_check
          %p187 = pneg %p74
        $region14: #{se_bottleneck_pallas.6} parent=11 // pred_check_branch
          %189 = sbr.rel (%p187) target = $region16
        $region15: #{se_bottleneck_pallas.6} parent=11 // pred_region
          _
        $region16: #{se_bottleneck_pallas.6} parent=11 // pred_fallthru
          _
        // Predicated region
        $region17: #{se_bottleneck_pallas.6} parent=11 // pred_check
          %p190 = pneg %p95
        $region18: #{se_bottleneck_pallas.6} parent=11 // pred_check_branch
          %192 = sbr.rel (%p190) target = $region20
        $region19: #{se_bottleneck_pallas.6} parent=11 // pred_region
          _
        $region20: #{se_bottleneck_pallas.6} parent=11 // pred_fallthru
          _
        // Predicated region
        $region21: #{se_bottleneck_pallas.6} parent=11 // pred_check
          %p193 = pneg %p116
        $region22: #{se_bottleneck_pallas.6} parent=11 // pred_check_branch
          %195 = sbr.rel (%p193) target = $region24
        $region23: #{se_bottleneck_pallas.6} parent=11 // pred_region
          %197 = vsyncadd [#allocation3], 0
          %s198 = sshll.u32 %s3, 4
          %s199 = int_to_ptr.hbm [resolvable:$true] %s198
          %s200 = sshll.u32 [#allocation2], 4
          %s201 = int_to_ptr.vmem [resolvable:$true] %s200
          %206 = dma.hbm_to_vmem [thread:$0]  %s199, 1024, %s201, [#allocation3], 64, 64, 4
        $region24: #{se_bottleneck_pallas.6} parent=11 // pred_fallthru
          _
      $region12: #{se_bottleneck_pallas.6} parent=5 // pred_fallthru
        _
      %p207 = scmp.lt.s32.totalorder %s13, 2
      // Predicated region
      $region25: #{se_bottleneck_pallas.6} parent=5 // pred_check
        %p208 = pneg %p207
      $region26: #{se_bottleneck_pallas.6} parent=5 // pred_check_branch
        %210 = sbr.rel (%p208) target = $region28
      $region27: #{se_bottleneck_pallas.6} parent=5 // pred_region
        // Predicated region
        $region29: #{se_bottleneck_pallas.6} parent=27 // pred_check
          %p211 = pneg %p47
        $region30: #{se_bottleneck_pallas.6} parent=27 // pred_check_branch
          %213 = sbr.rel (%p211) target = $region32
        $region31: #{se_bottleneck_pallas.6} parent=27 // pred_region
          %s214 = smul.u32 32, %s21
          %p215 = scmp.lt.s32.totalorder %s20, 1
          %s216 = scalar_select %p215, %s20, 1
          %p217 = scmp.lt.s32.totalorder %s214, 31
          %s218 = scalar_select %p217, %s214, 31
          %s219 = smul.addr %s216, 32
          %s220 = sadd.s32 %s218, %s219
          %s221 = smul.addr %s220, 8
          %s222 = scalar_lea.vmem %s0, %s221
          %s223 = smul.u32 32, %s21
        $region32: #{se_bottleneck_pallas.6} parent=27 // pred_fallthru
          _
      $region28: #{se_bottleneck_pallas.6} parent=5 // pred_fallthru
        _
      %p224 = scmp.le.s32.totalorder 1, %s13
      %p225 = scmp.lt.s32.totalorder %s13, 3
      %p226 = pnand %p224, %p225
      %p227 = pneg %p226
      // Predicated region
      $region33: #{se_bottleneck_pallas.6} parent=5 // pred_check
        _
      $region34: #{se_bottleneck_pallas.6} parent=5 // pred_check_branch
        %229 = sbr.rel (%p226) target = $region36
      $region35: #{se_bottleneck_pallas.6} parent=5 // pred_region
        %s230 = ssub.s32 %s13, 1
        // Predicated region
        $region37: #{se_bottleneck_pallas.6} parent=35 // pred_check
          %p231 = pneg %p116
        $region38: #{se_bottleneck_pallas.6} parent=35 // pred_check_branch
          %233 = sbr.rel (%p231) target = $region40
        $region39: #{se_bottleneck_pallas.6} parent=35 // pred_region
          %235 = dma.done [#allocation3], 1024
        $region40: #{se_bottleneck_pallas.6} parent=35 // pred_fallthru
          _
        %s236 = smul.u32 32, %s23
        %p237 = scmp.lt.s32.totalorder %s22, 1
        %s238 = scalar_select %p237, %s22, 1
        %p239 = scmp.lt.s32.totalorder %s236, 31
        %s240 = scalar_select %p239, %s236, 31
        %s241 = smul.addr %s238, 32
        %s242 = sadd.s32 %s240, %s241
        %s243 = smul.addr %s242, 8
        %s244 = scalar_lea.vmem %s0, %s243
        %p245 = pneg %p53
        %p246 = pneg %p50
        %p247 = pneg %p74
        %p248 = pneg %p71
        %p249 = pneg %p95
        %p250 = pneg %p92
        %p251 = pneg %p116
        %p252 = pneg %p113
        %p253 = pneg %p144
        %p254 = pneg %p141
        %s255 = smul.u32 32, %s23
        %p256 = scmp.lt.s32.totalorder %s22, 1
        %s257 = scalar_select %p256, %s22, 1
        %p258 = scmp.lt.s32.totalorder %s255, 31
        %s259 = scalar_select %p258, %s255, 31
        %s260 = smul.addr %s257, 32
        %s261 = sadd.s32 %s259, %s260
        %s262 = smul.addr %s261, 8
        %s263 = scalar_lea.vmem %s4, %s262
        %p264 = pneg %p172
        %p265 = pneg %p169
        %p266 = scmp.lt.s32.totalorder %s22, 1
        %s267 = scalar_select %p266, %s22, 1
        %p268 = scmp.lt.s32.totalorder %s23, 0
        %s269 = scalar_select %p268, %s23, 0
        %s270 = sadd.s32 %s269, %s267
        %s271 = smul.addr %s270, 2
        %s272 = scalar_lea.vmem %s5, %s271
        %s273 = smul.u32 32, %s23
        %p274 = scmp.lt.s32.totalorder %s22, 1
        %s275 = scalar_select %p274, %s22, 1
        %p276 = scmp.lt.s32.totalorder %s273, 31
        %s277 = scalar_select %p276, %s273, 31
        %s278 = smul.addr %s275, 32
        %s279 = sadd.s32 %s277, %s278
        %s280 = smul.addr %s279, 8
        %s281 = scalar_lea.vmem %s0, %s280
        %s282 = smul.u32 32, %s23
        %s283 = smul.u32 32, %s23
        %p284 = scmp.lt.s32.totalorder %s22, 1
        %s285 = scalar_select %p284, %s22, 1
        %p286 = scmp.lt.s32.totalorder %s283, 31
        %s287 = scalar_select %p286, %s283, 31
        %s288 = smul.addr %s285, 32
        %s289 = sadd.s32 %s287, %s288
        %s290 = smul.addr %s289, 8
        %s291 = scalar_lea.vmem %s4, %s290
        %s292 = smul.u32 32, %s23
        %p293 = scmp.lt.s32.totalorder %s22, 1
        %s294 = scalar_select %p293, %s22, 1
        %p295 = scmp.lt.s32.totalorder %s23, 0
        %s296 = scalar_select %p295, %s23, 0
        %s297 = sadd.s32 %s296, %s294
        %s298 = smul.addr %s297, 2
        %s299 = scalar_lea.vmem %s5, %s298
        %v300 = vld [vmem:[%s281] sm:$0xff]
        %v301 = vld [vmem:[%s281 + $0x8] sm:$0xff]
        %v302 = vld [vmem:[%s281 + $0x10] sm:$0xff]
        %v303 = vld [vmem:[%s281 + $0x18] sm:$0xff]
        %v304 = vld [vmem:[%s281 + $0x20] sm:$0xff]
        %v305 = vld [vmem:[%s281 + $0x28] sm:$0xff]
        %v306 = vld [vmem:[%s281 + $0x30] sm:$0xff]
        %v307 = vld [vmem:[%s281 + $0x38] sm:$0xff]
        %v308 = vld [vmem:[%s281 + $0x40] sm:$0xff]
        %v309 = vld [vmem:[%s281 + $0x48] sm:$0xff]
        %v310 = vld [vmem:[%s281 + $0x50] sm:$0xff]
        %v311 = vld [vmem:[%s281 + $0x58] sm:$0xff]
        %v312 = vld [vmem:[%s281 + $0x60] sm:$0xff]
        %v313 = vld [vmem:[%s281 + $0x68] sm:$0xff]
        %v314 = vld [vmem:[%s281 + $0x70] sm:$0xff]
        %v315 = vld [vmem:[%s281 + $0x78] sm:$0xff]
        %v316 = vld [vmem:[%s281 + $0x80] sm:$0xff]
        %v317 = vld [vmem:[%s281 + $0x88] sm:$0xff]
        %v318 = vld [vmem:[%s281 + $0x90] sm:$0xff]
        %v319 = vld [vmem:[%s281 + $0x98] sm:$0xff]
        %v320 = vld [vmem:[%s281 + $0xa0] sm:$0xff]
        %v321 = vld [vmem:[%s281 + $0xa8] sm:$0xff]
        %v322 = vld [vmem:[%s281 + $0xb0] sm:$0xff]
        %v323 = vld [vmem:[%s281 + $0xb8] sm:$0xff]
        %v324 = vld [vmem:[%s281 + $0xc0] sm:$0xff]
        %v325 = vld [vmem:[%s281 + $0xc8] sm:$0xff]
        %v326 = vld [vmem:[%s281 + $0xd0] sm:$0xff]
        %v327 = vld [vmem:[%s281 + $0xd8] sm:$0xff]
        %v328 = vld [vmem:[%s281 + $0xe0] sm:$0xff]
        %v329 = vld [vmem:[%s281 + $0xe8] sm:$0xff]
        %v330 = vld [vmem:[%s281 + $0xf0] sm:$0xff]
        %v331 = vld [vmem:[%s281 + $0xf8] sm:$0xff]
        %v332 = vld [vmem:[%s1] sm:$0x1]
        %v334 = vperm.slane %v332, 0
        %v336 = vmul.f32 %v300, %v334
        %v337 = vmul.f32 %v301, %v334
        %v338 = vmul.f32 %v302, %v334
        %v339 = vmul.f32 %v303, %v334
        %v340 = vmul.f32 %v304, %v334
        %v341 = vmul.f32 %v305, %v334
        %v342 = vmul.f32 %v306, %v334
        %v343 = vmul.f32 %v307, %v334
        %v344 = vmul.f32 %v308, %v334
        %v345 = vmul.f32 %v309, %v334
        %v346 = vmul.f32 %v310, %v334
        %v347 = vmul.f32 %v311, %v334
        %v348 = vmul.f32 %v312, %v334
        %v349 = vmul.f32 %v313, %v334
        %v350 = vmul.f32 %v314, %v334
        %v351 = vmul.f32 %v315, %v334
        %v352 = vmul.f32 %v316, %v334
        %v353 = vmul.f32 %v317, %v334
        %v354 = vmul.f32 %v318, %v334
        %v355 = vmul.f32 %v319, %v334
        %v356 = vmul.f32 %v320, %v334
        %v357 = vmul.f32 %v321, %v334
        %v358 = vmul.f32 %v322, %v334
        %v359 = vmul.f32 %v323, %v334
        %v360 = vmul.f32 %v324, %v334
        %v361 = vmul.f32 %v325, %v334
        %v362 = vmul.f32 %v326, %v334
        %v363 = vmul.f32 %v327, %v334
        %v364 = vmul.f32 %v328, %v334
        %v365 = vmul.f32 %v329, %v334
        %v366 = vmul.f32 %v330, %v334
        %v367 = vmul.f32 %v331, %v334
        %v368 = vld [vmem:[%s2] sm:$0x1]
        %v370 = vperm.slane %v368, 0
        %v372 = vadd.f32 %v336, %v370
        %v373 = vadd.f32 %v337, %v370
        %v374 = vadd.f32 %v338, %v370
        %v375 = vadd.f32 %v339, %v370
        %v376 = vadd.f32 %v340, %v370
        %v377 = vadd.f32 %v341, %v370
        %v378 = vadd.f32 %v342, %v370
        %v379 = vadd.f32 %v343, %v370
        %v380 = vadd.f32 %v344, %v370
        %v381 = vadd.f32 %v345, %v370
        %v382 = vadd.f32 %v346, %v370
        %v383 = vadd.f32 %v347, %v370
        %v384 = vadd.f32 %v348, %v370
        %v385 = vadd.f32 %v349, %v370
        %v386 = vadd.f32 %v350, %v370
        %v387 = vadd.f32 %v351, %v370
        %v388 = vadd.f32 %v352, %v370
        %v389 = vadd.f32 %v353, %v370
        %v390 = vadd.f32 %v354, %v370
        %v391 = vadd.f32 %v355, %v370
        %v392 = vadd.f32 %v356, %v370
        %v393 = vadd.f32 %v357, %v370
        %v394 = vadd.f32 %v358, %v370
        %v395 = vadd.f32 %v359, %v370
        %v396 = vadd.f32 %v360, %v370
        %v397 = vadd.f32 %v361, %v370
        %v398 = vadd.f32 %v362, %v370
        %v399 = vadd.f32 %v363, %v370
        %v400 = vadd.f32 %v364, %v370
        %v401 = vadd.f32 %v365, %v370
        %v402 = vadd.f32 %v366, %v370
        %v403 = vadd.f32 %v367, %v370
        %vm404 = vcmp.ge.f32.partialorder %v372, 0.0
        %vm405 = vcmp.ge.f32.partialorder %v373, 0.0
        %vm406 = vcmp.ge.f32.partialorder %v374, 0.0
        %vm407 = vcmp.ge.f32.partialorder %v375, 0.0
        %vm408 = vcmp.ge.f32.partialorder %v376, 0.0
        %vm409 = vcmp.ge.f32.partialorder %v377, 0.0
        %vm410 = vcmp.ge.f32.partialorder %v378, 0.0
        %vm411 = vcmp.ge.f32.partialorder %v379, 0.0
        %vm412 = vcmp.ge.f32.partialorder %v380, 0.0
        %vm413 = vcmp.ge.f32.partialorder %v381, 0.0
        %vm414 = vcmp.ge.f32.partialorder %v382, 0.0
        %vm415 = vcmp.ge.f32.partialorder %v383, 0.0
        %vm416 = vcmp.ge.f32.partialorder %v384, 0.0
        %vm417 = vcmp.ge.f32.partialorder %v385, 0.0
        %vm418 = vcmp.ge.f32.partialorder %v386, 0.0
        %vm419 = vcmp.ge.f32.partialorder %v387, 0.0
        %vm420 = vcmp.ge.f32.partialorder %v388, 0.0
        %vm421 = vcmp.ge.f32.partialorder %v389, 0.0
        %vm422 = vcmp.ge.f32.partialorder %v390, 0.0
        %vm423 = vcmp.ge.f32.partialorder %v391, 0.0
        %vm424 = vcmp.ge.f32.partialorder %v392, 0.0
        %vm425 = vcmp.ge.f32.partialorder %v393, 0.0
        %vm426 = vcmp.ge.f32.partialorder %v394, 0.0
        %vm427 = vcmp.ge.f32.partialorder %v395, 0.0
        %vm428 = vcmp.ge.f32.partialorder %v396, 0.0
        %vm429 = vcmp.ge.f32.partialorder %v397, 0.0
        %vm430 = vcmp.ge.f32.partialorder %v398, 0.0
        %vm431 = vcmp.ge.f32.partialorder %v399, 0.0
        %vm432 = vcmp.ge.f32.partialorder %v400, 0.0
        %vm433 = vcmp.ge.f32.partialorder %v401, 0.0
        %vm434 = vcmp.ge.f32.partialorder %v402, 0.0
        %vm435 = vcmp.ge.f32.partialorder %v403, 0.0
        %v436 = vmul.f32 %v372, 0.01
        %v437 = vmul.f32 %v373, 0.01
        %v438 = vmul.f32 %v374, 0.01
        %v439 = vmul.f32 %v375, 0.01
        %v440 = vmul.f32 %v376, 0.01
        %v441 = vmul.f32 %v377, 0.01
        %v442 = vmul.f32 %v378, 0.01
        %v443 = vmul.f32 %v379, 0.01
        %v444 = vmul.f32 %v380, 0.01
        %v445 = vmul.f32 %v381, 0.01
        %v446 = vmul.f32 %v382, 0.01
        %v447 = vmul.f32 %v383, 0.01
        %v448 = vmul.f32 %v384, 0.01
        %v449 = vmul.f32 %v385, 0.01
        %v450 = vmul.f32 %v386, 0.01
        %v451 = vmul.f32 %v387, 0.01
        %v452 = vmul.f32 %v388, 0.01
        %v453 = vmul.f32 %v389, 0.01
        %v454 = vmul.f32 %v390, 0.01
        %v455 = vmul.f32 %v391, 0.01
        %v456 = vmul.f32 %v392, 0.01
        %v457 = vmul.f32 %v393, 0.01
        %v458 = vmul.f32 %v394, 0.01
        %v459 = vmul.f32 %v395, 0.01
        %v460 = vmul.f32 %v396, 0.01
        %v461 = vmul.f32 %v397, 0.01
        %v462 = vmul.f32 %v398, 0.01
        %v463 = vmul.f32 %v399, 0.01
        %v464 = vmul.f32 %v400, 0.01
        %v465 = vmul.f32 %v401, 0.01
        %v466 = vmul.f32 %v402, 0.01
        %v467 = vmul.f32 %v403, 0.01
        %v468 = vsel %vm404, %v372, %v436
        %v469 = vsel %vm405, %v373, %v437
        %v470 = vsel %vm406, %v374, %v438
        %v471 = vsel %vm407, %v375, %v439
        %v472 = vsel %vm408, %v376, %v440
        %v473 = vsel %vm409, %v377, %v441
        %v474 = vsel %vm410, %v378, %v442
        %v475 = vsel %vm411, %v379, %v443
        %v476 = vsel %vm412, %v380, %v444
        %v477 = vsel %vm413, %v381, %v445
        %v478 = vsel %vm414, %v382, %v446
        %v479 = vsel %vm415, %v383, %v447
        %v480 = vsel %vm416, %v384, %v448
        %v481 = vsel %vm417, %v385, %v449
        %v482 = vsel %vm418, %v386, %v450
        %v483 = vsel %vm419, %v387, %v451
        %v484 = vsel %vm420, %v388, %v452
        %v485 = vsel %vm421, %v389, %v453
        %v486 = vsel %vm422, %v390, %v454
        %v487 = vsel %vm423, %v391, %v455
        %v488 = vsel %vm424, %v392, %v456
        %v489 = vsel %vm425, %v393, %v457
        %v490 = vsel %vm426, %v394, %v458
        %v491 = vsel %vm427, %v395, %v459
        %v492 = vsel %vm428, %v396, %v460
        %v493 = vsel %vm429, %v397, %v461
        %v494 = vsel %vm430, %v398, %v462
        %v495 = vsel %vm431, %v399, %v463
        %v496 = vsel %vm432, %v400, %v464
        %v497 = vsel %vm433, %v401, %v465
        %v498 = vsel %vm434, %v402, %v466
        %v499 = vsel %vm435, %v403, %v467
        %v500 = vpack.c.bf16 %v469, %v468
        %v501 = vpack.c.bf16 %v471, %v470
        %v502 = vpack.c.bf16 %v473, %v472
        %v503 = vpack.c.bf16 %v475, %v474
        %v504 = vpack.c.bf16 %v477, %v476
        %v505 = vpack.c.bf16 %v479, %v478
        %v506 = vpack.c.bf16 %v481, %v480
        %v507 = vpack.c.bf16 %v483, %v482
        %v508 = vpack.c.bf16 %v485, %v484
        %v509 = vpack.c.bf16 %v487, %v486
        %v510 = vpack.c.bf16 %v489, %v488
        %v511 = vpack.c.bf16 %v491, %v490
        %v512 = vpack.c.bf16 %v493, %v492
        %v513 = vpack.c.bf16 %v495, %v494
        %v514 = vpack.c.bf16 %v497, %v496
        %v515 = vpack.c.bf16 %v499, %v498
        %v516 = vld [vmem:[#allocation2] sm:$0xf]
        %v517 = vld [vmem:[#allocation2 + $0x4] sm:$0xf]
        %v518 = vld [vmem:[#allocation2 + $0x8] sm:$0xf]
        %v519 = vld [vmem:[#allocation2 + $0xc] sm:$0xf]
        %v520 = vld [vmem:[#allocation2 + $0x10] sm:$0xf]
        %v521 = vld [vmem:[#allocation2 + $0x14] sm:$0xf]
        %v522 = vld [vmem:[#allocation2 + $0x18] sm:$0xf]
        %v523 = vld [vmem:[#allocation2 + $0x1c] sm:$0xf]
        %v524 = vld [vmem:[#allocation2 + $0x20] sm:$0xf]
        %v525 = vld [vmem:[#allocation2 + $0x24] sm:$0xf]
        %v526 = vld [vmem:[#allocation2 + $0x28] sm:$0xf]
        %v527 = vld [vmem:[#allocation2 + $0x2c] sm:$0xf]
        %v528 = vld [vmem:[#allocation2 + $0x30] sm:$0xf]
        %v529 = vld [vmem:[#allocation2 + $0x34] sm:$0xf]
        %v530 = vld [vmem:[#allocation2 + $0x38] sm:$0xf]
        %v531 = vld [vmem:[#allocation2 + $0x3c] sm:$0xf]
        %v548 = vunpack.c.l.b16 %v516
        %v549 = vunpack.c.l.b16 %v517
        %v550 = vunpack.c.l.b16 %v518
        %v551 = vunpack.c.l.b16 %v519
        %v552 = vunpack.c.l.b16 %v520
        %v553 = vunpack.c.l.b16 %v521
        %v554 = vunpack.c.l.b16 %v522
        %v555 = vunpack.c.l.b16 %v523
        %v556 = vunpack.c.l.b16 %v524
        %v557 = vunpack.c.l.b16 %v525
        %v558 = vunpack.c.l.b16 %v526
        %v559 = vunpack.c.l.b16 %v527
        %v560 = vunpack.c.l.b16 %v528
        %v561 = vunpack.c.l.b16 %v529
        %v562 = vunpack.c.l.b16 %v530
        %v563 = vunpack.c.l.b16 %v531
        %v564 = vpack.c.b16 %v549, %v548
        %v565 = vpack.c.b16 %v551, %v550
        %v566 = vpack.c.b16 %v553, %v552
        %v567 = vpack.c.b16 %v555, %v554
        %v568 = vpack.c.b16 %v557, %v556
        %v569 = vpack.c.b16 %v559, %v558
        %v570 = vpack.c.b16 %v561, %v560
        %v571 = vpack.c.b16 %v563, %v562
        %580 = vmatpush.bf16.msra.mxu0 %v571
        %581 = vmatpush.bf16.msra.mxu0 %v570
        %582 = vmatpush.bf16.msra.mxu0 %v569
        %583 = vmatpush.bf16.msra.mxu0 %v568
        %584 = vmatpush.bf16.msra.mxu0 %v567
        %585 = vmatpush.bf16.msra.mxu0 %v566
        %586 = vmatpush.bf16.msra.mxu0 %v565
        %587 = vmatpush.bf16.msra.mxu0 %v564
        %588 = vmatmul.bf16.gmra.mxu0 %v500
        %v589 = vpop.f32.mrf.mxu0
        %v590 = vadd.f32 0.0, %v589
        %v591 = vpop.f32.mrf.mxu0
        %v592 = vadd.f32 0.0, %v591
        %593 = vmatmul.bf16.gmra.mxu0 %v501
        %v594 = vpop.f32.mrf.mxu0
        %v595 = vadd.f32 0.0, %v594
        %v596 = vpop.f32.mrf.mxu0
        %v597 = vadd.f32 0.0, %v596
        %598 = vmatmul.bf16.gmra.mxu0 %v502
        %v599 = vpop.f32.mrf.mxu0
        %v600 = vadd.f32 0.0, %v599
        %v601 = vpop.f32.mrf.mxu0
        %v602 = vadd.f32 0.0, %v601
        %603 = vmatmul.bf16.gmra.mxu0 %v503
        %v604 = vpop.f32.mrf.mxu0
        %v605 = vadd.f32 0.0, %v604
        %v606 = vpop.f32.mrf.mxu0
        %v607 = vadd.f32 0.0, %v606
        %608 = vmatmul.bf16.gmra.mxu0 %v504
        %v609 = vpop.f32.mrf.mxu0
        %v610 = vadd.f32 0.0, %v609
        %v611 = vpop.f32.mrf.mxu0
        %v612 = vadd.f32 0.0, %v611
        %613 = vmatmul.bf16.gmra.mxu0 %v505
        %v614 = vpop.f32.mrf.mxu0
        %v615 = vadd.f32 0.0, %v614
        %v616 = vpop.f32.mrf.mxu0
        %v617 = vadd.f32 0.0, %v616
        %618 = vmatmul.bf16.gmra.mxu0 %v506
        %v619 = vpop.f32.mrf.mxu0
        %v620 = vadd.f32 0.0, %v619
        %v621 = vpop.f32.mrf.mxu0
        %v622 = vadd.f32 0.0, %v621
        %623 = vmatmul.bf16.gmra.mxu0 %v507
        %v624 = vpop.f32.mrf.mxu0
        %v625 = vadd.f32 0.0, %v624
        %v626 = vpop.f32.mrf.mxu0
        %v627 = vadd.f32 0.0, %v626
        %628 = vmatmul.bf16.gmra.mxu0 %v508
        %v629 = vpop.f32.mrf.mxu0
        %v630 = vadd.f32 0.0, %v629
        %v631 = vpop.f32.mrf.mxu0
        %v632 = vadd.f32 0.0, %v631
        %633 = vmatmul.bf16.gmra.mxu0 %v509
        %v634 = vpop.f32.mrf.mxu0
        %v635 = vadd.f32 0.0, %v634
        %v636 = vpop.f32.mrf.mxu0
        %v637 = vadd.f32 0.0, %v636
        %638 = vmatmul.bf16.gmra.mxu0 %v510
        %v639 = vpop.f32.mrf.mxu0
        %v640 = vadd.f32 0.0, %v639
        %v641 = vpop.f32.mrf.mxu0
        %v642 = vadd.f32 0.0, %v641
        %643 = vmatmul.bf16.gmra.mxu0 %v511
        %v644 = vpop.f32.mrf.mxu0
        %v645 = vadd.f32 0.0, %v644
        %v646 = vpop.f32.mrf.mxu0
        %v647 = vadd.f32 0.0, %v646
        %648 = vmatmul.bf16.gmra.mxu0 %v512
        %v649 = vpop.f32.mrf.mxu0
        %v650 = vadd.f32 0.0, %v649
        %v651 = vpop.f32.mrf.mxu0
        %v652 = vadd.f32 0.0, %v651
        %653 = vmatmul.bf16.gmra.mxu0 %v513
        %v654 = vpop.f32.mrf.mxu0
        %v655 = vadd.f32 0.0, %v654
        %v656 = vpop.f32.mrf.mxu0
        %v657 = vadd.f32 0.0, %v656
        %658 = vmatmul.bf16.gmra.mxu0 %v514
        %v659 = vpop.f32.mrf.mxu0
        %v660 = vadd.f32 0.0, %v659
        %v661 = vpop.f32.mrf.mxu0
        %v662 = vadd.f32 0.0, %v661
        %663 = vmatmul.bf16.gmra.mxu0 %v515
        %v664 = vpop.f32.mrf.mxu0
        %v665 = vadd.f32 0.0, %v664
        %v666 = vpop.f32.mrf.mxu0
        %v667 = vadd.f32 0.0, %v666
        %668 = vdwg.mxu0
        %669 = vst [vmem:[%s291] sm:$0xff] %v590
        %670 = vst [vmem:[%s291 + $0x8] sm:$0xff] %v592
        %671 = vst [vmem:[%s291 + $0x10] sm:$0xff] %v595
        %672 = vst [vmem:[%s291 + $0x18] sm:$0xff] %v597
        %673 = vst [vmem:[%s291 + $0x20] sm:$0xff] %v600
        %674 = vst [vmem:[%s291 + $0x28] sm:$0xff] %v602
        %675 = vst [vmem:[%s291 + $0x30] sm:$0xff] %v605
        %676 = vst [vmem:[%s291 + $0x38] sm:$0xff] %v607
        %677 = vst [vmem:[%s291 + $0x40] sm:$0xff] %v610
        %678 = vst [vmem:[%s291 + $0x48] sm:$0xff] %v612
        %679 = vst [vmem:[%s291 + $0x50] sm:$0xff] %v615
        %680 = vst [vmem:[%s291 + $0x58] sm:$0xff] %v617
        %681 = vst [vmem:[%s291 + $0x60] sm:$0xff] %v620
        %682 = vst [vmem:[%s291 + $0x68] sm:$0xff] %v622
        %683 = vst [vmem:[%s291 + $0x70] sm:$0xff] %v625
        %684 = vst [vmem:[%s291 + $0x78] sm:$0xff] %v627
        %685 = vst [vmem:[%s291 + $0x80] sm:$0xff] %v630
        %686 = vst [vmem:[%s291 + $0x88] sm:$0xff] %v632
        %687 = vst [vmem:[%s291 + $0x90] sm:$0xff] %v635
        %688 = vst [vmem:[%s291 + $0x98] sm:$0xff] %v637
        %689 = vst [vmem:[%s291 + $0xa0] sm:$0xff] %v640
        %690 = vst [vmem:[%s291 + $0xa8] sm:$0xff] %v642
        %691 = vst [vmem:[%s291 + $0xb0] sm:$0xff] %v645
        %692 = vst [vmem:[%s291 + $0xb8] sm:$0xff] %v647
        %693 = vst [vmem:[%s291 + $0xc0] sm:$0xff] %v650
        %694 = vst [vmem:[%s291 + $0xc8] sm:$0xff] %v652
        %695 = vst [vmem:[%s291 + $0xd0] sm:$0xff] %v655
        %696 = vst [vmem:[%s291 + $0xd8] sm:$0xff] %v657
        %697 = vst [vmem:[%s291 + $0xe0] sm:$0xff] %v660
        %698 = vst [vmem:[%s291 + $0xe8] sm:$0xff] %v662
        %699 = vst [vmem:[%s291 + $0xf0] sm:$0xff] %v665
        %700 = vst [vmem:[%s291 + $0xf8] sm:$0xff] %v667
        %v701 = vadd.f32 %v590, %v592
        %v702 = vadd.f32 %v701, %v595
        %v703 = vadd.f32 %v702, %v597
        %v704 = vadd.f32 %v703, %v600
        %v705 = vadd.f32 %v704, %v602
        %v706 = vadd.f32 %v705, %v605
        %v707 = vadd.f32 %v706, %v607
        %v708 = vadd.f32 %v707, %v610
        %v709 = vadd.f32 %v708, %v612
        %v710 = vadd.f32 %v709, %v615
        %v711 = vadd.f32 %v710, %v617
        %v712 = vadd.f32 %v711, %v620
        %v713 = vadd.f32 %v712, %v622
        %v714 = vadd.f32 %v713, %v625
        %v715 = vadd.f32 %v714, %v627
        %v716 = vadd.f32 %v715, %v630
        %v717 = vadd.f32 %v716, %v632
        %v718 = vadd.f32 %v717, %v635
        %v719 = vadd.f32 %v718, %v637
        %v720 = vadd.f32 %v719, %v640
        %v721 = vadd.f32 %v720, %v642
        %v722 = vadd.f32 %v721, %v645
        %v723 = vadd.f32 %v722, %v647
        %v724 = vadd.f32 %v723, %v650
        %v725 = vadd.f32 %v724, %v652
        %v726 = vadd.f32 %v725, %v655
        %v727 = vadd.f32 %v726, %v657
        %v728 = vadd.f32 %v727, %v660
        %v729 = vadd.f32 %v728, %v662
        %v730 = vadd.f32 %v729, %v665
        %v731 = vadd.f32 %v730, %v667
        %v732 = vrot.slane %v731, 4
        %v733 = vadd.f32 %v731, %v732
        %v734 = vrot.slane %v733, 2
        %v735 = vadd.f32 %v733, %v734
        %v736 = vrot.slane %v735, 1
        %v737 = vadd.f32 %v735, %v736
        %738 = vst [vmem:[%s299] sm:$0x1] %v737
        %v739 = vmul.f32 %v590, %v590
        %v740 = vmul.f32 %v592, %v592
        %v741 = vmul.f32 %v595, %v595
        %v742 = vmul.f32 %v597, %v597
        %v743 = vmul.f32 %v600, %v600
        %v744 = vmul.f32 %v602, %v602
        %v745 = vmul.f32 %v605, %v605
        %v746 = vmul.f32 %v607, %v607
        %v747 = vmul.f32 %v610, %v610
        %v748 = vmul.f32 %v612, %v612
        %v749 = vmul.f32 %v615, %v615
        %v750 = vmul.f32 %v617, %v617
        %v751 = vmul.f32 %v620, %v620
        %v752 = vmul.f32 %v622, %v622
        %v753 = vmul.f32 %v625, %v625
        %v754 = vmul.f32 %v627, %v627
        %v755 = vmul.f32 %v630, %v630
        %v756 = vmul.f32 %v632, %v632
        %v757 = vmul.f32 %v635, %v635
        %v758 = vmul.f32 %v637, %v637
        %v759 = vmul.f32 %v640, %v640
        %v760 = vmul.f32 %v642, %v642
        %v761 = vmul.f32 %v645, %v645
        %v762 = vmul.f32 %v647, %v647
        %v763 = vmul.f32 %v650, %v650
        %v764 = vmul.f32 %v652, %v652
        %v765 = vmul.f32 %v655, %v655
        %v766 = vmul.f32 %v657, %v657
        %v767 = vmul.f32 %v660, %v660
        %v768 = vmul.f32 %v662, %v662
        %v769 = vmul.f32 %v665, %v665
        %v770 = vmul.f32 %v667, %v667
        %v771 = vadd.f32 %v739, %v740
        %v772 = vadd.f32 %v771, %v741
        %v773 = vadd.f32 %v772, %v742
        %v774 = vadd.f32 %v773, %v743
        %v775 = vadd.f32 %v774, %v744
        %v776 = vadd.f32 %v775, %v745
        %v777 = vadd.f32 %v776, %v746
        %v778 = vadd.f32 %v777, %v747
        %v779 = vadd.f32 %v778, %v748
        %v780 = vadd.f32 %v779, %v749
        %v781 = vadd.f32 %v780, %v750
        %v782 = vadd.f32 %v781, %v751
        %v783 = vadd.f32 %v782, %v752
        %v784 = vadd.f32 %v783, %v753
        %v785 = vadd.f32 %v784, %v754
        %v786 = vadd.f32 %v785, %v755
        %v787 = vadd.f32 %v786, %v756
        %v788 = vadd.f32 %v787, %v757
        %v789 = vadd.f32 %v788, %v758
        %v790 = vadd.f32 %v789, %v759
        %v791 = vadd.f32 %v790, %v760
        %v792 = vadd.f32 %v791, %v761
        %v793 = vadd.f32 %v792, %v762
        %v794 = vadd.f32 %v793, %v763
        %v795 = vadd.f32 %v794, %v764
        %v796 = vadd.f32 %v795, %v765
        %v797 = vadd.f32 %v796, %v766
        %v798 = vadd.f32 %v797, %v767
        %v799 = vadd.f32 %v798, %v768
        %v800 = vadd.f32 %v799, %v769
        %v801 = vadd.f32 %v800, %v770
        %v802 = vrot.slane %v801, 4
        %v803 = vadd.f32 %v801, %v802
        %v804 = vrot.slane %v803, 2
        %v805 = vadd.f32 %v803, %v804
        %v806 = vrot.slane %v805, 1
        %v807 = vadd.f32 %v805, %v806
        %808 = vst [vmem:[%s299 + $0x1] sm:$0x1] %v807
        %s809 = smul.u32 32, %s23
        %p810 = scmp.lt.s32.totalorder %s22, 1
        %s811 = scalar_select %p810, %s22, 1
        %p812 = scmp.lt.s32.totalorder %s809, 31
        %s813 = scalar_select %p812, %s809, 31
        %s814 = smul.addr %s811, 32
        %s815 = sadd.s32 %s813, %s814
        %s816 = smul.addr %s815, 8
        %s817 = scalar_lea.vmem %s4, %s816
        %p818 = scmp.lt.s32.totalorder %s22, 1
        %s819 = scalar_select %p818, %s22, 1
        %p820 = scmp.lt.s32.totalorder %s23, 0
        %s821 = scalar_select %p820, %s23, 0
        %s822 = sadd.s32 %s821, %s819
        %s823 = smul.addr %s822, 2
        %s824 = scalar_lea.vmem %s5, %s823
        // Predicated region
        $region41: #{se_bottleneck_pallas.6} parent=35 // pred_check
          %p825 = pneg %p141
        $region42: #{se_bottleneck_pallas.6} parent=35 // pred_check_branch
          %827 = sbr.rel (%p825) target = $region44
        $region43: #{se_bottleneck_pallas.6} parent=35 // pred_region
          %s828 = smul.u32 32, %s23
        $region44: #{se_bottleneck_pallas.6} parent=35 // pred_fallthru
          _
        // Predicated region
        $region45: #{se_bottleneck_pallas.6} parent=35 // pred_check
          %p829 = pneg %p169
        $region46: #{se_bottleneck_pallas.6} parent=35 // pred_check_branch
          %831 = sbr.rel (%p829) target = $region48
        $region47: #{se_bottleneck_pallas.6} parent=35 // pred_region
          _
        $region48: #{se_bottleneck_pallas.6} parent=35 // pred_fallthru
          _
      $region36: #{se_bottleneck_pallas.6} parent=5 // pred_fallthru
        _
      %p832 = scmp.le.s32.totalorder 2, %s13
      // Predicated region
      $region49: #{se_bottleneck_pallas.6} parent=5 // pred_check
        %p833 = pneg %p832
      $region50: #{se_bottleneck_pallas.6} parent=5 // pred_check_branch
        %835 = sbr.rel (%p833) target = $region52
      $region51: #{se_bottleneck_pallas.6} parent=5 // pred_region
        %s836 = ssub.s32 %s13, 2
        // Predicated region
        $region53: #{se_bottleneck_pallas.6} parent=51 // pred_check
          %p837 = pneg %p147
        $region54: #{se_bottleneck_pallas.6} parent=51 // pred_check_branch
          %839 = sbr.rel (%p837) target = $region56
        $region55: #{se_bottleneck_pallas.6} parent=51 // pred_region
          %s840 = smul.u32 32, %s25
          %p841 = scmp.lt.s32.totalorder %s24, 1
          %s842 = scalar_select %p841, %s24, 1
          %p843 = scmp.lt.s32.totalorder %s840, 31
          %s844 = scalar_select %p843, %s840, 31
          %s845 = smul.addr %s842, 32
          %s846 = sadd.s32 %s844, %s845
          %s847 = smul.addr %s846, 8
          %s848 = scalar_lea.vmem %s4, %s847
        $region56: #{se_bottleneck_pallas.6} parent=51 // pred_fallthru
          _
        // Predicated region
        $region57: #{se_bottleneck_pallas.6} parent=51 // pred_check
          %p849 = pneg %p175
        $region58: #{se_bottleneck_pallas.6} parent=51 // pred_check_branch
          %851 = sbr.rel (%p849) target = $region60
        $region59: #{se_bottleneck_pallas.6} parent=51 // pred_region
          %p852 = scmp.lt.s32.totalorder %s24, 1
          %s853 = scalar_select %p852, %s24, 1
          %p854 = scmp.lt.s32.totalorder %s25, 0
          %s855 = scalar_select %p854, %s25, 0
          %s856 = sadd.s32 %s855, %s853
          %s857 = smul.addr %s856, 2
          %s858 = scalar_lea.vmem %s5, %s857
        $region60: #{se_bottleneck_pallas.6} parent=51 // pred_fallthru
          _
      $region52: #{se_bottleneck_pallas.6} parent=5 // pred_fallthru
        _
    $region6: #{se_bottleneck_pallas.6} parent=1 // loop_footer
      %s17 = sadd.s32 1, %s13
    $region7: #{se_bottleneck_pallas.6} parent=1 // loop_footer_branch
      %12 = sbr.rel target = $region3
    $region8: #{se_bottleneck_pallas.6} parent=1 // loop_exit
      _
    %859 = vsyncpa [#allocation3], 1
    %s860 = scalar_lea.sflag [#allocation3], 1
    %861 = vsyncpa %s860, 1

// kernel: se_bottleneck_pallas.7
$region0: #{se_bottleneck_pallas.7}
  #allocation0 [shape = 'u32[]', space=smem, size = 0x4, offset = 0x4, fixed_abs, tag = 'smem constant byte address 0x4 - core index']
  #allocation1 [shape = 'u32[72,128]{1,0:T(1,128)}', space=vmem, size = 0x9000, scoped, tag = 'internal scratch']
  %s0 = inlined_call_operand.vmem [shape: f32[2,256,128], index: 0, kind: input, shape index: {}]
  %s1 = inlined_call_operand.hbm [shape: f32[2,256,128], index: 1, kind: input, shape index: {}]
  %s2 = inlined_call_operand.vmem [shape: f32[1,128], index: 2, kind: input, shape index: {}]
  %s3 = inlined_call_operand.vmem [shape: f32[1,128], index: 3, kind: input, shape index: {}]
  %s4 = inlined_call_operand.vmem [shape: f32[2,1,128], index: 4, kind: input, shape index: {}]
  %s5 = inlined_call_operand.vmem [shape: f32[128,8], index: 5, kind: input, shape index: {}]
  %s6 = inlined_call_operand.vmem [shape: f32[1,8], index: 6, kind: input, shape index: {}]
  %s7 = inlined_call_operand.vmem [shape: f32[8,128], index: 7, kind: input, shape index: {}]
  %s8 = inlined_call_operand.vmem [shape: f32[1,128], index: 8, kind: input, shape index: {}]
  %s9 = inlined_call_operand.hbm [shape: f32[2,256,128], index: 9, kind: output, shape index: {}]
  %s10 = sld [smem:[#allocation0]]
  $region73: #{se_bottleneck_pallas.7} parent=0
    _
  %s12 = ssub.s32 1, %s10
  %s13 = scalar_select 0, %s12, %s10
  $region1: #{se_bottleneck_pallas.7} parent=0
    #allocation2 [shape = 'u8[262144]{0}', space=vmem, size = 0x40000, scoped, tag = 'input window, operand 1']
    #allocation3 [shape = 's32[2]{0}', space=sflag, size = 0x8, scoped, tag = 'scoped memory for se_bottleneck_pallas.7']
    #allocation4 [shape = 's32[2]{0}', space=sflag, size = 0x8, scoped, tag = 'scoped memory for se_bottleneck_pallas.7']
    #allocation5 [shape = 'u8[262144]{0}', space=vmem, size = 0x40000, scoped, tag = 'output window, operand 0']
    %14 = vsyncpa [#allocation3], 0
    %s15 = scalar_lea.sflag [#allocation3], 1
    %16 = vsyncpa %s15, 0
    %17 = vsyncpa [#allocation4], 0
    %s18 = scalar_lea.sflag [#allocation4], 1
    %19 = vsyncpa %s18, 0
    loop: start=0, step=1, limit=4
    $region2: #{se_bottleneck_pallas.7} parent=1 // loop_pre_header
      _
    $region3: #{se_bottleneck_pallas.7} parent=1 // loop_header
      %s21 = sphi 0, %s25
      %p22 = scmp.ge.s32.totalorder %s21, 4
      %s28 = sphi 0, %s40
      %s29 = sphi 0, %s36
      %s30 = sphi 0, %s28
      %s31 = sphi 0, %s29
      %s32 = sphi 0, %s30
      %s33 = sphi 0, %s31
      %s45 = sphi 0, %s47
      %s48 = sphi 0, %s45
      %s49 = sphi 0, %s48
      %s65 = sphi 0, %s49
      %s73 = sphi 0, %s75
      %s76 = sphi 0, %s73
      %s77 = sphi 0, %s76
      %s93 = sphi 0, %s77
      %s97 = sphi 0, %s97
      %s99 = sphi 0, %s97
      %s100 = sphi 0, %s99
      %s114 = sphi 0, %s100
      %s118 = sphi 0, %s118
      %s120 = sphi 0, %s118
      %s121 = sphi 0, %s120
      %s135 = sphi 0, %s121
      %s141 = sphi 0, %s143
      %s144 = sphi 0, %s141
      %s145 = sphi 0, %s144
      %s161 = sphi 0, %s145
      %s165 = sphi 0, %s165
      %s167 = sphi 0, %s165
      %s168 = sphi 0, %s167
      %s182 = sphi 0, %s168
      %s186 = sphi 0, %s186
      %s188 = sphi 0, %s186
      %s189 = sphi 0, %s188
      %s203 = sphi 0, %s189
      %s207 = sphi 0, %s207
      %s209 = sphi 0, %s207
      %s210 = sphi 0, %s209
      %s224 = sphi 0, %s210
      %s228 = sphi 0, %s228
      %s230 = sphi 0, %s228
      %s231 = sphi 0, %s230
      %s245 = sphi 0, %s231
      %s253 = sphi 0, %s255
      %s256 = sphi 0, %s253
      %s257 = sphi 0, %s256
      %s273 = sphi 0, %s257
    $region4: #{se_bottleneck_pallas.7} parent=1 // loop_header_branch
      %24 = sbr.rel (%p22) target = $region8
    $region5: #{se_bottleneck_pallas.7} parent=1 // loop_body
      %s26 = ssub.s32 %s21, 1
      %s27 = ssub.s32 %s21, 2
      %s34 = sadd.s32 1, %s29
      %p35 = scmp.ge.s32.totalorder %s34, 1
      %s36 = scalar_select %p35, 0, %s34
      %s37 = sadd.s32 1, %s28
      %s38 = scalar_select %p35, %s37, %s28
      %p39 = scmp.ge.s32.totalorder %s38, 2
      %s40 = scalar_select %p39, 0, %s38
      %s41 = ssub.s32 %s28, %s40
      %s42 = ssub.s32 %s29, %s36
      %s43 = sor.u32 %s41, %s42
      %p44 = scmp.eq.s32.totalorder %s43, 0
      %s46 = sadd.s32 %s45, 1
      %s47 = scalar_select %p44, %s45, %s46
      %p50 = pneg %p44
      %p51 = scmp.eq.s32.totalorder %s21, 1
      %p52 = por %p50, %p51
      %p53 = scmp.ne.s32.totalorder %s45, %s48
      %p54 = scmp.eq.s32.totalorder %s21, 0
      %p55 = por %p53, %p54
      %p56 = scmp.ne.s32.totalorder %s45, %s48
      %p57 = scmp.eq.s32.totalorder %s26, 1
      %p58 = por %p56, %p57
      %p59 = scmp.ne.s32.totalorder %s48, %s49
      %p60 = scmp.eq.s32.totalorder %s26, 0
      %p61 = por %p59, %p60
      %p62 = scmp.ne.s32.totalorder %s48, %s49
      %p63 = scmp.eq.s32.totalorder %s27, 1
      %p64 = por %p62, %p63
      %p66 = scmp.ne.s32.totalorder %s49, %s65
      %p67 = scmp.eq.s32.totalorder %s27, 0
      %p68 = por %p66, %p67
      %s69 = ssub.s32 %s28, %s40
      %s70 = ssub.s32 %s29, %s36
      %s71 = sor.u32 %s69, %s70
      %p72 = scmp.eq.s32.totalorder %s71, 0
      %s74 = sadd.s32 %s73, 1
      %s75 = scalar_select %p72, %s73, %s74
      %p78 = pneg %p72
      %p79 = scmp.eq.s32.totalorder %s21, 1
      %p80 = por %p78, %p79
      %p81 = scmp.ne.s32.totalorder %s73, %s76
      %p82 = scmp.eq.s32.totalorder %s21, 0
      %p83 = por %p81, %p82
      %p84 = scmp.ne.s32.totalorder %s73, %s76
      %p85 = scmp.eq.s32.totalorder %s26, 1
      %p86 = por %p84, %p85
      %p87 = scmp.ne.s32.totalorder %s76, %s77
      %p88 = scmp.eq.s32.totalorder %s26, 0
      %p89 = por %p87, %p88
      %p90 = scmp.ne.s32.totalorder %s76, %s77
      %p91 = scmp.eq.s32.totalorder %s27, 1
      %p92 = por %p90, %p91
      %p94 = scmp.ne.s32.totalorder %s77, %s93
      %p95 = scmp.eq.s32.totalorder %s27, 0
      %p96 = por %p94, %p95
      %s98 = sadd.s32 %s97, 1
      %p101 = scmp.eq.s32.totalorder %s21, 1
      %p102 = scmp.ne.s32.totalorder %s97, %s99
      %p103 = scmp.eq.s32.totalorder %s21, 0
      %p104 = por %p102, %p103
      %p105 = scmp.ne.s32.totalorder %s97, %s99
      %p106 = scmp.eq.s32.totalorder %s26, 1
      %p107 = por %p105, %p106
      %p108 = scmp.ne.s32.totalorder %s99, %s100
      %p109 = scmp.eq.s32.totalorder %s26, 0
      %p110 = por %p108, %p109
      %p111 = scmp.ne.s32.totalorder %s99, %s100
      %p112 = scmp.eq.s32.totalorder %s27, 1
      %p113 = por %p111, %p112
      %p115 = scmp.ne.s32.totalorder %s100, %s114
      %p116 = scmp.eq.s32.totalorder %s27, 0
      %p117 = por %p115, %p116
      %s119 = sadd.s32 %s118, 1
      %p122 = scmp.eq.s32.totalorder %s21, 1
      %p123 = scmp.ne.s32.totalorder %s118, %s120
      %p124 = scmp.eq.s32.totalorder %s21, 0
      %p125 = por %p123, %p124
      %p126 = scmp.ne.s32.totalorder %s118, %s120
      %p127 = scmp.eq.s32.totalorder %s26, 1
      %p128 = por %p126, %p127
      %p129 = scmp.ne.s32.totalorder %s120, %s121
      %p130 = scmp.eq.s32.totalorder %s26, 0
      %p131 = por %p129, %p130
      %p132 = scmp.ne.s32.totalorder %s120, %s121
      %p133 = scmp.eq.s32.totalorder %s27, 1
      %p134 = por %p132, %p133
      %p136 = scmp.ne.s32.totalorder %s121, %s135
      %p137 = scmp.eq.s32.totalorder %s27, 0
      %p138 = por %p136, %p137
      %s139 = ssub.s32 %s28, %s40
      %p140 = scmp.eq.s32.totalorder %s139, 0
      %s142 = sadd.s32 %s141, 1
      %s143 = scalar_select %p140, %s141, %s142
      %p146 = pneg %p140
      %p147 = scmp.eq.s32.totalorder %s21, 1
      %p148 = por %p146, %p147
      %p149 = scmp.ne.s32.totalorder %s141, %s144
      %p150 = scmp.eq.s32.totalorder %s21, 0
      %p151 = por %p149, %p150
      %p152 = scmp.ne.s32.totalorder %s141, %s144
      %p153 = scmp.eq.s32.totalorder %s26, 1
      %p154 = por %p152, %p153
      %p155 = scmp.ne.s32.totalorder %s144, %s145
      %p156 = scmp.eq.s32.totalorder %s26, 0
      %p157 = por %p155, %p156
      %p158 = scmp.ne.s32.totalorder %s144, %s145
      %p159 = scmp.eq.s32.totalorder %s27, 1
      %p160 = por %p158, %p159
      %p162 = scmp.ne.s32.totalorder %s145, %s161
      %p163 = scmp.eq.s32.totalorder %s27, 0
      %p164 = por %p162, %p163
      %s166 = sadd.s32 %s165, 1
      %p169 = scmp.eq.s32.totalorder %s21, 1
      %p170 = scmp.ne.s32.totalorder %s165, %s167
      %p171 = scmp.eq.s32.totalorder %s21, 0
      %p172 = por %p170, %p171
      %p173 = scmp.ne.s32.totalorder %s165, %s167
      %p174 = scmp.eq.s32.totalorder %s26, 1
      %p175 = por %p173, %p174
      %p176 = scmp.ne.s32.totalorder %s167, %s168
      %p177 = scmp.eq.s32.totalorder %s26, 0
      %p178 = por %p176, %p177
      %p179 = scmp.ne.s32.totalorder %s167, %s168
      %p180 = scmp.eq.s32.totalorder %s27, 1
      %p181 = por %p179, %p180
      %p183 = scmp.ne.s32.totalorder %s168, %s182
      %p184 = scmp.eq.s32.totalorder %s27, 0
      %p185 = por %p183, %p184
      %s187 = sadd.s32 %s186, 1
      %p190 = scmp.eq.s32.totalorder %s21, 1
      %p191 = scmp.ne.s32.totalorder %s186, %s188
      %p192 = scmp.eq.s32.totalorder %s21, 0
      %p193 = por %p191, %p192
      %p194 = scmp.ne.s32.totalorder %s186, %s188
      %p195 = scmp.eq.s32.totalorder %s26, 1
      %p196 = por %p194, %p195
      %p197 = scmp.ne.s32.totalorder %s188, %s189
      %p198 = scmp.eq.s32.totalorder %s26, 0
      %p199 = por %p197, %p198
      %p200 = scmp.ne.s32.totalorder %s188, %s189
      %p201 = scmp.eq.s32.totalorder %s27, 1
      %p202 = por %p200, %p201
      %p204 = scmp.ne.s32.totalorder %s189, %s203
      %p205 = scmp.eq.s32.totalorder %s27, 0
      %p206 = por %p204, %p205
      %s208 = sadd.s32 %s207, 1
      %p211 = scmp.eq.s32.totalorder %s21, 1
      %p212 = scmp.ne.s32.totalorder %s207, %s209
      %p213 = scmp.eq.s32.totalorder %s21, 0
      %p214 = por %p212, %p213
      %p215 = scmp.ne.s32.totalorder %s207, %s209
      %p216 = scmp.eq.s32.totalorder %s26, 1
      %p217 = por %p215, %p216
      %p218 = scmp.ne.s32.totalorder %s209, %s210
      %p219 = scmp.eq.s32.totalorder %s26, 0
      %p220 = por %p218, %p219
      %p221 = scmp.ne.s32.totalorder %s209, %s210
      %p222 = scmp.eq.s32.totalorder %s27, 1
      %p223 = por %p221, %p222
      %p225 = scmp.ne.s32.totalorder %s210, %s224
      %p226 = scmp.eq.s32.totalorder %s27, 0
      %p227 = por %p225, %p226
      %s229 = sadd.s32 %s228, 1
      %p232 = scmp.eq.s32.totalorder %s21, 1
      %p233 = scmp.ne.s32.totalorder %s228, %s230
      %p234 = scmp.eq.s32.totalorder %s21, 0
      %p235 = por %p233, %p234
      %p236 = scmp.ne.s32.totalorder %s228, %s230
      %p237 = scmp.eq.s32.totalorder %s26, 1
      %p238 = por %p236, %p237
      %p239 = scmp.ne.s32.totalorder %s230, %s231
      %p240 = scmp.eq.s32.totalorder %s26, 0
      %p241 = por %p239, %p240
      %p242 = scmp.ne.s32.totalorder %s230, %s231
      %p243 = scmp.eq.s32.totalorder %s27, 1
      %p244 = por %p242, %p243
      %p246 = scmp.ne.s32.totalorder %s231, %s245
      %p247 = scmp.eq.s32.totalorder %s27, 0
      %p248 = por %p246, %p247
      %s249 = ssub.s32 %s28, %s40
      %s250 = ssub.s32 %s29, %s36
      %s251 = sor.u32 %s249, %s250
      %p252 = scmp.eq.s32.totalorder %s251, 0
      %s254 = sadd.s32 %s253, 1
      %s255 = scalar_select %p252, %s253, %s254
      %p258 = pneg %p252
      %p259 = scmp.eq.s32.totalorder %s21, 1
      %p260 = por %p258, %p259
      %p261 = scmp.ne.s32.totalorder %s253, %s256
      %p262 = scmp.eq.s32.totalorder %s21, 0
      %p263 = por %p261, %p262
      %p264 = scmp.ne.s32.totalorder %s253, %s256
      %p265 = scmp.eq.s32.totalorder %s26, 1
      %p266 = por %p264, %p265
      %p267 = scmp.ne.s32.totalorder %s256, %s257
      %p268 = scmp.eq.s32.totalorder %s26, 0
      %p269 = por %p267, %p268
      %p270 = scmp.ne.s32.totalorder %s256, %s257
      %p271 = scmp.eq.s32.totalorder %s27, 1
      %p272 = por %p270, %p271
      %p274 = scmp.ne.s32.totalorder %s257, %s273
      %p275 = scmp.eq.s32.totalorder %s27, 0
      %p276 = por %p274, %p275
      %p277 = scmp.le.s32.totalorder 1, %s21
      %p278 = scmp.lt.s32.totalorder %s21, 3
      %p279 = pnand %p277, %p278
      %p280 = pneg %p279
      // Predicated region
      $region9: #{se_bottleneck_pallas.7} parent=5 // pred_check
        _
      $region10: #{se_bottleneck_pallas.7} parent=5 // pred_check_branch
        %282 = sbr.rel (%p279) target = $region12
      $region11: #{se_bottleneck_pallas.7} parent=5 // pred_region
        %s283 = ssub.s32 %s21, 1
        // Predicated region
        $region13: #{se_bottleneck_pallas.7} parent=11 // pred_check
          %p284 = pneg %p110
        $region14: #{se_bottleneck_pallas.7} parent=11 // pred_check_branch
          %286 = sbr.rel (%p284) target = $region16
        $region15: #{se_bottleneck_pallas.7} parent=11 // pred_region
          _
        $region16: #{se_bottleneck_pallas.7} parent=11 // pred_fallthru
          _
        // Predicated region
        $region17: #{se_bottleneck_pallas.7} parent=11 // pred_check
          %p287 = pneg %p131
        $region18: #{se_bottleneck_pallas.7} parent=11 // pred_check_branch
          %289 = sbr.rel (%p287) target = $region20
        $region19: #{se_bottleneck_pallas.7} parent=11 // pred_region
          _
        $region20: #{se_bottleneck_pallas.7} parent=11 // pred_fallthru
          _
        // Predicated region
        $region21: #{se_bottleneck_pallas.7} parent=11 // pred_check
          %p290 = pneg %p178
        $region22: #{se_bottleneck_pallas.7} parent=11 // pred_check_branch
          %292 = sbr.rel (%p290) target = $region24
        $region23: #{se_bottleneck_pallas.7} parent=11 // pred_region
          _
        $region24: #{se_bottleneck_pallas.7} parent=11 // pred_fallthru
          _
        // Predicated region
        $region25: #{se_bottleneck_pallas.7} parent=11 // pred_check
          %p293 = pneg %p199
        $region26: #{se_bottleneck_pallas.7} parent=11 // pred_check_branch
          %295 = sbr.rel (%p293) target = $region28
        $region27: #{se_bottleneck_pallas.7} parent=11 // pred_region
          _
        $region28: #{se_bottleneck_pallas.7} parent=11 // pred_fallthru
          _
        // Predicated region
        $region29: #{se_bottleneck_pallas.7} parent=11 // pred_check
          %p296 = pneg %p220
        $region30: #{se_bottleneck_pallas.7} parent=11 // pred_check_branch
          %298 = sbr.rel (%p296) target = $region32
        $region31: #{se_bottleneck_pallas.7} parent=11 // pred_region
          _
        $region32: #{se_bottleneck_pallas.7} parent=11 // pred_fallthru
          _
        // Predicated region
        $region33: #{se_bottleneck_pallas.7} parent=11 // pred_check
          %p299 = pneg %p241
        $region34: #{se_bottleneck_pallas.7} parent=11 // pred_check_branch
          %301 = sbr.rel (%p299) target = $region36
        $region35: #{se_bottleneck_pallas.7} parent=11 // pred_region
          _
        $region36: #{se_bottleneck_pallas.7} parent=11 // pred_fallthru
          _
      $region12: #{se_bottleneck_pallas.7} parent=5 // pred_fallthru
        _
      %p302 = scmp.lt.s32.totalorder %s21, 2
      // Predicated region
      $region37: #{se_bottleneck_pallas.7} parent=5 // pred_check
        %p303 = pneg %p302
      $region38: #{se_bottleneck_pallas.7} parent=5 // pred_check_branch
        %305 = sbr.rel (%p303) target = $region40
      $region39: #{se_bottleneck_pallas.7} parent=5 // pred_region
        // Predicated region
        $region41: #{se_bottleneck_pallas.7} parent=39 // pred_check
          %p306 = pneg %p55
        $region42: #{se_bottleneck_pallas.7} parent=39 // pred_check_branch
          %308 = sbr.rel (%p306) target = $region44
        $region43: #{se_bottleneck_pallas.7} parent=39 // pred_region
          %s309 = smul.u32 32, %s29
          %p310 = scmp.lt.s32.totalorder %s28, 1
          %s311 = scalar_select %p310, %s28, 1
          %p312 = scmp.lt.s32.totalorder %s309, 31
          %s313 = scalar_select %p312, %s309, 31
          %s314 = smul.addr %s311, 32
          %s315 = sadd.s32 %s313, %s314
          %s316 = smul.addr %s315, 8
          %s317 = scalar_lea.vmem %s0, %s316
          %s318 = smul.u32 32, %s29
        $region44: #{se_bottleneck_pallas.7} parent=39 // pred_fallthru
          _
        // Predicated region
        $region45: #{se_bottleneck_pallas.7} parent=39 // pred_check
          %p319 = pneg %p83
        $region46: #{se_bottleneck_pallas.7} parent=39 // pred_check_branch
          %321 = sbr.rel (%p319) target = $region48
        $region47: #{se_bottleneck_pallas.7} parent=39 // pred_region
          %s322 = sand.u32 %s73, 1
          %s323 = scalar_lea.sflag [#allocation3], %s322
          %s324 = sand.u32 %s73, 1
          %s325 = smul.addr %s324, 256
          %s326 = scalar_lea.vmem [#allocation2], %s325
          %s327 = smul.u32 32, %s29
          %329 = vsyncadd %s323, 0
          %s330 = smul.addr %s28, 32
          %s331 = sadd.s32 %s327, %s330
          %s332 = smul.addr %s331, 8
          %s333 = scalar_lea.hbm %s1, %s332
          %s334 = sshll.u32 %s333, 4
          %s335 = int_to_ptr.hbm [resolvable:$true] %s334
          %s336 = sshll.u32 %s326, 4
          %s337 = int_to_ptr.vmem [resolvable:$true] %s336
          %342 = dma.hbm_to_vmem [thread:$0]  %s335, 4096, %s337, %s323, 128, 128, 8
        $region48: #{se_bottleneck_pallas.7} parent=39 // pred_fallthru
          _
        // Predicated region
        $region49: #{se_bottleneck_pallas.7} parent=39 // pred_check
          %p343 = pneg %p151
        $region50: #{se_bottleneck_pallas.7} parent=39 // pred_check_branch
          %345 = sbr.rel (%p343) target = $region52
        $region51: #{se_bottleneck_pallas.7} parent=39 // pred_region
          %p346 = scmp.lt.s32.totalorder %s28, 1
          %s347 = scalar_select %p346, %s28, 1
          %s348 = scalar_lea.vmem %s4, %s347
        $region52: #{se_bottleneck_pallas.7} parent=39 // pred_fallthru
          _
      $region40: #{se_bottleneck_pallas.7} parent=5 // pred_fallthru
        _
      %p349 = scmp.le.s32.totalorder 1, %s21
      %p350 = scmp.lt.s32.totalorder %s21, 3
      %p351 = pnand %p349, %p350
      %p352 = pneg %p351
      // Predicated region
      $region53: #{se_bottleneck_pallas.7} parent=5 // pred_check
        _
      $region54: #{se_bottleneck_pallas.7} parent=5 // pred_check_branch
        %354 = sbr.rel (%p351) target = $region56
      $region55: #{se_bottleneck_pallas.7} parent=5 // pred_region
        %s355 = ssub.s32 %s21, 1
        %s356 = sand.u32 %s76, 1
        %s357 = scalar_lea.sflag [#allocation3], %s356
        %s358 = sand.u32 %s76, 1
        %s359 = smul.addr %s358, 256
        %s360 = scalar_lea.vmem [#allocation2], %s359
        // Predicated region
        $region57: #{se_bottleneck_pallas.7} parent=55 // pred_check
          %p361 = pneg %p89
        $region58: #{se_bottleneck_pallas.7} parent=55 // pred_check_branch
          %363 = sbr.rel (%p361) target = $region60
        $region59: #{se_bottleneck_pallas.7} parent=55 // pred_region
          %365 = dma.done %s357, 4096
        $region60: #{se_bottleneck_pallas.7} parent=55 // pred_fallthru
          _
        %s366 = smul.u32 32, %s31
        %p367 = scmp.lt.s32.totalorder %s30, 1
        %s368 = scalar_select %p367, %s30, 1
        %p369 = scmp.lt.s32.totalorder %s366, 31
        %s370 = scalar_select %p369, %s366, 31
        %s371 = smul.addr %s368, 32
        %s372 = sadd.s32 %s370, %s371
        %s373 = smul.addr %s372, 8
        %s374 = scalar_lea.vmem %s0, %s373
        %p375 = pneg %p61
        %p376 = pneg %p58
        %s377 = sand.u32 %s76, 1
        %s378 = scalar_lea.sflag [#allocation3], %s377
        %s379 = sand.u32 %s76, 1
        %s380 = smul.addr %s379, 256
        %s381 = scalar_lea.vmem [#allocation2], %s380
        %p382 = pneg %p89
        %p383 = pneg %p86
        %p384 = pneg %p110
        %p385 = pneg %p107
        %p386 = pneg %p131
        %p387 = pneg %p128
        %p388 = scmp.lt.s32.totalorder %s30, 1
        %s389 = scalar_select %p388, %s30, 1
        %s390 = scalar_lea.vmem %s4, %s389
        %p391 = pneg %p157
        %p392 = pneg %p154
        %p393 = pneg %p178
        %p394 = pneg %p175
        %p395 = pneg %p199
        %p396 = pneg %p196
        %p397 = pneg %p220
        %p398 = pneg %p217
        %p399 = pneg %p241
        %p400 = pneg %p238
        %p401 = pneg %p269
        %p402 = pneg %p266
        %s403 = sand.u32 %s256, 1
        %s404 = scalar_lea.sflag [#allocation4], %s403
        %s405 = sand.u32 %s256, 1
        %s406 = smul.addr %s405, 256
        %s407 = scalar_lea.vmem [#allocation5], %s406
        %s408 = smul.u32 32, %s31
        %p409 = scmp.lt.s32.totalorder %s30, 1
        %s410 = scalar_select %p409, %s30, 1
        %p411 = scmp.lt.s32.totalorder %s408, 31
        %s412 = scalar_select %p411, %s408, 31
        %s413 = smul.addr %s410, 32
        %s414 = sadd.s32 %s412, %s413
        %s415 = smul.addr %s414, 8
        %s416 = scalar_lea.vmem %s0, %s415
        %s417 = smul.u32 32, %s31
        %s418 = smul.u32 32, %s31
        %p419 = scmp.lt.s32.totalorder %s30, 1
        %s420 = scalar_select %p419, %s30, 1
        %s421 = scalar_lea.vmem %s4, %s420
        %s422 = smul.u32 32, %s31
        %v423 = vld [vmem:[%s421] sm:$0x1]
        %v424 = vld [vmem:[%s5] sm:$0xff]
        %v425 = vld [vmem:[%s5 + $0x8] sm:$0xff]
        %v426 = vld [vmem:[%s5 + $0x10] sm:$0xff]
        %v427 = vld [vmem:[%s5 + $0x18] sm:$0xff]
        %v428 = vld [vmem:[%s5 + $0x20] sm:$0xff]
        %v429 = vld [vmem:[%s5 + $0x28] sm:$0xff]
        %v430 = vld [vmem:[%s5 + $0x30] sm:$0xff]
        %v431 = vld [vmem:[%s5 + $0x38] sm:$0xff]
        %v432 = vld [vmem:[%s5 + $0x40] sm:$0xff]
        %v433 = vld [vmem:[%s5 + $0x48] sm:$0xff]
        %v434 = vld [vmem:[%s5 + $0x50] sm:$0xff]
        %v435 = vld [vmem:[%s5 + $0x58] sm:$0xff]
        %v436 = vld [vmem:[%s5 + $0x60] sm:$0xff]
        %v437 = vld [vmem:[%s5 + $0x68] sm:$0xff]
        %v438 = vld [vmem:[%s5 + $0x70] sm:$0xff]
        %v439 = vld [vmem:[%s5 + $0x78] sm:$0xff]
        %v440 = vld [vmem:[%s6] sm:$0x1]
        %441 = vmatpush.msra.mxu0 %v439
        %442 = vmatpush.msra.mxu0 %v438
        %443 = vmatpush.msra.mxu0 %v437
        %444 = vmatpush.msra.mxu0 %v436
        %445 = vmatpush.msra.mxu0 %v435
        %446 = vmatpush.msra.mxu0 %v434
        %447 = vmatpush.msra.mxu0 %v433
        %448 = vmatpush.msra.mxu0 %v432
        %449 = vmatpush.msra.mxu0 %v431
        %450 = vmatpush.msra.mxu0 %v430
        %451 = vmatpush.msra.mxu0 %v429
        %452 = vmatpush.msra.mxu0 %v428
        %453 = vmatpush.msra.mxu0 %v427
        %454 = vmatpush.msra.mxu0 %v426
        %455 = vmatpush.msra.mxu0 %v425
        %456 = vmatpush.msra.mxu0 %v424
        %457 = vmatmul.f32.gmra.mxu0 %v423
        %v458 = vpop.f32.mrf.mxu0
        %v459 = vadd.f32 %v440, %v458
        %460 = vdwg.mxu0
        %vm461 = vcmp.ge.f32.partialorder %v459, 0.0
        %v462 = vmul.f32 %v459, 0.01
        %v463 = vsel %vm461, %v459, %v462
        %v464 = vld [vmem:[%s7] sm:$0xff]
        %v465 = vld [vmem:[%s8] sm:$0x1]
        %vm466 = vcmask 64512
        %v468 = vsel %vm466, %v463, 0
        %470 = vmatpush.msra.mxu0 0.0
        %471 = vmatpush.msra.mxu0 0.0
        %472 = vmatpush.msra.mxu0 0.0
        %473 = vmatpush.msra.mxu0 0.0
        %474 = vmatpush.msra.mxu0 0.0
        %475 = vmatpush.msra.mxu0 0.0
        %476 = vmatpush.msra.mxu0 0.0
        %477 = vmatpush.msra.mxu0 0.0
        %478 = vmatpush.msra.mxu0 0.0
        %479 = vmatpush.msra.mxu0 0.0
        %480 = vmatpush.msra.mxu0 0.0
        %481 = vmatpush.msra.mxu0 0.0
        %482 = vmatpush.msra.mxu0 0.0
        %483 = vmatpush.msra.mxu0 0.0
        %484 = vmatpush.msra.mxu0 0.0
        %485 = vmatpush.msra.mxu0 %v464
        %486 = vmatmul.f32.gmra.mxu0 %v468
        %v487 = vpop.f32.mrf.mxu0
        %v488 = vadd.f32 %v465, %v487
        %489 = vdwg.mxu0
        %v490 = vsub.f32 0.0, %v488
        %v491 = vmul.f32 %v490, 1.442695
        %v492 = vpow.pop %v491
        %v493 = vadd.f32 %v492, 1.0
        %v494 = vrcp.pop %v493
        %v495 = vmul.f32 %v493, %v494
        %v496 = vsub.f32 1.0, %v495
        %v497 = vmul.f32 %v494, %v496
        %v498 = vadd.f32 %v494, %v497
        %vm499 = vweird.f32 %v493
        %vm500 = vweird.f32 %v494
        %vm501 = vmor %vm499, %vm500
        %v502 = vsel %vm501, %v494, %v498
        %v503 = vand.u32 2147483647, %v493
        %vm504 = vcmp.eq.f32.partialorder %v503, 8.507059e+37
        %v505 = vand.u32 %v493, 2147483648
        %v506 = vor.u32 1.1754944e-38, %v505
        %v507 = vsel %vm504, %v506, %v502
        %v508 = vmul.f32 1.0, %v507
        %v509 = vld [vmem:[%s416] sm:$0xff]
        %v510 = vld [vmem:[%s416 + $0x8] sm:$0xff]
        %v511 = vld [vmem:[%s416 + $0x10] sm:$0xff]
        %v512 = vld [vmem:[%s416 + $0x18] sm:$0xff]
        %v513 = vld [vmem:[%s416 + $0x20] sm:$0xff]
        %v514 = vld [vmem:[%s416 + $0x28] sm:$0xff]
        %v515 = vld [vmem:[%s416 + $0x30] sm:$0xff]
        %v516 = vld [vmem:[%s416 + $0x38] sm:$0xff]
        %v517 = vld [vmem:[%s416 + $0x40] sm:$0xff]
        %v518 = vld [vmem:[%s416 + $0x48] sm:$0xff]
        %v519 = vld [vmem:[%s416 + $0x50] sm:$0xff]
        %v520 = vld [vmem:[%s416 + $0x58] sm:$0xff]
        %v521 = vld [vmem:[%s416 + $0x60] sm:$0xff]
        %v522 = vld [vmem:[%s416 + $0x68] sm:$0xff]
        %v523 = vld [vmem:[%s416 + $0x70] sm:$0xff]
        %v524 = vld [vmem:[%s416 + $0x78] sm:$0xff]
        %v525 = vld [vmem:[%s416 + $0x80] sm:$0xff]
        %v526 = vld [vmem:[%s416 + $0x88] sm:$0xff]
        %v527 = vld [vmem:[%s416 + $0x90] sm:$0xff]
        %v528 = vld [vmem:[%s416 + $0x98] sm:$0xff]
        %v529 = vld [vmem:[%s416 + $0xa0] sm:$0xff]
        %v530 = vld [vmem:[%s416 + $0xa8] sm:$0xff]
        %v531 = vld [vmem:[%s416 + $0xb0] sm:$0xff]
        %v532 = vld [vmem:[%s416 + $0xb8] sm:$0xff]
        %v533 = vld [vmem:[%s416 + $0xc0] sm:$0xff]
        %v534 = vld [vmem:[%s416 + $0xc8] sm:$0xff]
        %v535 = vld [vmem:[%s416 + $0xd0] sm:$0xff]
        %v536 = vld [vmem:[%s416 + $0xd8] sm:$0xff]
        %v537 = vld [vmem:[%s416 + $0xe0] sm:$0xff]
        %v538 = vld [vmem:[%s416 + $0xe8] sm:$0xff]
        %v539 = vld [vmem:[%s416 + $0xf0] sm:$0xff]
        %v540 = vld [vmem:[%s416 + $0xf8] sm:$0xff]
        %v541 = vld [vmem:[%s2] sm:$0x1]
        %v543 = vperm.slane %v541, 0
        %v545 = vmul.f32 %v509, %v543
        %v546 = vmul.f32 %v510, %v543
        %v547 = vmul.f32 %v511, %v543
        %v548 = vmul.f32 %v512, %v543
        %v549 = vmul.f32 %v513, %v543
        %v550 = vmul.f32 %v514, %v543
        %v551 = vmul.f32 %v515, %v543
        %v552 = vmul.f32 %v516, %v543
        %v553 = vmul.f32 %v517, %v543
        %v554 = vmul.f32 %v518, %v543
        %v555 = vmul.f32 %v519, %v543
        %v556 = vmul.f32 %v520, %v543
        %v557 = vmul.f32 %v521, %v543
        %v558 = vmul.f32 %v522, %v543
        %v559 = vmul.f32 %v523, %v543
        %v560 = vmul.f32 %v524, %v543
        %v561 = vmul.f32 %v525, %v543
        %v562 = vmul.f32 %v526, %v543
        %v563 = vmul.f32 %v527, %v543
        %v564 = vmul.f32 %v528, %v543
        %v565 = vmul.f32 %v529, %v543
        %v566 = vmul.f32 %v530, %v543
        %v567 = vmul.f32 %v531, %v543
        %v568 = vmul.f32 %v532, %v543
        %v569 = vmul.f32 %v533, %v543
        %v570 = vmul.f32 %v534, %v543
        %v571 = vmul.f32 %v535, %v543
        %v572 = vmul.f32 %v536, %v543
        %v573 = vmul.f32 %v537, %v543
        %v574 = vmul.f32 %v538, %v543
        %v575 = vmul.f32 %v539, %v543
        %v576 = vmul.f32 %v540, %v543
        %v577 = vld [vmem:[%s3] sm:$0x1]
        %v579 = vperm.slane %v577, 0
        %v581 = vadd.f32 %v545, %v579
        %v582 = vadd.f32 %v546, %v579
        %v583 = vadd.f32 %v547, %v579
        %v584 = vadd.f32 %v548, %v579
        %v585 = vadd.f32 %v549, %v579
        %v586 = vadd.f32 %v550, %v579
        %v587 = vadd.f32 %v551, %v579
        %v588 = vadd.f32 %v552, %v579
        %v589 = vadd.f32 %v553, %v579
        %v590 = vadd.f32 %v554, %v579
        %v591 = vadd.f32 %v555, %v579
        %v592 = vadd.f32 %v556, %v579
        %v593 = vadd.f32 %v557, %v579
        %v594 = vadd.f32 %v558, %v579
        %v595 = vadd.f32 %v559, %v579
        %v596 = vadd.f32 %v560, %v579
        %v597 = vadd.f32 %v561, %v579
        %v598 = vadd.f32 %v562, %v579
        %v599 = vadd.f32 %v563, %v579
        %v600 = vadd.f32 %v564, %v579
        %v601 = vadd.f32 %v565, %v579
        %v602 = vadd.f32 %v566, %v579
        %v603 = vadd.f32 %v567, %v579
        %v604 = vadd.f32 %v568, %v579
        %v605 = vadd.f32 %v569, %v579
        %v606 = vadd.f32 %v570, %v579
        %v607 = vadd.f32 %v571, %v579
        %v608 = vadd.f32 %v572, %v579
        %v609 = vadd.f32 %v573, %v579
        %v610 = vadd.f32 %v574, %v579
        %v611 = vadd.f32 %v575, %v579
        %v612 = vadd.f32 %v576, %v579
        %v613 = vperm.slane %v508, 0
        %v614 = vmul.f32 %v613, %v581
        %v615 = vmul.f32 %v613, %v582
        %v616 = vmul.f32 %v613, %v583
        %v617 = vmul.f32 %v613, %v584
        %v618 = vmul.f32 %v613, %v585
        %v619 = vmul.f32 %v613, %v586
        %v620 = vmul.f32 %v613, %v587
        %v621 = vmul.f32 %v613, %v588
        %v622 = vmul.f32 %v613, %v589
        %v623 = vmul.f32 %v613, %v590
        %v624 = vmul.f32 %v613, %v591
        %v625 = vmul.f32 %v613, %v592
        %v626 = vmul.f32 %v613, %v593
        %v627 = vmul.f32 %v613, %v594
        %v628 = vmul.f32 %v613, %v595
        %v629 = vmul.f32 %v613, %v596
        %v630 = vmul.f32 %v613, %v597
        %v631 = vmul.f32 %v613, %v598
        %v632 = vmul.f32 %v613, %v599
        %v633 = vmul.f32 %v613, %v600
        %v634 = vmul.f32 %v613, %v601
        %v635 = vmul.f32 %v613, %v602
        %v636 = vmul.f32 %v613, %v603
        %v637 = vmul.f32 %v613, %v604
        %v638 = vmul.f32 %v613, %v605
        %v639 = vmul.f32 %v613, %v606
        %v640 = vmul.f32 %v613, %v607
        %v641 = vmul.f32 %v613, %v608
        %v642 = vmul.f32 %v613, %v609
        %v643 = vmul.f32 %v613, %v610
        %v644 = vmul.f32 %v613, %v611
        %v645 = vmul.f32 %v613, %v612
        %v646 = vld [vmem:[%s360] sm:$0xff]
        %v647 = vld [vmem:[%s360 + $0x8] sm:$0xff]
        %v648 = vld [vmem:[%s360 + $0x10] sm:$0xff]
        %v649 = vld [vmem:[%s360 + $0x18] sm:$0xff]
        %v650 = vld [vmem:[%s360 + $0x20] sm:$0xff]
        %v651 = vld [vmem:[%s360 + $0x28] sm:$0xff]
        %v652 = vld [vmem:[%s360 + $0x30] sm:$0xff]
        %v653 = vld [vmem:[%s360 + $0x38] sm:$0xff]
        %v654 = vld [vmem:[%s360 + $0x40] sm:$0xff]
        %v655 = vld [vmem:[%s360 + $0x48] sm:$0xff]
        %v656 = vld [vmem:[%s360 + $0x50] sm:$0xff]
        %v657 = vld [vmem:[%s360 + $0x58] sm:$0xff]
        %v658 = vld [vmem:[%s360 + $0x60] sm:$0xff]
        %v659 = vld [vmem:[%s360 + $0x68] sm:$0xff]
        %v660 = vld [vmem:[%s360 + $0x70] sm:$0xff]
        %v661 = vld [vmem:[%s360 + $0x78] sm:$0xff]
        %v662 = vld [vmem:[%s360 + $0x80] sm:$0xff]
        %v663 = vld [vmem:[%s360 + $0x88] sm:$0xff]
        %v664 = vld [vmem:[%s360 + $0x90] sm:$0xff]
        %v665 = vld [vmem:[%s360 + $0x98] sm:$0xff]
        %v666 = vld [vmem:[%s360 + $0xa0] sm:$0xff]
        %v667 = vld [vmem:[%s360 + $0xa8] sm:$0xff]
        %v668 = vld [vmem:[%s360 + $0xb0] sm:$0xff]
        %v669 = vld [vmem:[%s360 + $0xb8] sm:$0xff]
        %v670 = vld [vmem:[%s360 + $0xc0] sm:$0xff]
        %v671 = vld [vmem:[%s360 + $0xc8] sm:$0xff]
        %v672 = vld [vmem:[%s360 + $0xd0] sm:$0xff]
        %v673 = vld [vmem:[%s360 + $0xd8] sm:$0xff]
        %v674 = vld [vmem:[%s360 + $0xe0] sm:$0xff]
        %v675 = vld [vmem:[%s360 + $0xe8] sm:$0xff]
        %v676 = vld [vmem:[%s360 + $0xf0] sm:$0xff]
        %v677 = vld [vmem:[%s360 + $0xf8] sm:$0xff]
        %v678 = vadd.f32 %v614, %v646
        %v679 = vadd.f32 %v615, %v647
        %v680 = vadd.f32 %v616, %v648
        %v681 = vadd.f32 %v617, %v649
        %v682 = vadd.f32 %v618, %v650
        %v683 = vadd.f32 %v619, %v651
        %v684 = vadd.f32 %v620, %v652
        %v685 = vadd.f32 %v621, %v653
        %v686 = vadd.f32 %v622, %v654
        %v687 = vadd.f32 %v623, %v655
        %v688 = vadd.f32 %v624, %v656
        %v689 = vadd.f32 %v625, %v657
        %v690 = vadd.f32 %v626, %v658
        %v691 = vadd.f32 %v627, %v659
        %v692 = vadd.f32 %v628, %v660
        %v693 = vadd.f32 %v629, %v661
        %v694 = vadd.f32 %v630, %v662
        %v695 = vadd.f32 %v631, %v663
        %v696 = vadd.f32 %v632, %v664
        %v697 = vadd.f32 %v633, %v665
        %v698 = vadd.f32 %v634, %v666
        %v699 = vadd.f32 %v635, %v667
        %v700 = vadd.f32 %v636, %v668
        %v701 = vadd.f32 %v637, %v669
        %v702 = vadd.f32 %v638, %v670
        %v703 = vadd.f32 %v639, %v671
        %v704 = vadd.f32 %v640, %v672
        %v705 = vadd.f32 %v641, %v673
        %v706 = vadd.f32 %v642, %v674
        %v707 = vadd.f32 %v643, %v675
        %v708 = vadd.f32 %v644, %v676
        %v709 = vadd.f32 %v645, %v677
        %vm710 = vcmp.ge.f32.partialorder %v678, 0.0
        %vm711 = vcmp.ge.f32.partialorder %v679, 0.0
        %vm712 = vcmp.ge.f32.partialorder %v680, 0.0
        %vm713 = vcmp.ge.f32.partialorder %v681, 0.0
        %vm714 = vcmp.ge.f32.partialorder %v682, 0.0
        %vm715 = vcmp.ge.f32.partialorder %v683, 0.0
        %vm716 = vcmp.ge.f32.partialorder %v684, 0.0
        %vm717 = vcmp.ge.f32.partialorder %v685, 0.0
        %vm718 = vcmp.ge.f32.partialorder %v686, 0.0
        %vm719 = vcmp.ge.f32.partialorder %v687, 0.0
        %vm720 = vcmp.ge.f32.partialorder %v688, 0.0
        %vm721 = vcmp.ge.f32.partialorder %v689, 0.0
        %vm722 = vcmp.ge.f32.partialorder %v690, 0.0
        %vm723 = vcmp.ge.f32.partialorder %v691, 0.0
        %vm724 = vcmp.ge.f32.partialorder %v692, 0.0
        %vm725 = vcmp.ge.f32.partialorder %v693, 0.0
        %vm726 = vcmp.ge.f32.partialorder %v694, 0.0
        %vm727 = vcmp.ge.f32.partialorder %v695, 0.0
        %vm728 = vcmp.ge.f32.partialorder %v696, 0.0
        %vm729 = vcmp.ge.f32.partialorder %v697, 0.0
        %vm730 = vcmp.ge.f32.partialorder %v698, 0.0
        %vm731 = vcmp.ge.f32.partialorder %v699, 0.0
        %vm732 = vcmp.ge.f32.partialorder %v700, 0.0
        %vm733 = vcmp.ge.f32.partialorder %v701, 0.0
        %vm734 = vcmp.ge.f32.partialorder %v702, 0.0
        %vm735 = vcmp.ge.f32.partialorder %v703, 0.0
        %vm736 = vcmp.ge.f32.partialorder %v704, 0.0
        %vm737 = vcmp.ge.f32.partialorder %v705, 0.0
        %vm738 = vcmp.ge.f32.partialorder %v706, 0.0
        %vm739 = vcmp.ge.f32.partialorder %v707, 0.0
        %vm740 = vcmp.ge.f32.partialorder %v708, 0.0
        %vm741 = vcmp.ge.f32.partialorder %v709, 0.0
        %v742 = vmul.f32 %v678, 0.01
        %v743 = vmul.f32 %v679, 0.01
        %v744 = vmul.f32 %v680, 0.01
        %v745 = vmul.f32 %v681, 0.01
        %v746 = vmul.f32 %v682, 0.01
        %v747 = vmul.f32 %v683, 0.01
        %v748 = vmul.f32 %v684, 0.01
        %v749 = vmul.f32 %v685, 0.01
        %v750 = vmul.f32 %v686, 0.01
        %v751 = vmul.f32 %v687, 0.01
        %v752 = vmul.f32 %v688, 0.01
        %v753 = vmul.f32 %v689, 0.01
        %v754 = vmul.f32 %v690, 0.01
        %v755 = vmul.f32 %v691, 0.01
        %v756 = vmul.f32 %v692, 0.01
        %v757 = vmul.f32 %v693, 0.01
        %v758 = vmul.f32 %v694, 0.01
        %v759 = vmul.f32 %v695, 0.01
        %v760 = vmul.f32 %v696, 0.01
        %v761 = vmul.f32 %v697, 0.01
        %v762 = vmul.f32 %v698, 0.01
        %v763 = vmul.f32 %v699, 0.01
        %v764 = vmul.f32 %v700, 0.01
        %v765 = vmul.f32 %v701, 0.01
        %v766 = vmul.f32 %v702, 0.01
        %v767 = vmul.f32 %v703, 0.01
        %v768 = vmul.f32 %v704, 0.01
        %v769 = vmul.f32 %v705, 0.01
        %v770 = vmul.f32 %v706, 0.01
        %v771 = vmul.f32 %v707, 0.01
        %v772 = vmul.f32 %v708, 0.01
        %v773 = vmul.f32 %v709, 0.01
        %v774 = vsel %vm710, %v678, %v742
        %v775 = vsel %vm711, %v679, %v743
        %v776 = vsel %vm712, %v680, %v744
        %v777 = vsel %vm713, %v681, %v745
        %v778 = vsel %vm714, %v682, %v746
        %v779 = vsel %vm715, %v683, %v747
        %v780 = vsel %vm716, %v684, %v748
        %v781 = vsel %vm717, %v685, %v749
        %v782 = vsel %vm718, %v686, %v750
        %v783 = vsel %vm719, %v687, %v751
        %v784 = vsel %vm720, %v688, %v752
        %v785 = vsel %vm721, %v689, %v753
        %v786 = vsel %vm722, %v690, %v754
        %v787 = vsel %vm723, %v691, %v755
        %v788 = vsel %vm724, %v692, %v756
        %v789 = vsel %vm725, %v693, %v757
        %v790 = vsel %vm726, %v694, %v758
        %v791 = vsel %vm727, %v695, %v759
        %v792 = vsel %vm728, %v696, %v760
        %v793 = vsel %vm729, %v697, %v761
        %v794 = vsel %vm730, %v698, %v762
        %v795 = vsel %vm731, %v699, %v763
        %v796 = vsel %vm732, %v700, %v764
        %v797 = vsel %vm733, %v701, %v765
        %v798 = vsel %vm734, %v702, %v766
        %v799 = vsel %vm735, %v703, %v767
        %v800 = vsel %vm736, %v704, %v768
        %v801 = vsel %vm737, %v705, %v769
        %v802 = vsel %vm738, %v706, %v770
        %v803 = vsel %vm739, %v707, %v771
        %v804 = vsel %vm740, %v708, %v772
        %v805 = vsel %vm741, %v709, %v773
        %806 = vst [vmem:[%s407] sm:$0xff] %v774
        %807 = vst [vmem:[%s407 + $0x8] sm:$0xff] %v775
        %808 = vst [vmem:[%s407 + $0x10] sm:$0xff] %v776
        %809 = vst [vmem:[%s407 + $0x18] sm:$0xff] %v777
        %810 = vst [vmem:[%s407 + $0x20] sm:$0xff] %v778
        %811 = vst [vmem:[%s407 + $0x28] sm:$0xff] %v779
        %812 = vst [vmem:[%s407 + $0x30] sm:$0xff] %v780
        %813 = vst [vmem:[%s407 + $0x38] sm:$0xff] %v781
        %814 = vst [vmem:[%s407 + $0x40] sm:$0xff] %v782
        %815 = vst [vmem:[%s407 + $0x48] sm:$0xff] %v783
        %816 = vst [vmem:[%s407 + $0x50] sm:$0xff] %v784
        %817 = vst [vmem:[%s407 + $0x58] sm:$0xff] %v785
        %818 = vst [vmem:[%s407 + $0x60] sm:$0xff] %v786
        %819 = vst [vmem:[%s407 + $0x68] sm:$0xff] %v787
        %820 = vst [vmem:[%s407 + $0x70] sm:$0xff] %v788
        %821 = vst [vmem:[%s407 + $0x78] sm:$0xff] %v789
        %822 = vst [vmem:[%s407 + $0x80] sm:$0xff] %v790
        %823 = vst [vmem:[%s407 + $0x88] sm:$0xff] %v791
        %824 = vst [vmem:[%s407 + $0x90] sm:$0xff] %v792
        %825 = vst [vmem:[%s407 + $0x98] sm:$0xff] %v793
        %826 = vst [vmem:[%s407 + $0xa0] sm:$0xff] %v794
        %827 = vst [vmem:[%s407 + $0xa8] sm:$0xff] %v795
        %828 = vst [vmem:[%s407 + $0xb0] sm:$0xff] %v796
        %829 = vst [vmem:[%s407 + $0xb8] sm:$0xff] %v797
        %830 = vst [vmem:[%s407 + $0xc0] sm:$0xff] %v798
        %831 = vst [vmem:[%s407 + $0xc8] sm:$0xff] %v799
        %832 = vst [vmem:[%s407 + $0xd0] sm:$0xff] %v800
        %833 = vst [vmem:[%s407 + $0xd8] sm:$0xff] %v801
        %834 = vst [vmem:[%s407 + $0xe0] sm:$0xff] %v802
        %835 = vst [vmem:[%s407 + $0xe8] sm:$0xff] %v803
        %836 = vst [vmem:[%s407 + $0xf0] sm:$0xff] %v804
        %837 = vst [vmem:[%s407 + $0xf8] sm:$0xff] %v805
        %s838 = sand.u32 %s256, 1
        %s839 = scalar_lea.sflag [#allocation4], %s838
        %s840 = sand.u32 %s256, 1
        %s841 = smul.addr %s840, 256
        %s842 = scalar_lea.vmem [#allocation5], %s841
        // Predicated region
        $region61: #{se_bottleneck_pallas.7} parent=55 // pred_check
          %p843 = pneg %p266
        $region62: #{se_bottleneck_pallas.7} parent=55 // pred_check_branch
          %845 = sbr.rel (%p843) target = $region64
        $region63: #{se_bottleneck_pallas.7} parent=55 // pred_region
          %s846 = smul.u32 32, %s31
          %848 = vsyncadd %s839, 0
          %s849 = smul.addr %s30, 32
          %s850 = sadd.s32 %s846, %s849
          %s851 = smul.addr %s850, 8
          %s852 = scalar_lea.hbm %s9, %s851
          %s853 = sshll.u32 %s842, 4
          %s854 = int_to_ptr.vmem [resolvable:$true] %s853
          %s855 = sshll.u32 %s852, 4
          %s856 = int_to_ptr.hbm [resolvable:$true] %s855
          %861 = dma.vmem_to_hbm [thread:$0]  %s854, 4096, %s856, %s839, 128, 128, 8
        $region64: #{se_bottleneck_pallas.7} parent=55 // pred_fallthru
          _
      $region56: #{se_bottleneck_pallas.7} parent=5 // pred_fallthru
        _
      %p862 = scmp.le.s32.totalorder 2, %s21
      // Predicated region
      $region65: #{se_bottleneck_pallas.7} parent=5 // pred_check
        %p863 = pneg %p862
      $region66: #{se_bottleneck_pallas.7} parent=5 // pred_check_branch
        %865 = sbr.rel (%p863) target = $region68
      $region67: #{se_bottleneck_pallas.7} parent=5 // pred_region
        %s866 = ssub.s32 %s21, 2
        // Predicated region
        $region69: #{se_bottleneck_pallas.7} parent=67 // pred_check
          %p867 = pneg %p272
        $region70: #{se_bottleneck_pallas.7} parent=67 // pred_check_branch
          %869 = sbr.rel (%p867) target = $region72
        $region71: #{se_bottleneck_pallas.7} parent=67 // pred_region
          %s870 = sand.u32 %s257, 1
          %s871 = scalar_lea.sflag [#allocation4], %s870
          %s872 = sand.u32 %s257, 1
          %s873 = smul.addr %s872, 256
          %s874 = scalar_lea.vmem [#allocation5], %s873
          %876 = dma.done %s871, 4096
        $region72: #{se_bottleneck_pallas.7} parent=67 // pred_fallthru
          _
      $region68: #{se_bottleneck_pallas.7} parent=5 // pred_fallthru
        _
    $region6: #{se_bottleneck_pallas.7} parent=1 // loop_footer
      %s25 = sadd.s32 1, %s21
    $region7: #{se_bottleneck_pallas.7} parent=1 // loop_footer_branch
      %20 = sbr.rel target = $region3
    $region8: #{se_bottleneck_pallas.7} parent=1 // loop_exit
      _
    %877 = vsyncpa [#allocation3], 1
    %s878 = scalar_lea.sflag [#allocation3], 1
    %879 = vsyncpa %s878, 1
    %880 = vsyncpa [#allocation4], 1
    %s881 = scalar_lea.sflag [#allocation4], 1
    %882 = vsyncpa %s881, 1

// kernel: se_bottleneck_pallas.5
$region0: #{se_bottleneck_pallas.5}
  #allocation0 [shape = 'u32[]', space=smem, size = 0x4, offset = 0x4, fixed_abs, tag = 'smem constant byte address 0x4 - core index']
  #allocation1 [shape = 'u32[72,128]{1,0:T(1,128)}', space=vmem, size = 0x9000, scoped, tag = 'internal scratch']
  #allocation2 [shape = 'bf16[256,1152]{1,0:T(8,128)(2,1)}', space=vmem, size = 0x90000, scoped, tag = 'scratch operand']
  %s0 = inlined_call_operand.vmem [shape: f32[2,16,16,128], index: 0, kind: input, shape index: {}]
  %s1 = inlined_call_operand.vmem [shape: f32[1,128], index: 1, kind: input, shape index: {}]
  %s2 = inlined_call_operand.vmem [shape: f32[1,128], index: 2, kind: input, shape index: {}]
  %s3 = inlined_call_operand.hbm [shape: bf16[1152,128], index: 3, kind: input, shape index: {}]
  %s4 = inlined_call_operand.vmem [shape: f32[2,256,128], index: 4, kind: output, shape index: {0}]
  %s5 = inlined_call_operand.vmem [shape: f32[2,2,128], index: 5, kind: output, shape index: {1}]
  %6 = xla_tuple %s4, %s5
  %s7 = sld [smem:[#allocation0]]
  $region61: #{se_bottleneck_pallas.5} parent=0
    _
  %s9 = ssub.s32 1, %s7
  %s10 = scalar_select 0, %s9, %s7
  $region1: #{se_bottleneck_pallas.5} parent=0
    #allocation3 [shape = 'u8[294912]{0}', space=vmem, size = 0x48000, scoped, tag = 'input window, operand 3, single buffered']
    #allocation4 [shape = 's32[2]{0}', space=sflag, size = 0x8, scoped, tag = 'scoped memory for se_bottleneck_pallas.5']
    %11 = vsyncpa [#allocation4], 0
    loop: start=0, step=1, limit=4
    $region2: #{se_bottleneck_pallas.5} parent=1 // loop_pre_header
      _
    $region3: #{se_bottleneck_pallas.5} parent=1 // loop_header
      %s13 = sphi 0, %s17
      %p14 = scmp.ge.s32.totalorder %s13, 4
      %s23 = sphi 0, %s25
      %s26 = sphi 0, %s23
      %s27 = sphi 0, %s26
      %s43 = sphi 0, %s27
      %s47 = sphi 0, %s47
      %s49 = sphi 0, %s47
      %s50 = sphi 0, %s49
      %s64 = sphi 0, %s50
      %s68 = sphi 0, %s68
      %s70 = sphi 0, %s68
      %s71 = sphi 0, %s70
      %s85 = sphi 0, %s71
      %s89 = sphi 0, %s89
      %s91 = sphi 0, %s89
      %s92 = sphi 0, %s91
      %s106 = sphi 0, %s92
      %s112 = sphi 0, %s114
      %s115 = sphi 0, %s112
      %s116 = sphi 0, %s115
      %s132 = sphi 0, %s116
      %s138 = sphi 0, %s140
      %s141 = sphi 0, %s138
      %s142 = sphi 0, %s141
      %s158 = sphi 0, %s142
    $region4: #{se_bottleneck_pallas.5} parent=1 // loop_header_branch
      %16 = sbr.rel (%p14) target = $region8
    $region5: #{se_bottleneck_pallas.5} parent=1 // loop_body
      %s18 = ssub.s32 %s13, 1
      %s19 = ssub.s32 %s13, 2
      %s20 = sadd.s32 %s13, 1
      %s21 = ssub.s32 %s13, %s20
      %p22 = scmp.eq.s32.totalorder %s21, 0
      %s24 = sadd.s32 %s23, 1
      %s25 = scalar_select %p22, %s23, %s24
      %p28 = pneg %p22
      %p29 = scmp.eq.s32.totalorder %s13, 1
      %p30 = por %p28, %p29
      %p31 = scmp.ne.s32.totalorder %s23, %s26
      %p32 = scmp.eq.s32.totalorder %s13, 0
      %p33 = por %p31, %p32
      %p34 = scmp.ne.s32.totalorder %s23, %s26
      %p35 = scmp.eq.s32.totalorder %s18, 1
      %p36 = por %p34, %p35
      %p37 = scmp.ne.s32.totalorder %s26, %s27
      %p38 = scmp.eq.s32.totalorder %s18, 0
      %p39 = por %p37, %p38
      %p40 = scmp.ne.s32.totalorder %s26, %s27
      %p41 = scmp.eq.s32.totalorder %s19, 1
      %p42 = por %p40, %p41
      %p44 = scmp.ne.s32.totalorder %s27, %s43
      %p45 = scmp.eq.s32.totalorder %s19, 0
      %p46 = por %p44, %p45
      %s48 = sadd.s32 %s47, 1
      %p51 = scmp.eq.s32.totalorder %s13, 1
      %p52 = scmp.ne.s32.totalorder %s47, %s49
      %p53 = scmp.eq.s32.totalorder %s13, 0
      %p54 = por %p52, %p53
      %p55 = scmp.ne.s32.totalorder %s47, %s49
      %p56 = scmp.eq.s32.totalorder %s18, 1
      %p57 = por %p55, %p56
      %p58 = scmp.ne.s32.totalorder %s49, %s50
      %p59 = scmp.eq.s32.totalorder %s18, 0
      %p60 = por %p58, %p59
      %p61 = scmp.ne.s32.totalorder %s49, %s50
      %p62 = scmp.eq.s32.totalorder %s19, 1
      %p63 = por %p61, %p62
      %p65 = scmp.ne.s32.totalorder %s50, %s64
      %p66 = scmp.eq.s32.totalorder %s19, 0
      %p67 = por %p65, %p66
      %s69 = sadd.s32 %s68, 1
      %p72 = scmp.eq.s32.totalorder %s13, 1
      %p73 = scmp.ne.s32.totalorder %s68, %s70
      %p74 = scmp.eq.s32.totalorder %s13, 0
      %p75 = por %p73, %p74
      %p76 = scmp.ne.s32.totalorder %s68, %s70
      %p77 = scmp.eq.s32.totalorder %s18, 1
      %p78 = por %p76, %p77
      %p79 = scmp.ne.s32.totalorder %s70, %s71
      %p80 = scmp.eq.s32.totalorder %s18, 0
      %p81 = por %p79, %p80
      %p82 = scmp.ne.s32.totalorder %s70, %s71
      %p83 = scmp.eq.s32.totalorder %s19, 1
      %p84 = por %p82, %p83
      %p86 = scmp.ne.s32.totalorder %s71, %s85
      %p87 = scmp.eq.s32.totalorder %s19, 0
      %p88 = por %p86, %p87
      %s90 = sadd.s32 %s89, 1
      %p93 = scmp.eq.s32.totalorder %s13, 1
      %p94 = scmp.ne.s32.totalorder %s89, %s91
      %p95 = scmp.eq.s32.totalorder %s13, 0
      %p96 = por %p94, %p95
      %p97 = scmp.ne.s32.totalorder %s89, %s91
      %p98 = scmp.eq.s32.totalorder %s18, 1
      %p99 = por %p97, %p98
      %p100 = scmp.ne.s32.totalorder %s91, %s92
      %p101 = scmp.eq.s32.totalorder %s18, 0
      %p102 = por %p100, %p101
      %p103 = scmp.ne.s32.totalorder %s91, %s92
      %p104 = scmp.eq.s32.totalorder %s19, 1
      %p105 = por %p103, %p104
      %p107 = scmp.ne.s32.totalorder %s92, %s106
      %p108 = scmp.eq.s32.totalorder %s19, 0
      %p109 = por %p107, %p108
      %s110 = ssub.s32 %s13, %s20
      %p111 = scmp.eq.s32.totalorder %s110, 0
      %s113 = sadd.s32 %s112, 1
      %s114 = scalar_select %p111, %s112, %s113
      %p117 = pneg %p111
      %p118 = scmp.eq.s32.totalorder %s13, 1
      %p119 = por %p117, %p118
      %p120 = scmp.ne.s32.totalorder %s112, %s115
      %p121 = scmp.eq.s32.totalorder %s13, 0
      %p122 = por %p120, %p121
      %p123 = scmp.ne.s32.totalorder %s112, %s115
      %p124 = scmp.eq.s32.totalorder %s18, 1
      %p125 = por %p123, %p124
      %p126 = scmp.ne.s32.totalorder %s115, %s116
      %p127 = scmp.eq.s32.totalorder %s18, 0
      %p128 = por %p126, %p127
      %p129 = scmp.ne.s32.totalorder %s115, %s116
      %p130 = scmp.eq.s32.totalorder %s19, 1
      %p131 = por %p129, %p130
      %p133 = scmp.ne.s32.totalorder %s116, %s132
      %p134 = scmp.eq.s32.totalorder %s19, 0
      %p135 = por %p133, %p134
      %s136 = ssub.s32 %s13, %s20
      %p137 = scmp.eq.s32.totalorder %s136, 0
      %s139 = sadd.s32 %s138, 1
      %s140 = scalar_select %p137, %s138, %s139
      %p143 = pneg %p137
      %p144 = scmp.eq.s32.totalorder %s13, 1
      %p145 = por %p143, %p144
      %p146 = scmp.ne.s32.totalorder %s138, %s141
      %p147 = scmp.eq.s32.totalorder %s13, 0
      %p148 = por %p146, %p147
      %p149 = scmp.ne.s32.totalorder %s138, %s141
      %p150 = scmp.eq.s32.totalorder %s18, 1
      %p151 = por %p149, %p150
      %p152 = scmp.ne.s32.totalorder %s141, %s142
      %p153 = scmp.eq.s32.totalorder %s18, 0
      %p154 = por %p152, %p153
      %p155 = scmp.ne.s32.totalorder %s141, %s142
      %p156 = scmp.eq.s32.totalorder %s19, 1
      %p157 = por %p155, %p156
      %p159 = scmp.ne.s32.totalorder %s142, %s158
      %p160 = scmp.eq.s32.totalorder %s19, 0
      %p161 = por %p159, %p160
      %p162 = scmp.le.s32.totalorder 1, %s13
      %p163 = scmp.lt.s32.totalorder %s13, 3
      %p164 = pnand %p162, %p163
      %p165 = pneg %p164
      // Predicated region
      $region9: #{se_bottleneck_pallas.5} parent=5 // pred_check
        _
      $region10: #{se_bottleneck_pallas.5} parent=5 // pred_check_branch
        %167 = sbr.rel (%p164) target = $region12
      $region11: #{se_bottleneck_pallas.5} parent=5 // pred_region
        %s168 = ssub.s32 %s13, 1
        // Predicated region
        $region13: #{se_bottleneck_pallas.5} parent=11 // pred_check
          %p169 = pneg %p60
        $region14: #{se_bottleneck_pallas.5} parent=11 // pred_check_branch
          %171 = sbr.rel (%p169) target = $region16
        $region15: #{se_bottleneck_pallas.5} parent=11 // pred_region
          _
        $region16: #{se_bottleneck_pallas.5} parent=11 // pred_fallthru
          _
        // Predicated region
        $region17: #{se_bottleneck_pallas.5} parent=11 // pred_check
          %p172 = pneg %p81
        $region18: #{se_bottleneck_pallas.5} parent=11 // pred_check_branch
          %174 = sbr.rel (%p172) target = $region20
        $region19: #{se_bottleneck_pallas.5} parent=11 // pred_region
          _
        $region20: #{se_bottleneck_pallas.5} parent=11 // pred_fallthru
          _
        // Predicated region
        $region21: #{se_bottleneck_pallas.5} parent=11 // pred_check
          %p175 = pneg %p102
        $region22: #{se_bottleneck_pallas.5} parent=11 // pred_check_branch
          %177 = sbr.rel (%p175) target = $region24
        $region23: #{se_bottleneck_pallas.5} parent=11 // pred_region
          %179 = vsyncadd [#allocation4], 0
          %s180 = sshll.u32 %s3, 4
          %s181 = int_to_ptr.hbm [resolvable:$true] %s180
          %s182 = sshll.u32 [#allocation3], 4
          %s183 = int_to_ptr.vmem [resolvable:$true] %s182
          %188 = dma.hbm_to_vmem [thread:$0]  %s181, 9216, %s183, [#allocation4], 64, 64, 4
        $region24: #{se_bottleneck_pallas.5} parent=11 // pred_fallthru
          _
      $region12: #{se_bottleneck_pallas.5} parent=5 // pred_fallthru
        _
      %p189 = scmp.lt.s32.totalorder %s13, 2
      // Predicated region
      $region25: #{se_bottleneck_pallas.5} parent=5 // pred_check
        %p190 = pneg %p189
      $region26: #{se_bottleneck_pallas.5} parent=5 // pred_check_branch
        %192 = sbr.rel (%p190) target = $region28
      $region27: #{se_bottleneck_pallas.5} parent=5 // pred_region
        // Predicated region
        $region29: #{se_bottleneck_pallas.5} parent=27 // pred_check
          %p193 = pneg %p33
        $region30: #{se_bottleneck_pallas.5} parent=27 // pred_check_branch
          %195 = sbr.rel (%p193) target = $region32
        $region31: #{se_bottleneck_pallas.5} parent=27 // pred_region
          %p196 = scmp.lt.s32.totalorder %s13, 1
          %s197 = scalar_select %p196, %s13, 1
          %s198 = smul.addr %s197, 32
          %s199 = smul.addr %s198, 8
          %s200 = scalar_lea.vmem %s0, %s199
        $region32: #{se_bottleneck_pallas.5} parent=27 // pred_fallthru
          _
      $region28: #{se_bottleneck_pallas.5} parent=5 // pred_fallthru
        _
      %p201 = scmp.le.s32.totalorder 1, %s13
      %p202 = scmp.lt.s32.totalorder %s13, 3
      %p203 = pnand %p201, %p202
      %p204 = pneg %p203
      // Predicated region
      $region33: #{se_bottleneck_pallas.5} parent=5 // pred_check
        _
      $region34: #{se_bottleneck_pallas.5} parent=5 // pred_check_branch
        %206 = sbr.rel (%p203) target = $region36
      $region35: #{se_bottleneck_pallas.5} parent=5 // pred_region
        %s207 = ssub.s32 %s13, 1
        // Predicated region
        $region37: #{se_bottleneck_pallas.5} parent=35 // pred_check
          %p208 = pneg %p102
        $region38: #{se_bottleneck_pallas.5} parent=35 // pred_check_branch
          %210 = sbr.rel (%p208) target = $region40
        $region39: #{se_bottleneck_pallas.5} parent=35 // pred_region
          %212 = dma.done [#allocation4], 9216
        $region40: #{se_bottleneck_pallas.5} parent=35 // pred_fallthru
          _
        %p213 = scmp.lt.s32.totalorder %s18, 1
        %s214 = scalar_select %p213, %s18, 1
        %s215 = smul.addr %s214, 32
        %s216 = smul.addr %s215, 8
        %s217 = scalar_lea.vmem %s0, %s216
        %p218 = pneg %p39
        %p219 = pneg %p36
        %p220 = pneg %p60
        %p221 = pneg %p57
        %p222 = pneg %p81
        %p223 = pneg %p78
        %p224 = pneg %p102
        %p225 = pneg %p99
        %p226 = pneg %p128
        %p227 = pneg %p125
        %p228 = scmp.lt.s32.totalorder %s18, 1
        %s229 = scalar_select %p228, %s18, 1
        %s230 = smul.addr %s229, 32
        %s231 = smul.addr %s230, 8
        %s232 = scalar_lea.vmem %s4, %s231
        %p233 = pneg %p154
        %p234 = pneg %p151
        %p235 = scmp.lt.s32.totalorder %s18, 1
        %s236 = scalar_select %p235, %s18, 1
        %s237 = smul.addr %s236, 2
        %s238 = scalar_lea.vmem %s5, %s237
        %p239 = scmp.lt.s32.totalorder %s18, 1
        %s240 = scalar_select %p239, %s18, 1
        %s241 = smul.addr %s240, 32
        %s242 = smul.addr %s241, 8
        %s243 = scalar_lea.vmem %s0, %s242
        %p244 = scmp.lt.s32.totalorder %s18, 1
        %s245 = scalar_select %p244, %s18, 1
        %s246 = smul.addr %s245, 32
        %s247 = smul.addr %s246, 8
        %s248 = scalar_lea.vmem %s4, %s247
        %p249 = scmp.lt.s32.totalorder %s18, 1
        %s250 = scalar_select %p249, %s18, 1
        %s251 = smul.addr %s250, 2
        %s252 = scalar_lea.vmem %s5, %s251
        %v253 = vld [vmem:[%s243] sm:$0xff]
        %v254 = vld [vmem:[%s243 + $0x8] sm:$0xff]
        %v255 = vld [vmem:[%s243 + $0x10] sm:$0xff]
        %v256 = vld [vmem:[%s243 + $0x18] sm:$0xff]
        %v257 = vld [vmem:[%s243 + $0x20] sm:$0xff]
        %v258 = vld [vmem:[%s243 + $0x28] sm:$0xff]
        %v259 = vld [vmem:[%s243 + $0x30] sm:$0xff]
        %v260 = vld [vmem:[%s243 + $0x38] sm:$0xff]
        %v261 = vld [vmem:[%s243 + $0x40] sm:$0xff]
        %v262 = vld [vmem:[%s243 + $0x48] sm:$0xff]
        %v263 = vld [vmem:[%s243 + $0x50] sm:$0xff]
        %v264 = vld [vmem:[%s243 + $0x58] sm:$0xff]
        %v265 = vld [vmem:[%s243 + $0x60] sm:$0xff]
        %v266 = vld [vmem:[%s243 + $0x68] sm:$0xff]
        %v267 = vld [vmem:[%s243 + $0x70] sm:$0xff]
        %v268 = vld [vmem:[%s243 + $0x78] sm:$0xff]
        %v269 = vld [vmem:[%s243 + $0x80] sm:$0xff]
        %v270 = vld [vmem:[%s243 + $0x88] sm:$0xff]
        %v271 = vld [vmem:[%s243 + $0x90] sm:$0xff]
        %v272 = vld [vmem:[%s243 + $0x98] sm:$0xff]
        %v273 = vld [vmem:[%s243 + $0xa0] sm:$0xff]
        %v274 = vld [vmem:[%s243 + $0xa8] sm:$0xff]
        %v275 = vld [vmem:[%s243 + $0xb0] sm:$0xff]
        %v276 = vld [vmem:[%s243 + $0xb8] sm:$0xff]
        %v277 = vld [vmem:[%s243 + $0xc0] sm:$0xff]
        %v278 = vld [vmem:[%s243 + $0xc8] sm:$0xff]
        %v279 = vld [vmem:[%s243 + $0xd0] sm:$0xff]
        %v280 = vld [vmem:[%s243 + $0xd8] sm:$0xff]
        %v281 = vld [vmem:[%s243 + $0xe0] sm:$0xff]
        %v282 = vld [vmem:[%s243 + $0xe8] sm:$0xff]
        %v283 = vld [vmem:[%s243 + $0xf0] sm:$0xff]
        %v284 = vld [vmem:[%s243 + $0xf8] sm:$0xff]
        %v285 = vld [vmem:[%s1] sm:$0x1]
        %v287 = vperm.slane %v285, 0
        %v289 = vmul.f32 %v253, %v287
        %v290 = vmul.f32 %v254, %v287
        %v291 = vmul.f32 %v255, %v287
        %v292 = vmul.f32 %v256, %v287
        %v293 = vmul.f32 %v257, %v287
        %v294 = vmul.f32 %v258, %v287
        %v295 = vmul.f32 %v259, %v287
        %v296 = vmul.f32 %v260, %v287
        %v297 = vmul.f32 %v261, %v287
        %v298 = vmul.f32 %v262, %v287
        %v299 = vmul.f32 %v263, %v287
        %v300 = vmul.f32 %v264, %v287
        %v301 = vmul.f32 %v265, %v287
        %v302 = vmul.f32 %v266, %v287
        %v303 = vmul.f32 %v267, %v287
        %v304 = vmul.f32 %v268, %v287
        %v305 = vmul.f32 %v269, %v287
        %v306 = vmul.f32 %v270, %v287
        %v307 = vmul.f32 %v271, %v287
        %v308 = vmul.f32 %v272, %v287
        %v309 = vmul.f32 %v273, %v287
        %v310 = vmul.f32 %v274, %v287
        %v311 = vmul.f32 %v275, %v287
        %v312 = vmul.f32 %v276, %v287
        %v313 = vmul.f32 %v277, %v287
        %v314 = vmul.f32 %v278, %v287
        %v315 = vmul.f32 %v279, %v287
        %v316 = vmul.f32 %v280, %v287
        %v317 = vmul.f32 %v281, %v287
        %v318 = vmul.f32 %v282, %v287
        %v319 = vmul.f32 %v283, %v287
        %v320 = vmul.f32 %v284, %v287
        %v321 = vld [vmem:[%s2] sm:$0x1]
        %v323 = vperm.slane %v321, 0
        %v325 = vadd.f32 %v289, %v323
        %v326 = vadd.f32 %v290, %v323
        %v327 = vadd.f32 %v291, %v323
        %v328 = vadd.f32 %v292, %v323
        %v329 = vadd.f32 %v293, %v323
        %v330 = vadd.f32 %v294, %v323
        %v331 = vadd.f32 %v295, %v323
        %v332 = vadd.f32 %v296, %v323
        %v333 = vadd.f32 %v297, %v323
        %v334 = vadd.f32 %v298, %v323
        %v335 = vadd.f32 %v299, %v323
        %v336 = vadd.f32 %v300, %v323
        %v337 = vadd.f32 %v301, %v323
        %v338 = vadd.f32 %v302, %v323
        %v339 = vadd.f32 %v303, %v323
        %v340 = vadd.f32 %v304, %v323
        %v341 = vadd.f32 %v305, %v323
        %v342 = vadd.f32 %v306, %v323
        %v343 = vadd.f32 %v307, %v323
        %v344 = vadd.f32 %v308, %v323
        %v345 = vadd.f32 %v309, %v323
        %v346 = vadd.f32 %v310, %v323
        %v347 = vadd.f32 %v311, %v323
        %v348 = vadd.f32 %v312, %v323
        %v349 = vadd.f32 %v313, %v323
        %v350 = vadd.f32 %v314, %v323
        %v351 = vadd.f32 %v315, %v323
        %v352 = vadd.f32 %v316, %v323
        %v353 = vadd.f32 %v317, %v323
        %v354 = vadd.f32 %v318, %v323
        %v355 = vadd.f32 %v319, %v323
        %v356 = vadd.f32 %v320, %v323
        %vm357 = vcmp.ge.f32.partialorder %v325, 0.0
        %vm358 = vcmp.ge.f32.partialorder %v326, 0.0
        %vm359 = vcmp.ge.f32.partialorder %v327, 0.0
        %vm360 = vcmp.ge.f32.partialorder %v328, 0.0
        %vm361 = vcmp.ge.f32.partialorder %v329, 0.0
        %vm362 = vcmp.ge.f32.partialorder %v330, 0.0
        %vm363 = vcmp.ge.f32.partialorder %v331, 0.0
        %vm364 = vcmp.ge.f32.partialorder %v332, 0.0
        %vm365 = vcmp.ge.f32.partialorder %v333, 0.0
        %vm366 = vcmp.ge.f32.partialorder %v334, 0.0
        %vm367 = vcmp.ge.f32.partialorder %v335, 0.0
        %vm368 = vcmp.ge.f32.partialorder %v336, 0.0
        %vm369 = vcmp.ge.f32.partialorder %v337, 0.0
        %vm370 = vcmp.ge.f32.partialorder %v338, 0.0
        %vm371 = vcmp.ge.f32.partialorder %v339, 0.0
        %vm372 = vcmp.ge.f32.partialorder %v340, 0.0
        %vm373 = vcmp.ge.f32.partialorder %v341, 0.0
        %vm374 = vcmp.ge.f32.partialorder %v342, 0.0
        %vm375 = vcmp.ge.f32.partialorder %v343, 0.0
        %vm376 = vcmp.ge.f32.partialorder %v344, 0.0
        %vm377 = vcmp.ge.f32.partialorder %v345, 0.0
        %vm378 = vcmp.ge.f32.partialorder %v346, 0.0
        %vm379 = vcmp.ge.f32.partialorder %v347, 0.0
        %vm380 = vcmp.ge.f32.partialorder %v348, 0.0
        %vm381 = vcmp.ge.f32.partialorder %v349, 0.0
        %vm382 = vcmp.ge.f32.partialorder %v350, 0.0
        %vm383 = vcmp.ge.f32.partialorder %v351, 0.0
        %vm384 = vcmp.ge.f32.partialorder %v352, 0.0
        %vm385 = vcmp.ge.f32.partialorder %v353, 0.0
        %vm386 = vcmp.ge.f32.partialorder %v354, 0.0
        %vm387 = vcmp.ge.f32.partialorder %v355, 0.0
        %vm388 = vcmp.ge.f32.partialorder %v356, 0.0
        %v389 = vmul.f32 %v325, 0.01
        %v390 = vmul.f32 %v326, 0.01
        %v391 = vmul.f32 %v327, 0.01
        %v392 = vmul.f32 %v328, 0.01
        %v393 = vmul.f32 %v329, 0.01
        %v394 = vmul.f32 %v330, 0.01
        %v395 = vmul.f32 %v331, 0.01
        %v396 = vmul.f32 %v332, 0.01
        %v397 = vmul.f32 %v333, 0.01
        %v398 = vmul.f32 %v334, 0.01
        %v399 = vmul.f32 %v335, 0.01
        %v400 = vmul.f32 %v336, 0.01
        %v401 = vmul.f32 %v337, 0.01
        %v402 = vmul.f32 %v338, 0.01
        %v403 = vmul.f32 %v339, 0.01
        %v404 = vmul.f32 %v340, 0.01
        %v405 = vmul.f32 %v341, 0.01
        %v406 = vmul.f32 %v342, 0.01
        %v407 = vmul.f32 %v343, 0.01
        %v408 = vmul.f32 %v344, 0.01
        %v409 = vmul.f32 %v345, 0.01
        %v410 = vmul.f32 %v346, 0.01
        %v411 = vmul.f32 %v347, 0.01
        %v412 = vmul.f32 %v348, 0.01
        %v413 = vmul.f32 %v349, 0.01
        %v414 = vmul.f32 %v350, 0.01
        %v415 = vmul.f32 %v351, 0.01
        %v416 = vmul.f32 %v352, 0.01
        %v417 = vmul.f32 %v353, 0.01
        %v418 = vmul.f32 %v354, 0.01
        %v419 = vmul.f32 %v355, 0.01
        %v420 = vmul.f32 %v356, 0.01
        %v421 = vsel %vm357, %v325, %v389
        %v422 = vsel %vm358, %v326, %v390
        %v423 = vsel %vm359, %v327, %v391
        %v424 = vsel %vm360, %v328, %v392
        %v425 = vsel %vm361, %v329, %v393
        %v426 = vsel %vm362, %v330, %v394
        %v427 = vsel %vm363, %v331, %v395
        %v428 = vsel %vm364, %v332, %v396
        %v429 = vsel %vm365, %v333, %v397
        %v430 = vsel %vm366, %v334, %v398
        %v431 = vsel %vm367, %v335, %v399
        %v432 = vsel %vm368, %v336, %v400
        %v433 = vsel %vm369, %v337, %v401
        %v434 = vsel %vm370, %v338, %v402
        %v435 = vsel %vm371, %v339, %v403
        %v436 = vsel %vm372, %v340, %v404
        %v437 = vsel %vm373, %v341, %v405
        %v438 = vsel %vm374, %v342, %v406
        %v439 = vsel %vm375, %v343, %v407
        %v440 = vsel %vm376, %v344, %v408
        %v441 = vsel %vm377, %v345, %v409
        %v442 = vsel %vm378, %v346, %v410
        %v443 = vsel %vm379, %v347, %v411
        %v444 = vsel %vm380, %v348, %v412
        %v445 = vsel %vm381, %v349, %v413
        %v446 = vsel %vm382, %v350, %v414
        %v447 = vsel %vm383, %v351, %v415
        %v448 = vsel %vm384, %v352, %v416
        %v449 = vsel %vm385, %v353, %v417
        %v450 = vsel %vm386, %v354, %v418
        %v451 = vsel %vm387, %v355, %v419
        %v452 = vsel %vm388, %v356, %v420
        %vm486 = vcmask 1040384
        %v487 = vrot.slane 0.0, 7
        %v488 = vsel %vm486, %v487, %v487
        %v489 = vrot.slane %v421, 7
        %v490 = vrot.slane %v422, 7
        %v491 = vsel %vm486, %v489, %v490
        %v492 = vrot.slane %v423, 7
        %v493 = vrot.slane %v424, 7
        %v494 = vsel %vm486, %v492, %v493
        %v495 = vrot.slane %v425, 7
        %v496 = vrot.slane %v426, 7
        %v497 = vsel %vm486, %v495, %v496
        %v498 = vrot.slane %v427, 7
        %v499 = vrot.slane %v428, 7
        %v500 = vsel %vm486, %v498, %v499
        %v501 = vrot.slane %v429, 7
        %v502 = vrot.slane %v430, 7
        %v503 = vsel %vm486, %v501, %v502
        %v504 = vrot.slane %v431, 7
        %v505 = vrot.slane %v432, 7
        %v506 = vsel %vm486, %v504, %v505
        %v507 = vrot.slane %v433, 7
        %v508 = vrot.slane %v434, 7
        %v509 = vsel %vm486, %v507, %v508
        %v510 = vrot.slane %v435, 7
        %v511 = vrot.slane %v436, 7
        %v512 = vsel %vm486, %v510, %v511
        %v513 = vrot.slane %v437, 7
        %v514 = vrot.slane %v438, 7
        %v515 = vsel %vm486, %v513, %v514
        %v516 = vrot.slane %v439, 7
        %v517 = vrot.slane %v440, 7
        %v518 = vsel %vm486, %v516, %v517
        %v519 = vrot.slane %v441, 7
        %v520 = vrot.slane %v442, 7
        %v521 = vsel %vm486, %v519, %v520
        %v522 = vrot.slane %v443, 7
        %v523 = vrot.slane %v444, 7
        %v524 = vsel %vm486, %v522, %v523
        %v525 = vrot.slane %v445, 7
        %v526 = vrot.slane %v446, 7
        %v527 = vsel %vm486, %v525, %v526
        %v528 = vrot.slane %v447, 7
        %v529 = vrot.slane %v448, 7
        %v530 = vsel %vm486, %v528, %v529
        %v531 = vrot.slane %v449, 7
        %v532 = vrot.slane %v450, 7
        %v533 = vsel %vm486, %v531, %v532
        %v534 = vrot.slane %v451, 7
        %v535 = vrot.slane %v452, 7
        %v536 = vsel %vm486, %v534, %v535
        %v587 = vsel %vm486, 0.0, %v487
        %v588 = vsel %vm486, 0.0, %v489
        %v589 = vsel %vm486, 0.0, %v492
        %v590 = vsel %vm486, 0.0, %v495
        %v591 = vsel %vm486, 0.0, %v498
        %v592 = vsel %vm486, 0.0, %v501
        %v593 = vsel %vm486, 0.0, %v504
        %v594 = vsel %vm486, 0.0, %v507
        %v595 = vsel %vm486, 0.0, %v510
        %v596 = vsel %vm486, 0.0, %v513
        %v597 = vsel %vm486, 0.0, %v516
        %v598 = vsel %vm486, 0.0, %v519
        %v599 = vsel %vm486, 0.0, %v522
        %v600 = vsel %vm486, 0.0, %v525
        %v601 = vsel %vm486, 0.0, %v528
        %v602 = vsel %vm486, 0.0, %v531
        %v603 = vsel %vm486, 0.0, %v534
        %v604 = vsel %vm486, %v487, 0.0
        %v605 = vsel %vm486, %v490, 0.0
        %v606 = vsel %vm486, %v493, 0.0
        %v607 = vsel %vm486, %v496, 0.0
        %v608 = vsel %vm486, %v499, 0.0
        %v609 = vsel %vm486, %v502, 0.0
        %v610 = vsel %vm486, %v505, 0.0
        %v611 = vsel %vm486, %v508, 0.0
        %v612 = vsel %vm486, %v511, 0.0
        %v613 = vsel %vm486, %v514, 0.0
        %v614 = vsel %vm486, %v517, 0.0
        %v615 = vsel %vm486, %v520, 0.0
        %v616 = vsel %vm486, %v523, 0.0
        %v617 = vsel %vm486, %v526, 0.0
        %v618 = vsel %vm486, %v529, 0.0
        %v619 = vsel %vm486, %v532, 0.0
        %v620 = vsel %vm486, %v535, 0.0
        %v621 = vpack.c.bf16 %v587, %v587
        %v622 = vpack.c.bf16 %v488, %v488
        %v623 = vpack.c.bf16 %v588, %v588
        %v624 = vpack.c.bf16 %v491, %v491
        %v625 = vpack.c.bf16 %v589, %v589
        %v626 = vpack.c.bf16 %v494, %v494
        %v627 = vpack.c.bf16 %v590, %v590
        %v628 = vpack.c.bf16 %v497, %v497
        %v629 = vpack.c.bf16 %v591, %v591
        %v630 = vpack.c.bf16 %v500, %v500
        %v631 = vpack.c.bf16 %v592, %v592
        %v632 = vpack.c.bf16 %v503, %v503
        %v633 = vpack.c.bf16 %v593, %v593
        %v634 = vpack.c.bf16 %v506, %v506
        %v635 = vpack.c.bf16 %v594, %v594
        %v636 = vpack.c.bf16 %v509, %v509
        %v637 = vpack.c.bf16 %v595, %v595
        %v638 = vpack.c.bf16 %v512, %v512
        %v639 = vpack.c.bf16 %v596, %v596
        %v640 = vpack.c.bf16 %v515, %v515
        %v641 = vpack.c.bf16 %v597, %v597
        %v642 = vpack.c.bf16 %v518, %v518
        %v643 = vpack.c.bf16 %v598, %v598
        %v644 = vpack.c.bf16 %v521, %v521
        %v645 = vpack.c.bf16 %v599, %v599
        %v646 = vpack.c.bf16 %v524, %v524
        %v647 = vpack.c.bf16 %v600, %v600
        %v648 = vpack.c.bf16 %v527, %v527
        %v649 = vpack.c.bf16 %v601, %v601
        %v650 = vpack.c.bf16 %v530, %v530
        %v651 = vpack.c.bf16 %v602, %v602
        %v652 = vpack.c.bf16 %v533, %v533
        %653 = vst [vmem:[#allocation2] sm:$0xf] %v621
        %654 = vst [vmem:[#allocation2 + $0x24] sm:$0xf] %v622
        %655 = vst [vmem:[#allocation2 + $0x48] sm:$0xf] %v623
        %656 = vst [vmem:[#allocation2 + $0x6c] sm:$0xf] %v624
        %657 = vst [vmem:[#allocation2 + $0x90] sm:$0xf] %v625
        %658 = vst [vmem:[#allocation2 + $0xb4] sm:$0xf] %v626
        %659 = vst [vmem:[#allocation2 + $0xd8] sm:$0xf] %v627
        %660 = vst [vmem:[#allocation2 + $0xfc] sm:$0xf] %v628
        %661 = vst [vmem:[#allocation2 + $0x120] sm:$0xf] %v629
        %662 = vst [vmem:[#allocation2 + $0x144] sm:$0xf] %v630
        %663 = vst [vmem:[#allocation2 + $0x168] sm:$0xf] %v631
        %664 = vst [vmem:[#allocation2 + $0x18c] sm:$0xf] %v632
        %665 = vst [vmem:[#allocation2 + $0x1b0] sm:$0xf] %v633
        %666 = vst [vmem:[#allocation2 + $0x1d4] sm:$0xf] %v634
        %667 = vst [vmem:[#allocation2 + $0x1f8] sm:$0xf] %v635
        %668 = vst [vmem:[#allocation2 + $0x21c] sm:$0xf] %v636
        %669 = vst [vmem:[#allocation2 + $0x240] sm:$0xf] %v637
        %670 = vst [vmem:[#allocation2 + $0x264] sm:$0xf] %v638
        %671 = vst [vmem:[#allocation2 + $0x288] sm:$0xf] %v639
        %672 = vst [vmem:[#allocation2 + $0x2ac] sm:$0xf] %v640
        %673 = vst [vmem:[#allocation2 + $0x2d0] sm:$0xf] %v641
        %674 = vst [vmem:[#allocation2 + $0x2f4] sm:$0xf] %v642
        %675 = vst [vmem:[#allocation2 + $0x318] sm:$0xf] %v643
        %676 = vst [vmem:[#allocation2 + $0x33c] sm:$0xf] %v644
        %677 = vst [vmem:[#allocation2 + $0x360] sm:$0xf] %v645
        %678 = vst [vmem:[#allocation2 + $0x384] sm:$0xf] %v646
        %679 = vst [vmem:[#allocation2 + $0x3a8] sm:$0xf] %v647
        %680 = vst [vmem:[#allocation2 + $0x3cc] sm:$0xf] %v648
        %681 = vst [vmem:[#allocation2 + $0x3f0] sm:$0xf] %v649
        %682 = vst [vmem:[#allocation2 + $0x414] sm:$0xf] %v650
        %683 = vst [vmem:[#allocation2 + $0x438] sm:$0xf] %v651
        %684 = vst [vmem:[#allocation2 + $0x45c] sm:$0xf] %v652
        %vm717 = vcmask 1046528
        %v718 = vrot.slane %v587, 1
        %v719 = vrot.slane %v488, 1
        %v720 = vsel %vm717, %v718, %v719
        %v721 = vrot.slane %v604, 1
        %v722 = vsel %vm717, %v719, %v721
        %v723 = vrot.slane %v588, 1
        %v724 = vrot.slane %v491, 1
        %v725 = vsel %vm717, %v723, %v724
        %v726 = vrot.slane %v605, 1
        %v727 = vsel %vm717, %v724, %v726
        %v728 = vrot.slane %v589, 1
        %v729 = vrot.slane %v494, 1
        %v730 = vsel %vm717, %v728, %v729
        %v731 = vrot.slane %v606, 1
        %v732 = vsel %vm717, %v729, %v731
        %v733 = vrot.slane %v590, 1
        %v734 = vrot.slane %v497, 1
        %v735 = vsel %vm717, %v733, %v734
        %v736 = vrot.slane %v607, 1
        %v737 = vsel %vm717, %v734, %v736
        %v738 = vrot.slane %v591, 1
        %v739 = vrot.slane %v500, 1
        %v740 = vsel %vm717, %v738, %v739
        %v741 = vrot.slane %v608, 1
        %v742 = vsel %vm717, %v739, %v741
        %v743 = vrot.slane %v592, 1
        %v744 = vrot.slane %v503, 1
        %v745 = vsel %vm717, %v743, %v744
        %v746 = vrot.slane %v609, 1
        %v747 = vsel %vm717, %v744, %v746
        %v748 = vrot.slane %v593, 1
        %v749 = vrot.slane %v506, 1
        %v750 = vsel %vm717, %v748, %v749
        %v751 = vrot.slane %v610, 1
        %v752 = vsel %vm717, %v749, %v751
        %v753 = vrot.slane %v594, 1
        %v754 = vrot.slane %v509, 1
        %v755 = vsel %vm717, %v753, %v754
        %v756 = vrot.slane %v611, 1
        %v757 = vsel %vm717, %v754, %v756
        %v758 = vrot.slane %v595, 1
        %v759 = vrot.slane %v512, 1
        %v760 = vsel %vm717, %v758, %v759
        %v761 = vrot.slane %v612, 1
        %v762 = vsel %vm717, %v759, %v761
        %v763 = vrot.slane %v596, 1
        %v764 = vrot.slane %v515, 1
        %v765 = vsel %vm717, %v763, %v764
        %v766 = vrot.slane %v613, 1
        %v767 = vsel %vm717, %v764, %v766
        %v768 = vrot.slane %v597, 1
        %v769 = vrot.slane %v518, 1
        %v770 = vsel %vm717, %v768, %v769
        %v771 = vrot.slane %v614, 1
        %v772 = vsel %vm717, %v769, %v771
        %v773 = vrot.slane %v598, 1
        %v774 = vrot.slane %v521, 1
        %v775 = vsel %vm717, %v773, %v774
        %v776 = vrot.slane %v615, 1
        %v777 = vsel %vm717, %v774, %v776
        %v778 = vrot.slane %v599, 1
        %v779 = vrot.slane %v524, 1
        %v780 = vsel %vm717, %v778, %v779
        %v781 = vrot.slane %v616, 1
        %v782 = vsel %vm717, %v779, %v781
        %v783 = vrot.slane %v600, 1
        %v784 = vrot.slane %v527, 1
        %v785 = vsel %vm717, %v783, %v784
        %v786 = vrot.slane %v617, 1
        %v787 = vsel %vm717, %v784, %v786
        %v788 = vrot.slane %v601, 1
        %v789 = vrot.slane %v530, 1
        %v790 = vsel %vm717, %v788, %v789
        %v791 = vrot.slane %v618, 1
        %v792 = vsel %vm717, %v789, %v791
        %v793 = vrot.slane %v602, 1
        %v794 = vrot.slane %v533, 1
        %v795 = vsel %vm717, %v793, %v794
        %v796 = vrot.slane %v619, 1
        %v797 = vsel %vm717, %v794, %v796
        %v830 = vpack.c.bf16 %v720, %v720
        %v831 = vpack.c.bf16 %v722, %v722
        %v832 = vpack.c.bf16 %v725, %v725
        %v833 = vpack.c.bf16 %v727, %v727
        %v834 = vpack.c.bf16 %v730, %v730
        %v835 = vpack.c.bf16 %v732, %v732
        %v836 = vpack.c.bf16 %v735, %v735
        %v837 = vpack.c.bf16 %v737, %v737
        %v838 = vpack.c.bf16 %v740, %v740
        %v839 = vpack.c.bf16 %v742, %v742
        %v840 = vpack.c.bf16 %v745, %v745
        %v841 = vpack.c.bf16 %v747, %v747
        %v842 = vpack.c.bf16 %v750, %v750
        %v843 = vpack.c.bf16 %v752, %v752
        %v844 = vpack.c.bf16 %v755, %v755
        %v845 = vpack.c.bf16 %v757, %v757
        %v846 = vpack.c.bf16 %v760, %v760
        %v847 = vpack.c.bf16 %v762, %v762
        %v848 = vpack.c.bf16 %v765, %v765
        %v849 = vpack.c.bf16 %v767, %v767
        %v850 = vpack.c.bf16 %v770, %v770
        %v851 = vpack.c.bf16 %v772, %v772
        %v852 = vpack.c.bf16 %v775, %v775
        %v853 = vpack.c.bf16 %v777, %v777
        %v854 = vpack.c.bf16 %v780, %v780
        %v855 = vpack.c.bf16 %v782, %v782
        %v856 = vpack.c.bf16 %v785, %v785
        %v857 = vpack.c.bf16 %v787, %v787
        %v858 = vpack.c.bf16 %v790, %v790
        %v859 = vpack.c.bf16 %v792, %v792
        %v860 = vpack.c.bf16 %v795, %v795
        %v861 = vpack.c.bf16 %v797, %v797
        %862 = vst [vmem:[#allocation2 + $0x4] sm:$0xf] %v830
        %863 = vst [vmem:[#allocation2 + $0x28] sm:$0xf] %v831
        %864 = vst [vmem:[#allocation2 + $0x4c] sm:$0xf] %v832
        %865 = vst [vmem:[#allocation2 + $0x70] sm:$0xf] %v833
        %866 = vst [vmem:[#allocation2 + $0x94] sm:$0xf] %v834
        %867 = vst [vmem:[#allocation2 + $0xb8] sm:$0xf] %v835
        %868 = vst [vmem:[#allocation2 + $0xdc] sm:$0xf] %v836
        %869 = vst [vmem:[#allocation2 + $0x100] sm:$0xf] %v837
        %870 = vst [vmem:[#allocation2 + $0x124] sm:$0xf] %v838
        %871 = vst [vmem:[#allocation2 + $0x148] sm:$0xf] %v839
        %872 = vst [vmem:[#allocation2 + $0x16c] sm:$0xf] %v840
        %873 = vst [vmem:[#allocation2 + $0x190] sm:$0xf] %v841
        %874 = vst [vmem:[#allocation2 + $0x1b4] sm:$0xf] %v842
        %875 = vst [vmem:[#allocation2 + $0x1d8] sm:$0xf] %v843
        %876 = vst [vmem:[#allocation2 + $0x1fc] sm:$0xf] %v844
        %877 = vst [vmem:[#allocation2 + $0x220] sm:$0xf] %v845
        %878 = vst [vmem:[#allocation2 + $0x244] sm:$0xf] %v846
        %879 = vst [vmem:[#allocation2 + $0x268] sm:$0xf] %v847
        %880 = vst [vmem:[#allocation2 + $0x28c] sm:$0xf] %v848
        %881 = vst [vmem:[#allocation2 + $0x2b0] sm:$0xf] %v849
        %882 = vst [vmem:[#allocation2 + $0x2d4] sm:$0xf] %v850
        %883 = vst [vmem:[#allocation2 + $0x2f8] sm:$0xf] %v851
        %884 = vst [vmem:[#allocation2 + $0x31c] sm:$0xf] %v852
        %885 = vst [vmem:[#allocation2 + $0x340] sm:$0xf] %v853
        %886 = vst [vmem:[#allocation2 + $0x364] sm:$0xf] %v854
        %887 = vst [vmem:[#allocation2 + $0x388] sm:$0xf] %v855
        %888 = vst [vmem:[#allocation2 + $0x3ac] sm:$0xf] %v856
        %889 = vst [vmem:[#allocation2 + $0x3d0] sm:$0xf] %v857
        %890 = vst [vmem:[#allocation2 + $0x3f4] sm:$0xf] %v858
        %891 = vst [vmem:[#allocation2 + $0x418] sm:$0xf] %v859
        %892 = vst [vmem:[#allocation2 + $0x43c] sm:$0xf] %v860
        %893 = vst [vmem:[#allocation2 + $0x460] sm:$0xf] %v861
        %vm894 = vcmask 1045504
        %v895 = vrot.slane %v587, 2
        %v896 = vrot.slane %v488, 2
        %v897 = vsel %vm894, %v895, %v896
        %v898 = vrot.slane %v604, 2
        %v899 = vsel %vm894, %v896, %v898
        %v900 = vrot.slane %v588, 2
        %v901 = vrot.slane %v491, 2
        %v902 = vsel %vm894, %v900, %v901
        %v903 = vrot.slane %v605, 2
        %v904 = vsel %vm894, %v901, %v903
        %v905 = vrot.slane %v589, 2
        %v906 = vrot.slane %v494, 2
        %v907 = vsel %vm894, %v905, %v906
        %v908 = vrot.slane %v606, 2
        %v909 = vsel %vm894, %v906, %v908
        %v910 = vrot.slane %v590, 2
        %v911 = vrot.slane %v497, 2
        %v912 = vsel %vm894, %v910, %v911
        %v913 = vrot.slane %v607, 2
        %v914 = vsel %vm894, %v911, %v913
        %v915 = vrot.slane %v591, 2
        %v916 = vrot.slane %v500, 2
        %v917 = vsel %vm894, %v915, %v916
        %v918 = vrot.slane %v608, 2
        %v919 = vsel %vm894, %v916, %v918
        %v920 = vrot.slane %v592, 2
        %v921 = vrot.slane %v503, 2
        %v922 = vsel %vm894, %v920, %v921
        %v923 = vrot.slane %v609, 2
        %v924 = vsel %vm894, %v921, %v923
        %v925 = vrot.slane %v593, 2
        %v926 = vrot.slane %v506, 2
        %v927 = vsel %vm894, %v925, %v926
        %v928 = vrot.slane %v610, 2
        %v929 = vsel %vm894, %v926, %v928
        %v930 = vrot.slane %v594, 2
        %v931 = vrot.slane %v509, 2
        %v932 = vsel %vm894, %v930, %v931
        %v933 = vrot.slane %v611, 2
        %v934 = vsel %vm894, %v931, %v933
        %v935 = vrot.slane %v595, 2
        %v936 = vrot.slane %v512, 2
        %v937 = vsel %vm894, %v935, %v936
        %v938 = vrot.slane %v612, 2
        %v939 = vsel %vm894, %v936, %v938
        %v940 = vrot.slane %v596, 2
        %v941 = vrot.slane %v515, 2
        %v942 = vsel %vm894, %v940, %v941
        %v943 = vrot.slane %v613, 2
        %v944 = vsel %vm894, %v941, %v943
        %v945 = vrot.slane %v597, 2
        %v946 = vrot.slane %v518, 2
        %v947 = vsel %vm894, %v945, %v946
        %v948 = vrot.slane %v614, 2
        %v949 = vsel %vm894, %v946, %v948
        %v950 = vrot.slane %v598, 2
        %v951 = vrot.slane %v521, 2
        %v952 = vsel %vm894, %v950, %v951
        %v953 = vrot.slane %v615, 2
        %v954 = vsel %vm894, %v951, %v953
        %v955 = vrot.slane %v599, 2
        %v956 = vrot.slane %v524, 2
        %v957 = vsel %vm894, %v955, %v956
        %v958 = vrot.slane %v616, 2
        %v959 = vsel %vm894, %v956, %v958
        %v960 = vrot.slane %v600, 2
        %v961 = vrot.slane %v527, 2
        %v962 = vsel %vm894, %v960, %v961
        %v963 = vrot.slane %v617, 2
        %v964 = vsel %vm894, %v961, %v963
        %v965 = vrot.slane %v601, 2
        %v966 = vrot.slane %v530, 2
        %v967 = vsel %vm894, %v965, %v966
        %v968 = vrot.slane %v618, 2
        %v969 = vsel %vm894, %v966, %v968
        %v970 = vrot.slane %v602, 2
        %v971 = vrot.slane %v533, 2
        %v972 = vsel %vm894, %v970, %v971
        %v973 = vrot.slane %v619, 2
        %v974 = vsel %vm894, %v971, %v973
        %v1007 = vpack.c.bf16 %v897, %v897
        %v1008 = vpack.c.bf16 %v899, %v899
        %v1009 = vpack.c.bf16 %v902, %v902
        %v1010 = vpack.c.bf16 %v904, %v904
        %v1011 = vpack.c.bf16 %v907, %v907
        %v1012 = vpack.c.bf16 %v909, %v909
        %v1013 = vpack.c.bf16 %v912, %v912
        %v1014 = vpack.c.bf16 %v914, %v914
        %v1015 = vpack.c.bf16 %v917, %v917
        %v1016 = vpack.c.bf16 %v919, %v919
        %v1017 = vpack.c.bf16 %v922, %v922
        %v1018 = vpack.c.bf16 %v924, %v924
        %v1019 = vpack.c.bf16 %v927, %v927
        %v1020 = vpack.c.bf16 %v929, %v929
        %v1021 = vpack.c.bf16 %v932, %v932
        %v1022 = vpack.c.bf16 %v934, %v934
        %v1023 = vpack.c.bf16 %v937, %v937
        %v1024 = vpack.c.bf16 %v939, %v939
        %v1025 = vpack.c.bf16 %v942, %v942
        %v1026 = vpack.c.bf16 %v944, %v944
        %v1027 = vpack.c.bf16 %v947, %v947
        %v1028 = vpack.c.bf16 %v949, %v949
        %v1029 = vpack.c.bf16 %v952, %v952
        %v1030 = vpack.c.bf16 %v954, %v954
        %v1031 = vpack.c.bf16 %v957, %v957
        %v1032 = vpack.c.bf16 %v959, %v959
        %v1033 = vpack.c.bf16 %v962, %v962
        %v1034 = vpack.c.bf16 %v964, %v964
        %v1035 = vpack.c.bf16 %v967, %v967
        %v1036 = vpack.c.bf16 %v969, %v969
        %v1037 = vpack.c.bf16 %v972, %v972
        %v1038 = vpack.c.bf16 %v974, %v974
        %1039 = vst [vmem:[#allocation2 + $0x8] sm:$0xf] %v1007
        %1040 = vst [vmem:[#allocation2 + $0x2c] sm:$0xf] %v1008
        %1041 = vst [vmem:[#allocation2 + $0x50] sm:$0xf] %v1009
        %1042 = vst [vmem:[#allocation2 + $0x74] sm:$0xf] %v1010
        %1043 = vst [vmem:[#allocation2 + $0x98] sm:$0xf] %v1011
        %1044 = vst [vmem:[#allocation2 + $0xbc] sm:$0xf] %v1012
        %1045 = vst [vmem:[#allocation2 + $0xe0] sm:$0xf] %v1013
        %1046 = vst [vmem:[#allocation2 + $0x104] sm:$0xf] %v1014
        %1047 = vst [vmem:[#allocation2 + $0x128] sm:$0xf] %v1015
        %1048 = vst [vmem:[#allocation2 + $0x14c] sm:$0xf] %v1016
        %1049 = vst [vmem:[#allocation2 + $0x170] sm:$0xf] %v1017
        %1050 = vst [vmem:[#allocation2 + $0x194] sm:$0xf] %v1018
        %1051 = vst [vmem:[#allocation2 + $0x1b8] sm:$0xf] %v1019
        %1052 = vst [vmem:[#allocation2 + $0x1dc] sm:$0xf] %v1020
        %1053 = vst [vmem:[#allocation2 + $0x200] sm:$0xf] %v1021
        %1054 = vst [vmem:[#allocation2 + $0x224] sm:$0xf] %v1022
        %1055 = vst [vmem:[#allocation2 + $0x248] sm:$0xf] %v1023
        %1056 = vst [vmem:[#allocation2 + $0x26c] sm:$0xf] %v1024
        %1057 = vst [vmem:[#allocation2 + $0x290] sm:$0xf] %v1025
        %1058 = vst [vmem:[#allocation2 + $0x2b4] sm:$0xf] %v1026
        %1059 = vst [vmem:[#allocation2 + $0x2d8] sm:$0xf] %v1027
        %1060 = vst [vmem:[#allocation2 + $0x2fc] sm:$0xf] %v1028
        %1061 = vst [vmem:[#allocation2 + $0x320] sm:$0xf] %v1029
        %1062 = vst [vmem:[#allocation2 + $0x344] sm:$0xf] %v1030
        %1063 = vst [vmem:[#allocation2 + $0x368] sm:$0xf] %v1031
        %1064 = vst [vmem:[#allocation2 + $0x38c] sm:$0xf] %v1032
        %1065 = vst [vmem:[#allocation2 + $0x3b0] sm:$0xf] %v1033
        %1066 = vst [vmem:[#allocation2 + $0x3d4] sm:$0xf] %v1034
        %1067 = vst [vmem:[#allocation2 + $0x3f8] sm:$0xf] %v1035
        %1068 = vst [vmem:[#allocation2 + $0x41c] sm:$0xf] %v1036
        %1069 = vst [vmem:[#allocation2 + $0x440] sm:$0xf] %v1037
        %1070 = vst [vmem:[#allocation2 + $0x464] sm:$0xf] %v1038
        %v1071 = vpack.c.bf16 %v603, %v603
        %v1072 = vpack.c.bf16 %v536, %v536
        %1073 = vst [vmem:[#allocation2 + $0xc] sm:$0xf] %v623
        %1074 = vst [vmem:[#allocation2 + $0x30] sm:$0xf] %v624
        %1075 = vst [vmem:[#allocation2 + $0x54] sm:$0xf] %v625
        %1076 = vst [vmem:[#allocation2 + $0x78] sm:$0xf] %v626
        %1077 = vst [vmem:[#allocation2 + $0x9c] sm:$0xf] %v627
        %1078 = vst [vmem:[#allocation2 + $0xc0] sm:$0xf] %v628
        %1079 = vst [vmem:[#allocation2 + $0xe4] sm:$0xf] %v629
        %1080 = vst [vmem:[#allocation2 + $0x108] sm:$0xf] %v630
        %1081 = vst [vmem:[#allocation2 + $0x12c] sm:$0xf] %v631
        %1082 = vst [vmem:[#allocation2 + $0x150] sm:$0xf] %v632
        %1083 = vst [vmem:[#allocation2 + $0x174] sm:$0xf] %v633
        %1084 = vst [vmem:[#allocation2 + $0x198] sm:$0xf] %v634
        %1085 = vst [vmem:[#allocation2 + $0x1bc] sm:$0xf] %v635
        %1086 = vst [vmem:[#allocation2 + $0x1e0] sm:$0xf] %v636
        %1087 = vst [vmem:[#allocation2 + $0x204] sm:$0xf] %v637
        %1088 = vst [vmem:[#allocation2 + $0x228] sm:$0xf] %v638
        %1089 = vst [vmem:[#allocation2 + $0x24c] sm:$0xf] %v639
        %1090 = vst [vmem:[#allocation2 + $0x270] sm:$0xf] %v640
        %1091 = vst [vmem:[#allocation2 + $0x294] sm:$0xf] %v641
        %1092 = vst [vmem:[#allocation2 + $0x2b8] sm:$0xf] %v642
        %1093 = vst [vmem:[#allocation2 + $0x2dc] sm:$0xf] %v643
        %1094 = vst [vmem:[#allocation2 + $0x300] sm:$0xf] %v644
        %1095 = vst [vmem:[#allocation2 + $0x324] sm:$0xf] %v645
        %1096 = vst [vmem:[#allocation2 + $0x348] sm:$0xf] %v646
        %1097 = vst [vmem:[#allocation2 + $0x36c] sm:$0xf] %v647
        %1098 = vst [vmem:[#allocation2 + $0x390] sm:$0xf] %v648
        %1099 = vst [vmem:[#allocation2 + $0x3b4] sm:$0xf] %v649
        %1100 = vst [vmem:[#allocation2 + $0x3d8] sm:$0xf] %v650
        %1101 = vst [vmem:[#allocation2 + $0x3fc] sm:$0xf] %v651
        %1102 = vst [vmem:[#allocation2 + $0x420] sm:$0xf] %v652
        %1103 = vst [vmem:[#allocation2 + $0x444] sm:$0xf] %v1071
        %1104 = vst [vmem:[#allocation2 + $0x468] sm:$0xf] %v1072
        %v1107 = vrot.slane %v603, 1
        %v1108 = vrot.slane %v536, 1
        %v1109 = vsel %vm717, %v1107, %v1108
        %v1110 = vrot.slane %v620, 1
        %v1111 = vsel %vm717, %v1108, %v1110
        %v1114 = vpack.c.bf16 %v1109, %v1109
        %v1115 = vpack.c.bf16 %v1111, %v1111
        %1116 = vst [vmem:[#allocation2 + $0x10] sm:$0xf] %v832
        %1117 = vst [vmem:[#allocation2 + $0x34] sm:$0xf] %v833
        %1118 = vst [vmem:[#allocation2 + $0x58] sm:$0xf] %v834
        %1119 = vst [vmem:[#allocation2 + $0x7c] sm:$0xf] %v835
        %1120 = vst [vmem:[#allocation2 + $0xa0] sm:$0xf] %v836
        %1121 = vst [vmem:[#allocation2 + $0xc4] sm:$0xf] %v837
        %1122 = vst [vmem:[#allocation2 + $0xe8] sm:$0xf] %v838
        %1123 = vst [vmem:[#allocation2 + $0x10c] sm:$0xf] %v839
        %1124 = vst [vmem:[#allocation2 + $0x130] sm:$0xf] %v840
        %1125 = vst [vmem:[#allocation2 + $0x154] sm:$0xf] %v841
        %1126 = vst [vmem:[#allocation2 + $0x178] sm:$0xf] %v842
        %1127 = vst [vmem:[#allocation2 + $0x19c] sm:$0xf] %v843
        %1128 = vst [vmem:[#allocation2 + $0x1c0] sm:$0xf] %v844
        %1129 = vst [vmem:[#allocation2 + $0x1e4] sm:$0xf] %v845
        %1130 = vst [vmem:[#allocation2 + $0x208] sm:$0xf] %v846
        %1131 = vst [vmem:[#allocation2 + $0x22c] sm:$0xf] %v847
        %1132 = vst [vmem:[#allocation2 + $0x250] sm:$0xf] %v848
        %1133 = vst [vmem:[#allocation2 + $0x274] sm:$0xf] %v849
        %1134 = vst [vmem:[#allocation2 + $0x298] sm:$0xf] %v850
        %1135 = vst [vmem:[#allocation2 + $0x2bc] sm:$0xf] %v851
        %1136 = vst [vmem:[#allocation2 + $0x2e0] sm:$0xf] %v852
        %1137 = vst [vmem:[#allocation2 + $0x304] sm:$0xf] %v853
        %1138 = vst [vmem:[#allocation2 + $0x328] sm:$0xf] %v854
        %1139 = vst [vmem:[#allocation2 + $0x34c] sm:$0xf] %v855
        %1140 = vst [vmem:[#allocation2 + $0x370] sm:$0xf] %v856
        %1141 = vst [vmem:[#allocation2 + $0x394] sm:$0xf] %v857
        %1142 = vst [vmem:[#allocation2 + $0x3b8] sm:$0xf] %v858
        %1143 = vst [vmem:[#allocation2 + $0x3dc] sm:$0xf] %v859
        %1144 = vst [vmem:[#allocation2 + $0x400] sm:$0xf] %v860
        %1145 = vst [vmem:[#allocation2 + $0x424] sm:$0xf] %v861
        %1146 = vst [vmem:[#allocation2 + $0x448] sm:$0xf] %v1114
        %1147 = vst [vmem:[#allocation2 + $0x46c] sm:$0xf] %v1115
        %v1148 = vrot.slane %v603, 2
        %v1149 = vrot.slane %v536, 2
        %v1150 = vsel %vm894, %v1148, %v1149
        %v1151 = vrot.slane %v620, 2
        %v1152 = vsel %vm894, %v1149, %v1151
        %v1155 = vpack.c.bf16 %v1150, %v1150
        %v1156 = vpack.c.bf16 %v1152, %v1152
        %1157 = vst [vmem:[#allocation2 + $0x14] sm:$0xf] %v1009
        %1158 = vst [vmem:[#allocation2 + $0x38] sm:$0xf] %v1010
        %1159 = vst [vmem:[#allocation2 + $0x5c] sm:$0xf] %v1011
        %1160 = vst [vmem:[#allocation2 + $0x80] sm:$0xf] %v1012
        %1161 = vst [vmem:[#allocation2 + $0xa4] sm:$0xf] %v1013
        %1162 = vst [vmem:[#allocation2 + $0xc8] sm:$0xf] %v1014
        %1163 = vst [vmem:[#allocation2 + $0xec] sm:$0xf] %v1015
        %1164 = vst [vmem:[#allocation2 + $0x110] sm:$0xf] %v1016
        %1165 = vst [vmem:[#allocation2 + $0x134] sm:$0xf] %v1017
        %1166 = vst [vmem:[#allocation2 + $0x158] sm:$0xf] %v1018
        %1167 = vst [vmem:[#allocation2 + $0x17c] sm:$0xf] %v1019
        %1168 = vst [vmem:[#allocation2 + $0x1a0] sm:$0xf] %v1020
        %1169 = vst [vmem:[#allocation2 + $0x1c4] sm:$0xf] %v1021
        %1170 = vst [vmem:[#allocation2 + $0x1e8] sm:$0xf] %v1022
        %1171 = vst [vmem:[#allocation2 + $0x20c] sm:$0xf] %v1023
        %1172 = vst [vmem:[#allocation2 + $0x230] sm:$0xf] %v1024
        %1173 = vst [vmem:[#allocation2 + $0x254] sm:$0xf] %v1025
        %1174 = vst [vmem:[#allocation2 + $0x278] sm:$0xf] %v1026
        %1175 = vst [vmem:[#allocation2 + $0x29c] sm:$0xf] %v1027
        %1176 = vst [vmem:[#allocation2 + $0x2c0] sm:$0xf] %v1028
        %1177 = vst [vmem:[#allocation2 + $0x2e4] sm:$0xf] %v1029
        %1178 = vst [vmem:[#allocation2 + $0x308] sm:$0xf] %v1030
        %1179 = vst [vmem:[#allocation2 + $0x32c] sm:$0xf] %v1031
        %1180 = vst [vmem:[#allocation2 + $0x350] sm:$0xf] %v1032
        %1181 = vst [vmem:[#allocation2 + $0x374] sm:$0xf] %v1033
        %1182 = vst [vmem:[#allocation2 + $0x398] sm:$0xf] %v1034
        %1183 = vst [vmem:[#allocation2 + $0x3bc] sm:$0xf] %v1035
        %1184 = vst [vmem:[#allocation2 + $0x3e0] sm:$0xf] %v1036
        %1185 = vst [vmem:[#allocation2 + $0x404] sm:$0xf] %v1037
        %1186 = vst [vmem:[#allocation2 + $0x428] sm:$0xf] %v1038
        %1187 = vst [vmem:[#allocation2 + $0x44c] sm:$0xf] %v1155
        %1188 = vst [vmem:[#allocation2 + $0x470] sm:$0xf] %v1156
        %1189 = vst [vmem:[#allocation2 + $0x18] sm:$0xf] %v625
        %1190 = vst [vmem:[#allocation2 + $0x3c] sm:$0xf] %v626
        %1191 = vst [vmem:[#allocation2 + $0x60] sm:$0xf] %v627
        %1192 = vst [vmem:[#allocation2 + $0x84] sm:$0xf] %v628
        %1193 = vst [vmem:[#allocation2 + $0xa8] sm:$0xf] %v629
        %1194 = vst [vmem:[#allocation2 + $0xcc] sm:$0xf] %v630
        %1195 = vst [vmem:[#allocation2 + $0xf0] sm:$0xf] %v631
        %1196 = vst [vmem:[#allocation2 + $0x114] sm:$0xf] %v632
        %1197 = vst [vmem:[#allocation2 + $0x138] sm:$0xf] %v633
        %1198 = vst [vmem:[#allocation2 + $0x15c] sm:$0xf] %v634
        %1199 = vst [vmem:[#allocation2 + $0x180] sm:$0xf] %v635
        %1200 = vst [vmem:[#allocation2 + $0x1a4] sm:$0xf] %v636
        %1201 = vst [vmem:[#allocation2 + $0x1c8] sm:$0xf] %v637
        %1202 = vst [vmem:[#allocation2 + $0x1ec] sm:$0xf] %v638
        %1203 = vst [vmem:[#allocation2 + $0x210] sm:$0xf] %v639
        %1204 = vst [vmem:[#allocation2 + $0x234] sm:$0xf] %v640
        %1205 = vst [vmem:[#allocation2 + $0x258] sm:$0xf] %v641
        %1206 = vst [vmem:[#allocation2 + $0x27c] sm:$0xf] %v642
        %1207 = vst [vmem:[#allocation2 + $0x2a0] sm:$0xf] %v643
        %1208 = vst [vmem:[#allocation2 + $0x2c4] sm:$0xf] %v644
        %1209 = vst [vmem:[#allocation2 + $0x2e8] sm:$0xf] %v645
        %1210 = vst [vmem:[#allocation2 + $0x30c] sm:$0xf] %v646
        %1211 = vst [vmem:[#allocation2 + $0x330] sm:$0xf] %v647
        %1212 = vst [vmem:[#allocation2 + $0x354] sm:$0xf] %v648
        %1213 = vst [vmem:[#allocation2 + $0x378] sm:$0xf] %v649
        %1214 = vst [vmem:[#allocation2 + $0x39c] sm:$0xf] %v650
        %1215 = vst [vmem:[#allocation2 + $0x3c0] sm:$0xf] %v651
        %1216 = vst [vmem:[#allocation2 + $0x3e4] sm:$0xf] %v652
        %1217 = vst [vmem:[#allocation2 + $0x408] sm:$0xf] %v1071
        %1218 = vst [vmem:[#allocation2 + $0x42c] sm:$0xf] %v1072
        %1219 = vst [vmem:[#allocation2 + $0x450] sm:$0xf] %v621
        %1220 = vst [vmem:[#allocation2 + $0x474] sm:$0xf] %v622
        %1221 = vst [vmem:[#allocation2 + $0x1c] sm:$0xf] %v834
        %1222 = vst [vmem:[#allocation2 + $0x40] sm:$0xf] %v835
        %1223 = vst [vmem:[#allocation2 + $0x64] sm:$0xf] %v836
        %1224 = vst [vmem:[#allocation2 + $0x88] sm:$0xf] %v837
        %1225 = vst [vmem:[#allocation2 + $0xac] sm:$0xf] %v838
        %1226 = vst [vmem:[#allocation2 + $0xd0] sm:$0xf] %v839
        %1227 = vst [vmem:[#allocation2 + $0xf4] sm:$0xf] %v840
        %1228 = vst [vmem:[#allocation2 + $0x118] sm:$0xf] %v841
        %1229 = vst [vmem:[#allocation2 + $0x13c] sm:$0xf] %v842
        %1230 = vst [vmem:[#allocation2 + $0x160] sm:$0xf] %v843
        %1231 = vst [vmem:[#allocation2 + $0x184] sm:$0xf] %v844
        %1232 = vst [vmem:[#allocation2 + $0x1a8] sm:$0xf] %v845
        %1233 = vst [vmem:[#allocation2 + $0x1cc] sm:$0xf] %v846
        %1234 = vst [vmem:[#allocation2 + $0x1f0] sm:$0xf] %v847
        %1235 = vst [vmem:[#allocation2 + $0x214] sm:$0xf] %v848
        %1236 = vst [vmem:[#allocation2 + $0x238] sm:$0xf] %v849
        %1237 = vst [vmem:[#allocation2 + $0x25c] sm:$0xf] %v850
        %1238 = vst [vmem:[#allocation2 + $0x280] sm:$0xf] %v851
        %1239 = vst [vmem:[#allocation2 + $0x2a4] sm:$0xf] %v852
        %1240 = vst [vmem:[#allocation2 + $0x2c8] sm:$0xf] %v853
        %1241 = vst [vmem:[#allocation2 + $0x2ec] sm:$0xf] %v854
        %1242 = vst [vmem:[#allocation2 + $0x310] sm:$0xf] %v855
        %1243 = vst [vmem:[#allocation2 + $0x334] sm:$0xf] %v856
        %1244 = vst [vmem:[#allocation2 + $0x358] sm:$0xf] %v857
        %1245 = vst [vmem:[#allocation2 + $0x37c] sm:$0xf] %v858
        %1246 = vst [vmem:[#allocation2 + $0x3a0] sm:$0xf] %v859
        %1247 = vst [vmem:[#allocation2 + $0x3c4] sm:$0xf] %v860
        %1248 = vst [vmem:[#allocation2 + $0x3e8] sm:$0xf] %v861
        %1249 = vst [vmem:[#allocation2 + $0x40c] sm:$0xf] %v1114
        %1250 = vst [vmem:[#allocation2 + $0x430] sm:$0xf] %v1115
        %1251 = vst [vmem:[#allocation2 + $0x454] sm:$0xf] %v830
        %1252 = vst [vmem:[#allocation2 + $0x478] sm:$0xf] %v831
        %1253 = vst [vmem:[#allocation2 + $0x20] sm:$0xf] %v1011
        %1254 = vst [vmem:[#allocation2 + $0x44] sm:$0xf] %v1012
        %1255 = vst [vmem:[#allocation2 + $0x68] sm:$0xf] %v1013
        %1256 = vst [vmem:[#allocation2 + $0x8c] sm:$0xf] %v1014
        %1257 = vst [vmem:[#allocation2 + $0xb0] sm:$0xf] %v1015
        %1258 = vst [vmem:[#allocation2 + $0xd4] sm:$0xf] %v1016
        %1259 = vst [vmem:[#allocation2 + $0xf8] sm:$0xf] %v1017
        %1260 = vst [vmem:[#allocation2 + $0x11c] sm:$0xf] %v1018
        %1261 = vst [vmem:[#allocation2 + $0x140] sm:$0xf] %v1019
        %1262 = vst [vmem:[#allocation2 + $0x164] sm:$0xf] %v1020
        %1263 = vst [vmem:[#allocation2 + $0x188] sm:$0xf] %v1021
        %1264 = vst [vmem:[#allocation2 + $0x1ac] sm:$0xf] %v1022
        %1265 = vst [vmem:[#allocation2 + $0x1d0] sm:$0xf] %v1023
        %1266 = vst [vmem:[#allocation2 + $0x1f4] sm:$0xf] %v1024
        %1267 = vst [vmem:[#allocation2 + $0x218] sm:$0xf] %v1025
        %1268 = vst [vmem:[#allocation2 + $0x23c] sm:$0xf] %v1026
        %1269 = vst [vmem:[#allocation2 + $0x260] sm:$0xf] %v1027
        %1270 = vst [vmem:[#allocation2 + $0x284] sm:$0xf] %v1028
        %1271 = vst [vmem:[#allocation2 + $0x2a8] sm:$0xf] %v1029
        %1272 = vst [vmem:[#allocation2 + $0x2cc] sm:$0xf] %v1030
        %1273 = vst [vmem:[#allocation2 + $0x2f0] sm:$0xf] %v1031
        %1274 = vst [vmem:[#allocation2 + $0x314] sm:$0xf] %v1032
        %1275 = vst [vmem:[#allocation2 + $0x338] sm:$0xf] %v1033
        %1276 = vst [vmem:[#allocation2 + $0x35c] sm:$0xf] %v1034
        %1277 = vst [vmem:[#allocation2 + $0x380] sm:$0xf] %v1035
        %1278 = vst [vmem:[#allocation2 + $0x3a4] sm:$0xf] %v1036
        %1279 = vst [vmem:[#allocation2 + $0x3c8] sm:$0xf] %v1037
        %1280 = vst [vmem:[#allocation2 + $0x3ec] sm:$0xf] %v1038
        %1281 = vst [vmem:[#allocation2 + $0x410] sm:$0xf] %v1155
        %1282 = vst [vmem:[#allocation2 + $0x434] sm:$0xf] %v1156
        %1283 = vst [vmem:[#allocation2 + $0x458] sm:$0xf] %v1007
        %1284 = vst [vmem:[#allocation2 + $0x47c] sm:$0xf] %v1008
        %v1285 = vld [vmem:[#allocation2] sm:$0xff]
        %v1286 = vld [vmem:[#allocation2 + $0x8] sm:$0xff]
        %v1287 = vld [vmem:[#allocation2 + $0x10] sm:$0xff]
        %v1288 = vld [vmem:[#allocation2 + $0x18] sm:$0xff]
        %v1289 = vld [vmem:[#allocation2 + $0x20] sm:$0xf]
        %v1290 = vld [vmem:[#allocation2 + $0x24] sm:$0xff]
        %v1291 = vld [vmem:[#allocation2 + $0x2c] sm:$0xff]
        %v1292 = vld [vmem:[#allocation2 + $0x34] sm:$0xff]
        %v1293 = vld [vmem:[#allocation2 + $0x3c] sm:$0xff]
        %v1294 = vld [vmem:[#allocation2 + $0x44] sm:$0xf]
        %v1295 = vld [vmem:[#allocation2 + $0x48] sm:$0xff]
        %v1296 = vld [vmem:[#allocation2 + $0x50] sm:$0xff]
        %v1297 = vld [vmem:[#allocation2 + $0x58] sm:$0xff]
        %v1298 = vld [vmem:[#allocation2 + $0x60] sm:$0xff]
        %v1299 = vld [vmem:[#allocation2 + $0x68] sm:$0xf]
        %v1300 = vld [vmem:[#allocation2 + $0x6c] sm:$0xff]
        %v1301 = vld [vmem:[#allocation2 + $0x74] sm:$0xff]
        %v1302 = vld [vmem:[#allocation2 + $0x7c] sm:$0xff]
        %v1303 = vld [vmem:[#allocation2 + $0x84] sm:$0xff]
        %v1304 = vld [vmem:[#allocation2 + $0x8c] sm:$0xf]
        %v1305 = vld [vmem:[#allocation2 + $0x90] sm:$0xff]
        %v1306 = vld [vmem:[#allocation2 + $0x98] sm:$0xff]
        %v1307 = vld [vmem:[#allocation2 + $0xa0] sm:$0xff]
        %v1308 = vld [vmem:[#allocation2 + $0xa8] sm:$0xff]
        %v1309 = vld [vmem:[#allocation2 + $0xb0] sm:$0xf]
        %v1310 = vld [vmem:[#allocation2 + $0xb4] sm:$0xff]
        %v1311 = vld [vmem:[#allocation2 + $0xbc] sm:$0xff]
        %v1312 = vld [vmem:[#allocation2 + $0xc4] sm:$0xff]
        %v1313 = vld [vmem:[#allocation2 + $0xcc] sm:$0xff]
        %v1314 = vld [vmem:[#allocation2 + $0xd4] sm:$0xf]
        %v1315 = vld [vmem:[#allocation2 + $0xd8] sm:$0xff]
        %v1316 = vld [vmem:[#allocation2 + $0xe0] sm:$0xff]
        %v1317 = vld [vmem:[#allocation2 + $0xe8] sm:$0xff]
        %v1318 = vld [vmem:[#allocation2 + $0xf0] sm:$0xff]
        %v1319 = vld [vmem:[#allocation2 + $0xf8] sm:$0xf]
        %v1320 = vld [vmem:[#allocation2 + $0xfc] sm:$0xff]
        %v1321 = vld [vmem:[#allocation2 + $0x104] sm:$0xff]
        %v1322 = vld [vmem:[#allocation2 + $0x10c] sm:$0xff]
        %v1323 = vld [vmem:[#allocation2 + $0x114] sm:$0xff]
        %v1324 = vld [vmem:[#allocation2 + $0x11c] sm:$0xf]
        %v1325 = vld [vmem:[#allocation2 + $0x120] sm:$0xff]
        %v1326 = vld [vmem:[#allocation2 + $0x128] sm:$0xff]
        %v1327 = vld [vmem:[#allocation2 + $0x130] sm:$0xff]
        %v1328 = vld [vmem:[#allocation2 + $0x138] sm:$0xff]
        %v1329 = vld [vmem:[#allocation2 + $0x140] sm:$0xf]
        %v1330 = vld [vmem:[#allocation2 + $0x144] sm:$0xff]
        %v1331 = vld [vmem:[#allocation2 + $0x14c] sm:$0xff]
        %v1332 = vld [vmem:[#allocation2 + $0x154] sm:$0xff]
        %v1333 = vld [vmem:[#allocation2 + $0x15c] sm:$0xff]
        %v1334 = vld [vmem:[#allocation2 + $0x164] sm:$0xf]
        %v1335 = vld [vmem:[#allocation2 + $0x168] sm:$0xff]
        %v1336 = vld [vmem:[#allocation2 + $0x170] sm:$0xff]
        %v1337 = vld [vmem:[#allocation2 + $0x178] sm:$0xff]
        %v1338 = vld [vmem:[#allocation2 + $0x180] sm:$0xff]
        %v1339 = vld [vmem:[#allocation2 + $0x188] sm:$0xf]
        %v1340 = vld [vmem:[#allocation2 + $0x18c] sm:$0xff]
        %v1341 = vld [vmem:[#allocation2 + $0x194] sm:$0xff]
        %v1342 = vld [vmem:[#allocation2 + $0x19c] sm:$0xff]
        %v1343 = vld [vmem:[#allocation2 + $0x1a4] sm:$0xff]
        %v1344 = vld [vmem:[#allocation2 + $0x1ac] sm:$0xf]
        %v1345 = vld [vmem:[#allocation2 + $0x1b0] sm:$0xff]
        %v1346 = vld [vmem:[#allocation2 + $0x1b8] sm:$0xff]
        %v1347 = vld [vmem:[#allocation2 + $0x1c0] sm:$0xff]
        %v1348 = vld [vmem:[#allocation2 + $0x1c8] sm:$0xff]
        %v1349 = vld [vmem:[#allocation2 + $0x1d0] sm:$0xf]
        %v1350 = vld [vmem:[#allocation2 + $0x1d4] sm:$0xff]
        %v1351 = vld [vmem:[#allocation2 + $0x1dc] sm:$0xff]
        %v1352 = vld [vmem:[#allocation2 + $0x1e4] sm:$0xff]
        %v1353 = vld [vmem:[#allocation2 + $0x1ec] sm:$0xff]
        %v1354 = vld [vmem:[#allocation2 + $0x1f4] sm:$0xf]
        %v1355 = vld [vmem:[#allocation2 + $0x1f8] sm:$0xff]
        %v1356 = vld [vmem:[#allocation2 + $0x200] sm:$0xff]
        %v1357 = vld [vmem:[#allocation2 + $0x208] sm:$0xff]
        %v1358 = vld [vmem:[#allocation2 + $0x210] sm:$0xff]
        %v1359 = vld [vmem:[#allocation2 + $0x218] sm:$0xf]
        %v1360 = vld [vmem:[#allocation2 + $0x21c] sm:$0xff]
        %v1361 = vld [vmem:[#allocation2 + $0x224] sm:$0xff]
        %v1362 = vld [vmem:[#allocation2 + $0x22c] sm:$0xff]
        %v1363 = vld [vmem:[#allocation2 + $0x234] sm:$0xff]
        %v1364 = vld [vmem:[#allocation2 + $0x23c] sm:$0xf]
        %v1365 = vld [vmem:[#allocation2 + $0x240] sm:$0xff]
        %v1366 = vld [vmem:[#allocation2 + $0x248] sm:$0xff]
        %v1367 = vld [vmem:[#allocation2 + $0x250] sm:$0xff]
        %v1368 = vld [vmem:[#allocation2 + $0x258] sm:$0xff]
        %v1369 = vld [vmem:[#allocation2 + $0x260] sm:$0xf]
        %v1370 = vld [vmem:[#allocation2 + $0x264] sm:$0xff]
        %v1371 = vld [vmem:[#allocation2 + $0x26c] sm:$0xff]
        %v1372 = vld [vmem:[#allocation2 + $0x274] sm:$0xff]
        %v1373 = vld [vmem:[#allocation2 + $0x27c] sm:$0xff]
        %v1374 = vld [vmem:[#allocation2 + $0x284] sm:$0xf]
        %v1375 = vld [vmem:[#allocation2 + $0x288] sm:$0xff]
        %v1376 = vld [vmem:[#allocation2 + $0x290] sm:$0xff]
        %v1377 = vld [vmem:[#allocation2 + $0x298] sm:$0xff]
        %v1378 = vld [vmem:[#allocation2 + $0x2a0] sm:$0xff]
        %v1379 = vld [vmem:[#allocation2 + $0x2a8] sm:$0xf]
        %v1380 = vld [vmem:[#allocation2 + $0x2ac] sm:$0xff]
        %v1381 = vld [vmem:[#allocation2 + $0x2b4] sm:$0xff]
        %v1382 = vld [vmem:[#allocation2 + $0x2bc] sm:$0xff]
        %v1383 = vld [vmem:[#allocation2 + $0x2c4] sm:$0xff]
        %v1384 = vld [vmem:[#allocation2 + $0x2cc] sm:$0xf]
        %v1385 = vld [vmem:[#allocation2 + $0x2d0] sm:$0xff]
        %v1386 = vld [vmem:[#allocation2 + $0x2d8] sm:$0xff]
        %v1387 = vld [vmem:[#allocation2 + $0x2e0] sm:$0xff]
        %v1388 = vld [vmem:[#allocation2 + $0x2e8] sm:$0xff]
        %v1389 = vld [vmem:[#allocation2 + $0x2f0] sm:$0xf]
        %v1390 = vld [vmem:[#allocation2 + $0x2f4] sm:$0xff]
        %v1391 = vld [vmem:[#allocation2 + $0x2fc] sm:$0xff]
        %v1392 = vld [vmem:[#allocation2 + $0x304] sm:$0xff]
        %v1393 = vld [vmem:[#allocation2 + $0x30c] sm:$0xff]
        %v1394 = vld [vmem:[#allocation2 + $0x314] sm:$0xf]
        %v1395 = vld [vmem:[#allocation2 + $0x318] sm:$0xff]
        %v1396 = vld [vmem:[#allocation2 + $0x320] sm:$0xff]
        %v1397 = vld [vmem:[#allocation2 + $0x328] sm:$0xff]
        %v1398 = vld [vmem:[#allocation2 + $0x330] sm:$0xff]
        %v1399 = vld [vmem:[#allocation2 + $0x338] sm:$0xf]
        %v1400 = vld [vmem:[#allocation2 + $0x33c] sm:$0xff]
        %v1401 = vld [vmem:[#allocation2 + $0x344] sm:$0xff]
        %v1402 = vld [vmem:[#allocation2 + $0x34c] sm:$0xff]
        %v1403 = vld [vmem:[#allocation2 + $0x354] sm:$0xff]
        %v1404 = vld [vmem:[#allocation2 + $0x35c] sm:$0xf]
        %v1405 = vld [vmem:[#allocation2 + $0x360] sm:$0xff]
        %v1406 = vld [vmem:[#allocation2 + $0x368] sm:$0xff]
        %v1407 = vld [vmem:[#allocation2 + $0x370] sm:$0xff]
        %v1408 = vld [vmem:[#allocation2 + $0x378] sm:$0xff]
        %v1409 = vld [vmem:[#allocation2 + $0x380] sm:$0xf]
        %v1410 = vld [vmem:[#allocation2 + $0x384] sm:$0xff]
        %v1411 = vld [vmem:[#allocation2 + $0x38c] sm:$0xff]
        %v1412 = vld [vmem:[#allocation2 + $0x394] sm:$0xff]
        %v1413 = vld [vmem:[#allocation2 + $0x39c] sm:$0xff]
        %v1414 = vld [vmem:[#allocation2 + $0x3a4] sm:$0xf]
        %v1415 = vld [vmem:[#allocation2 + $0x3a8] sm:$0xff]
        %v1416 = vld [vmem:[#allocation2 + $0x3b0] sm:$0xff]
        %v1417 = vld [vmem:[#allocation2 + $0x3b8] sm:$0xff]
        %v1418 = vld [vmem:[#allocation2 + $0x3c0] sm:$0xff]
        %v1419 = vld [vmem:[#allocation2 + $0x3c8] sm:$0xf]
        %v1420 = vld [vmem:[#allocation2 + $0x3cc] sm:$0xff]
        %v1421 = vld [vmem:[#allocation2 + $0x3d4] sm:$0xff]
        %v1422 = vld [vmem:[#allocation2 + $0x3dc] sm:$0xff]
        %v1423 = vld [vmem:[#allocation2 + $0x3e4] sm:$0xff]
        %v1424 = vld [vmem:[#allocation2 + $0x3ec] sm:$0xf]
        %v1425 = vld [vmem:[#allocation2 + $0x3f0] sm:$0xff]
        %v1426 = vld [vmem:[#allocation2 + $0x3f8] sm:$0xff]
        %v1427 = vld [vmem:[#allocation2 + $0x400] sm:$0xff]
        %v1428 = vld [vmem:[#allocation2 + $0x408] sm:$0xff]
        %v1429 = vld [vmem:[#allocation2 + $0x410] sm:$0xf]
        %v1430 = vld [vmem:[#allocation2 + $0x414] sm:$0xff]
        %v1431 = vld [vmem:[#allocation2 + $0x41c] sm:$0xff]
        %v1432 = vld [vmem:[#allocation2 + $0x424] sm:$0xff]
        %v1433 = vld [vmem:[#allocation2 + $0x42c] sm:$0xff]
        %v1434 = vld [vmem:[#allocation2 + $0x434] sm:$0xf]
        %v1435 = vld [vmem:[#allocation2 + $0x438] sm:$0xff]
        %v1436 = vld [vmem:[#allocation2 + $0x440] sm:$0xff]
        %v1437 = vld [vmem:[#allocation2 + $0x448] sm:$0xff]
        %v1438 = vld [vmem:[#allocation2 + $0x450] sm:$0xff]
        %v1439 = vld [vmem:[#allocation2 + $0x458] sm:$0xf]
        %v1440 = vld [vmem:[#allocation2 + $0x45c] sm:$0xff]
        %v1441 = vld [vmem:[#allocation2 + $0x464] sm:$0xff]
        %v1442 = vld [vmem:[#allocation2 + $0x46c] sm:$0xff]
        %v1443 = vld [vmem:[#allocation2 + $0x474] sm:$0xff]
        %v1444 = vld [vmem:[#allocation2 + $0x47c] sm:$0xf]
        %v1445 = vld [vmem:[#allocation3] sm:$0xf]
        %v1446 = vld [vmem:[#allocation3 + $0x4] sm:$0xf]
        %v1447 = vld [vmem:[#allocation3 + $0x8] sm:$0xf]
        %v1448 = vld [vmem:[#allocation3 + $0xc] sm:$0xf]
        %v1449 = vld [vmem:[#allocation3 + $0x10] sm:$0xf]
        %v1450 = vld [vmem:[#allocation3 + $0x14] sm:$0xf]
        %v1451 = vld [vmem:[#allocation3 + $0x18] sm:$0xf]
        %v1452 = vld [vmem:[#allocation3 + $0x1c] sm:$0xf]
        %v1453 = vld [vmem:[#allocation3 + $0x20] sm:$0xf]
        %v1454 = vld [vmem:[#allocation3 + $0x24] sm:$0xf]
        %v1455 = vld [vmem:[#allocation3 + $0x28] sm:$0xf]
        %v1456 = vld [vmem:[#allocation3 + $0x2c] sm:$0xf]
        %v1457 = vld [vmem:[#allocation3 + $0x30] sm:$0xf]
        %v1458 = vld [vmem:[#allocation3 + $0x34] sm:$0xf]
        %v1459 = vld [vmem:[#allocation3 + $0x38] sm:$0xf]
        %v1460 = vld [vmem:[#allocation3 + $0x3c] sm:$0xf]
        %v1461 = vld [vmem:[#allocation3 + $0x40] sm:$0xf]
        %v1462 = vld [vmem:[#allocation3 + $0x44] sm:$0xf]
        %v1463 = vld [vmem:[#allocation3 + $0x48] sm:$0xf]
        %v1464 = vld [vmem:[#allocation3 + $0x4c] sm:$0xf]
        %v1465 = vld [vmem:[#allocation3 + $0x50] sm:$0xf]
        %v1466 = vld [vmem:[#allocation3 + $0x54] sm:$0xf]
        %v1467 = vld [vmem:[#allocation3 + $0x58] sm:$0xf]
        %v1468 = vld [vmem:[#allocation3 + $0x5c] sm:$0xf]
        %v1469 = vld [vmem:[#allocation3 + $0x60] sm:$0xf]
        %v1470 = vld [vmem:[#allocation3 + $0x64] sm:$0xf]
        %v1471 = vld [vmem:[#allocation3 + $0x68] sm:$0xf]
        %v1472 = vld [vmem:[#allocation3 + $0x6c] sm:$0xf]
        %v1473 = vld [vmem:[#allocation3 + $0x70] sm:$0xf]
        %v1474 = vld [vmem:[#allocation3 + $0x74] sm:$0xf]
        %v1475 = vld [vmem:[#allocation3 + $0x78] sm:$0xf]
        %v1476 = vld [vmem:[#allocation3 + $0x7c] sm:$0xf]
        %v1477 = vld [vmem:[#allocation3 + $0x80] sm:$0xf]
        %v1478 = vld [vmem:[#allocation3 + $0x84] sm:$0xf]
        %v1479 = vld [vmem:[#allocation3 + $0x88] sm:$0xf]
        %v1480 = vld [vmem:[#allocation3 + $0x8c] sm:$0xf]
        %v1481 = vld [vmem:[#allocation3 + $0x90] sm:$0xf]
        %v1482 = vld [vmem:[#allocation3 + $0x94] sm:$0xf]
        %v1483 = vld [vmem:[#allocation3 + $0x98] sm:$0xf]
        %v1484 = vld [vmem:[#allocation3 + $0x9c] sm:$0xf]
        %v1485 = vld [vmem:[#allocation3 + $0xa0] sm:$0xf]
        %v1486 = vld [vmem:[#allocation3 + $0xa4] sm:$0xf]
        %v1487 = vld [vmem:[#allocation3 + $0xa8] sm:$0xf]
        %v1488 = vld [vmem:[#allocation3 + $0xac] sm:$0xf]
        %v1489 = vld [vmem:[#allocation3 + $0xb0] sm:$0xf]
        %v1490 = vld [vmem:[#allocation3 + $0xb4] sm:$0xf]
        %v1491 = vld [vmem:[#allocation3 + $0xb8] sm:$0xf]
        %v1492 = vld [vmem:[#allocation3 + $0xbc] sm:$0xf]
        %v1493 = vld [vmem:[#allocation3 + $0xc0] sm:$0xf]
        %v1494 = vld [vmem:[#allocation3 + $0xc4] sm:$0xf]
        %v1495 = vld [vmem:[#allocation3 + $0xc8] sm:$0xf]
        %v1496 = vld [vmem:[#allocation3 + $0xcc] sm:$0xf]
        %v1497 = vld [vmem:[#allocation3 + $0xd0] sm:$0xf]
        %v1498 = vld [vmem:[#allocation3 + $0xd4] sm:$0xf]
        %v1499 = vld [vmem:[#allocation3 + $0xd8] sm:$0xf]
        %v1500 = vld [vmem:[#allocation3 + $0xdc] sm:$0xf]
        %v1501 = vld [vmem:[#allocation3 + $0xe0] sm:$0xf]
        %v1502 = vld [vmem:[#allocation3 + $0xe4] sm:$0xf]
        %v1503 = vld [vmem:[#allocation3 + $0xe8] sm:$0xf]
        %v1504 = vld [vmem:[#allocation3 + $0xec] sm:$0xf]
        %v1505 = vld [vmem:[#allocation3 + $0xf0] sm:$0xf]
        %v1506 = vld [vmem:[#allocation3 + $0xf4] sm:$0xf]
        %v1507 = vld [vmem:[#allocation3 + $0xf8] sm:$0xf]
        %v1508 = vld [vmem:[#allocation3 + $0xfc] sm:$0xf]
        %v1509 = vld [vmem:[#allocation3 + $0x100] sm:$0xf]
        %v1510 = vld [vmem:[#allocation3 + $0x104] sm:$0xf]
        %v1511 = vld [vmem:[#allocation3 + $0x108] sm:$0xf]
        %v1512 = vld [vmem:[#allocation3 + $0x10c] sm:$0xf]
        %v1513 = vld [vmem:[#allocation3 + $0x110] sm:$0xf]
        %v1514 = vld [vmem:[#allocation3 + $0x114] sm:$0xf]
        %v1515 = vld [vmem:[#allocation3 + $0x118] sm:$0xf]
        %v1516 = vld [vmem:[#allocation3 + $0x11c] sm:$0xf]
        %v1517 = vld [vmem:[#allocation3 + $0x120] sm:$0xf]
        %v1518 = vld [vmem:[#allocation3 + $0x124] sm:$0xf]
        %v1519 = vld [vmem:[#allocation3 + $0x128] sm:$0xf]
        %v1520 = vld [vmem:[#allocation3 + $0x12c] sm:$0xf]
        %v1521 = vld [vmem:[#allocation3 + $0x130] sm:$0xf]
        %v1522 = vld [vmem:[#allocation3 + $0x134] sm:$0xf]
        %v1523 = vld [vmem:[#allocation3 + $0x138] sm:$0xf]
        %v1524 = vld [vmem:[#allocation3 + $0x13c] sm:$0xf]
        %v1525 = vld [vmem:[#allocation3 + $0x140] sm:$0xf]
        %v1526 = vld [vmem:[#allocation3 + $0x144] sm:$0xf]
        %v1527 = vld [vmem:[#allocation3 + $0x148] sm:$0xf]
        %v1528 = vld [vmem:[#allocation3 + $0x14c] sm:$0xf]
        %v1529 = vld [vmem:[#allocation3 + $0x150] sm:$0xf]
        %v1530 = vld [vmem:[#allocation3 + $0x154] sm:$0xf]
        %v1531 = vld [vmem:[#allocation3 + $0x158] sm:$0xf]
        %v1532 = vld [vmem:[#allocation3 + $0x15c] sm:$0xf]
        %v1533 = vld [vmem:[#allocation3 + $0x160] sm:$0xf]
        %v1534 = vld [vmem:[#allocation3 + $0x164] sm:$0xf]
        %v1535 = vld [vmem:[#allocation3 + $0x168] sm:$0xf]
        %v1536 = vld [vmem:[#allocation3 + $0x16c] sm:$0xf]
        %v1537 = vld [vmem:[#allocation3 + $0x170] sm:$0xf]
        %v1538 = vld [vmem:[#allocation3 + $0x174] sm:$0xf]
        %v1539 = vld [vmem:[#allocation3 + $0x178] sm:$0xf]
        %v1540 = vld [vmem:[#allocation3 + $0x17c] sm:$0xf]
        %v1541 = vld [vmem:[#allocation3 + $0x180] sm:$0xf]
        %v1542 = vld [vmem:[#allocation3 + $0x184] sm:$0xf]
        %v1543 = vld [vmem:[#allocation3 + $0x188] sm:$0xf]
        %v1544 = vld [vmem:[#allocation3 + $0x18c] sm:$0xf]
        %v1545 = vld [vmem:[#allocation3 + $0x190] sm:$0xf]
        %v1546 = vld [vmem:[#allocation3 + $0x194] sm:$0xf]
        %v1547 = vld [vmem:[#allocation3 + $0x198] sm:$0xf]
        %v1548 = vld [vmem:[#allocation3 + $0x19c] sm:$0xf]
        %v1549 = vld [vmem:[#allocation3 + $0x1a0] sm:$0xf]
        %v1550 = vld [vmem:[#allocation3 + $0x1a4] sm:$0xf]
        %v1551 = vld [vmem:[#allocation3 + $0x1a8] sm:$0xf]
        %v1552 = vld [vmem:[#allocation3 + $0x1ac] sm:$0xf]
        %v1553 = vld [vmem:[#allocation3 + $0x1b0] sm:$0xf]
        %v1554 = vld [vmem:[#allocation3 + $0x1b4] sm:$0xf]
        %v1555 = vld [vmem:[#allocation3 + $0x1b8] sm:$0xf]
        %v1556 = vld [vmem:[#allocation3 + $0x1bc] sm:$0xf]
        %v1557 = vld [vmem:[#allocation3 + $0x1c0] sm:$0xf]
        %v1558 = vld [vmem:[#allocation3 + $0x1c4] sm:$0xf]
        %v1559 = vld [vmem:[#allocation3 + $0x1c8] sm:$0xf]
        %v1560 = vld [vmem:[#allocation3 + $0x1cc] sm:$0xf]
        %v1561 = vld [vmem:[#allocation3 + $0x1d0] sm:$0xf]
        %v1562 = vld [vmem:[#allocation3 + $0x1d4] sm:$0xf]
        %v1563 = vld [vmem:[#allocation3 + $0x1d8] sm:$0xf]
        %v1564 = vld [vmem:[#allocation3 + $0x1dc] sm:$0xf]
        %v1565 = vld [vmem:[#allocation3 + $0x1e0] sm:$0xf]
        %v1566 = vld [vmem:[#allocation3 + $0x1e4] sm:$0xf]
        %v1567 = vld [vmem:[#allocation3 + $0x1e8] sm:$0xf]
        %v1568 = vld [vmem:[#allocation3 + $0x1ec] sm:$0xf]
        %v1569 = vld [vmem:[#allocation3 + $0x1f0] sm:$0xf]
        %v1570 = vld [vmem:[#allocation3 + $0x1f4] sm:$0xf]
        %v1571 = vld [vmem:[#allocation3 + $0x1f8] sm:$0xf]
        %v1572 = vld [vmem:[#allocation3 + $0x1fc] sm:$0xf]
        %v1573 = vld [vmem:[#allocation3 + $0x200] sm:$0xf]
        %v1574 = vld [vmem:[#allocation3 + $0x204] sm:$0xf]
        %v1575 = vld [vmem:[#allocation3 + $0x208] sm:$0xf]
        %v1576 = vld [vmem:[#allocation3 + $0x20c] sm:$0xf]
        %v1577 = vld [vmem:[#allocation3 + $0x210] sm:$0xf]
        %v1578 = vld [vmem:[#allocation3 + $0x214] sm:$0xf]
        %v1579 = vld [vmem:[#allocation3 + $0x218] sm:$0xf]
        %v1580 = vld [vmem:[#allocation3 + $0x21c] sm:$0xf]
        %v1581 = vld [vmem:[#allocation3 + $0x220] sm:$0xf]
        %v1582 = vld [vmem:[#allocation3 + $0x224] sm:$0xf]
        %v1583 = vld [vmem:[#allocation3 + $0x228] sm:$0xf]
        %v1584 = vld [vmem:[#allocation3 + $0x22c] sm:$0xf]
        %v1585 = vld [vmem:[#allocation3 + $0x230] sm:$0xf]
        %v1586 = vld [vmem:[#allocation3 + $0x234] sm:$0xf]
        %v1587 = vld [vmem:[#allocation3 + $0x238] sm:$0xf]
        %v1588 = vld [vmem:[#allocation3 + $0x23c] sm:$0xf]
        %v1749 = vunpack.c.l.b16 %v1285
        %v1750 = vunpack.c.h.b16 %v1285
        %v1751 = vunpack.c.l.b16 %v1286
        %v1752 = vunpack.c.h.b16 %v1286
        %v1753 = vunpack.c.l.b16 %v1287
        %v1754 = vunpack.c.h.b16 %v1287
        %v1755 = vunpack.c.l.b16 %v1288
        %v1756 = vunpack.c.h.b16 %v1288
        %v1757 = vunpack.c.l.b16 %v1289
        %v1758 = vunpack.c.l.b16 %v1290
        %v1759 = vunpack.c.h.b16 %v1290
        %v1760 = vunpack.c.l.b16 %v1291
        %v1761 = vunpack.c.h.b16 %v1291
        %v1762 = vunpack.c.l.b16 %v1292
        %v1763 = vunpack.c.h.b16 %v1292
        %v1764 = vunpack.c.l.b16 %v1293
        %v1765 = vunpack.c.h.b16 %v1293
        %v1766 = vunpack.c.l.b16 %v1294
        %v1767 = vunpack.c.l.b16 %v1295
        %v1768 = vunpack.c.h.b16 %v1295
        %v1769 = vunpack.c.l.b16 %v1296
        %v1770 = vunpack.c.h.b16 %v1296
        %v1771 = vunpack.c.l.b16 %v1297
        %v1772 = vunpack.c.h.b16 %v1297
        %v1773 = vunpack.c.l.b16 %v1298
        %v1774 = vunpack.c.h.b16 %v1298
        %v1775 = vunpack.c.l.b16 %v1299
        %v1776 = vunpack.c.l.b16 %v1300
        %v1777 = vunpack.c.h.b16 %v1300
        %v1778 = vunpack.c.l.b16 %v1301
        %v1779 = vunpack.c.h.b16 %v1301
        %v1780 = vunpack.c.l.b16 %v1302
        %v1781 = vunpack.c.h.b16 %v1302
        %v1782 = vunpack.c.l.b16 %v1303
        %v1783 = vunpack.c.h.b16 %v1303
        %v1784 = vunpack.c.l.b16 %v1304
        %v1785 = vunpack.c.l.b16 %v1305
        %v1786 = vunpack.c.h.b16 %v1305
        %v1787 = vunpack.c.l.b16 %v1306
        %v1788 = vunpack.c.h.b16 %v1306
        %v1789 = vunpack.c.l.b16 %v1307
        %v1790 = vunpack.c.h.b16 %v1307
        %v1791 = vunpack.c.l.b16 %v1308
        %v1792 = vunpack.c.h.b16 %v1308
        %v1793 = vunpack.c.l.b16 %v1309
        %v1794 = vunpack.c.l.b16 %v1310
        %v1795 = vunpack.c.h.b16 %v1310
        %v1796 = vunpack.c.l.b16 %v1311
        %v1797 = vunpack.c.h.b16 %v1311
        %v1798 = vunpack.c.l.b16 %v1312
        %v1799 = vunpack.c.h.b16 %v1312
        %v1800 = vunpack.c.l.b16 %v1313
        %v1801 = vunpack.c.h.b16 %v1313
        %v1802 = vunpack.c.l.b16 %v1314
        %v1803 = vunpack.c.l.b16 %v1315
        %v1804 = vunpack.c.h.b16 %v1315
        %v1805 = vunpack.c.l.b16 %v1316
        %v1806 = vunpack.c.h.b16 %v1316
        %v1807 = vunpack.c.l.b16 %v1317
        %v1808 = vunpack.c.h.b16 %v1317
        %v1809 = vunpack.c.l.b16 %v1318
        %v1810 = vunpack.c.h.b16 %v1318
        %v1811 = vunpack.c.l.b16 %v1319
        %v1812 = vunpack.c.l.b16 %v1320
        %v1813 = vunpack.c.h.b16 %v1320
        %v1814 = vunpack.c.l.b16 %v1321
        %v1815 = vunpack.c.h.b16 %v1321
        %v1816 = vunpack.c.l.b16 %v1322
        %v1817 = vunpack.c.h.b16 %v1322
        %v1818 = vunpack.c.l.b16 %v1323
        %v1819 = vunpack.c.h.b16 %v1323
        %v1820 = vunpack.c.l.b16 %v1324
        %v1821 = vunpack.c.l.b16 %v1325
        %v1822 = vunpack.c.h.b16 %v1325
        %v1823 = vunpack.c.l.b16 %v1326
        %v1824 = vunpack.c.h.b16 %v1326
        %v1825 = vunpack.c.l.b16 %v1327
        %v1826 = vunpack.c.h.b16 %v1327
        %v1827 = vunpack.c.l.b16 %v1328
        %v1828 = vunpack.c.h.b16 %v1328
        %v1829 = vunpack.c.l.b16 %v1329
        %v1830 = vunpack.c.l.b16 %v1330
        %v1831 = vunpack.c.h.b16 %v1330
        %v1832 = vunpack.c.l.b16 %v1331
        %v1833 = vunpack.c.h.b16 %v1331
        %v1834 = vunpack.c.l.b16 %v1332
        %v1835 = vunpack.c.h.b16 %v1332
        %v1836 = vunpack.c.l.b16 %v1333
        %v1837 = vunpack.c.h.b16 %v1333
        %v1838 = vunpack.c.l.b16 %v1334
        %v1839 = vunpack.c.l.b16 %v1335
        %v1840 = vunpack.c.h.b16 %v1335
        %v1841 = vunpack.c.l.b16 %v1336
        %v1842 = vunpack.c.h.b16 %v1336
        %v1843 = vunpack.c.l.b16 %v1337
        %v1844 = vunpack.c.h.b16 %v1337
        %v1845 = vunpack.c.l.b16 %v1338
        %v1846 = vunpack.c.h.b16 %v1338
        %v1847 = vunpack.c.l.b16 %v1339
        %v1848 = vunpack.c.l.b16 %v1340
        %v1849 = vunpack.c.h.b16 %v1340
        %v1850 = vunpack.c.l.b16 %v1341
        %v1851 = vunpack.c.h.b16 %v1341
        %v1852 = vunpack.c.l.b16 %v1342
        %v1853 = vunpack.c.h.b16 %v1342
        %v1854 = vunpack.c.l.b16 %v1343
        %v1855 = vunpack.c.h.b16 %v1343
        %v1856 = vunpack.c.l.b16 %v1344
        %v1857 = vunpack.c.l.b16 %v1345
        %v1858 = vunpack.c.h.b16 %v1345
        %v1859 = vunpack.c.l.b16 %v1346
        %v1860 = vunpack.c.h.b16 %v1346
        %v1861 = vunpack.c.l.b16 %v1347
        %v1862 = vunpack.c.h.b16 %v1347
        %v1863 = vunpack.c.l.b16 %v1348
        %v1864 = vunpack.c.h.b16 %v1348
        %v1865 = vunpack.c.l.b16 %v1349
        %v1866 = vunpack.c.l.b16 %v1350
        %v1867 = vunpack.c.h.b16 %v1350
        %v1868 = vunpack.c.l.b16 %v1351
        %v1869 = vunpack.c.h.b16 %v1351
        %v1870 = vunpack.c.l.b16 %v1352
        %v1871 = vunpack.c.h.b16 %v1352
        %v1872 = vunpack.c.l.b16 %v1353
        %v1873 = vunpack.c.h.b16 %v1353
        %v1874 = vunpack.c.l.b16 %v1354
        %v1875 = vunpack.c.l.b16 %v1355
        %v1876 = vunpack.c.h.b16 %v1355
        %v1877 = vunpack.c.l.b16 %v1356
        %v1878 = vunpack.c.h.b16 %v1356
        %v1879 = vunpack.c.l.b16 %v1357
        %v1880 = vunpack.c.h.b16 %v1357
        %v1881 = vunpack.c.l.b16 %v1358
        %v1882 = vunpack.c.h.b16 %v1358
        %v1883 = vunpack.c.l.b16 %v1359
        %v1884 = vunpack.c.l.b16 %v1360
        %v1885 = vunpack.c.h.b16 %v1360
        %v1886 = vunpack.c.l.b16 %v1361
        %v1887 = vunpack.c.h.b16 %v1361
        %v1888 = vunpack.c.l.b16 %v1362
        %v1889 = vunpack.c.h.b16 %v1362
        %v1890 = vunpack.c.l.b16 %v1363
        %v1891 = vunpack.c.h.b16 %v1363
        %v1892 = vunpack.c.l.b16 %v1364
        %v1893 = vunpack.c.l.b16 %v1365
        %v1894 = vunpack.c.h.b16 %v1365
        %v1895 = vunpack.c.l.b16 %v1366
        %v1896 = vunpack.c.h.b16 %v1366
        %v1897 = vunpack.c.l.b16 %v1367
        %v1898 = vunpack.c.h.b16 %v1367
        %v1899 = vunpack.c.l.b16 %v1368
        %v1900 = vunpack.c.h.b16 %v1368
        %v1901 = vunpack.c.l.b16 %v1369
        %v1902 = vunpack.c.l.b16 %v1370
        %v1903 = vunpack.c.h.b16 %v1370
        %v1904 = vunpack.c.l.b16 %v1371
        %v1905 = vunpack.c.h.b16 %v1371
        %v1906 = vunpack.c.l.b16 %v1372
        %v1907 = vunpack.c.h.b16 %v1372
        %v1908 = vunpack.c.l.b16 %v1373
        %v1909 = vunpack.c.h.b16 %v1373
        %v1910 = vunpack.c.l.b16 %v1374
        %v1911 = vunpack.c.l.b16 %v1375
        %v1912 = vunpack.c.h.b16 %v1375
        %v1913 = vunpack.c.l.b16 %v1376
        %v1914 = vunpack.c.h.b16 %v1376
        %v1915 = vunpack.c.l.b16 %v1377
        %v1916 = vunpack.c.h.b16 %v1377
        %v1917 = vunpack.c.l.b16 %v1378
        %v1918 = vunpack.c.h.b16 %v1378
        %v1919 = vunpack.c.l.b16 %v1379
        %v1920 = vunpack.c.l.b16 %v1380
        %v1921 = vunpack.c.h.b16 %v1380
        %v1922 = vunpack.c.l.b16 %v1381
        %v1923 = vunpack.c.h.b16 %v1381
        %v1924 = vunpack.c.l.b16 %v1382
        %v1925 = vunpack.c.h.b16 %v1382
        %v1926 = vunpack.c.l.b16 %v1383
        %v1927 = vunpack.c.h.b16 %v1383
        %v1928 = vunpack.c.l.b16 %v1384
        %v1929 = vunpack.c.l.b16 %v1385
        %v1930 = vunpack.c.h.b16 %v1385
        %v1931 = vunpack.c.l.b16 %v1386
        %v1932 = vunpack.c.h.b16 %v1386
        %v1933 = vunpack.c.l.b16 %v1387
        %v1934 = vunpack.c.h.b16 %v1387
        %v1935 = vunpack.c.l.b16 %v1388
        %v1936 = vunpack.c.h.b16 %v1388
        %v1937 = vunpack.c.l.b16 %v1389
        %v1938 = vunpack.c.l.b16 %v1390
        %v1939 = vunpack.c.h.b16 %v1390
        %v1940 = vunpack.c.l.b16 %v1391
        %v1941 = vunpack.c.h.b16 %v1391
        %v1942 = vunpack.c.l.b16 %v1392
        %v1943 = vunpack.c.h.b16 %v1392
        %v1944 = vunpack.c.l.b16 %v1393
        %v1945 = vunpack.c.h.b16 %v1393
        %v1946 = vunpack.c.l.b16 %v1394
        %v1947 = vunpack.c.l.b16 %v1395
        %v1948 = vunpack.c.h.b16 %v1395
        %v1949 = vunpack.c.l.b16 %v1396
        %v1950 = vunpack.c.h.b16 %v1396
        %v1951 = vunpack.c.l.b16 %v1397
        %v1952 = vunpack.c.h.b16 %v1397
        %v1953 = vunpack.c.l.b16 %v1398
        %v1954 = vunpack.c.h.b16 %v1398
        %v1955 = vunpack.c.l.b16 %v1399
        %v1956 = vunpack.c.l.b16 %v1400
        %v1957 = vunpack.c.h.b16 %v1400
        %v1958 = vunpack.c.l.b16 %v1401
        %v1959 = vunpack.c.h.b16 %v1401
        %v1960 = vunpack.c.l.b16 %v1402
        %v1961 = vunpack.c.h.b16 %v1402
        %v1962 = vunpack.c.l.b16 %v1403
        %v1963 = vunpack.c.h.b16 %v1403
        %v1964 = vunpack.c.l.b16 %v1404
        %v1965 = vunpack.c.l.b16 %v1405
        %v1966 = vunpack.c.h.b16 %v1405
        %v1967 = vunpack.c.l.b16 %v1406
        %v1968 = vunpack.c.h.b16 %v1406
        %v1969 = vunpack.c.l.b16 %v1407
        %v1970 = vunpack.c.h.b16 %v1407
        %v1971 = vunpack.c.l.b16 %v1408
        %v1972 = vunpack.c.h.b16 %v1408
        %v1973 = vunpack.c.l.b16 %v1409
        %v1974 = vunpack.c.l.b16 %v1410
        %v1975 = vunpack.c.h.b16 %v1410
        %v1976 = vunpack.c.l.b16 %v1411
        %v1977 = vunpack.c.h.b16 %v1411
        %v1978 = vunpack.c.l.b16 %v1412
        %v1979 = vunpack.c.h.b16 %v1412
        %v1980 = vunpack.c.l.b16 %v1413
        %v1981 = vunpack.c.h.b16 %v1413
        %v1982 = vunpack.c.l.b16 %v1414
        %v1983 = vunpack.c.l.b16 %v1415
        %v1984 = vunpack.c.h.b16 %v1415
        %v1985 = vunpack.c.l.b16 %v1416
        %v1986 = vunpack.c.h.b16 %v1416
        %v1987 = vunpack.c.l.b16 %v1417
        %v1988 = vunpack.c.h.b16 %v1417
        %v1989 = vunpack.c.l.b16 %v1418
        %v1990 = vunpack.c.h.b16 %v1418
        %v1991 = vunpack.c.l.b16 %v1419
        %v1992 = vunpack.c.l.b16 %v1420
        %v1993 = vunpack.c.h.b16 %v1420
        %v1994 = vunpack.c.l.b16 %v1421
        %v1995 = vunpack.c.h.b16 %v1421
        %v1996 = vunpack.c.l.b16 %v1422
        %v1997 = vunpack.c.h.b16 %v1422
        %v1998 = vunpack.c.l.b16 %v1423
        %v1999 = vunpack.c.h.b16 %v1423
        %v2000 = vunpack.c.l.b16 %v1424
        %v2001 = vunpack.c.l.b16 %v1425
        %v2002 = vunpack.c.h.b16 %v1425
        %v2003 = vunpack.c.l.b16 %v1426
        %v2004 = vunpack.c.h.b16 %v1426
        %v2005 = vunpack.c.l.b16 %v1427
        %v2006 = vunpack.c.h.b16 %v1427
        %v2007 = vunpack.c.l.b16 %v1428
        %v2008 = vunpack.c.h.b16 %v1428
        %v2009 = vunpack.c.l.b16 %v1429
        %v2010 = vunpack.c.l.b16 %v1430
        %v2011 = vunpack.c.h.b16 %v1430
        %v2012 = vunpack.c.l.b16 %v1431
        %v2013 = vunpack.c.h.b16 %v1431
        %v2014 = vunpack.c.l.b16 %v1432
        %v2015 = vunpack.c.h.b16 %v1432
        %v2016 = vunpack.c.l.b16 %v1433
        %v2017 = vunpack.c.h.b16 %v1433
        %v2018 = vunpack.c.l.b16 %v1434
        %v2019 = vunpack.c.l.b16 %v1435
        %v2020 = vunpack.c.h.b16 %v1435
        %v2021 = vunpack.c.l.b16 %v1436
        %v2022 = vunpack.c.h.b16 %v1436
        %v2023 = vunpack.c.l.b16 %v1437
        %v2024 = vunpack.c.h.b16 %v1437
        %v2025 = vunpack.c.l.b16 %v1438
        %v2026 = vunpack.c.h.b16 %v1438
        %v2027 = vunpack.c.l.b16 %v1439
        %v2028 = vunpack.c.l.b16 %v1440
        %v2029 = vunpack.c.h.b16 %v1440
        %v2030 = vunpack.c.l.b16 %v1441
        %v2031 = vunpack.c.h.b16 %v1441
        %v2032 = vunpack.c.l.b16 %v1442
        %v2033 = vunpack.c.h.b16 %v1442
        %v2034 = vunpack.c.l.b16 %v1443
        %v2035 = vunpack.c.h.b16 %v1443
        %v2036 = vunpack.c.l.b16 %v1444
        %v2037 = vpack.c.b16 %v1758, %v1749
        %v2038 = vpack.c.b16 %v1759, %v1750
        %v2039 = vpack.c.b16 %v1760, %v1751
        %v2040 = vpack.c.b16 %v1761, %v1752
        %v2041 = vpack.c.b16 %v1762, %v1753
        %v2042 = vpack.c.b16 %v1763, %v1754
        %v2043 = vpack.c.b16 %v1764, %v1755
        %v2044 = vpack.c.b16 %v1765, %v1756
        %v2045 = vpack.c.b16 %v1766, %v1757
        %v2046 = vpack.c.b16 %v1776, %v1767
        %v2047 = vpack.c.b16 %v1777, %v1768
        %v2048 = vpack.c.b16 %v1778, %v1769
        %v2049 = vpack.c.b16 %v1779, %v1770
        %v2050 = vpack.c.b16 %v1780, %v1771
        %v2051 = vpack.c.b16 %v1781, %v1772
        %v2052 = vpack.c.b16 %v1782, %v1773
        %v2053 = vpack.c.b16 %v1783, %v1774
        %v2054 = vpack.c.b16 %v1784, %v1775
        %v2055 = vpack.c.b16 %v1794, %v1785
        %v2056 = vpack.c.b16 %v1795, %v1786
        %v2057 = vpack.c.b16 %v1796, %v1787
        %v2058 = vpack.c.b16 %v1797, %v1788
        %v2059 = vpack.c.b16 %v1798, %v1789
        %v2060 = vpack.c.b16 %v1799, %v1790
        %v2061 = vpack.c.b16 %v1800, %v1791
        %v2062 = vpack.c.b16 %v1801, %v1792
        %v2063 = vpack.c.b16 %v1802, %v1793
        %v2064 = vpack.c.b16 %v1812, %v1803
        %v2065 = vpack.c.b16 %v1813, %v1804
        %v2066 = vpack.c.b16 %v1814, %v1805
        %v2067 = vpack.c.b16 %v1815, %v1806
        %v2068 = vpack.c.b16 %v1816, %v1807
        %v2069 = vpack.c.b16 %v1817, %v1808
        %v2070 = vpack.c.b16 %v1818, %v1809
        %v2071 = vpack.c.b16 %v1819, %v1810
        %v2072 = vpack.c.b16 %v1820, %v1811
        %v2073 = vpack.c.b16 %v1830, %v1821
        %v2074 = vpack.c.b16 %v1831, %v1822
        %v2075 = vpack.c.b16 %v1832, %v1823
        %v2076 = vpack.c.b16 %v1833, %v1824
        %v2077 = vpack.c.b16 %v1834, %v1825
        %v2078 = vpack.c.b16 %v1835, %v1826
        %v2079 = vpack.c.b16 %v1836, %v1827
        %v2080 = vpack.c.b16 %v1837, %v1828
        %v2081 = vpack.c.b16 %v1838, %v1829
        %v2082 = vpack.c.b16 %v1848, %v1839
        %v2083 = vpack.c.b16 %v1849, %v1840
        %v2084 = vpack.c.b16 %v1850, %v1841
        %v2085 = vpack.c.b16 %v1851, %v1842
        %v2086 = vpack.c.b16 %v1852, %v1843
        %v2087 = vpack.c.b16 %v1853, %v1844
        %v2088 = vpack.c.b16 %v1854, %v1845
        %v2089 = vpack.c.b16 %v1855, %v1846
        %v2090 = vpack.c.b16 %v1856, %v1847
        %v2091 = vpack.c.b16 %v1866, %v1857
        %v2092 = vpack.c.b16 %v1867, %v1858
        %v2093 = vpack.c.b16 %v1868, %v1859
        %v2094 = vpack.c.b16 %v1869, %v1860
        %v2095 = vpack.c.b16 %v1870, %v1861
        %v2096 = vpack.c.b16 %v1871, %v1862
        %v2097 = vpack.c.b16 %v1872, %v1863
        %v2098 = vpack.c.b16 %v1873, %v1864
        %v2099 = vpack.c.b16 %v1874, %v1865
        %v2100 = vpack.c.b16 %v1884, %v1875
        %v2101 = vpack.c.b16 %v1885, %v1876
        %v2102 = vpack.c.b16 %v1886, %v1877
        %v2103 = vpack.c.b16 %v1887, %v1878
        %v2104 = vpack.c.b16 %v1888, %v1879
        %v2105 = vpack.c.b16 %v1889, %v1880
        %v2106 = vpack.c.b16 %v1890, %v1881
        %v2107 = vpack.c.b16 %v1891, %v1882
        %v2108 = vpack.c.b16 %v1892, %v1883
        %v2109 = vpack.c.b16 %v1902, %v1893
        %v2110 = vpack.c.b16 %v1903, %v1894
        %v2111 = vpack.c.b16 %v1904, %v1895
        %v2112 = vpack.c.b16 %v1905, %v1896
        %v2113 = vpack.c.b16 %v1906, %v1897
        %v2114 = vpack.c.b16 %v1907, %v1898
        %v2115 = vpack.c.b16 %v1908, %v1899
        %v2116 = vpack.c.b16 %v1909, %v1900
        %v2117 = vpack.c.b16 %v1910, %v1901
        %v2118 = vpack.c.b16 %v1920, %v1911
        %v2119 = vpack.c.b16 %v1921, %v1912
        %v2120 = vpack.c.b16 %v1922, %v1913
        %v2121 = vpack.c.b16 %v1923, %v1914
        %v2122 = vpack.c.b16 %v1924, %v1915
        %v2123 = vpack.c.b16 %v1925, %v1916
        %v2124 = vpack.c.b16 %v1926, %v1917
        %v2125 = vpack.c.b16 %v1927, %v1918
        %v2126 = vpack.c.b16 %v1928, %v1919
        %v2127 = vpack.c.b16 %v1938, %v1929
        %v2128 = vpack.c.b16 %v1939, %v1930
        %v2129 = vpack.c.b16 %v1940, %v1931
        %v2130 = vpack.c.b16 %v1941, %v1932
        %v2131 = vpack.c.b16 %v1942, %v1933
        %v2132 = vpack.c.b16 %v1943, %v1934
        %v2133 = vpack.c.b16 %v1944, %v1935
        %v2134 = vpack.c.b16 %v1945, %v1936
        %v2135 = vpack.c.b16 %v1946, %v1937
        %v2136 = vpack.c.b16 %v1956, %v1947
        %v2137 = vpack.c.b16 %v1957, %v1948
        %v2138 = vpack.c.b16 %v1958, %v1949
        %v2139 = vpack.c.b16 %v1959, %v1950
        %v2140 = vpack.c.b16 %v1960, %v1951
        %v2141 = vpack.c.b16 %v1961, %v1952
        %v2142 = vpack.c.b16 %v1962, %v1953
        %v2143 = vpack.c.b16 %v1963, %v1954
        %v2144 = vpack.c.b16 %v1964, %v1955
        %v2145 = vpack.c.b16 %v1974, %v1965
        %v2146 = vpack.c.b16 %v1975, %v1966
        %v2147 = vpack.c.b16 %v1976, %v1967
        %v2148 = vpack.c.b16 %v1977, %v1968
        %v2149 = vpack.c.b16 %v1978, %v1969
        %v2150 = vpack.c.b16 %v1979, %v1970
        %v2151 = vpack.c.b16 %v1980, %v1971
        %v2152 = vpack.c.b16 %v1981, %v1972
        %v2153 = vpack.c.b16 %v1982, %v1973
        %v2154 = vpack.c.b16 %v1992, %v1983
        %v2155 = vpack.c.b16 %v1993, %v1984
        %v2156 = vpack.c.b16 %v1994, %v1985
        %v2157 = vpack.c.b16 %v1995, %v1986
        %v2158 = vpack.c.b16 %v1996, %v1987
        %v2159 = vpack.c.b16 %v1997, %v1988
        %v2160 = vpack.c.b16 %v1998, %v1989
        %v2161 = vpack.c.b16 %v1999, %v1990
        %v2162 = vpack.c.b16 %v2000, %v1991
        %v2163 = vpack.c.b16 %v2010, %v2001
        %v2164 = vpack.c.b16 %v2011, %v2002
        %v2165 = vpack.c.b16 %v2012, %v2003
        %v2166 = vpack.c.b16 %v2013, %v2004
        %v2167 = vpack.c.b16 %v2014, %v2005
        %v2168 = vpack.c.b16 %v2015, %v2006
        %v2169 = vpack.c.b16 %v2016, %v2007
        %v2170 = vpack.c.b16 %v2017, %v2008
        %v2171 = vpack.c.b16 %v2018, %v2009
        %v2172 = vpack.c.b16 %v2028, %v2019
        %v2173 = vpack.c.b16 %v2029, %v2020
        %v2174 = vpack.c.b16 %v2030, %v2021
        %v2175 = vpack.c.b16 %v2031, %v2022
        %v2176 = vpack.c.b16 %v2032, %v2023
        %v2177 = vpack.c.b16 %v2033, %v2024
        %v2178 = vpack.c.b16 %v2034, %v2025
        %v2179 = vpack.c.b16 %v2035, %v2026
        %v2180 = vpack.c.b16 %v2036, %v2027
        %v2469 = vunpack.c.l.b16 %v1445
        %v2470 = vunpack.c.l.b16 %v1446
        %v2471 = vunpack.c.l.b16 %v1447
        %v2472 = vunpack.c.l.b16 %v1448
        %v2473 = vunpack.c.l.b16 %v1449
        %v2474 = vunpack.c.l.b16 %v1450
        %v2475 = vunpack.c.l.b16 %v1451
        %v2476 = vunpack.c.l.b16 %v1452
        %v2477 = vunpack.c.l.b16 %v1453
        %v2478 = vunpack.c.l.b16 %v1454
        %v2479 = vunpack.c.l.b16 %v1455
        %v2480 = vunpack.c.l.b16 %v1456
        %v2481 = vunpack.c.l.b16 %v1457
        %v2482 = vunpack.c.l.b16 %v1458
        %v2483 = vunpack.c.l.b16 %v1459
        %v2484 = vunpack.c.l.b16 %v1460
        %v2485 = vunpack.c.l.b16 %v1461
        %v2486 = vunpack.c.l.b16 %v1462
        %v2487 = vunpack.c.l.b16 %v1463
        %v2488 = vunpack.c.l.b16 %v1464
        %v2489 = vunpack.c.l.b16 %v1465
        %v2490 = vunpack.c.l.b16 %v1466
        %v2491 = vunpack.c.l.b16 %v1467
        %v2492 = vunpack.c.l.b16 %v1468
        %v2493 = vunpack.c.l.b16 %v1469
        %v2494 = vunpack.c.l.b16 %v1470
        %v2495 = vunpack.c.l.b16 %v1471
        %v2496 = vunpack.c.l.b16 %v1472
        %v2497 = vunpack.c.l.b16 %v1473
        %v2498 = vunpack.c.l.b16 %v1474
        %v2499 = vunpack.c.l.b16 %v1475
        %v2500 = vunpack.c.l.b16 %v1476
        %v2501 = vunpack.c.l.b16 %v1477
        %v2502 = vunpack.c.l.b16 %v1478
        %v2503 = vunpack.c.l.b16 %v1479
        %v2504 = vunpack.c.l.b16 %v1480
        %v2505 = vunpack.c.l.b16 %v1481
        %v2506 = vunpack.c.l.b16 %v1482
        %v2507 = vunpack.c.l.b16 %v1483
        %v2508 = vunpack.c.l.b16 %v1484
        %v2509 = vunpack.c.l.b16 %v1485
        %v2510 = vunpack.c.l.b16 %v1486
        %v2511 = vunpack.c.l.b16 %v1487
        %v2512 = vunpack.c.l.b16 %v1488
        %v2513 = vunpack.c.l.b16 %v1489
        %v2514 = vunpack.c.l.b16 %v1490
        %v2515 = vunpack.c.l.b16 %v1491
        %v2516 = vunpack.c.l.b16 %v1492
        %v2517 = vunpack.c.l.b16 %v1493
        %v2518 = vunpack.c.l.b16 %v1494
        %v2519 = vunpack.c.l.b16 %v1495
        %v2520 = vunpack.c.l.b16 %v1496
        %v2521 = vunpack.c.l.b16 %v1497
        %v2522 = vunpack.c.l.b16 %v1498
        %v2523 = vunpack.c.l.b16 %v1499
        %v2524 = vunpack.c.l.b16 %v1500
        %v2525 = vunpack.c.l.b16 %v1501
        %v2526 = vunpack.c.l.b16 %v1502
        %v2527 = vunpack.c.l.b16 %v1503
        %v2528 = vunpack.c.l.b16 %v1504
        %v2529 = vunpack.c.l.b16 %v1505
        %v2530 = vunpack.c.l.b16 %v1506
        %v2531 = vunpack.c.l.b16 %v1507
        %v2532 = vunpack.c.l.b16 %v1508
        %v2533 = vunpack.c.l.b16 %v1509
        %v2534 = vunpack.c.l.b16 %v1510
        %v2535 = vunpack.c.l.b16 %v1511
        %v2536 = vunpack.c.l.b16 %v1512
        %v2537 = vunpack.c.l.b16 %v1513
        %v2538 = vunpack.c.l.b16 %v1514
        %v2539 = vunpack.c.l.b16 %v1515
        %v2540 = vunpack.c.l.b16 %v1516
        %v2541 = vunpack.c.l.b16 %v1517
        %v2542 = vunpack.c.l.b16 %v1518
        %v2543 = vunpack.c.l.b16 %v1519
        %v2544 = vunpack.c.l.b16 %v1520
        %v2545 = vunpack.c.l.b16 %v1521
        %v2546 = vunpack.c.l.b16 %v1522
        %v2547 = vunpack.c.l.b16 %v1523
        %v2548 = vunpack.c.l.b16 %v1524
        %v2549 = vunpack.c.l.b16 %v1525
        %v2550 = vunpack.c.l.b16 %v1526
        %v2551 = vunpack.c.l.b16 %v1527
        %v2552 = vunpack.c.l.b16 %v1528
        %v2553 = vunpack.c.l.b16 %v1529
        %v2554 = vunpack.c.l.b16 %v1530
        %v2555 = vunpack.c.l.b16 %v1531
        %v2556 = vunpack.c.l.b16 %v1532
        %v2557 = vunpack.c.l.b16 %v1533
        %v2558 = vunpack.c.l.b16 %v1534
        %v2559 = vunpack.c.l.b16 %v1535
        %v2560 = vunpack.c.l.b16 %v1536
        %v2561 = vunpack.c.l.b16 %v1537
        %v2562 = vunpack.c.l.b16 %v1538
        %v2563 = vunpack.c.l.b16 %v1539
        %v2564 = vunpack.c.l.b16 %v1540
        %v2565 = vunpack.c.l.b16 %v1541
        %v2566 = vunpack.c.l.b16 %v1542
        %v2567 = vunpack.c.l.b16 %v1543
        %v2568 = vunpack.c.l.b16 %v1544
        %v2569 = vunpack.c.l.b16 %v1545
        %v2570 = vunpack.c.l.b16 %v1546
        %v2571 = vunpack.c.l.b16 %v1547
        %v2572 = vunpack.c.l.b16 %v1548
        %v2573 = vunpack.c.l.b16 %v1549
        %v2574 = vunpack.c.l.b16 %v1550
        %v2575 = vunpack.c.l.b16 %v1551
        %v2576 = vunpack.c.l.b16 %v1552
        %v2577 = vunpack.c.l.b16 %v1553
        %v2578 = vunpack.c.l.b16 %v1554
        %v2579 = vunpack.c.l.b16 %v1555
        %v2580 = vunpack.c.l.b16 %v1556
        %v2581 = vunpack.c.l.b16 %v1557
        %v2582 = vunpack.c.l.b16 %v1558
        %v2583 = vunpack.c.l.b16 %v1559
        %v2584 = vunpack.c.l.b16 %v1560
        %v2585 = vunpack.c.l.b16 %v1561
        %v2586 = vunpack.c.l.b16 %v1562
        %v2587 = vunpack.c.l.b16 %v1563
        %v2588 = vunpack.c.l.b16 %v1564
        %v2589 = vunpack.c.l.b16 %v1565
        %v2590 = vunpack.c.l.b16 %v1566
        %v2591 = vunpack.c.l.b16 %v1567
        %v2592 = vunpack.c.l.b16 %v1568
        %v2593 = vunpack.c.l.b16 %v1569
        %v2594 = vunpack.c.l.b16 %v1570
        %v2595 = vunpack.c.l.b16 %v1571
        %v2596 = vunpack.c.l.b16 %v1572
        %v2597 = vunpack.c.l.b16 %v1573
        %v2598 = vunpack.c.l.b16 %v1574
        %v2599 = vunpack.c.l.b16 %v1575
        %v2600 = vunpack.c.l.b16 %v1576
        %v2601 = vunpack.c.l.b16 %v1577
        %v2602 = vunpack.c.l.b16 %v1578
        %v2603 = vunpack.c.l.b16 %v1579
        %v2604 = vunpack.c.l.b16 %v1580
        %v2605 = vunpack.c.l.b16 %v1581
        %v2606 = vunpack.c.l.b16 %v1582
        %v2607 = vunpack.c.l.b16 %v1583
        %v2608 = vunpack.c.l.b16 %v1584
        %v2609 = vunpack.c.l.b16 %v1585
        %v2610 = vunpack.c.l.b16 %v1586
        %v2611 = vunpack.c.l.b16 %v1587
        %v2612 = vunpack.c.l.b16 %v1588
        %v2613 = vpack.c.b16 %v2470, %v2469
        %v2614 = vpack.c.b16 %v2472, %v2471
        %v2615 = vpack.c.b16 %v2474, %v2473
        %v2616 = vpack.c.b16 %v2476, %v2475
        %v2617 = vpack.c.b16 %v2478, %v2477
        %v2618 = vpack.c.b16 %v2480, %v2479
        %v2619 = vpack.c.b16 %v2482, %v2481
        %v2620 = vpack.c.b16 %v2484, %v2483
        %v2621 = vpack.c.b16 %v2486, %v2485
        %v2622 = vpack.c.b16 %v2488, %v2487
        %v2623 = vpack.c.b16 %v2490, %v2489
        %v2624 = vpack.c.b16 %v2492, %v2491
        %v2625 = vpack.c.b16 %v2494, %v2493
        %v2626 = vpack.c.b16 %v2496, %v2495
        %v2627 = vpack.c.b16 %v2498, %v2497
        %v2628 = vpack.c.b16 %v2500, %v2499
        %v2629 = vpack.c.b16 %v2502, %v2501
        %v2630 = vpack.c.b16 %v2504, %v2503
        %v2631 = vpack.c.b16 %v2506, %v2505
        %v2632 = vpack.c.b16 %v2508, %v2507
        %v2633 = vpack.c.b16 %v2510, %v2509
        %v2634 = vpack.c.b16 %v2512, %v2511
        %v2635 = vpack.c.b16 %v2514, %v2513
        %v2636 = vpack.c.b16 %v2516, %v2515
        %v2637 = vpack.c.b16 %v2518, %v2517
        %v2638 = vpack.c.b16 %v2520, %v2519
        %v2639 = vpack.c.b16 %v2522, %v2521
        %v2640 = vpack.c.b16 %v2524, %v2523
        %v2641 = vpack.c.b16 %v2526, %v2525
        %v2642 = vpack.c.b16 %v2528, %v2527
        %v2643 = vpack.c.b16 %v2530, %v2529
        %v2644 = vpack.c.b16 %v2532, %v2531
        %v2645 = vpack.c.b16 %v2534, %v2533
        %v2646 = vpack.c.b16 %v2536, %v2535
        %v2647 = vpack.c.b16 %v2538, %v2537
        %v2648 = vpack.c.b16 %v2540, %v2539
        %v2649 = vpack.c.b16 %v2542, %v2541
        %v2650 = vpack.c.b16 %v2544, %v2543
        %v2651 = vpack.c.b16 %v2546, %v2545
        %v2652 = vpack.c.b16 %v2548, %v2547
        %v2653 = vpack.c.b16 %v2550, %v2549
        %v2654 = vpack.c.b16 %v2552, %v2551
        %v2655 = vpack.c.b16 %v2554, %v2553
        %v2656 = vpack.c.b16 %v2556, %v2555
        %v2657 = vpack.c.b16 %v2558, %v2557
        %v2658 = vpack.c.b16 %v2560, %v2559
        %v2659 = vpack.c.b16 %v2562, %v2561
        %v2660 = vpack.c.b16 %v2564, %v2563
        %v2661 = vpack.c.b16 %v2566, %v2565
        %v2662 = vpack.c.b16 %v2568, %v2567
        %v2663 = vpack.c.b16 %v2570, %v2569
        %v2664 = vpack.c.b16 %v2572, %v2571
        %v2665 = vpack.c.b16 %v2574, %v2573
        %v2666 = vpack.c.b16 %v2576, %v2575
        %v2667 = vpack.c.b16 %v2578, %v2577
        %v2668 = vpack.c.b16 %v2580, %v2579
        %v2669 = vpack.c.b16 %v2582, %v2581
        %v2670 = vpack.c.b16 %v2584, %v2583
        %v2671 = vpack.c.b16 %v2586, %v2585
        %v2672 = vpack.c.b16 %v2588, %v2587
        %v2673 = vpack.c.b16 %v2590, %v2589
        %v2674 = vpack.c.b16 %v2592, %v2591
        %v2675 = vpack.c.b16 %v2594, %v2593
        %v2676 = vpack.c.b16 %v2596, %v2595
        %v2677 = vpack.c.b16 %v2598, %v2597
        %v2678 = vpack.c.b16 %v2600, %v2599
        %v2679 = vpack.c.b16 %v2602, %v2601
        %v2680 = vpack.c.b16 %v2604, %v2603
        %v2681 = vpack.c.b16 %v2606, %v2605
        %v2682 = vpack.c.b16 %v2608, %v2607
        %v2683 = vpack.c.b16 %v2610, %v2609
        %v2684 = vpack.c.b16 %v2612, %v2611
        %2757 = vmatpush.bf16.msra.mxu0 %v2620
        %2758 = vmatpush.bf16.msra.mxu0 %v2619
        %2759 = vmatpush.bf16.msra.mxu0 %v2618
        %2760 = vmatpush.bf16.msra.mxu0 %v2617
        %2761 = vmatpush.bf16.msra.mxu0 %v2616
        %2762 = vmatpush.bf16.msra.mxu0 %v2615
        %2763 = vmatpush.bf16.msra.mxu0 %v2614
        %2764 = vmatpush.bf16.msra.mxu0 %v2613
        %2765 = vmatmul.bf16.gmra.mxu0 %v2037
        %v2766 = vpop.f32.mrf.mxu0
        %v2767 = vadd.f32 0.0, %v2766
        %v2768 = vpop.f32.mrf.mxu0
        %v2769 = vadd.f32 0.0, %v2768
        %2770 = vmatmul.bf16.gmra.mxu0 %v2046
        %v2771 = vpop.f32.mrf.mxu0
        %v2772 = vadd.f32 0.0, %v2771
        %v2773 = vpop.f32.mrf.mxu0
        %v2774 = vadd.f32 0.0, %v2773
        %2775 = vmatmul.bf16.gmra.mxu0 %v2055
        %v2776 = vpop.f32.mrf.mxu0
        %v2777 = vadd.f32 0.0, %v2776
        %v2778 = vpop.f32.mrf.mxu0
        %v2779 = vadd.f32 0.0, %v2778
        %2780 = vmatmul.bf16.gmra.mxu0 %v2064
        %v2781 = vpop.f32.mrf.mxu0
        %v2782 = vadd.f32 0.0, %v2781
        %v2783 = vpop.f32.mrf.mxu0
        %v2784 = vadd.f32 0.0, %v2783
        %2785 = vmatmul.bf16.gmra.mxu0 %v2073
        %v2786 = vpop.f32.mrf.mxu0
        %v2787 = vadd.f32 0.0, %v2786
        %v2788 = vpop.f32.mrf.mxu0
        %v2789 = vadd.f32 0.0, %v2788
        %2790 = vmatmul.bf16.gmra.mxu0 %v2082
        %v2791 = vpop.f32.mrf.mxu0
        %v2792 = vadd.f32 0.0, %v2791
        %v2793 = vpop.f32.mrf.mxu0
        %v2794 = vadd.f32 0.0, %v2793
        %2795 = vmatmul.bf16.gmra.mxu0 %v2091
        %v2796 = vpop.f32.mrf.mxu0
        %v2797 = vadd.f32 0.0, %v2796
        %v2798 = vpop.f32.mrf.mxu0
        %v2799 = vadd.f32 0.0, %v2798
        %2800 = vmatmul.bf16.gmra.mxu0 %v2100
        %v2801 = vpop.f32.mrf.mxu0
        %v2802 = vadd.f32 0.0, %v2801
        %v2803 = vpop.f32.mrf.mxu0
        %v2804 = vadd.f32 0.0, %v2803
        %2805 = vmatmul.bf16.gmra.mxu0 %v2109
        %v2806 = vpop.f32.mrf.mxu0
        %v2807 = vadd.f32 0.0, %v2806
        %v2808 = vpop.f32.mrf.mxu0
        %v2809 = vadd.f32 0.0, %v2808
        %2810 = vmatmul.bf16.gmra.mxu0 %v2118
        %v2811 = vpop.f32.mrf.mxu0
        %v2812 = vadd.f32 0.0, %v2811
        %v2813 = vpop.f32.mrf.mxu0
        %v2814 = vadd.f32 0.0, %v2813
        %2815 = vmatmul.bf16.gmra.mxu0 %v2127
        %v2816 = vpop.f32.mrf.mxu0
        %v2817 = vadd.f32 0.0, %v2816
        %v2818 = vpop.f32.mrf.mxu0
        %v2819 = vadd.f32 0.0, %v2818
        %2820 = vmatmul.bf16.gmra.mxu0 %v2136
        %v2821 = vpop.f32.mrf.mxu0
        %v2822 = vadd.f32 0.0, %v2821
        %v2823 = vpop.f32.mrf.mxu0
        %v2824 = vadd.f32 0.0, %v2823
        %2825 = vmatmul.bf16.gmra.mxu0 %v2145
        %v2826 = vpop.f32.mrf.mxu0
        %v2827 = vadd.f32 0.0, %v2826
        %v2828 = vpop.f32.mrf.mxu0
        %v2829 = vadd.f32 0.0, %v2828
        %2830 = vmatmul.bf16.gmra.mxu0 %v2154
        %v2831 = vpop.f32.mrf.mxu0
        %v2832 = vadd.f32 0.0, %v2831
        %v2833 = vpop.f32.mrf.mxu0
        %v2834 = vadd.f32 0.0, %v2833
        %2835 = vmatmul.bf16.gmra.mxu0 %v2163
        %v2836 = vpop.f32.mrf.mxu0
        %v2837 = vadd.f32 0.0, %v2836
        %v2838 = vpop.f32.mrf.mxu0
        %v2839 = vadd.f32 0.0, %v2838
        %2840 = vmatmul.bf16.gmra.mxu0 %v2172
        %v2841 = vpop.f32.mrf.mxu0
        %v2842 = vadd.f32 0.0, %v2841
        %v2843 = vpop.f32.mrf.mxu0
        %v2844 = vadd.f32 0.0, %v2843
        %2845 = vdwg.mxu0
        %2846 = vmatpush.bf16.msra.mxu0 %v2628
        %2847 = vmatpush.bf16.msra.mxu0 %v2627
        %2848 = vmatpush.bf16.msra.mxu0 %v2626
        %2849 = vmatpush.bf16.msra.mxu0 %v2625
        %2850 = vmatpush.bf16.msra.mxu0 %v2624
        %2851 = vmatpush.bf16.msra.mxu0 %v2623
        %2852 = vmatpush.bf16.msra.mxu0 %v2622
        %2853 = vmatpush.bf16.msra.mxu0 %v2621
        %2854 = vmatmul.bf16.gmra.mxu0 %v2038
        %v2855 = vpop.f32.mrf.mxu0
        %v2856 = vadd.f32 %v2767, %v2855
        %v2857 = vpop.f32.mrf.mxu0
        %v2858 = vadd.f32 %v2769, %v2857
        %2859 = vmatmul.bf16.gmra.mxu0 %v2047
        %v2860 = vpop.f32.mrf.mxu0
        %v2861 = vadd.f32 %v2772, %v2860
        %v2862 = vpop.f32.mrf.mxu0
        %v2863 = vadd.f32 %v2774, %v2862
        %2864 = vmatmul.bf16.gmra.mxu0 %v2056
        %v2865 = vpop.f32.mrf.mxu0
        %v2866 = vadd.f32 %v2777, %v2865
        %v2867 = vpop.f32.mrf.mxu0
        %v2868 = vadd.f32 %v2779, %v2867
        %2869 = vmatmul.bf16.gmra.mxu0 %v2065
        %v2870 = vpop.f32.mrf.mxu0
        %v2871 = vadd.f32 %v2782, %v2870
        %v2872 = vpop.f32.mrf.mxu0
        %v2873 = vadd.f32 %v2784, %v2872
        %2874 = vmatmul.bf16.gmra.mxu0 %v2074
        %v2875 = vpop.f32.mrf.mxu0
        %v2876 = vadd.f32 %v2787, %v2875
        %v2877 = vpop.f32.mrf.mxu0
        %v2878 = vadd.f32 %v2789, %v2877
        %2879 = vmatmul.bf16.gmra.mxu0 %v2083
        %v2880 = vpop.f32.mrf.mxu0
        %v2881 = vadd.f32 %v2792, %v2880
        %v2882 = vpop.f32.mrf.mxu0
        %v2883 = vadd.f32 %v2794, %v2882
        %2884 = vmatmul.bf16.gmra.mxu0 %v2092
        %v2885 = vpop.f32.mrf.mxu0
        %v2886 = vadd.f32 %v2797, %v2885
        %v2887 = vpop.f32.mrf.mxu0
        %v2888 = vadd.f32 %v2799, %v2887
        %2889 = vmatmul.bf16.gmra.mxu0 %v2101
        %v2890 = vpop.f32.mrf.mxu0
        %v2891 = vadd.f32 %v2802, %v2890
        %v2892 = vpop.f32.mrf.mxu0
        %v2893 = vadd.f32 %v2804, %v2892
        %2894 = vmatmul.bf16.gmra.mxu0 %v2110
        %v2895 = vpop.f32.mrf.mxu0
        %v2896 = vadd.f32 %v2807, %v2895
        %v2897 = vpop.f32.mrf.mxu0
        %v2898 = vadd.f32 %v2809, %v2897
        %2899 = vmatmul.bf16.gmra.mxu0 %v2119
        %v2900 = vpop.f32.mrf.mxu0
        %v2901 = vadd.f32 %v2812, %v2900
        %v2902 = vpop.f32.mrf.mxu0
        %v2903 = vadd.f32 %v2814, %v2902
        %2904 = vmatmul.bf16.gmra.mxu0 %v2128
        %v2905 = vpop.f32.mrf.mxu0
        %v2906 = vadd.f32 %v2817, %v2905
        %v2907 = vpop.f32.mrf.mxu0
        %v2908 = vadd.f32 %v2819, %v2907
        %2909 = vmatmul.bf16.gmra.mxu0 %v2137
        %v2910 = vpop.f32.mrf.mxu0
        %v2911 = vadd.f32 %v2822, %v2910
        %v2912 = vpop.f32.mrf.mxu0
        %v2913 = vadd.f32 %v2824, %v2912
        %2914 = vmatmul.bf16.gmra.mxu0 %v2146
        %v2915 = vpop.f32.mrf.mxu0
        %v2916 = vadd.f32 %v2827, %v2915
        %v2917 = vpop.f32.mrf.mxu0
        %v2918 = vadd.f32 %v2829, %v2917
        %2919 = vmatmul.bf16.gmra.mxu0 %v2155
        %v2920 = vpop.f32.mrf.mxu0
        %v2921 = vadd.f32 %v2832, %v2920
        %v2922 = vpop.f32.mrf.mxu0
        %v2923 = vadd.f32 %v2834, %v2922
        %2924 = vmatmul.bf16.gmra.mxu0 %v2164
        %v2925 = vpop.f32.mrf.mxu0
        %v2926 = vadd.f32 %v2837, %v2925
        %v2927 = vpop.f32.mrf.mxu0
        %v2928 = vadd.f32 %v2839, %v2927
        %2929 = vmatmul.bf16.gmra.mxu0 %v2173
        %v2930 = vpop.f32.mrf.mxu0
        %v2931 = vadd.f32 %v2842, %v2930
        %v2932 = vpop.f32.mrf.mxu0
        %v2933 = vadd.f32 %v2844, %v2932
        %2934 = vdwg.mxu0
        %2935 = vmatpush.bf16.msra.mxu0 %v2636
        %2936 = vmatpush.bf16.msra.mxu0 %v2635
        %2937 = vmatpush.bf16.msra.mxu0 %v2634
        %2938 = vmatpush.bf16.msra.mxu0 %v2633
        %2939 = vmatpush.bf16.msra.mxu0 %v2632
        %2940 = vmatpush.bf16.msra.mxu0 %v2631
        %2941 = vmatpush.bf16.msra.mxu0 %v2630
        %2942 = vmatpush.bf16.msra.mxu0 %v2629
        %2943 = vmatmul.bf16.gmra.mxu0 %v2039
        %v2944 = vpop.f32.mrf.mxu0
        %v2945 = vadd.f32 %v2856, %v2944
        %v2946 = vpop.f32.mrf.mxu0
        %v2947 = vadd.f32 %v2858, %v2946
        %2948 = vmatmul.bf16.gmra.mxu0 %v2048
        %v2949 = vpop.f32.mrf.mxu0
        %v2950 = vadd.f32 %v2861, %v2949
        %v2951 = vpop.f32.mrf.mxu0
        %v2952 = vadd.f32 %v2863, %v2951
        %2953 = vmatmul.bf16.gmra.mxu0 %v2057
        %v2954 = vpop.f32.mrf.mxu0
        %v2955 = vadd.f32 %v2866, %v2954
        %v2956 = vpop.f32.mrf.mxu0
        %v2957 = vadd.f32 %v2868, %v2956
        %2958 = vmatmul.bf16.gmra.mxu0 %v2066
        %v2959 = vpop.f32.mrf.mxu0
        %v2960 = vadd.f32 %v2871, %v2959
        %v2961 = vpop.f32.mrf.mxu0
        %v2962 = vadd.f32 %v2873, %v2961
        %2963 = vmatmul.bf16.gmra.mxu0 %v2075
        %v2964 = vpop.f32.mrf.mxu0
        %v2965 = vadd.f32 %v2876, %v2964
        %v2966 = vpop.f32.mrf.mxu0
        %v2967 = vadd.f32 %v2878, %v2966
        %2968 = vmatmul.bf16.gmra.mxu0 %v2084
        %v2969 = vpop.f32.mrf.mxu0
        %v2970 = vadd.f32 %v2881, %v2969
        %v2971 = vpop.f32.mrf.mxu0
        %v2972 = vadd.f32 %v2883, %v2971
        %2973 = vmatmul.bf16.gmra.mxu0 %v2093
        %v2974 = vpop.f32.mrf.mxu0
        %v2975 = vadd.f32 %v2886, %v2974
        %v2976 = vpop.f32.mrf.mxu0
        %v2977 = vadd.f32 %v2888, %v2976
        %2978 = vmatmul.bf16.gmra.mxu0 %v2102
        %v2979 = vpop.f32.mrf.mxu0
        %v2980 = vadd.f32 %v2891, %v2979
        %v2981 = vpop.f32.mrf.mxu0
        %v2982 = vadd.f32 %v2893, %v2981
        %2983 = vmatmul.bf16.gmra.mxu0 %v2111
        %v2984 = vpop.f32.mrf.mxu0
        %v2985 = vadd.f32 %v2896, %v2984
        %v2986 = vpop.f32.mrf.mxu0
        %v2987 = vadd.f32 %v2898, %v2986
        %2988 = vmatmul.bf16.gmra.mxu0 %v2120
        %v2989 = vpop.f32.mrf.mxu0
        %v2990 = vadd.f32 %v2901, %v2989
        %v2991 = vpop.f32.mrf.mxu0
        %v2992 = vadd.f32 %v2903, %v2991
        %2993 = vmatmul.bf16.gmra.mxu0 %v2129
        %v2994 = vpop.f32.mrf.mxu0
        %v2995 = vadd.f32 %v2906, %v2994
        %v2996 = vpop.f32.mrf.mxu0
        %v2997 = vadd.f32 %v2908, %v2996
        %2998 = vmatmul.bf16.gmra.mxu0 %v2138
        %v2999 = vpop.f32.mrf.mxu0
        %v3000 = vadd.f32 %v2911, %v2999
        %v3001 = vpop.f32.mrf.mxu0
        %v3002 = vadd.f32 %v2913, %v3001
        %3003 = vmatmul.bf16.gmra.mxu0 %v2147
        %v3004 = vpop.f32.mrf.mxu0
        %v3005 = vadd.f32 %v2916, %v3004
        %v3006 = vpop.f32.mrf.mxu0
        %v3007 = vadd.f32 %v2918, %v3006
        %3008 = vmatmul.bf16.gmra.mxu0 %v2156
        %v3009 = vpop.f32.mrf.mxu0
        %v3010 = vadd.f32 %v2921, %v3009
        %v3011 = vpop.f32.mrf.mxu0
        %v3012 = vadd.f32 %v2923, %v3011
        %3013 = vmatmul.bf16.gmra.mxu0 %v2165
        %v3014 = vpop.f32.mrf.mxu0
        %v3015 = vadd.f32 %v2926, %v3014
        %v3016 = vpop.f32.mrf.mxu0
        %v3017 = vadd.f32 %v2928, %v3016
        %3018 = vmatmul.bf16.gmra.mxu0 %v2174
        %v3019 = vpop.f32.mrf.mxu0
        %v3020 = vadd.f32 %v2931, %v3019
        %v3021 = vpop.f32.mrf.mxu0
        %v3022 = vadd.f32 %v2933, %v3021
        %3023 = vdwg.mxu0
        %3024 = vmatpush.bf16.msra.mxu0 %v2644
        %3025 = vmatpush.bf16.msra.mxu0 %v2643
        %3026 = vmatpush.bf16.msra.mxu0 %v2642
        %3027 = vmatpush.bf16.msra.mxu0 %v2641
        %3028 = vmatpush.bf16.msra.mxu0 %v2640
        %3029 = vmatpush.bf16.msra.mxu0 %v2639
        %3030 = vmatpush.bf16.msra.mxu0 %v2638
        %3031 = vmatpush.bf16.msra.mxu0 %v2637
        %3032 = vmatmul.bf16.gmra.mxu0 %v2040
        %v3033 = vpop.f32.mrf.mxu0
        %v3034 = vadd.f32 %v2945, %v3033
        %v3035 = vpop.f32.mrf.mxu0
        %v3036 = vadd.f32 %v2947, %v3035
        %3037 = vmatmul.bf16.gmra.mxu0 %v2049
        %v3038 = vpop.f32.mrf.mxu0
        %v3039 = vadd.f32 %v2950, %v3038
        %v3040 = vpop.f32.mrf.mxu0
        %v3041 = vadd.f32 %v2952, %v3040
        %3042 = vmatmul.bf16.gmra.mxu0 %v2058
        %v3043 = vpop.f32.mrf.mxu0
        %v3044 = vadd.f32 %v2955, %v3043
        %v3045 = vpop.f32.mrf.mxu0
        %v3046 = vadd.f32 %v2957, %v3045
        %3047 = vmatmul.bf16.gmra.mxu0 %v2067
        %v3048 = vpop.f32.mrf.mxu0
        %v3049 = vadd.f32 %v2960, %v3048
        %v3050 = vpop.f32.mrf.mxu0
        %v3051 = vadd.f32 %v2962, %v3050
        %3052 = vmatmul.bf16.gmra.mxu0 %v2076
        %v3053 = vpop.f32.mrf.mxu0
        %v3054 = vadd.f32 %v2965, %v3053
        %v3055 = vpop.f32.mrf.mxu0
        %v3056 = vadd.f32 %v2967, %v3055
        %3057 = vmatmul.bf16.gmra.mxu0 %v2085
        %v3058 = vpop.f32.mrf.mxu0
        %v3059 = vadd.f32 %v2970, %v3058
        %v3060 = vpop.f32.mrf.mxu0
        %v3061 = vadd.f32 %v2972, %v3060
        %3062 = vmatmul.bf16.gmra.mxu0 %v2094
        %v3063 = vpop.f32.mrf.mxu0
        %v3064 = vadd.f32 %v2975, %v3063
        %v3065 = vpop.f32.mrf.mxu0
        %v3066 = vadd.f32 %v2977, %v3065
        %3067 = vmatmul.bf16.gmra.mxu0 %v2103
        %v3068 = vpop.f32.mrf.mxu0
        %v3069 = vadd.f32 %v2980, %v3068
        %v3070 = vpop.f32.mrf.mxu0
        %v3071 = vadd.f32 %v2982, %v3070
        %3072 = vmatmul.bf16.gmra.mxu0 %v2112
        %v3073 = vpop.f32.mrf.mxu0
        %v3074 = vadd.f32 %v2985, %v3073
        %v3075 = vpop.f32.mrf.mxu0
        %v3076 = vadd.f32 %v2987, %v3075
        %3077 = vmatmul.bf16.gmra.mxu0 %v2121
        %v3078 = vpop.f32.mrf.mxu0
        %v3079 = vadd.f32 %v2990, %v3078
        %v3080 = vpop.f32.mrf.mxu0
        %v3081 = vadd.f32 %v2992, %v3080
        %3082 = vmatmul.bf16.gmra.mxu0 %v2130
        %v3083 = vpop.f32.mrf.mxu0
        %v3084 = vadd.f32 %v2995, %v3083
        %v3085 = vpop.f32.mrf.mxu0
        %v3086 = vadd.f32 %v2997, %v3085
        %3087 = vmatmul.bf16.gmra.mxu0 %v2139
        %v3088 = vpop.f32.mrf.mxu0
        %v3089 = vadd.f32 %v3000, %v3088
        %v3090 = vpop.f32.mrf.mxu0
        %v3091 = vadd.f32 %v3002, %v3090
        %3092 = vmatmul.bf16.gmra.mxu0 %v2148
        %v3093 = vpop.f32.mrf.mxu0
        %v3094 = vadd.f32 %v3005, %v3093
        %v3095 = vpop.f32.mrf.mxu0
        %v3096 = vadd.f32 %v3007, %v3095
        %3097 = vmatmul.bf16.gmra.mxu0 %v2157
        %v3098 = vpop.f32.mrf.mxu0
        %v3099 = vadd.f32 %v3010, %v3098
        %v3100 = vpop.f32.mrf.mxu0
        %v3101 = vadd.f32 %v3012, %v3100
        %3102 = vmatmul.bf16.gmra.mxu0 %v2166
        %v3103 = vpop.f32.mrf.mxu0
        %v3104 = vadd.f32 %v3015, %v3103
        %v3105 = vpop.f32.mrf.mxu0
        %v3106 = vadd.f32 %v3017, %v3105
        %3107 = vmatmul.bf16.gmra.mxu0 %v2175
        %v3108 = vpop.f32.mrf.mxu0
        %v3109 = vadd.f32 %v3020, %v3108
        %v3110 = vpop.f32.mrf.mxu0
        %v3111 = vadd.f32 %v3022, %v3110
        %3112 = vdwg.mxu0
        %3113 = vmatpush.bf16.msra.mxu0 %v2652
        %3114 = vmatpush.bf16.msra.mxu0 %v2651
        %3115 = vmatpush.bf16.msra.mxu0 %v2650
        %3116 = vmatpush.bf16.msra.mxu0 %v2649
        %3117 = vmatpush.bf16.msra.mxu0 %v2648
        %3118 = vmatpush.bf16.msra.mxu0 %v2647
        %3119 = vmatpush.bf16.msra.mxu0 %v2646
        %3120 = vmatpush.bf16.msra.mxu0 %v2645
        %3121 = vmatmul.bf16.gmra.mxu0 %v2041
        %v3122 = vpop.f32.mrf.mxu0
        %v3123 = vadd.f32 %v3034, %v3122
        %v3124 = vpop.f32.mrf.mxu0
        %v3125 = vadd.f32 %v3036, %v3124
        %3126 = vmatmul.bf16.gmra.mxu0 %v2050
        %v3127 = vpop.f32.mrf.mxu0
        %v3128 = vadd.f32 %v3039, %v3127
        %v3129 = vpop.f32.mrf.mxu0
        %v3130 = vadd.f32 %v3041, %v3129
        %3131 = vmatmul.bf16.gmra.mxu0 %v2059
        %v3132 = vpop.f32.mrf.mxu0
        %v3133 = vadd.f32 %v3044, %v3132
        %v3134 = vpop.f32.mrf.mxu0
        %v3135 = vadd.f32 %v3046, %v3134
        %3136 = vmatmul.bf16.gmra.mxu0 %v2068
        %v3137 = vpop.f32.mrf.mxu0
        %v3138 = vadd.f32 %v3049, %v3137
        %v3139 = vpop.f32.mrf.mxu0
        %v3140 = vadd.f32 %v3051, %v3139
        %3141 = vmatmul.bf16.gmra.mxu0 %v2077
        %v3142 = vpop.f32.mrf.mxu0
        %v3143 = vadd.f32 %v3054, %v3142
        %v3144 = vpop.f32.mrf.mxu0
        %v3145 = vadd.f32 %v3056, %v3144
        %3146 = vmatmul.bf16.gmra.mxu0 %v2086
        %v3147 = vpop.f32.mrf.mxu0
        %v3148 = vadd.f32 %v3059, %v3147
        %v3149 = vpop.f32.mrf.mxu0
        %v3150 = vadd.f32 %v3061, %v3149
        %3151 = vmatmul.bf16.gmra.mxu0 %v2095
        %v3152 = vpop.f32.mrf.mxu0
        %v3153 = vadd.f32 %v3064, %v3152
        %v3154 = vpop.f32.mrf.mxu0
        %v3155 = vadd.f32 %v3066, %v3154
        %3156 = vmatmul.bf16.gmra.mxu0 %v2104
        %v3157 = vpop.f32.mrf.mxu0
        %v3158 = vadd.f32 %v3069, %v3157
        %v3159 = vpop.f32.mrf.mxu0
        %v3160 = vadd.f32 %v3071, %v3159
        %3161 = vmatmul.bf16.gmra.mxu0 %v2113
        %v3162 = vpop.f32.mrf.mxu0
        %v3163 = vadd.f32 %v3074, %v3162
        %v3164 = vpop.f32.mrf.mxu0
        %v3165 = vadd.f32 %v3076, %v3164
        %3166 = vmatmul.bf16.gmra.mxu0 %v2122
        %v3167 = vpop.f32.mrf.mxu0
        %v3168 = vadd.f32 %v3079, %v3167
        %v3169 = vpop.f32.mrf.mxu0
        %v3170 = vadd.f32 %v3081, %v3169
        %3171 = vmatmul.bf16.gmra.mxu0 %v2131
        %v3172 = vpop.f32.mrf.mxu0
        %v3173 = vadd.f32 %v3084, %v3172
        %v3174 = vpop.f32.mrf.mxu0
        %v3175 = vadd.f32 %v3086, %v3174
        %3176 = vmatmul.bf16.gmra.mxu0 %v2140
        %v3177 = vpop.f32.mrf.mxu0
        %v3178 = vadd.f32 %v3089, %v3177
        %v3179 = vpop.f32.mrf.mxu0
        %v3180 = vadd.f32 %v3091, %v3179
        %3181 = vmatmul.bf16.gmra.mxu0 %v2149
        %v3182 = vpop.f32.mrf.mxu0
        %v3183 = vadd.f32 %v3094, %v3182
        %v3184 = vpop.f32.mrf.mxu0
        %v3185 = vadd.f32 %v3096, %v3184
        %3186 = vmatmul.bf16.gmra.mxu0 %v2158
        %v3187 = vpop.f32.mrf.mxu0
        %v3188 = vadd.f32 %v3099, %v3187
        %v3189 = vpop.f32.mrf.mxu0
        %v3190 = vadd.f32 %v3101, %v3189
        %3191 = vmatmul.bf16.gmra.mxu0 %v2167
        %v3192 = vpop.f32.mrf.mxu0
        %v3193 = vadd.f32 %v3104, %v3192
        %v3194 = vpop.f32.mrf.mxu0
        %v3195 = vadd.f32 %v3106, %v3194
        %3196 = vmatmul.bf16.gmra.mxu0 %v2176
        %v3197 = vpop.f32.mrf.mxu0
        %v3198 = vadd.f32 %v3109, %v3197
        %v3199 = vpop.f32.mrf.mxu0
        %v3200 = vadd.f32 %v3111, %v3199
        %3201 = vdwg.mxu0
        %3202 = vmatpush.bf16.msra.mxu0 %v2660
        %3203 = vmatpush.bf16.msra.mxu0 %v2659
        %3204 = vmatpush.bf16.msra.mxu0 %v2658
        %3205 = vmatpush.bf16.msra.mxu0 %v2657
        %3206 = vmatpush.bf16.msra.mxu0 %v2656
        %3207 = vmatpush.bf16.msra.mxu0 %v2655
        %3208 = vmatpush.bf16.msra.mxu0 %v2654
        %3209 = vmatpush.bf16.msra.mxu0 %v2653
        %3210 = vmatmul.bf16.gmra.mxu0 %v2042
        %v3211 = vpop.f32.mrf.mxu0
        %v3212 = vadd.f32 %v3123, %v3211
        %v3213 = vpop.f32.mrf.mxu0
        %v3214 = vadd.f32 %v3125, %v3213
        %3215 = vmatmul.bf16.gmra.mxu0 %v2051
        %v3216 = vpop.f32.mrf.mxu0
        %v3217 = vadd.f32 %v3128, %v3216
        %v3218 = vpop.f32.mrf.mxu0
        %v3219 = vadd.f32 %v3130, %v3218
        %3220 = vmatmul.bf16.gmra.mxu0 %v2060
        %v3221 = vpop.f32.mrf.mxu0
        %v3222 = vadd.f32 %v3133, %v3221
        %v3223 = vpop.f32.mrf.mxu0
        %v3224 = vadd.f32 %v3135, %v3223
        %3225 = vmatmul.bf16.gmra.mxu0 %v2069
        %v3226 = vpop.f32.mrf.mxu0
        %v3227 = vadd.f32 %v3138, %v3226
        %v3228 = vpop.f32.mrf.mxu0
        %v3229 = vadd.f32 %v3140, %v3228
        %3230 = vmatmul.bf16.gmra.mxu0 %v2078
        %v3231 = vpop.f32.mrf.mxu0
        %v3232 = vadd.f32 %v3143, %v3231
        %v3233 = vpop.f32.mrf.mxu0
        %v3234 = vadd.f32 %v3145, %v3233
        %3235 = vmatmul.bf16.gmra.mxu0 %v2087
        %v3236 = vpop.f32.mrf.mxu0
        %v3237 = vadd.f32 %v3148, %v3236
        %v3238 = vpop.f32.mrf.mxu0
        %v3239 = vadd.f32 %v3150, %v3238
        %3240 = vmatmul.bf16.gmra.mxu0 %v2096
        %v3241 = vpop.f32.mrf.mxu0
        %v3242 = vadd.f32 %v3153, %v3241
        %v3243 = vpop.f32.mrf.mxu0
        %v3244 = vadd.f32 %v3155, %v3243
        %3245 = vmatmul.bf16.gmra.mxu0 %v2105
        %v3246 = vpop.f32.mrf.mxu0
        %v3247 = vadd.f32 %v3158, %v3246
        %v3248 = vpop.f32.mrf.mxu0
        %v3249 = vadd.f32 %v3160, %v3248
        %3250 = vmatmul.bf16.gmra.mxu0 %v2114
        %v3251 = vpop.f32.mrf.mxu0
        %v3252 = vadd.f32 %v3163, %v3251
        %v3253 = vpop.f32.mrf.mxu0
        %v3254 = vadd.f32 %v3165, %v3253
        %3255 = vmatmul.bf16.gmra.mxu0 %v2123
        %v3256 = vpop.f32.mrf.mxu0
        %v3257 = vadd.f32 %v3168, %v3256
        %v3258 = vpop.f32.mrf.mxu0
        %v3259 = vadd.f32 %v3170, %v3258
        %3260 = vmatmul.bf16.gmra.mxu0 %v2132
        %v3261 = vpop.f32.mrf.mxu0
        %v3262 = vadd.f32 %v3173, %v3261
        %v3263 = vpop.f32.mrf.mxu0
        %v3264 = vadd.f32 %v3175, %v3263
        %3265 = vmatmul.bf16.gmra.mxu0 %v2141
        %v3266 = vpop.f32.mrf.mxu0
        %v3267 = vadd.f32 %v3178, %v3266
        %v3268 = vpop.f32.mrf.mxu0
        %v3269 = vadd.f32 %v3180, %v3268
        %3270 = vmatmul.bf16.gmra.mxu0 %v2150
        %v3271 = vpop.f32.mrf.mxu0
        %v3272 = vadd.f32 %v3183, %v3271
        %v3273 = vpop.f32.mrf.mxu0
        %v3274 = vadd.f32 %v3185, %v3273
        %3275 = vmatmul.bf16.gmra.mxu0 %v2159
        %v3276 = vpop.f32.mrf.mxu0
        %v3277 = vadd.f32 %v3188, %v3276
        %v3278 = vpop.f32.mrf.mxu0
        %v3279 = vadd.f32 %v3190, %v3278
        %3280 = vmatmul.bf16.gmra.mxu0 %v2168
        %v3281 = vpop.f32.mrf.mxu0
        %v3282 = vadd.f32 %v3193, %v3281
        %v3283 = vpop.f32.mrf.mxu0
        %v3284 = vadd.f32 %v3195, %v3283
        %3285 = vmatmul.bf16.gmra.mxu0 %v2177
        %v3286 = vpop.f32.mrf.mxu0
        %v3287 = vadd.f32 %v3198, %v3286
        %v3288 = vpop.f32.mrf.mxu0
        %v3289 = vadd.f32 %v3200, %v3288
        %3290 = vdwg.mxu0
        %3291 = vmatpush.bf16.msra.mxu0 %v2668
        %3292 = vmatpush.bf16.msra.mxu0 %v2667
        %3293 = vmatpush.bf16.msra.mxu0 %v2666
        %3294 = vmatpush.bf16.msra.mxu0 %v2665
        %3295 = vmatpush.bf16.msra.mxu0 %v2664
        %3296 = vmatpush.bf16.msra.mxu0 %v2663
        %3297 = vmatpush.bf16.msra.mxu0 %v2662
        %3298 = vmatpush.bf16.msra.mxu0 %v2661
        %3299 = vmatmul.bf16.gmra.mxu0 %v2043
        %v3300 = vpop.f32.mrf.mxu0
        %v3301 = vadd.f32 %v3212, %v3300
        %v3302 = vpop.f32.mrf.mxu0
        %v3303 = vadd.f32 %v3214, %v3302
        %3304 = vmatmul.bf16.gmra.mxu0 %v2052
        %v3305 = vpop.f32.mrf.mxu0
        %v3306 = vadd.f32 %v3217, %v3305
        %v3307 = vpop.f32.mrf.mxu0
        %v3308 = vadd.f32 %v3219, %v3307
        %3309 = vmatmul.bf16.gmra.mxu0 %v2061
        %v3310 = vpop.f32.mrf.mxu0
        %v3311 = vadd.f32 %v3222, %v3310
        %v3312 = vpop.f32.mrf.mxu0
        %v3313 = vadd.f32 %v3224, %v3312
        %3314 = vmatmul.bf16.gmra.mxu0 %v2070
        %v3315 = vpop.f32.mrf.mxu0
        %v3316 = vadd.f32 %v3227, %v3315
        %v3317 = vpop.f32.mrf.mxu0
        %v3318 = vadd.f32 %v3229, %v3317
        %3319 = vmatmul.bf16.gmra.mxu0 %v2079
        %v3320 = vpop.f32.mrf.mxu0
        %v3321 = vadd.f32 %v3232, %v3320
        %v3322 = vpop.f32.mrf.mxu0
        %v3323 = vadd.f32 %v3234, %v3322
        %3324 = vmatmul.bf16.gmra.mxu0 %v2088
        %v3325 = vpop.f32.mrf.mxu0
        %v3326 = vadd.f32 %v3237, %v3325
        %v3327 = vpop.f32.mrf.mxu0
        %v3328 = vadd.f32 %v3239, %v3327
        %3329 = vmatmul.bf16.gmra.mxu0 %v2097
        %v3330 = vpop.f32.mrf.mxu0
        %v3331 = vadd.f32 %v3242, %v3330
        %v3332 = vpop.f32.mrf.mxu0
        %v3333 = vadd.f32 %v3244, %v3332
        %3334 = vmatmul.bf16.gmra.mxu0 %v2106
        %v3335 = vpop.f32.mrf.mxu0
        %v3336 = vadd.f32 %v3247, %v3335
        %v3337 = vpop.f32.mrf.mxu0
        %v3338 = vadd.f32 %v3249, %v3337
        %3339 = vmatmul.bf16.gmra.mxu0 %v2115
        %v3340 = vpop.f32.mrf.mxu0
        %v3341 = vadd.f32 %v3252, %v3340
        %v3342 = vpop.f32.mrf.mxu0
        %v3343 = vadd.f32 %v3254, %v3342
        %3344 = vmatmul.bf16.gmra.mxu0 %v2124
        %v3345 = vpop.f32.mrf.mxu0
        %v3346 = vadd.f32 %v3257, %v3345
        %v3347 = vpop.f32.mrf.mxu0
        %v3348 = vadd.f32 %v3259, %v3347
        %3349 = vmatmul.bf16.gmra.mxu0 %v2133
        %v3350 = vpop.f32.mrf.mxu0
        %v3351 = vadd.f32 %v3262, %v3350
        %v3352 = vpop.f32.mrf.mxu0
        %v3353 = vadd.f32 %v3264, %v3352
        %3354 = vmatmul.bf16.gmra.mxu0 %v2142
        %v3355 = vpop.f32.mrf.mxu0
        %v3356 = vadd.f32 %v3267, %v3355
        %v3357 = vpop.f32.mrf.mxu0
        %v3358 = vadd.f32 %v3269, %v3357
        %3359 = vmatmul.bf16.gmra.mxu0 %v2151
        %v3360 = vpop.f32.mrf.mxu0
        %v3361 = vadd.f32 %v3272, %v3360
        %v3362 = vpop.f32.mrf.mxu0
        %v3363 = vadd.f32 %v3274, %v3362
        %3364 = vmatmul.bf16.gmra.mxu0 %v2160
        %v3365 = vpop.f32.mrf.mxu0
        %v3366 = vadd.f32 %v3277, %v3365
        %v3367 = vpop.f32.mrf.mxu0
        %v3368 = vadd.f32 %v3279, %v3367
        %3369 = vmatmul.bf16.gmra.mxu0 %v2169
        %v3370 = vpop.f32.mrf.mxu0
        %v3371 = vadd.f32 %v3282, %v3370
        %v3372 = vpop.f32.mrf.mxu0
        %v3373 = vadd.f32 %v3284, %v3372
        %3374 = vmatmul.bf16.gmra.mxu0 %v2178
        %v3375 = vpop.f32.mrf.mxu0
        %v3376 = vadd.f32 %v3287, %v3375
        %v3377 = vpop.f32.mrf.mxu0
        %v3378 = vadd.f32 %v3289, %v3377
        %3379 = vdwg.mxu0
        %3380 = vmatpush.bf16.msra.mxu0 %v2676
        %3381 = vmatpush.bf16.msra.mxu0 %v2675
        %3382 = vmatpush.bf16.msra.mxu0 %v2674
        %3383 = vmatpush.bf16.msra.mxu0 %v2673
        %3384 = vmatpush.bf16.msra.mxu0 %v2672
        %3385 = vmatpush.bf16.msra.mxu0 %v2671
        %3386 = vmatpush.bf16.msra.mxu0 %v2670
        %3387 = vmatpush.bf16.msra.mxu0 %v2669
        %3388 = vmatmul.bf16.gmra.mxu0 %v2044
        %v3389 = vpop.f32.mrf.mxu0
        %v3390 = vadd.f32 %v3301, %v3389
        %v3391 = vpop.f32.mrf.mxu0
        %v3392 = vadd.f32 %v3303, %v3391
        %3393 = vmatmul.bf16.gmra.mxu0 %v2053
        %v3394 = vpop.f32.mrf.mxu0
        %v3395 = vadd.f32 %v3306, %v3394
        %v3396 = vpop.f32.mrf.mxu0
        %v3397 = vadd.f32 %v3308, %v3396
        %3398 = vmatmul.bf16.gmra.mxu0 %v2062
        %v3399 = vpop.f32.mrf.mxu0
        %v3400 = vadd.f32 %v3311, %v3399
        %v3401 = vpop.f32.mrf.mxu0
        %v3402 = vadd.f32 %v3313, %v3401
        %3403 = vmatmul.bf16.gmra.mxu0 %v2071
        %v3404 = vpop.f32.mrf.mxu0
        %v3405 = vadd.f32 %v3316, %v3404
        %v3406 = vpop.f32.mrf.mxu0
        %v3407 = vadd.f32 %v3318, %v3406
        %3408 = vmatmul.bf16.gmra.mxu0 %v2080
        %v3409 = vpop.f32.mrf.mxu0
        %v3410 = vadd.f32 %v3321, %v3409
        %v3411 = vpop.f32.mrf.mxu0
        %v3412 = vadd.f32 %v3323, %v3411
        %3413 = vmatmul.bf16.gmra.mxu0 %v2089
        %v3414 = vpop.f32.mrf.mxu0
        %v3415 = vadd.f32 %v3326, %v3414
        %v3416 = vpop.f32.mrf.mxu0
        %v3417 = vadd.f32 %v3328, %v3416
        %3418 = vmatmul.bf16.gmra.mxu0 %v2098
        %v3419 = vpop.f32.mrf.mxu0
        %v3420 = vadd.f32 %v3331, %v3419
        %v3421 = vpop.f32.mrf.mxu0
        %v3422 = vadd.f32 %v3333, %v3421
        %3423 = vmatmul.bf16.gmra.mxu0 %v2107
        %v3424 = vpop.f32.mrf.mxu0
        %v3425 = vadd.f32 %v3336, %v3424
        %v3426 = vpop.f32.mrf.mxu0
        %v3427 = vadd.f32 %v3338, %v3426
        %3428 = vmatmul.bf16.gmra.mxu0 %v2116
        %v3429 = vpop.f32.mrf.mxu0
        %v3430 = vadd.f32 %v3341, %v3429
        %v3431 = vpop.f32.mrf.mxu0
        %v3432 = vadd.f32 %v3343, %v3431
        %3433 = vmatmul.bf16.gmra.mxu0 %v2125
        %v3434 = vpop.f32.mrf.mxu0
        %v3435 = vadd.f32 %v3346, %v3434
        %v3436 = vpop.f32.mrf.mxu0
        %v3437 = vadd.f32 %v3348, %v3436
        %3438 = vmatmul.bf16.gmra.mxu0 %v2134
        %v3439 = vpop.f32.mrf.mxu0
        %v3440 = vadd.f32 %v3351, %v3439
        %v3441 = vpop.f32.mrf.mxu0
        %v3442 = vadd.f32 %v3353, %v3441
        %3443 = vmatmul.bf16.gmra.mxu0 %v2143
        %v3444 = vpop.f32.mrf.mxu0
        %v3445 = vadd.f32 %v3356, %v3444
        %v3446 = vpop.f32.mrf.mxu0
        %v3447 = vadd.f32 %v3358, %v3446
        %3448 = vmatmul.bf16.gmra.mxu0 %v2152
        %v3449 = vpop.f32.mrf.mxu0
        %v3450 = vadd.f32 %v3361, %v3449
        %v3451 = vpop.f32.mrf.mxu0
        %v3452 = vadd.f32 %v3363, %v3451
        %3453 = vmatmul.bf16.gmra.mxu0 %v2161
        %v3454 = vpop.f32.mrf.mxu0
        %v3455 = vadd.f32 %v3366, %v3454
        %v3456 = vpop.f32.mrf.mxu0
        %v3457 = vadd.f32 %v3368, %v3456
        %3458 = vmatmul.bf16.gmra.mxu0 %v2170
        %v3459 = vpop.f32.mrf.mxu0
        %v3460 = vadd.f32 %v3371, %v3459
        %v3461 = vpop.f32.mrf.mxu0
        %v3462 = vadd.f32 %v3373, %v3461
        %3463 = vmatmul.bf16.gmra.mxu0 %v2179
        %v3464 = vpop.f32.mrf.mxu0
        %v3465 = vadd.f32 %v3376, %v3464
        %v3466 = vpop.f32.mrf.mxu0
        %v3467 = vadd.f32 %v3378, %v3466
        %3468 = vdwg.mxu0
        %3469 = vmatpush.bf16.msra.mxu0 %v2684
        %3470 = vmatpush.bf16.msra.mxu0 %v2683
        %3471 = vmatpush.bf16.msra.mxu0 %v2682
        %3472 = vmatpush.bf16.msra.mxu0 %v2681
        %3473 = vmatpush.bf16.msra.mxu0 %v2680
        %3474 = vmatpush.bf16.msra.mxu0 %v2679
        %3475 = vmatpush.bf16.msra.mxu0 %v2678
        %3476 = vmatpush.bf16.msra.mxu0 %v2677
        %3477 = vmatmul.bf16.gmra.mxu0 %v2045
        %v3478 = vpop.f32.mrf.mxu0
        %v3479 = vadd.f32 %v3390, %v3478
        %v3480 = vpop.f32.mrf.mxu0
        %v3481 = vadd.f32 %v3392, %v3480
        %3482 = vmatmul.bf16.gmra.mxu0 %v2054
        %v3483 = vpop.f32.mrf.mxu0
        %v3484 = vadd.f32 %v3395, %v3483
        %v3485 = vpop.f32.mrf.mxu0
        %v3486 = vadd.f32 %v3397, %v3485
        %3487 = vmatmul.bf16.gmra.mxu0 %v2063
        %v3488 = vpop.f32.mrf.mxu0
        %v3489 = vadd.f32 %v3400, %v3488
        %v3490 = vpop.f32.mrf.mxu0
        %v3491 = vadd.f32 %v3402, %v3490
        %3492 = vmatmul.bf16.gmra.mxu0 %v2072
        %v3493 = vpop.f32.mrf.mxu0
        %v3494 = vadd.f32 %v3405, %v3493
        %v3495 = vpop.f32.mrf.mxu0
        %v3496 = vadd.f32 %v3407, %v3495
        %3497 = vmatmul.bf16.gmra.mxu0 %v2081
        %v3498 = vpop.f32.mrf.mxu0
        %v3499 = vadd.f32 %v3410, %v3498
        %v3500 = vpop.f32.mrf.mxu0
        %v3501 = vadd.f32 %v3412, %v3500
        %3502 = vmatmul.bf16.gmra.mxu0 %v2090
        %v3503 = vpop.f32.mrf.mxu0
        %v3504 = vadd.f32 %v3415, %v3503
        %v3505 = vpop.f32.mrf.mxu0
        %v3506 = vadd.f32 %v3417, %v3505
        %3507 = vmatmul.bf16.gmra.mxu0 %v2099
        %v3508 = vpop.f32.mrf.mxu0
        %v3509 = vadd.f32 %v3420, %v3508
        %v3510 = vpop.f32.mrf.mxu0
        %v3511 = vadd.f32 %v3422, %v3510
        %3512 = vmatmul.bf16.gmra.mxu0 %v2108
        %v3513 = vpop.f32.mrf.mxu0
        %v3514 = vadd.f32 %v3425, %v3513
        %v3515 = vpop.f32.mrf.mxu0
        %v3516 = vadd.f32 %v3427, %v3515
        %3517 = vmatmul.bf16.gmra.mxu0 %v2117
        %v3518 = vpop.f32.mrf.mxu0
        %v3519 = vadd.f32 %v3430, %v3518
        %v3520 = vpop.f32.mrf.mxu0
        %v3521 = vadd.f32 %v3432, %v3520
        %3522 = vmatmul.bf16.gmra.mxu0 %v2126
        %v3523 = vpop.f32.mrf.mxu0
        %v3524 = vadd.f32 %v3435, %v3523
        %v3525 = vpop.f32.mrf.mxu0
        %v3526 = vadd.f32 %v3437, %v3525
        %3527 = vmatmul.bf16.gmra.mxu0 %v2135
        %v3528 = vpop.f32.mrf.mxu0
        %v3529 = vadd.f32 %v3440, %v3528
        %v3530 = vpop.f32.mrf.mxu0
        %v3531 = vadd.f32 %v3442, %v3530
        %3532 = vmatmul.bf16.gmra.mxu0 %v2144
        %v3533 = vpop.f32.mrf.mxu0
        %v3534 = vadd.f32 %v3445, %v3533
        %v3535 = vpop.f32.mrf.mxu0
        %v3536 = vadd.f32 %v3447, %v3535
        %3537 = vmatmul.bf16.gmra.mxu0 %v2153
        %v3538 = vpop.f32.mrf.mxu0
        %v3539 = vadd.f32 %v3450, %v3538
        %v3540 = vpop.f32.mrf.mxu0
        %v3541 = vadd.f32 %v3452, %v3540
        %3542 = vmatmul.bf16.gmra.mxu0 %v2162
        %v3543 = vpop.f32.mrf.mxu0
        %v3544 = vadd.f32 %v3455, %v3543
        %v3545 = vpop.f32.mrf.mxu0
        %v3546 = vadd.f32 %v3457, %v3545
        %3547 = vmatmul.bf16.gmra.mxu0 %v2171
        %v3548 = vpop.f32.mrf.mxu0
        %v3549 = vadd.f32 %v3460, %v3548
        %v3550 = vpop.f32.mrf.mxu0
        %v3551 = vadd.f32 %v3462, %v3550
        %3552 = vmatmul.bf16.gmra.mxu0 %v2180
        %v3553 = vpop.f32.mrf.mxu0
        %v3554 = vadd.f32 %v3465, %v3553
        %v3555 = vpop.f32.mrf.mxu0
        %v3556 = vadd.f32 %v3467, %v3555
        %3557 = vdwg.mxu0
        %3558 = vst [vmem:[%s248] sm:$0xff] %v3479
        %3559 = vst [vmem:[%s248 + $0x8] sm:$0xff] %v3481
        %3560 = vst [vmem:[%s248 + $0x10] sm:$0xff] %v3484
        %3561 = vst [vmem:[%s248 + $0x18] sm:$0xff] %v3486
        %3562 = vst [vmem:[%s248 + $0x20] sm:$0xff] %v3489
        %3563 = vst [vmem:[%s248 + $0x28] sm:$0xff] %v3491
        %3564 = vst [vmem:[%s248 + $0x30] sm:$0xff] %v3494
        %3565 = vst [vmem:[%s248 + $0x38] sm:$0xff] %v3496
        %3566 = vst [vmem:[%s248 + $0x40] sm:$0xff] %v3499
        %3567 = vst [vmem:[%s248 + $0x48] sm:$0xff] %v3501
        %3568 = vst [vmem:[%s248 + $0x50] sm:$0xff] %v3504
        %3569 = vst [vmem:[%s248 + $0x58] sm:$0xff] %v3506
        %3570 = vst [vmem:[%s248 + $0x60] sm:$0xff] %v3509
        %3571 = vst [vmem:[%s248 + $0x68] sm:$0xff] %v3511
        %3572 = vst [vmem:[%s248 + $0x70] sm:$0xff] %v3514
        %3573 = vst [vmem:[%s248 + $0x78] sm:$0xff] %v3516
        %3574 = vst [vmem:[%s248 + $0x80] sm:$0xff] %v3519
        %3575 = vst [vmem:[%s248 + $0x88] sm:$0xff] %v3521
        %3576 = vst [vmem:[%s248 + $0x90] sm:$0xff] %v3524
        %3577 = vst [vmem:[%s248 + $0x98] sm:$0xff] %v3526
        %3578 = vst [vmem:[%s248 + $0xa0] sm:$0xff] %v3529
        %3579 = vst [vmem:[%s248 + $0xa8] sm:$0xff] %v3531
        %3580 = vst [vmem:[%s248 + $0xb0] sm:$0xff] %v3534
        %3581 = vst [vmem:[%s248 + $0xb8] sm:$0xff] %v3536
        %3582 = vst [vmem:[%s248 + $0xc0] sm:$0xff] %v3539
        %3583 = vst [vmem:[%s248 + $0xc8] sm:$0xff] %v3541
        %3584 = vst [vmem:[%s248 + $0xd0] sm:$0xff] %v3544
        %3585 = vst [vmem:[%s248 + $0xd8] sm:$0xff] %v3546
        %3586 = vst [vmem:[%s248 + $0xe0] sm:$0xff] %v3549
        %3587 = vst [vmem:[%s248 + $0xe8] sm:$0xff] %v3551
        %3588 = vst [vmem:[%s248 + $0xf0] sm:$0xff] %v3554
        %3589 = vst [vmem:[%s248 + $0xf8] sm:$0xff] %v3556
        %v3590 = vadd.f32 %v3479, %v3481
        %v3591 = vadd.f32 %v3590, %v3484
        %v3592 = vadd.f32 %v3591, %v3486
        %v3593 = vadd.f32 %v3592, %v3489
        %v3594 = vadd.f32 %v3593, %v3491
        %v3595 = vadd.f32 %v3594, %v3494
        %v3596 = vadd.f32 %v3595, %v3496
        %v3597 = vadd.f32 %v3596, %v3499
        %v3598 = vadd.f32 %v3597, %v3501
        %v3599 = vadd.f32 %v3598, %v3504
        %v3600 = vadd.f32 %v3599, %v3506
        %v3601 = vadd.f32 %v3600, %v3509
        %v3602 = vadd.f32 %v3601, %v3511
        %v3603 = vadd.f32 %v3602, %v3514
        %v3604 = vadd.f32 %v3603, %v3516
        %v3605 = vadd.f32 %v3604, %v3519
        %v3606 = vadd.f32 %v3605, %v3521
        %v3607 = vadd.f32 %v3606, %v3524
        %v3608 = vadd.f32 %v3607, %v3526
        %v3609 = vadd.f32 %v3608, %v3529
        %v3610 = vadd.f32 %v3609, %v3531
        %v3611 = vadd.f32 %v3610, %v3534
        %v3612 = vadd.f32 %v3611, %v3536
        %v3613 = vadd.f32 %v3612, %v3539
        %v3614 = vadd.f32 %v3613, %v3541
        %v3615 = vadd.f32 %v3614, %v3544
        %v3616 = vadd.f32 %v3615, %v3546
        %v3617 = vadd.f32 %v3616, %v3549
        %v3618 = vadd.f32 %v3617, %v3551
        %v3619 = vadd.f32 %v3618, %v3554
        %v3620 = vadd.f32 %v3619, %v3556
        %v3621 = vrot.slane %v3620, 4
        %v3622 = vadd.f32 %v3620, %v3621
        %v3623 = vrot.slane %v3622, 2
        %v3624 = vadd.f32 %v3622, %v3623
        %v3625 = vrot.slane %v3624, 1
        %v3626 = vadd.f32 %v3624, %v3625
        %3627 = vst [vmem:[%s252] sm:$0x1] %v3626
        %v3628 = vmul.f32 %v3479, %v3479
        %v3629 = vmul.f32 %v3481, %v3481
        %v3630 = vmul.f32 %v3484, %v3484
        %v3631 = vmul.f32 %v3486, %v3486
        %v3632 = vmul.f32 %v3489, %v3489
        %v3633 = vmul.f32 %v3491, %v3491
        %v3634 = vmul.f32 %v3494, %v3494
        %v3635 = vmul.f32 %v3496, %v3496
        %v3636 = vmul.f32 %v3499, %v3499
        %v3637 = vmul.f32 %v3501, %v3501
        %v3638 = vmul.f32 %v3504, %v3504
        %v3639 = vmul.f32 %v3506, %v3506
        %v3640 = vmul.f32 %v3509, %v3509
        %v3641 = vmul.f32 %v3511, %v3511
        %v3642 = vmul.f32 %v3514, %v3514
        %v3643 = vmul.f32 %v3516, %v3516
        %v3644 = vmul.f32 %v3519, %v3519
        %v3645 = vmul.f32 %v3521, %v3521
        %v3646 = vmul.f32 %v3524, %v3524
        %v3647 = vmul.f32 %v3526, %v3526
        %v3648 = vmul.f32 %v3529, %v3529
        %v3649 = vmul.f32 %v3531, %v3531
        %v3650 = vmul.f32 %v3534, %v3534
        %v3651 = vmul.f32 %v3536, %v3536
        %v3652 = vmul.f32 %v3539, %v3539
        %v3653 = vmul.f32 %v3541, %v3541
        %v3654 = vmul.f32 %v3544, %v3544
        %v3655 = vmul.f32 %v3546, %v3546
        %v3656 = vmul.f32 %v3549, %v3549
        %v3657 = vmul.f32 %v3551, %v3551
        %v3658 = vmul.f32 %v3554, %v3554
        %v3659 = vmul.f32 %v3556, %v3556
        %v3660 = vadd.f32 %v3628, %v3629
        %v3661 = vadd.f32 %v3660, %v3630
        %v3662 = vadd.f32 %v3661, %v3631
        %v3663 = vadd.f32 %v3662, %v3632
        %v3664 = vadd.f32 %v3663, %v3633
        %v3665 = vadd.f32 %v3664, %v3634
        %v3666 = vadd.f32 %v3665, %v3635
        %v3667 = vadd.f32 %v3666, %v3636
        %v3668 = vadd.f32 %v3667, %v3637
        %v3669 = vadd.f32 %v3668, %v3638
        %v3670 = vadd.f32 %v3669, %v3639
        %v3671 = vadd.f32 %v3670, %v3640
        %v3672 = vadd.f32 %v3671, %v3641
        %v3673 = vadd.f32 %v3672, %v3642
        %v3674 = vadd.f32 %v3673, %v3643
        %v3675 = vadd.f32 %v3674, %v3644
        %v3676 = vadd.f32 %v3675, %v3645
        %v3677 = vadd.f32 %v3676, %v3646
        %v3678 = vadd.f32 %v3677, %v3647
        %v3679 = vadd.f32 %v3678, %v3648
        %v3680 = vadd.f32 %v3679, %v3649
        %v3681 = vadd.f32 %v3680, %v3650
        %v3682 = vadd.f32 %v3681, %v3651
        %v3683 = vadd.f32 %v3682, %v3652
        %v3684 = vadd.f32 %v3683, %v3653
        %v3685 = vadd.f32 %v3684, %v3654
        %v3686 = vadd.f32 %v3685, %v3655
        %v3687 = vadd.f32 %v3686, %v3656
        %v3688 = vadd.f32 %v3687, %v3657
        %v3689 = vadd.f32 %v3688, %v3658
        %v3690 = vadd.f32 %v3689, %v3659
        %v3691 = vrot.slane %v3690, 4
        %v3692 = vadd.f32 %v3690, %v3691
        %v3693 = vrot.slane %v3692, 2
        %v3694 = vadd.f32 %v3692, %v3693
        %v3695 = vrot.slane %v3694, 1
        %v3696 = vadd.f32 %v3694, %v3695
        %3697 = vst [vmem:[%s252 + $0x1] sm:$0x1] %v3696
        %p3698 = scmp.lt.s32.totalorder %s18, 1
        %s3699 = scalar_select %p3698, %s18, 1
        %s3700 = smul.addr %s3699, 32
        %s3701 = smul.addr %s3700, 8
        %s3702 = scalar_lea.vmem %s4, %s3701
        %p3703 = scmp.lt.s32.totalorder %s18, 1
        %s3704 = scalar_select %p3703, %s18, 1
        %s3705 = smul.addr %s3704, 2
        %s3706 = scalar_lea.vmem %s5, %s3705
        // Predicated region
        $region41: #{se_bottleneck_pallas.5} parent=35 // pred_check
          %p3707 = pneg %p125
        $region42: #{se_bottleneck_pallas.5} parent=35 // pred_check_branch
          %3709 = sbr.rel (%p3707) target = $region44
        $region43: #{se_bottleneck_pallas.5} parent=35 // pred_region
          _
        $region44: #{se_bottleneck_pallas.5} parent=35 // pred_fallthru
          _
        // Predicated region
        $region45: #{se_bottleneck_pallas.5} parent=35 // pred_check
          %p3710 = pneg %p151
        $region46: #{se_bottleneck_pallas.5} parent=35 // pred_check_branch
          %3712 = sbr.rel (%p3710) target = $region48
        $region47: #{se_bottleneck_pallas.5} parent=35 // pred_region
          _
        $region48: #{se_bottleneck_pallas.5} parent=35 // pred_fallthru
          _
      $region36: #{se_bottleneck_pallas.5} parent=5 // pred_fallthru
        _
      %p3713 = scmp.le.s32.totalorder 2, %s13
      // Predicated region
      $region49: #{se_bottleneck_pallas.5} parent=5 // pred_check
        %p3714 = pneg %p3713
      $region50: #{se_bottleneck_pallas.5} parent=5 // pred_check_branch
        %3716 = sbr.rel (%p3714) target = $region52
      $region51: #{se_bottleneck_pallas.5} parent=5 // pred_region
        %s3717 = ssub.s32 %s13, 2
        // Predicated region
        $region53: #{se_bottleneck_pallas.5} parent=51 // pred_check
          %p3718 = pneg %p131
        $region54: #{se_bottleneck_pallas.5} parent=51 // pred_check_branch
          %3720 = sbr.rel (%p3718) target = $region56
        $region55: #{se_bottleneck_pallas.5} parent=51 // pred_region
          %p3721 = scmp.lt.s32.totalorder %s19, 1
          %s3722 = scalar_select %p3721, %s19, 1
          %s3723 = smul.addr %s3722, 32
          %s3724 = smul.addr %s3723, 8
          %s3725 = scalar_lea.vmem %s4, %s3724
        $region56: #{se_bottleneck_pallas.5} parent=51 // pred_fallthru
          _
        // Predicated region
        $region57: #{se_bottleneck_pallas.5} parent=51 // pred_check
          %p3726 = pneg %p157
        $region58: #{se_bottleneck_pallas.5} parent=51 // pred_check_branch
          %3728 = sbr.rel (%p3726) target = $region60
        $region59: #{se_bottleneck_pallas.5} parent=51 // pred_region
          %p3729 = scmp.lt.s32.totalorder %s19, 1
          %s3730 = scalar_select %p3729, %s19, 1
          %s3731 = smul.addr %s3730, 2
          %s3732 = scalar_lea.vmem %s5, %s3731
        $region60: #{se_bottleneck_pallas.5} parent=51 // pred_fallthru
          _
      $region52: #{se_bottleneck_pallas.5} parent=5 // pred_fallthru
        _
    $region6: #{se_bottleneck_pallas.5} parent=1 // loop_footer
      %s17 = sadd.s32 1, %s13
    $region7: #{se_bottleneck_pallas.5} parent=1 // loop_footer_branch
      %12 = sbr.rel target = $region3
    $region8: #{se_bottleneck_pallas.5} parent=1 // loop_exit
      _
    %3733 = vsyncpa [#allocation4], 1
    %s3734 = scalar_lea.sflag [#allocation4], 1
    %3735 = vsyncpa %s3734, 1

</llo_original>
